<compile_context>
chip_gen: v5e
topology: v5e:2x2
jax: 0.10.0
libtpu: 0.0.40
codegen_flags: <defaults>
</compile_context>

<pallas_src>
import functools
import math

import jax
import jax.numpy as jnp
from jax import lax
from jax.experimental import pallas as pl
from jax.experimental.pallas import tpu as pltpu


# ------------------------- fused attention kernel --------------------------
def _attention_kernel(x_ref, wqkv_ref, bqkv_ref, wproj_ref, bproj_ref, o_ref,
                      staged_ref, *, num_heads, head_dim, scale):
    # x_ref     : (1, N, C)  bf16
    # wqkv_ref  : (C, 3C)    bf16
    # bqkv_ref  : (1, 3C)    f32
    # wproj_ref : (C, C)     bf16
    # bproj_ref : (1, C)     f32
    # o_ref     : (1, N, C)  f32
    # staged_ref: (N, C)     bf16 VMEM scratch (per-head attention outputs)
    N, C = x_ref.shape[1], x_ref.shape[2]
    x = x_ref[0]                                                   # (N, C) bf16

    # Fused qkv projection: one MXU matmul with f32 accumulation, bias in f32.
    qkv_f32 = jnp.dot(x, wqkv_ref[...],
                      preferred_element_type=jnp.float32) + bqkv_ref[...]  # (N,3C)

    # Fold softmax scale into q (N*C f32 muls instead of N*N per head), then
    # ONE bf16 cast of the whole activation. Slices below land on 128-lane
    # boundaries, so per-head views are layout-free.
    q_all = (qkv_f32[:, :C] * scale).astype(jnp.bfloat16)          # (N, C)
    k_all = qkv_f32[:, C:2 * C].astype(jnp.bfloat16)               # (N, C)
    v_all = qkv_f32[:, 2 * C:].astype(jnp.bfloat16)                # (N, C)

    # Static per-head loop (small H fully unrolled; see TODO for large H).
    for h in range(num_heads):
        lo = h * head_dim
        qh = q_all[:, lo:lo + head_dim]                            # (N, D) bf16
        kh = k_all[:, lo:lo + head_dim]                            # (N, D) bf16
        vh = v_all[:, lo:lo + head_dim]                            # (N, D) bf16

        # scores: contract head_dim of q with head_dim of k (q already scaled)
        s = lax.dot_general(qh, kh, (((1,), (1,)), ((), ())),
                            preferred_element_type=jnp.float32)    # (N, N) f32
        # softmax over keys in f32; divide moved onto the EUP reciprocal slot.
        s = s - jnp.max(s, axis=-1, keepdims=True)
        p = jnp.exp(s)
        inv = pl.reciprocal(jnp.sum(p, axis=-1, keepdims=True), approx=True)
        p = (p * inv).astype(jnp.bfloat16)                          # (N, N) bf16

        oh = jnp.dot(p, vh, preferred_element_type=jnp.float32)     # (N, D) f32
        # 128-lane-aligned column write into the staging buffer (free layout).
        staged_ref[:, lo:lo + head_dim] = oh.astype(jnp.bfloat16)

    # Single output projection with full contraction depth K=C, bias folded in.
    out = jnp.dot(staged_ref[...], wproj_ref[...],
                  preferred_element_type=jnp.float32) + bproj_ref[...]      # (N, C)
    o_ref[0] = out.astype(o_ref.dtype)


def _vmem_limit_bytes(N, C):
    """Footprint estimate + headroom, clamped to a v7x-safe budget."""
    bf16, f32 = 2, 4
    weights = C * 3 * C * bf16 + 3 * C * f32 + C * C * bf16 + C * f32
    io = 2 * N * C * bf16 + 2 * N * C * f32          # double-buffered x / out
    live = (N * 3 * C * (f32 + bf16)                 # qkv f32 + bf16 views
            + 2 * N * N * f32                        # score + exp temporaries
            + N * C * (f32 + bf16))                  # proj acc + staging
    est = weights + io + live + (8 << 20)            # compiler scratch headroom
    # v7x has only 64 MiB of physical VMEM per TensorCore: never request it all.
    return int(min(max(est, 32 << 20), 48 << 20))


def attention_pallas(x, params, num_heads):
    """x: (B, N, C) float32. Returns (B, N, C) float32."""
    B, N, C = x.shape
    assert C % num_heads == 0
    D = C // num_heads
    # Lane/sublane alignment guards (demo shapes satisfy these).
    assert N % 8 == 0, "N must be a multiple of 8 (sublane)"
    assert C % 128 == 0, "C must be a multiple of 128 (lane)"
    assert D % 128 == 0, "head_dim must be a multiple of 128 (see TODO for D=64)"
    scale = D ** (-0.5)

    xb = x.astype(jnp.bfloat16)
    wqkv = params["w_qkv"].astype(jnp.bfloat16)                    # (C, 3C)
    bqkv = params["b_qkv"].astype(jnp.float32).reshape(1, 3 * C)
    wproj = params["w_proj"].astype(jnp.bfloat16)                  # (C, C)
    bproj = params["b_proj"].astype(jnp.float32).reshape(1, C)

    kernel = functools.partial(_attention_kernel, num_heads=num_heads,
                               head_dim=D, scale=scale)

    # Weights / biases are never re-fetched across the batch grid: single-buffer.
    const_kw = dict(pipeline_mode=pl.Buffered(1))

    return pl.pallas_call(
        kernel,
        out_shape=jax.ShapeDtypeStruct((B, N, C), jnp.float32),
        grid=(B,),
        in_specs=[
            pl.BlockSpec((1, N, C), lambda b: (b, 0, 0)),
            pl.BlockSpec((C, 3 * C), lambda b: (0, 0), **const_kw),
            pl.BlockSpec((1, 3 * C), lambda b: (0, 0), **const_kw),
            pl.BlockSpec((C, C), lambda b: (0, 0), **const_kw),
            pl.BlockSpec((1, C), lambda b: (0, 0), **const_kw),
        ],
        out_specs=pl.BlockSpec((1, N, C), lambda b: (b, 0, 0)),
        scratch_shapes=[pltpu.VMEM((N, C), jnp.bfloat16)],
        compiler_params=pltpu.CompilerParams(
            dimension_semantics=("parallel",),
            vmem_limit_bytes=_vmem_limit_bytes(N, C),
        ),
    )(xb, wqkv, bqkv, wproj, bproj)


# --------------------------- pure-JAX reference -----------------------------
def ref_attention(x, params, num_heads):
    """Mirrors the kernel's precision choices (bf16 matmul inputs, f32 acc)."""
    B, N, C = x.shape
    D = C // num_heads
    scale = D ** (-0.5)
    xb = x.astype(jnp.bfloat16)
    qkv = jnp.einsum("bnc,cd->bnd", xb, params["w_qkv"].astype(jnp.bfloat16),
                     preferred_element_type=jnp.float32)
    qkv = qkv + params["b_qkv"][None, None, :]
    q, k, v = jnp.split(qkv, 3, axis=-1)

    def heads(t):
        return t.reshape(B, N, num_heads, D).transpose(0, 2, 1, 3)

    q, k, v = heads(q), heads(k), heads(v)
    s = jnp.einsum("bhnd,bhmd->bhnm",
                   q.astype(jnp.bfloat16), k.astype(jnp.bfloat16),
                   preferred_element_type=jnp.float32) * scale
    p = jax.nn.softmax(s, axis=-1)
    o = jnp.einsum("bhnm,bhmd->bhnd",
                   p.astype(jnp.bfloat16), v.astype(jnp.bfloat16),
                   preferred_element_type=jnp.float32)
    o = o.transpose(0, 2, 1, 3).reshape(B, N, C)
    out = jnp.einsum("bnc,cd->bnd", o.astype(jnp.bfloat16),
                     params["w_proj"].astype(jnp.bfloat16),
                     preferred_element_type=jnp.float32)
    return out + params["b_proj"][None, None, :]


# ----------------------------- parameter init -------------------------------
def init_params(key, C, qkv_bias=True):
    k1, k2, k3, k4 = jax.random.split(key, 4)
    bound = 1.0 / math.sqrt(C)   # nn.Linear default init range
    w_qkv = jax.random.uniform(k1, (C, 3 * C), jnp.float32, -bound, bound)
    b_qkv = (jax.random.uniform(k2, (3 * C,), jnp.float32, -bound, bound)
             if qkv_bias else jnp.zeros((3 * C,), jnp.float32))
    w_proj = jax.random.uniform(k3, (C, C), jnp.float32, -bound, bound)
    b_proj = jax.random.uniform(k4, (C,), jnp.float32, -bound, bound)
    return {"w_qkv": w_qkv, "b_qkv": b_qkv, "w_proj": w_proj, "b_proj": b_proj}


if __name__ == "__main__":
    # Small, TPU-tile-aligned shapes: B=2, N=128 tokens, C=512, 4 heads (D=128).
    B, N, C, H = 2, 128, 512, 4

    key = jax.random.PRNGKey(0)
    kx, kp = jax.random.split(key)
    x = jax.random.normal(kx, (B, N, C), jnp.float32)
    params = init_params(kp, C, qkv_bias=True)

    out = attention_pallas(x, params, H)
    out = jax.block_until_ready(out)

    ref = jax.block_until_ready(ref_attention(x, params, H))
    assert out.shape == (B, N, C)
    max_err = float(jnp.max(jnp.abs(out - ref)))
    assert jnp.allclose(out, ref, atol=2e-2, rtol=2e-2), f"mismatch vs reference: {max_err}"
    print("KERNEL_OK")
</pallas_src>

<mosaic_0001>
module attributes {stable_mosaic.version = 11 : i64} {
  func.func @_attention_kernel(%arg0: i32, %arg1: memref<1x128x512xbf16, #tpu.memory_space<vmem>>, %arg2: memref<512x1536xbf16, #tpu.memory_space<vmem>>, %arg3: memref<1x1536xf32, #tpu.memory_space<vmem>>, %arg4: memref<512x512xbf16, #tpu.memory_space<vmem>>, %arg5: memref<1x512xf32, #tpu.memory_space<vmem>>, %arg6: memref<1x128x512xf32, #tpu.memory_space<vmem>>, %arg7: memref<128x512xbf16, #tpu.memory_space<vmem>>) attributes {dimension_semantics = [#tpu.dimension_semantics<parallel>], iteration_bounds = array<i64: 2>, scalar_prefetch = 0 : i64, scratch_operands = 1 : i64, tpu.core_type = #tpu.core_type<tc>, window_params = [{transform_indices = @transform_0, window_bounds = array<i64: 1, 128, 512>}, {pipeline_mode = #tpu.pipeline_mode<synchronous>, transform_indices = @transform_1, window_bounds = array<i64: 512, 1536>}, {pipeline_mode = #tpu.pipeline_mode<synchronous>, transform_indices = @transform_2, window_bounds = array<i64: 1, 1536>}, {pipeline_mode = #tpu.pipeline_mode<synchronous>, transform_indices = @transform_3, window_bounds = array<i64: 512, 512>}, {pipeline_mode = #tpu.pipeline_mode<synchronous>, transform_indices = @transform_4, window_bounds = array<i64: 1, 512>}, {transform_indices = @transform_5, window_bounds = array<i64: 1, 128, 512>}]} {
    %c0 = arith.constant 0 : index
    %c0_0 = arith.constant 0 : index
    %c0_1 = arith.constant 0 : index
    %0 = vector.load %arg1[%c0, %c0_0, %c0_1] : memref<1x128x512xbf16, #tpu.memory_space<vmem>>, vector<1x128x512xbf16>
    %1 = vector.shape_cast %0 : vector<1x128x512xbf16> to vector<128x512xbf16>
    %c0_2 = arith.constant 0 : index
    %c0_3 = arith.constant 0 : index
    %2 = vector.load %arg2[%c0_2, %c0_3] : memref<512x1536xbf16, #tpu.memory_space<vmem>>, vector<512x1536xbf16>
    %cst = arith.constant dense<0.000000e+00> : vector<128x1536xf32>
    %3 = tpu.matmul %1, %2, %cst {dimension_numbers = #tpu.dot_dimension_numbers<[1], [0], [0], [1], [0, 0, 1, 1], [], []>} : vector<128x512xbf16>, vector<512x1536xbf16>, vector<128x1536xf32> -> vector<128x1536xf32>
    %c0_4 = arith.constant 0 : index
    %c0_5 = arith.constant 0 : index
    %4 = vector.load %arg3[%c0_4, %c0_5] : memref<1x1536xf32, #tpu.memory_space<vmem>>, vector<1x1536xf32>
    %5 = vector.broadcast %4 : vector<1x1536xf32> to vector<128x1536xf32>
    %6 = arith.addf %3, %5 : vector<128x1536xf32>
    %7 = vector.extract_strided_slice %6 {offsets = [0, 0], sizes = [128, 512], strides = [1, 1]} : vector<128x1536xf32> to vector<128x512xf32>
    %cst_6 = arith.constant 0.0883883461 : f32
    %8 = vector.broadcast %cst_6 : f32 to vector<128x512xf32>
    %9 = arith.mulf %7, %8 : vector<128x512xf32>
    %10 = arith.truncf %9 : vector<128x512xf32> to vector<128x512xbf16>
    %11 = vector.extract_strided_slice %6 {offsets = [0, 512], sizes = [128, 512], strides = [1, 1]} : vector<128x1536xf32> to vector<128x512xf32>
    %12 = arith.truncf %11 : vector<128x512xf32> to vector<128x512xbf16>
    %13 = vector.extract_strided_slice %6 {offsets = [0, 1024], sizes = [128, 512], strides = [1, 1]} : vector<128x1536xf32> to vector<128x512xf32>
    %14 = arith.truncf %13 : vector<128x512xf32> to vector<128x512xbf16>
    %15 = vector.extract_strided_slice %10 {offsets = [0, 0], sizes = [128, 128], strides = [1, 1]} : vector<128x512xbf16> to vector<128x128xbf16>
    %16 = vector.extract_strided_slice %12 {offsets = [0, 0], sizes = [128, 128], strides = [1, 1]} : vector<128x512xbf16> to vector<128x128xbf16>
    %17 = vector.extract_strided_slice %14 {offsets = [0, 0], sizes = [128, 128], strides = [1, 1]} : vector<128x512xbf16> to vector<128x128xbf16>
    %cst_7 = arith.constant dense<0.000000e+00> : vector<128x128xf32>
    %18 = tpu.matmul %15, %16, %cst_7 {dimension_numbers = #tpu.dot_dimension_numbers<[1], [1], [0], [0], [0, 0, 1, 0], [], []>} : vector<128x128xbf16>, vector<128x128xbf16>, vector<128x128xf32> -> vector<128x128xf32>
    %cst_8 = arith.constant dense<0xFF800000> : vector<128xf32>
    %19 = vector.multi_reduction <maximumf>, %18, %cst_8 [1] : vector<128x128xf32> to vector<128xf32>
    %20 = vector.shape_cast %19 : vector<128xf32> to vector<128x1xf32>
    %21 = vector.broadcast %20 : vector<128x1xf32> to vector<128x128xf32>
    %22 = arith.subf %18, %21 : vector<128x128xf32>
    %23 = math.exp %22 : vector<128x128xf32>
    %cst_9 = arith.constant dense<0.000000e+00> : vector<128xf32>
    %24 = vector.multi_reduction <add>, %23, %cst_9 [1] : vector<128x128xf32> to vector<128xf32>
    %25 = vector.shape_cast %24 : vector<128xf32> to vector<128x1xf32>
    %26 = tpu.reciprocal %25 {approx = true} : vector<128x1xf32> -> vector<128x1xf32>
    %27 = vector.broadcast %26 : vector<128x1xf32> to vector<128x128xf32>
    %28 = arith.mulf %23, %27 : vector<128x128xf32>
    %29 = arith.truncf %28 : vector<128x128xf32> to vector<128x128xbf16>
    %cst_10 = arith.constant dense<0.000000e+00> : vector<128x128xf32>
    %30 = tpu.matmul %29, %17, %cst_10 {dimension_numbers = #tpu.dot_dimension_numbers<[1], [0], [0], [1], [0, 0, 1, 1], [], []>} : vector<128x128xbf16>, vector<128x128xbf16>, vector<128x128xf32> -> vector<128x128xf32>
    %31 = arith.truncf %30 : vector<128x128xf32> to vector<128x128xbf16>
    %c0_11 = arith.constant 0 : index
    %c0_12 = arith.constant 0 : index
    %32 = vector.load %arg7[%c0_11, %c0_12] : memref<128x512xbf16, #tpu.memory_space<vmem>>, vector<128x128xbf16>
    tpu.vector_store %arg7[%c0_11, %c0_12], %31 {strides = array<i32>} : memref<128x512xbf16, #tpu.memory_space<vmem>>, vector<128x128xbf16>,
    %33 = vector.extract_strided_slice %10 {offsets = [0, 128], sizes = [128, 128], strides = [1, 1]} : vector<128x512xbf16> to vector<128x128xbf16>
    %34 = vector.extract_strided_slice %12 {offsets = [0, 128], sizes = [128, 128], strides = [1, 1]} : vector<128x512xbf16> to vector<128x128xbf16>
    %35 = vector.extract_strided_slice %14 {offsets = [0, 128], sizes = [128, 128], strides = [1, 1]} : vector<128x512xbf16> to vector<128x128xbf16>
    %cst_13 = arith.constant dense<0.000000e+00> : vector<128x128xf32>
    %36 = tpu.matmul %33, %34, %cst_13 {dimension_numbers = #tpu.dot_dimension_numbers<[1], [1], [0], [0], [0, 0, 1, 0], [], []>} : vector<128x128xbf16>, vector<128x128xbf16>, vector<128x128xf32> -> vector<128x128xf32>
    %cst_14 = arith.constant dense<0xFF800000> : vector<128xf32>
    %37 = vector.multi_reduction <maximumf>, %36, %cst_14 [1] : vector<128x128xf32> to vector<128xf32>
    %38 = vector.shape_cast %37 : vector<128xf32> to vector<128x1xf32>
    %39 = vector.broadcast %38 : vector<128x1xf32> to vector<128x128xf32>
    %40 = arith.subf %36, %39 : vector<128x128xf32>
    %41 = math.exp %40 : vector<128x128xf32>
    %cst_15 = arith.constant dense<0.000000e+00> : vector<128xf32>
    %42 = vector.multi_reduction <add>, %41, %cst_15 [1] : vector<128x128xf32> to vector<128xf32>
    %43 = vector.shape_cast %42 : vector<128xf32> to vector<128x1xf32>
    %44 = tpu.reciprocal %43 {approx = true} : vector<128x1xf32> -> vector<128x1xf32>
    %45 = vector.broadcast %44 : vector<128x1xf32> to vector<128x128xf32>
    %46 = arith.mulf %41, %45 : vector<128x128xf32>
    %47 = arith.truncf %46 : vector<128x128xf32> to vector<128x128xbf16>
    %cst_16 = arith.constant dense<0.000000e+00> : vector<128x128xf32>
    %48 = tpu.matmul %47, %35, %cst_16 {dimension_numbers = #tpu.dot_dimension_numbers<[1], [0], [0], [1], [0, 0, 1, 1], [], []>} : vector<128x128xbf16>, vector<128x128xbf16>, vector<128x128xf32> -> vector<128x128xf32>
    %49 = arith.truncf %48 : vector<128x128xf32> to vector<128x128xbf16>
    %c0_17 = arith.constant 0 : index
    %c128 = arith.constant 128 : index
    %50 = vector.load %arg7[%c0_17, %c128] : memref<128x512xbf16, #tpu.memory_space<vmem>>, vector<128x128xbf16>
    tpu.vector_store %arg7[%c0_17, %c128], %49 {strides = array<i32>} : memref<128x512xbf16, #tpu.memory_space<vmem>>, vector<128x128xbf16>,
    %51 = vector.extract_strided_slice %10 {offsets = [0, 256], sizes = [128, 128], strides = [1, 1]} : vector<128x512xbf16> to vector<128x128xbf16>
    %52 = vector.extract_strided_slice %12 {offsets = [0, 256], sizes = [128, 128], strides = [1, 1]} : vector<128x512xbf16> to vector<128x128xbf16>
    %53 = vector.extract_strided_slice %14 {offsets = [0, 256], sizes = [128, 128], strides = [1, 1]} : vector<128x512xbf16> to vector<128x128xbf16>
    %cst_18 = arith.constant dense<0.000000e+00> : vector<128x128xf32>
    %54 = tpu.matmul %51, %52, %cst_18 {dimension_numbers = #tpu.dot_dimension_numbers<[1], [1], [0], [0], [0, 0, 1, 0], [], []>} : vector<128x128xbf16>, vector<128x128xbf16>, vector<128x128xf32> -> vector<128x128xf32>
    %cst_19 = arith.constant dense<0xFF800000> : vector<128xf32>
    %55 = vector.multi_reduction <maximumf>, %54, %cst_19 [1] : vector<128x128xf32> to vector<128xf32>
    %56 = vector.shape_cast %55 : vector<128xf32> to vector<128x1xf32>
    %57 = vector.broadcast %56 : vector<128x1xf32> to vector<128x128xf32>
    %58 = arith.subf %54, %57 : vector<128x128xf32>
    %59 = math.exp %58 : vector<128x128xf32>
    %cst_20 = arith.constant dense<0.000000e+00> : vector<128xf32>
    %60 = vector.multi_reduction <add>, %59, %cst_20 [1] : vector<128x128xf32> to vector<128xf32>
    %61 = vector.shape_cast %60 : vector<128xf32> to vector<128x1xf32>
    %62 = tpu.reciprocal %61 {approx = true} : vector<128x1xf32> -> vector<128x1xf32>
    %63 = vector.broadcast %62 : vector<128x1xf32> to vector<128x128xf32>
    %64 = arith.mulf %59, %63 : vector<128x128xf32>
    %65 = arith.truncf %64 : vector<128x128xf32> to vector<128x128xbf16>
    %cst_21 = arith.constant dense<0.000000e+00> : vector<128x128xf32>
    %66 = tpu.matmul %65, %53, %cst_21 {dimension_numbers = #tpu.dot_dimension_numbers<[1], [0], [0], [1], [0, 0, 1, 1], [], []>} : vector<128x128xbf16>, vector<128x128xbf16>, vector<128x128xf32> -> vector<128x128xf32>
    %67 = arith.truncf %66 : vector<128x128xf32> to vector<128x128xbf16>
    %c0_22 = arith.constant 0 : index
    %c256 = arith.constant 256 : index
    %68 = vector.load %arg7[%c0_22, %c256] : memref<128x512xbf16, #tpu.memory_space<vmem>>, vector<128x128xbf16>
    tpu.vector_store %arg7[%c0_22, %c256], %67 {strides = array<i32>} : memref<128x512xbf16, #tpu.memory_space<vmem>>, vector<128x128xbf16>,
    %69 = vector.extract_strided_slice %10 {offsets = [0, 384], sizes = [128, 128], strides = [1, 1]} : vector<128x512xbf16> to vector<128x128xbf16>
    %70 = vector.extract_strided_slice %12 {offsets = [0, 384], sizes = [128, 128], strides = [1, 1]} : vector<128x512xbf16> to vector<128x128xbf16>
    %71 = vector.extract_strided_slice %14 {offsets = [0, 384], sizes = [128, 128], strides = [1, 1]} : vector<128x512xbf16> to vector<128x128xbf16>
    %cst_23 = arith.constant dense<0.000000e+00> : vector<128x128xf32>
    %72 = tpu.matmul %69, %70, %cst_23 {dimension_numbers = #tpu.dot_dimension_numbers<[1], [1], [0], [0], [0, 0, 1, 0], [], []>} : vector<128x128xbf16>, vector<128x128xbf16>, vector<128x128xf32> -> vector<128x128xf32>
    %cst_24 = arith.constant dense<0xFF800000> : vector<128xf32>
    %73 = vector.multi_reduction <maximumf>, %72, %cst_24 [1] : vector<128x128xf32> to vector<128xf32>
    %74 = vector.shape_cast %73 : vector<128xf32> to vector<128x1xf32>
    %75 = vector.broadcast %74 : vector<128x1xf32> to vector<128x128xf32>
    %76 = arith.subf %72, %75 : vector<128x128xf32>
    %77 = math.exp %76 : vector<128x128xf32>
    %cst_25 = arith.constant dense<0.000000e+00> : vector<128xf32>
    %78 = vector.multi_reduction <add>, %77, %cst_25 [1] : vector<128x128xf32> to vector<128xf32>
    %79 = vector.shape_cast %78 : vector<128xf32> to vector<128x1xf32>
    %80 = tpu.reciprocal %79 {approx = true} : vector<128x1xf32> -> vector<128x1xf32>
    %81 = vector.broadcast %80 : vector<128x1xf32> to vector<128x128xf32>
    %82 = arith.mulf %77, %81 : vector<128x128xf32>
    %83 = arith.truncf %82 : vector<128x128xf32> to vector<128x128xbf16>
    %cst_26 = arith.constant dense<0.000000e+00> : vector<128x128xf32>
    %84 = tpu.matmul %83, %71, %cst_26 {dimension_numbers = #tpu.dot_dimension_numbers<[1], [0], [0], [1], [0, 0, 1, 1], [], []>} : vector<128x128xbf16>, vector<128x128xbf16>, vector<128x128xf32> -> vector<128x128xf32>
    %85 = arith.truncf %84 : vector<128x128xf32> to vector<128x128xbf16>
    %c0_27 = arith.constant 0 : index
    %c384 = arith.constant 384 : index
    %86 = vector.load %arg7[%c0_27, %c384] : memref<128x512xbf16, #tpu.memory_space<vmem>>, vector<128x128xbf16>
    tpu.vector_store %arg7[%c0_27, %c384], %85 {strides = array<i32>} : memref<128x512xbf16, #tpu.memory_space<vmem>>, vector<128x128xbf16>,
    %c0_28 = arith.constant 0 : index
    %c0_29 = arith.constant 0 : index
    %87 = vector.load %arg7[%c0_28, %c0_29] : memref<128x512xbf16, #tpu.memory_space<vmem>>, vector<128x512xbf16>
    %c0_30 = arith.constant 0 : index
    %c0_31 = arith.constant 0 : index
    %88 = vector.load %arg4[%c0_30, %c0_31] : memref<512x512xbf16, #tpu.memory_space<vmem>>, vector<512x512xbf16>
    %cst_32 = arith.constant dense<0.000000e+00> : vector<128x512xf32>
    %89 = tpu.matmul %87, %88, %cst_32 {dimension_numbers = #tpu.dot_dimension_numbers<[1], [0], [0], [1], [0, 0, 1, 1], [], []>} : vector<128x512xbf16>, vector<512x512xbf16>, vector<128x512xf32> -> vector<128x512xf32>
    %c0_33 = arith.constant 0 : index
    %c0_34 = arith.constant 0 : index
    %90 = vector.load %arg5[%c0_33, %c0_34] : memref<1x512xf32, #tpu.memory_space<vmem>>, vector<1x512xf32>
    %91 = vector.broadcast %90 : vector<1x512xf32> to vector<128x512xf32>
    %92 = arith.addf %89, %91 : vector<128x512xf32>
    %c0_35 = arith.constant 0 : index
    %c0_36 = arith.constant 0 : index
    %c0_37 = arith.constant 0 : index
    %93 = vector.load %arg6[%c0_35, %c0_36, %c0_37] : memref<1x128x512xf32, #tpu.memory_space<vmem>>, vector<1x128x512xf32>
    %94 = vector.shape_cast %93 : vector<1x128x512xf32> to vector<128x512xf32>
    %95 = vector.shape_cast %92 : vector<128x512xf32> to vector<1x128x512xf32>
    tpu.vector_store %arg6[%c0_35, %c0_36, %c0_37], %95 {strides = array<i32>} : memref<1x128x512xf32, #tpu.memory_space<vmem>>, vector<1x128x512xf32>,
    return
  }
  func.func @transform_0(%arg0: i32) -> (i32, i32, i32) {
    %c0_i32 = arith.constant 0 : i32
    %c0_i32_0 = arith.constant 0 : i32
    %c0_i32_1 = arith.constant 0 : i32
    return %arg0, %c0_i32, %c0_i32_0 : i32, i32, i32
  }
  func.func @transform_1(%arg0: i32) -> (i32, i32) {
    %c0_i32 = arith.constant 0 : i32
    %c0_i32_0 = arith.constant 0 : i32
    %c0_i32_1 = arith.constant 0 : i32
    return %c0_i32, %c0_i32_0 : i32, i32
  }
  func.func @transform_2(%arg0: i32) -> (i32, i32) {
    %c0_i32 = arith.constant 0 : i32
    %c0_i32_0 = arith.constant 0 : i32
    %c0_i32_1 = arith.constant 0 : i32
    return %c0_i32, %c0_i32_0 : i32, i32
  }
  func.func @transform_3(%arg0: i32) -> (i32, i32) {
    %c0_i32 = arith.constant 0 : i32
    %c0_i32_0 = arith.constant 0 : i32
    %c0_i32_1 = arith.constant 0 : i32
    return %c0_i32, %c0_i32_0 : i32, i32
  }
  func.func @transform_4(%arg0: i32) -> (i32, i32) {
    %c0_i32 = arith.constant 0 : i32
    %c0_i32_0 = arith.constant 0 : i32
    %c0_i32_1 = arith.constant 0 : i32
    return %c0_i32, %c0_i32_0 : i32, i32
  }
  func.func @transform_5(%arg0: i32) -> (i32, i32, i32) {
    %c0_i32 = arith.constant 0 : i32
    %c0_i32_0 = arith.constant 0 : i32
    %c0_i32_1 = arith.constant 0 : i32
    return %arg0, %c0_i32, %c0_i32_0 : i32, i32, i32
  }
}

</mosaic_0001>

<llo_original>
// kernel: tpu_custom_call.1
$region0: #{tpu_custom_call.1}
  #allocation0 [shape = 'u32[]', space=smem, size = 0x4, offset = 0x4, fixed_abs, tag = 'smem constant byte address 0x4 - core index']
  #allocation1 [shape = 'u32[72,128]{1,0:T(1,128)}', space=vmem, size = 0x9000, scoped, tag = 'internal scratch']
  #allocation2 [shape = 'bf16[128,512]{1,0:T(8,128)(2,1)}', space=vmem, size = 0x20000, scoped, tag = 'scratch operand']
  %s0 = inlined_call_operand.hbm [shape: bf16[2,128,512], index: 0, kind: input, shape index: {}]
  %s1 = inlined_call_operand.hbm [shape: bf16[512,1536], index: 1, kind: input, shape index: {}]
  %s2 = inlined_call_operand.hbm [shape: f32[1,1536], index: 2, kind: input, shape index: {}]
  %s3 = inlined_call_operand.hbm [shape: bf16[512,512], index: 3, kind: input, shape index: {}]
  %s4 = inlined_call_operand.hbm [shape: f32[1,512], index: 4, kind: input, shape index: {}]
  %s5 = inlined_call_operand.hbm [shape: f32[2,128,512], index: 5, kind: output, shape index: {}]
  %s6 = sld [smem:[#allocation0]]
  $region73: #{tpu_custom_call.1} parent=0
    _
  %s8 = ssub.s32 1, %s6
  %s9 = scalar_select 0, %s8, %s6
  $region1: #{tpu_custom_call.1} parent=0
    #allocation3 [shape = 'u8[262144]{0}', space=vmem, size = 0x40000, scoped, tag = 'input window, operand 0']
    #allocation4 [shape = 's32[2]{0}', space=sflag, size = 0x8, scoped, tag = 'scoped memory for tpu_custom_call.1']
    #allocation5 [shape = 's32[2]{0}', space=sflag, size = 0x8, scoped, tag = 'scoped memory for tpu_custom_call.1']
    #allocation6 [shape = 'u8[1572864]{0}', space=vmem, size = 0x180000, scoped, tag = 'input window, operand 1, single buffered']
    #allocation7 [shape = 's32[1]{0}', space=sflag, size = 0x4, scoped, tag = 'scoped memory for tpu_custom_call.1']
    #allocation8 [shape = 'u8[6144]{0}', space=vmem, size = 0x1800, scoped, tag = 'input window, operand 2, single buffered']
    #allocation9 [shape = 'u8[524288]{0}', space=vmem, size = 0x80000, scoped, tag = 'input window, operand 3, single buffered']
    #allocation10 [shape = 's32[1]{0}', space=sflag, size = 0x4, scoped, tag = 'scoped memory for tpu_custom_call.1']
    #allocation11 [shape = 'u8[2048]{0}', space=vmem, size = 0x800, scoped, tag = 'input window, operand 4, single buffered']
    #allocation12 [shape = 'u8[524288]{0}', space=vmem, size = 0x80000, scoped, tag = 'output window, operand 0']
    %10 = vsyncpa [#allocation4], 0
    %s11 = scalar_lea.sflag [#allocation4], 1
    %12 = vsyncpa %s11, 0
    %13 = vsyncpa [#allocation7], 0
    %14 = vsyncpa [#allocation10], 0
    %15 = vsyncpa [#allocation5], 0
    %s16 = scalar_lea.sflag [#allocation5], 1
    %17 = vsyncpa %s16, 0
    loop: start=0, step=1, limit=4
    $region2: #{tpu_custom_call.1} parent=1 // loop_pre_header
      _
    $region3: #{tpu_custom_call.1} parent=1 // loop_header
      %s19 = sphi 0, %s23
      %p20 = scmp.ge.s32.totalorder %s19, 4
      %s29 = sphi 0, %s31
      %s32 = sphi 0, %s29
      %s33 = sphi 0, %s32
      %s49 = sphi 0, %s33
      %s53 = sphi 0, %s53
      %s55 = sphi 0, %s53
      %s56 = sphi 0, %s55
      %s70 = sphi 0, %s56
      %s74 = sphi 0, %s74
      %s76 = sphi 0, %s74
      %s77 = sphi 0, %s76
      %s91 = sphi 0, %s77
      %s95 = sphi 0, %s95
      %s97 = sphi 0, %s95
      %s98 = sphi 0, %s97
      %s112 = sphi 0, %s98
      %s116 = sphi 0, %s116
      %s118 = sphi 0, %s116
      %s119 = sphi 0, %s118
      %s133 = sphi 0, %s119
      %s139 = sphi 0, %s141
      %s142 = sphi 0, %s139
      %s143 = sphi 0, %s142
      %s159 = sphi 0, %s143
    $region4: #{tpu_custom_call.1} parent=1 // loop_header_branch
      %22 = sbr.rel (%p20) target = $region8
    $region5: #{tpu_custom_call.1} parent=1 // loop_body
      %s24 = ssub.s32 %s19, 1
      %s25 = ssub.s32 %s19, 2
      %s26 = sadd.s32 %s19, 1
      %s27 = ssub.s32 %s19, %s26
      %p28 = scmp.eq.s32.totalorder %s27, 0
      %s30 = sadd.s32 %s29, 1
      %s31 = scalar_select %p28, %s29, %s30
      %p34 = pneg %p28
      %p35 = scmp.eq.s32.totalorder %s19, 1
      %p36 = por %p34, %p35
      %p37 = scmp.ne.s32.totalorder %s29, %s32
      %p38 = scmp.eq.s32.totalorder %s19, 0
      %p39 = por %p37, %p38
      %p40 = scmp.ne.s32.totalorder %s29, %s32
      %p41 = scmp.eq.s32.totalorder %s24, 1
      %p42 = por %p40, %p41
      %p43 = scmp.ne.s32.totalorder %s32, %s33
      %p44 = scmp.eq.s32.totalorder %s24, 0
      %p45 = por %p43, %p44
      %p46 = scmp.ne.s32.totalorder %s32, %s33
      %p47 = scmp.eq.s32.totalorder %s25, 1
      %p48 = por %p46, %p47
      %p50 = scmp.ne.s32.totalorder %s33, %s49
      %p51 = scmp.eq.s32.totalorder %s25, 0
      %p52 = por %p50, %p51
      %s54 = sadd.s32 %s53, 1
      %p57 = scmp.eq.s32.totalorder %s19, 1
      %p58 = scmp.ne.s32.totalorder %s53, %s55
      %p59 = scmp.eq.s32.totalorder %s19, 0
      %p60 = por %p58, %p59
      %p61 = scmp.ne.s32.totalorder %s53, %s55
      %p62 = scmp.eq.s32.totalorder %s24, 1
      %p63 = por %p61, %p62
      %p64 = scmp.ne.s32.totalorder %s55, %s56
      %p65 = scmp.eq.s32.totalorder %s24, 0
      %p66 = por %p64, %p65
      %p67 = scmp.ne.s32.totalorder %s55, %s56
      %p68 = scmp.eq.s32.totalorder %s25, 1
      %p69 = por %p67, %p68
      %p71 = scmp.ne.s32.totalorder %s56, %s70
      %p72 = scmp.eq.s32.totalorder %s25, 0
      %p73 = por %p71, %p72
      %s75 = sadd.s32 %s74, 1
      %p78 = scmp.eq.s32.totalorder %s19, 1
      %p79 = scmp.ne.s32.totalorder %s74, %s76
      %p80 = scmp.eq.s32.totalorder %s19, 0
      %p81 = por %p79, %p80
      %p82 = scmp.ne.s32.totalorder %s74, %s76
      %p83 = scmp.eq.s32.totalorder %s24, 1
      %p84 = por %p82, %p83
      %p85 = scmp.ne.s32.totalorder %s76, %s77
      %p86 = scmp.eq.s32.totalorder %s24, 0
      %p87 = por %p85, %p86
      %p88 = scmp.ne.s32.totalorder %s76, %s77
      %p89 = scmp.eq.s32.totalorder %s25, 1
      %p90 = por %p88, %p89
      %p92 = scmp.ne.s32.totalorder %s77, %s91
      %p93 = scmp.eq.s32.totalorder %s25, 0
      %p94 = por %p92, %p93
      %s96 = sadd.s32 %s95, 1
      %p99 = scmp.eq.s32.totalorder %s19, 1
      %p100 = scmp.ne.s32.totalorder %s95, %s97
      %p101 = scmp.eq.s32.totalorder %s19, 0
      %p102 = por %p100, %p101
      %p103 = scmp.ne.s32.totalorder %s95, %s97
      %p104 = scmp.eq.s32.totalorder %s24, 1
      %p105 = por %p103, %p104
      %p106 = scmp.ne.s32.totalorder %s97, %s98
      %p107 = scmp.eq.s32.totalorder %s24, 0
      %p108 = por %p106, %p107
      %p109 = scmp.ne.s32.totalorder %s97, %s98
      %p110 = scmp.eq.s32.totalorder %s25, 1
      %p111 = por %p109, %p110
      %p113 = scmp.ne.s32.totalorder %s98, %s112
      %p114 = scmp.eq.s32.totalorder %s25, 0
      %p115 = por %p113, %p114
      %s117 = sadd.s32 %s116, 1
      %p120 = scmp.eq.s32.totalorder %s19, 1
      %p121 = scmp.ne.s32.totalorder %s116, %s118
      %p122 = scmp.eq.s32.totalorder %s19, 0
      %p123 = por %p121, %p122
      %p124 = scmp.ne.s32.totalorder %s116, %s118
      %p125 = scmp.eq.s32.totalorder %s24, 1
      %p126 = por %p124, %p125
      %p127 = scmp.ne.s32.totalorder %s118, %s119
      %p128 = scmp.eq.s32.totalorder %s24, 0
      %p129 = por %p127, %p128
      %p130 = scmp.ne.s32.totalorder %s118, %s119
      %p131 = scmp.eq.s32.totalorder %s25, 1
      %p132 = por %p130, %p131
      %p134 = scmp.ne.s32.totalorder %s119, %s133
      %p135 = scmp.eq.s32.totalorder %s25, 0
      %p136 = por %p134, %p135
      %s137 = ssub.s32 %s19, %s26
      %p138 = scmp.eq.s32.totalorder %s137, 0
      %s140 = sadd.s32 %s139, 1
      %s141 = scalar_select %p138, %s139, %s140
      %p144 = pneg %p138
      %p145 = scmp.eq.s32.totalorder %s19, 1
      %p146 = por %p144, %p145
      %p147 = scmp.ne.s32.totalorder %s139, %s142
      %p148 = scmp.eq.s32.totalorder %s19, 0
      %p149 = por %p147, %p148
      %p150 = scmp.ne.s32.totalorder %s139, %s142
      %p151 = scmp.eq.s32.totalorder %s24, 1
      %p152 = por %p150, %p151
      %p153 = scmp.ne.s32.totalorder %s142, %s143
      %p154 = scmp.eq.s32.totalorder %s24, 0
      %p155 = por %p153, %p154
      %p156 = scmp.ne.s32.totalorder %s142, %s143
      %p157 = scmp.eq.s32.totalorder %s25, 1
      %p158 = por %p156, %p157
      %p160 = scmp.ne.s32.totalorder %s143, %s159
      %p161 = scmp.eq.s32.totalorder %s25, 0
      %p162 = por %p160, %p161
      %p163 = scmp.le.s32.totalorder 1, %s19
      %p164 = scmp.lt.s32.totalorder %s19, 3
      %p165 = pnand %p163, %p164
      %p166 = pneg %p165
      // Predicated region
      $region9: #{tpu_custom_call.1} parent=5 // pred_check
        _
      $region10: #{tpu_custom_call.1} parent=5 // pred_check_branch
        %168 = sbr.rel (%p165) target = $region12
      $region11: #{tpu_custom_call.1} parent=5 // pred_region
        %s169 = ssub.s32 %s19, 1
        // Predicated region
        $region13: #{tpu_custom_call.1} parent=11 // pred_check
          %p170 = pneg %p66
        $region14: #{tpu_custom_call.1} parent=11 // pred_check_branch
          %172 = sbr.rel (%p170) target = $region16
        $region15: #{tpu_custom_call.1} parent=11 // pred_region
          %174 = vsyncadd [#allocation7], 0
          %s175 = sshll.u32 %s1, 4
          %s176 = int_to_ptr.hbm [resolvable:$true] %s175
          %s177 = sshll.u32 [#allocation6], 4
          %s178 = int_to_ptr.vmem [resolvable:$true] %s177
          %183 = dma.hbm_to_vmem [thread:$0]  %s176, 49152, %s178, [#allocation7], 768, 768, 48
        $region16: #{tpu_custom_call.1} parent=11 // pred_fallthru
          _
        // Predicated region
        $region17: #{tpu_custom_call.1} parent=11 // pred_check
          %p184 = pneg %p87
        $region18: #{tpu_custom_call.1} parent=11 // pred_check_branch
          %186 = sbr.rel (%p184) target = $region20
        $region19: #{tpu_custom_call.1} parent=11 // pred_region
          %188 = vsyncadd [#allocation7], 0
          %s190 = sshll.u32 %s2, 4
          %s191 = int_to_ptr.hbm [resolvable:$true] %s190
          %s192 = sshll.u32 [#allocation8], 4
          %s193 = int_to_ptr.vmem [resolvable:$true] %s192
          %195 = dma.hbm_to_vmem [thread:$0]  %s191, 192, %s193, [#allocation7]
        $region20: #{tpu_custom_call.1} parent=11 // pred_fallthru
          _
        // Predicated region
        $region21: #{tpu_custom_call.1} parent=11 // pred_check
          %p196 = pneg %p108
        $region22: #{tpu_custom_call.1} parent=11 // pred_check_branch
          %198 = sbr.rel (%p196) target = $region24
        $region23: #{tpu_custom_call.1} parent=11 // pred_region
          %200 = vsyncadd [#allocation10], 0
          %s201 = sshll.u32 %s3, 4
          %s202 = int_to_ptr.hbm [resolvable:$true] %s201
          %s203 = sshll.u32 [#allocation9], 4
          %s204 = int_to_ptr.vmem [resolvable:$true] %s203
          %209 = dma.hbm_to_vmem [thread:$0]  %s202, 16384, %s204, [#allocation10], 256, 256, 16
        $region24: #{tpu_custom_call.1} parent=11 // pred_fallthru
          _
        // Predicated region
        $region25: #{tpu_custom_call.1} parent=11 // pred_check
          %p210 = pneg %p129
        $region26: #{tpu_custom_call.1} parent=11 // pred_check_branch
          %212 = sbr.rel (%p210) target = $region28
        $region27: #{tpu_custom_call.1} parent=11 // pred_region
          %214 = vsyncadd [#allocation10], 0
          %s216 = sshll.u32 %s4, 4
          %s217 = int_to_ptr.hbm [resolvable:$true] %s216
          %s218 = sshll.u32 [#allocation11], 4
          %s219 = int_to_ptr.vmem [resolvable:$true] %s218
          %221 = dma.hbm_to_vmem [thread:$0]  %s217, 64, %s219, [#allocation10]
        $region28: #{tpu_custom_call.1} parent=11 // pred_fallthru
          _
      $region12: #{tpu_custom_call.1} parent=5 // pred_fallthru
        _
      %p222 = scmp.lt.s32.totalorder %s19, 2
      // Predicated region
      $region29: #{tpu_custom_call.1} parent=5 // pred_check
        %p223 = pneg %p222
      $region30: #{tpu_custom_call.1} parent=5 // pred_check_branch
        %225 = sbr.rel (%p223) target = $region32
      $region31: #{tpu_custom_call.1} parent=5 // pred_region
        // Predicated region
        $region33: #{tpu_custom_call.1} parent=31 // pred_check
          %p226 = pneg %p39
        $region34: #{tpu_custom_call.1} parent=31 // pred_check_branch
          %228 = sbr.rel (%p226) target = $region36
        $region35: #{tpu_custom_call.1} parent=31 // pred_region
          %s229 = sand.u32 %s29, 1
          %s230 = scalar_lea.sflag [#allocation4], %s229
          %s231 = sand.u32 %s29, 1
          %s232 = smul.addr %s231, 256
          %s233 = scalar_lea.vmem [#allocation3], %s232
          %235 = vsyncadd %s230, 0
          %s236 = smul.addr %s19, 64
          %s237 = smul.addr %s236, 4
          %s238 = scalar_lea.hbm %s0, %s237
          %s239 = sshll.u32 %s238, 4
          %s240 = int_to_ptr.hbm [resolvable:$true] %s239
          %s241 = sshll.u32 %s233, 4
          %s242 = int_to_ptr.vmem [resolvable:$true] %s241
          %247 = dma.hbm_to_vmem [thread:$0]  %s240, 4096, %s242, %s230, 256, 256, 16
        $region36: #{tpu_custom_call.1} parent=31 // pred_fallthru
          _
      $region32: #{tpu_custom_call.1} parent=5 // pred_fallthru
        _
      %p248 = scmp.le.s32.totalorder 1, %s19
      %p249 = scmp.lt.s32.totalorder %s19, 3
      %p250 = pnand %p248, %p249
      %p251 = pneg %p250
      // Predicated region
      $region37: #{tpu_custom_call.1} parent=5 // pred_check
        _
      $region38: #{tpu_custom_call.1} parent=5 // pred_check_branch
        %253 = sbr.rel (%p250) target = $region40
      $region39: #{tpu_custom_call.1} parent=5 // pred_region
        %s254 = ssub.s32 %s19, 1
        %s255 = sand.u32 %s32, 1
        %s256 = scalar_lea.sflag [#allocation4], %s255
        %s257 = sand.u32 %s32, 1
        %s258 = smul.addr %s257, 256
        %s259 = scalar_lea.vmem [#allocation3], %s258
        // Predicated region
        $region41: #{tpu_custom_call.1} parent=39 // pred_check
          %p260 = pneg %p45
        $region42: #{tpu_custom_call.1} parent=39 // pred_check_branch
          %262 = sbr.rel (%p260) target = $region44
        $region43: #{tpu_custom_call.1} parent=39 // pred_region
          %264 = dma.done %s256, 4096
        $region44: #{tpu_custom_call.1} parent=39 // pred_fallthru
          _
        // Predicated region
        $region45: #{tpu_custom_call.1} parent=39 // pred_check
          %p265 = pneg %p66
        $region46: #{tpu_custom_call.1} parent=39 // pred_check_branch
          %267 = sbr.rel (%p265) target = $region48
        $region47: #{tpu_custom_call.1} parent=39 // pred_region
          %269 = dma.done [#allocation7], 49152
        $region48: #{tpu_custom_call.1} parent=39 // pred_fallthru
          _
        // Predicated region
        $region49: #{tpu_custom_call.1} parent=39 // pred_check
          %p270 = pneg %p87
        $region50: #{tpu_custom_call.1} parent=39 // pred_check_branch
          %272 = sbr.rel (%p270) target = $region52
        $region51: #{tpu_custom_call.1} parent=39 // pred_region
          %274 = dma.done [#allocation7], 192
        $region52: #{tpu_custom_call.1} parent=39 // pred_fallthru
          _
        // Predicated region
        $region53: #{tpu_custom_call.1} parent=39 // pred_check
          %p275 = pneg %p108
        $region54: #{tpu_custom_call.1} parent=39 // pred_check_branch
          %277 = sbr.rel (%p275) target = $region56
        $region55: #{tpu_custom_call.1} parent=39 // pred_region
          %279 = dma.done [#allocation10], 16384
        $region56: #{tpu_custom_call.1} parent=39 // pred_fallthru
          _
        // Predicated region
        $region57: #{tpu_custom_call.1} parent=39 // pred_check
          %p280 = pneg %p129
        $region58: #{tpu_custom_call.1} parent=39 // pred_check_branch
          %282 = sbr.rel (%p280) target = $region60
        $region59: #{tpu_custom_call.1} parent=39 // pred_region
          %284 = dma.done [#allocation10], 64
        $region60: #{tpu_custom_call.1} parent=39 // pred_fallthru
          _
        %s285 = sand.u32 %s32, 1
        %s286 = scalar_lea.sflag [#allocation4], %s285
        %s287 = sand.u32 %s32, 1
        %s288 = smul.addr %s287, 256
        %s289 = scalar_lea.vmem [#allocation3], %s288
        %p290 = pneg %p45
        %p291 = pneg %p42
        %p292 = pneg %p66
        %p293 = pneg %p63
        %p294 = pneg %p87
        %p295 = pneg %p84
        %p296 = pneg %p108
        %p297 = pneg %p105
        %p298 = pneg %p129
        %p299 = pneg %p126
        %p300 = pneg %p155
        %p301 = pneg %p152
        %s302 = sand.u32 %s142, 1
        %s303 = scalar_lea.sflag [#allocation5], %s302
        %s304 = sand.u32 %s142, 1
        %s305 = smul.addr %s304, 512
        %s306 = scalar_lea.vmem [#allocation12], %s305
        %v307 = vld [vmem:[%s259] sm:$0xff]
        %v308 = vld [vmem:[%s259 + $0x8] sm:$0xff]
        %v309 = vld [vmem:[%s259 + $0x10] sm:$0xff]
        %v310 = vld [vmem:[%s259 + $0x18] sm:$0xff]
        %v311 = vld [vmem:[%s259 + $0x20] sm:$0xff]
        %v312 = vld [vmem:[%s259 + $0x28] sm:$0xff]
        %v313 = vld [vmem:[%s259 + $0x30] sm:$0xff]
        %v314 = vld [vmem:[%s259 + $0x38] sm:$0xff]
        %v315 = vld [vmem:[%s259 + $0x40] sm:$0xff]
        %v316 = vld [vmem:[%s259 + $0x48] sm:$0xff]
        %v317 = vld [vmem:[%s259 + $0x50] sm:$0xff]
        %v318 = vld [vmem:[%s259 + $0x58] sm:$0xff]
        %v319 = vld [vmem:[%s259 + $0x60] sm:$0xff]
        %v320 = vld [vmem:[%s259 + $0x68] sm:$0xff]
        %v321 = vld [vmem:[%s259 + $0x70] sm:$0xff]
        %v322 = vld [vmem:[%s259 + $0x78] sm:$0xff]
        %v323 = vld [vmem:[%s259 + $0x80] sm:$0xff]
        %v324 = vld [vmem:[%s259 + $0x88] sm:$0xff]
        %v325 = vld [vmem:[%s259 + $0x90] sm:$0xff]
        %v326 = vld [vmem:[%s259 + $0x98] sm:$0xff]
        %v327 = vld [vmem:[%s259 + $0xa0] sm:$0xff]
        %v328 = vld [vmem:[%s259 + $0xa8] sm:$0xff]
        %v329 = vld [vmem:[%s259 + $0xb0] sm:$0xff]
        %v330 = vld [vmem:[%s259 + $0xb8] sm:$0xff]
        %v331 = vld [vmem:[%s259 + $0xc0] sm:$0xff]
        %v332 = vld [vmem:[%s259 + $0xc8] sm:$0xff]
        %v333 = vld [vmem:[%s259 + $0xd0] sm:$0xff]
        %v334 = vld [vmem:[%s259 + $0xd8] sm:$0xff]
        %v335 = vld [vmem:[%s259 + $0xe0] sm:$0xff]
        %v336 = vld [vmem:[%s259 + $0xe8] sm:$0xff]
        %v337 = vld [vmem:[%s259 + $0xf0] sm:$0xff]
        %v338 = vld [vmem:[%s259 + $0xf8] sm:$0xff]
        %v339 = vld [vmem:[#allocation6] sm:$0xff]
        %v340 = vld [vmem:[#allocation6 + $0x8] sm:$0xff]
        %v341 = vld [vmem:[#allocation6 + $0x10] sm:$0xff]
        %v342 = vld [vmem:[#allocation6 + $0x18] sm:$0xff]
        %v343 = vld [vmem:[#allocation6 + $0x20] sm:$0xff]
        %v344 = vld [vmem:[#allocation6 + $0x28] sm:$0xff]
        %v345 = vld [vmem:[#allocation6 + $0x30] sm:$0xff]
        %v346 = vld [vmem:[#allocation6 + $0x38] sm:$0xff]
        %v347 = vld [vmem:[#allocation6 + $0x40] sm:$0xff]
        %v348 = vld [vmem:[#allocation6 + $0x48] sm:$0xff]
        %v349 = vld [vmem:[#allocation6 + $0x50] sm:$0xff]
        %v350 = vld [vmem:[#allocation6 + $0x58] sm:$0xff]
        %v351 = vld [vmem:[#allocation6 + $0x60] sm:$0xff]
        %v352 = vld [vmem:[#allocation6 + $0x68] sm:$0xff]
        %v353 = vld [vmem:[#allocation6 + $0x70] sm:$0xff]
        %v354 = vld [vmem:[#allocation6 + $0x78] sm:$0xff]
        %v355 = vld [vmem:[#allocation6 + $0x80] sm:$0xff]
        %v356 = vld [vmem:[#allocation6 + $0x88] sm:$0xff]
        %v357 = vld [vmem:[#allocation6 + $0x90] sm:$0xff]
        %v358 = vld [vmem:[#allocation6 + $0x98] sm:$0xff]
        %v359 = vld [vmem:[#allocation6 + $0xa0] sm:$0xff]
        %v360 = vld [vmem:[#allocation6 + $0xa8] sm:$0xff]
        %v361 = vld [vmem:[#allocation6 + $0xb0] sm:$0xff]
        %v362 = vld [vmem:[#allocation6 + $0xb8] sm:$0xff]
        %v363 = vld [vmem:[#allocation6 + $0xc0] sm:$0xff]
        %v364 = vld [vmem:[#allocation6 + $0xc8] sm:$0xff]
        %v365 = vld [vmem:[#allocation6 + $0xd0] sm:$0xff]
        %v366 = vld [vmem:[#allocation6 + $0xd8] sm:$0xff]
        %v367 = vld [vmem:[#allocation6 + $0xe0] sm:$0xff]
        %v368 = vld [vmem:[#allocation6 + $0xe8] sm:$0xff]
        %v369 = vld [vmem:[#allocation6 + $0xf0] sm:$0xff]
        %v370 = vld [vmem:[#allocation6 + $0xf8] sm:$0xff]
        %v371 = vld [vmem:[#allocation6 + $0x100] sm:$0xff]
        %v372 = vld [vmem:[#allocation6 + $0x108] sm:$0xff]
        %v373 = vld [vmem:[#allocation6 + $0x110] sm:$0xff]
        %v374 = vld [vmem:[#allocation6 + $0x118] sm:$0xff]
        %v375 = vld [vmem:[#allocation6 + $0x120] sm:$0xff]
        %v376 = vld [vmem:[#allocation6 + $0x128] sm:$0xff]
        %v377 = vld [vmem:[#allocation6 + $0x130] sm:$0xff]
        %v378 = vld [vmem:[#allocation6 + $0x138] sm:$0xff]
        %v379 = vld [vmem:[#allocation6 + $0x140] sm:$0xff]
        %v380 = vld [vmem:[#allocation6 + $0x148] sm:$0xff]
        %v381 = vld [vmem:[#allocation6 + $0x150] sm:$0xff]
        %v382 = vld [vmem:[#allocation6 + $0x158] sm:$0xff]
        %v383 = vld [vmem:[#allocation6 + $0x160] sm:$0xff]
        %v384 = vld [vmem:[#allocation6 + $0x168] sm:$0xff]
        %v385 = vld [vmem:[#allocation6 + $0x170] sm:$0xff]
        %v386 = vld [vmem:[#allocation6 + $0x178] sm:$0xff]
        %v387 = vld [vmem:[#allocation6 + $0x180] sm:$0xff]
        %v388 = vld [vmem:[#allocation6 + $0x188] sm:$0xff]
        %v389 = vld [vmem:[#allocation6 + $0x190] sm:$0xff]
        %v390 = vld [vmem:[#allocation6 + $0x198] sm:$0xff]
        %v391 = vld [vmem:[#allocation6 + $0x1a0] sm:$0xff]
        %v392 = vld [vmem:[#allocation6 + $0x1a8] sm:$0xff]
        %v393 = vld [vmem:[#allocation6 + $0x1b0] sm:$0xff]
        %v394 = vld [vmem:[#allocation6 + $0x1b8] sm:$0xff]
        %v395 = vld [vmem:[#allocation6 + $0x1c0] sm:$0xff]
        %v396 = vld [vmem:[#allocation6 + $0x1c8] sm:$0xff]
        %v397 = vld [vmem:[#allocation6 + $0x1d0] sm:$0xff]
        %v398 = vld [vmem:[#allocation6 + $0x1d8] sm:$0xff]
        %v399 = vld [vmem:[#allocation6 + $0x1e0] sm:$0xff]
        %v400 = vld [vmem:[#allocation6 + $0x1e8] sm:$0xff]
        %v401 = vld [vmem:[#allocation6 + $0x1f0] sm:$0xff]
        %v402 = vld [vmem:[#allocation6 + $0x1f8] sm:$0xff]
        %v403 = vld [vmem:[#allocation6 + $0x200] sm:$0xff]
        %v404 = vld [vmem:[#allocation6 + $0x208] sm:$0xff]
        %v405 = vld [vmem:[#allocation6 + $0x210] sm:$0xff]
        %v406 = vld [vmem:[#allocation6 + $0x218] sm:$0xff]
        %v407 = vld [vmem:[#allocation6 + $0x220] sm:$0xff]
        %v408 = vld [vmem:[#allocation6 + $0x228] sm:$0xff]
        %v409 = vld [vmem:[#allocation6 + $0x230] sm:$0xff]
        %v410 = vld [vmem:[#allocation6 + $0x238] sm:$0xff]
        %v411 = vld [vmem:[#allocation6 + $0x240] sm:$0xff]
        %v412 = vld [vmem:[#allocation6 + $0x248] sm:$0xff]
        %v413 = vld [vmem:[#allocation6 + $0x250] sm:$0xff]
        %v414 = vld [vmem:[#allocation6 + $0x258] sm:$0xff]
        %v415 = vld [vmem:[#allocation6 + $0x260] sm:$0xff]
        %v416 = vld [vmem:[#allocation6 + $0x268] sm:$0xff]
        %v417 = vld [vmem:[#allocation6 + $0x270] sm:$0xff]
        %v418 = vld [vmem:[#allocation6 + $0x278] sm:$0xff]
        %v419 = vld [vmem:[#allocation6 + $0x280] sm:$0xff]
        %v420 = vld [vmem:[#allocation6 + $0x288] sm:$0xff]
        %v421 = vld [vmem:[#allocation6 + $0x290] sm:$0xff]
        %v422 = vld [vmem:[#allocation6 + $0x298] sm:$0xff]
        %v423 = vld [vmem:[#allocation6 + $0x2a0] sm:$0xff]
        %v424 = vld [vmem:[#allocation6 + $0x2a8] sm:$0xff]
        %v425 = vld [vmem:[#allocation6 + $0x2b0] sm:$0xff]
        %v426 = vld [vmem:[#allocation6 + $0x2b8] sm:$0xff]
        %v427 = vld [vmem:[#allocation6 + $0x2c0] sm:$0xff]
        %v428 = vld [vmem:[#allocation6 + $0x2c8] sm:$0xff]
        %v429 = vld [vmem:[#allocation6 + $0x2d0] sm:$0xff]
        %v430 = vld [vmem:[#allocation6 + $0x2d8] sm:$0xff]
        %v431 = vld [vmem:[#allocation6 + $0x2e0] sm:$0xff]
        %v432 = vld [vmem:[#allocation6 + $0x2e8] sm:$0xff]
        %v433 = vld [vmem:[#allocation6 + $0x2f0] sm:$0xff]
        %v434 = vld [vmem:[#allocation6 + $0x2f8] sm:$0xff]
        %v435 = vld [vmem:[#allocation6 + $0x300] sm:$0xff]
        %v436 = vld [vmem:[#allocation6 + $0x308] sm:$0xff]
        %v437 = vld [vmem:[#allocation6 + $0x310] sm:$0xff]
        %v438 = vld [vmem:[#allocation6 + $0x318] sm:$0xff]
        %v439 = vld [vmem:[#allocation6 + $0x320] sm:$0xff]
        %v440 = vld [vmem:[#allocation6 + $0x328] sm:$0xff]
        %v441 = vld [vmem:[#allocation6 + $0x330] sm:$0xff]
        %v442 = vld [vmem:[#allocation6 + $0x338] sm:$0xff]
        %v443 = vld [vmem:[#allocation6 + $0x340] sm:$0xff]
        %v444 = vld [vmem:[#allocation6 + $0x348] sm:$0xff]
        %v445 = vld [vmem:[#allocation6 + $0x350] sm:$0xff]
        %v446 = vld [vmem:[#allocation6 + $0x358] sm:$0xff]
        %v447 = vld [vmem:[#allocation6 + $0x360] sm:$0xff]
        %v448 = vld [vmem:[#allocation6 + $0x368] sm:$0xff]
        %v449 = vld [vmem:[#allocation6 + $0x370] sm:$0xff]
        %v450 = vld [vmem:[#allocation6 + $0x378] sm:$0xff]
        %v451 = vld [vmem:[#allocation6 + $0x380] sm:$0xff]
        %v452 = vld [vmem:[#allocation6 + $0x388] sm:$0xff]
        %v453 = vld [vmem:[#allocation6 + $0x390] sm:$0xff]
        %v454 = vld [vmem:[#allocation6 + $0x398] sm:$0xff]
        %v455 = vld [vmem:[#allocation6 + $0x3a0] sm:$0xff]
        %v456 = vld [vmem:[#allocation6 + $0x3a8] sm:$0xff]
        %v457 = vld [vmem:[#allocation6 + $0x3b0] sm:$0xff]
        %v458 = vld [vmem:[#allocation6 + $0x3b8] sm:$0xff]
        %v459 = vld [vmem:[#allocation6 + $0x3c0] sm:$0xff]
        %v460 = vld [vmem:[#allocation6 + $0x3c8] sm:$0xff]
        %v461 = vld [vmem:[#allocation6 + $0x3d0] sm:$0xff]
        %v462 = vld [vmem:[#allocation6 + $0x3d8] sm:$0xff]
        %v463 = vld [vmem:[#allocation6 + $0x3e0] sm:$0xff]
        %v464 = vld [vmem:[#allocation6 + $0x3e8] sm:$0xff]
        %v465 = vld [vmem:[#allocation6 + $0x3f0] sm:$0xff]
        %v466 = vld [vmem:[#allocation6 + $0x3f8] sm:$0xff]
        %v467 = vld [vmem:[#allocation6 + $0x400] sm:$0xff]
        %v468 = vld [vmem:[#allocation6 + $0x408] sm:$0xff]
        %v469 = vld [vmem:[#allocation6 + $0x410] sm:$0xff]
        %v470 = vld [vmem:[#allocation6 + $0x418] sm:$0xff]
        %v471 = vld [vmem:[#allocation6 + $0x420] sm:$0xff]
        %v472 = vld [vmem:[#allocation6 + $0x428] sm:$0xff]
        %v473 = vld [vmem:[#allocation6 + $0x430] sm:$0xff]
        %v474 = vld [vmem:[#allocation6 + $0x438] sm:$0xff]
        %v475 = vld [vmem:[#allocation6 + $0x440] sm:$0xff]
        %v476 = vld [vmem:[#allocation6 + $0x448] sm:$0xff]
        %v477 = vld [vmem:[#allocation6 + $0x450] sm:$0xff]
        %v478 = vld [vmem:[#allocation6 + $0x458] sm:$0xff]
        %v479 = vld [vmem:[#allocation6 + $0x460] sm:$0xff]
        %v480 = vld [vmem:[#allocation6 + $0x468] sm:$0xff]
        %v481 = vld [vmem:[#allocation6 + $0x470] sm:$0xff]
        %v482 = vld [vmem:[#allocation6 + $0x478] sm:$0xff]
        %v483 = vld [vmem:[#allocation6 + $0x480] sm:$0xff]
        %v484 = vld [vmem:[#allocation6 + $0x488] sm:$0xff]
        %v485 = vld [vmem:[#allocation6 + $0x490] sm:$0xff]
        %v486 = vld [vmem:[#allocation6 + $0x498] sm:$0xff]
        %v487 = vld [vmem:[#allocation6 + $0x4a0] sm:$0xff]
        %v488 = vld [vmem:[#allocation6 + $0x4a8] sm:$0xff]
        %v489 = vld [vmem:[#allocation6 + $0x4b0] sm:$0xff]
        %v490 = vld [vmem:[#allocation6 + $0x4b8] sm:$0xff]
        %v491 = vld [vmem:[#allocation6 + $0x4c0] sm:$0xff]
        %v492 = vld [vmem:[#allocation6 + $0x4c8] sm:$0xff]
        %v493 = vld [vmem:[#allocation6 + $0x4d0] sm:$0xff]
        %v494 = vld [vmem:[#allocation6 + $0x4d8] sm:$0xff]
        %v495 = vld [vmem:[#allocation6 + $0x4e0] sm:$0xff]
        %v496 = vld [vmem:[#allocation6 + $0x4e8] sm:$0xff]
        %v497 = vld [vmem:[#allocation6 + $0x4f0] sm:$0xff]
        %v498 = vld [vmem:[#allocation6 + $0x4f8] sm:$0xff]
        %v499 = vld [vmem:[#allocation6 + $0x500] sm:$0xff]
        %v500 = vld [vmem:[#allocation6 + $0x508] sm:$0xff]
        %v501 = vld [vmem:[#allocation6 + $0x510] sm:$0xff]
        %v502 = vld [vmem:[#allocation6 + $0x518] sm:$0xff]
        %v503 = vld [vmem:[#allocation6 + $0x520] sm:$0xff]
        %v504 = vld [vmem:[#allocation6 + $0x528] sm:$0xff]
        %v505 = vld [vmem:[#allocation6 + $0x530] sm:$0xff]
        %v506 = vld [vmem:[#allocation6 + $0x538] sm:$0xff]
        %v507 = vld [vmem:[#allocation6 + $0x540] sm:$0xff]
        %v508 = vld [vmem:[#allocation6 + $0x548] sm:$0xff]
        %v509 = vld [vmem:[#allocation6 + $0x550] sm:$0xff]
        %v510 = vld [vmem:[#allocation6 + $0x558] sm:$0xff]
        %v511 = vld [vmem:[#allocation6 + $0x560] sm:$0xff]
        %v512 = vld [vmem:[#allocation6 + $0x568] sm:$0xff]
        %v513 = vld [vmem:[#allocation6 + $0x570] sm:$0xff]
        %v514 = vld [vmem:[#allocation6 + $0x578] sm:$0xff]
        %v515 = vld [vmem:[#allocation6 + $0x580] sm:$0xff]
        %v516 = vld [vmem:[#allocation6 + $0x588] sm:$0xff]
        %v517 = vld [vmem:[#allocation6 + $0x590] sm:$0xff]
        %v518 = vld [vmem:[#allocation6 + $0x598] sm:$0xff]
        %v519 = vld [vmem:[#allocation6 + $0x5a0] sm:$0xff]
        %v520 = vld [vmem:[#allocation6 + $0x5a8] sm:$0xff]
        %v521 = vld [vmem:[#allocation6 + $0x5b0] sm:$0xff]
        %v522 = vld [vmem:[#allocation6 + $0x5b8] sm:$0xff]
        %v523 = vld [vmem:[#allocation6 + $0x5c0] sm:$0xff]
        %v524 = vld [vmem:[#allocation6 + $0x5c8] sm:$0xff]
        %v525 = vld [vmem:[#allocation6 + $0x5d0] sm:$0xff]
        %v526 = vld [vmem:[#allocation6 + $0x5d8] sm:$0xff]
        %v527 = vld [vmem:[#allocation6 + $0x5e0] sm:$0xff]
        %v528 = vld [vmem:[#allocation6 + $0x5e8] sm:$0xff]
        %v529 = vld [vmem:[#allocation6 + $0x5f0] sm:$0xff]
        %v530 = vld [vmem:[#allocation6 + $0x5f8] sm:$0xff]
        %v531 = vld [vmem:[#allocation6 + $0x600] sm:$0xff]
        %v532 = vld [vmem:[#allocation6 + $0x608] sm:$0xff]
        %v533 = vld [vmem:[#allocation6 + $0x610] sm:$0xff]
        %v534 = vld [vmem:[#allocation6 + $0x618] sm:$0xff]
        %v535 = vld [vmem:[#allocation6 + $0x620] sm:$0xff]
        %v536 = vld [vmem:[#allocation6 + $0x628] sm:$0xff]
        %v537 = vld [vmem:[#allocation6 + $0x630] sm:$0xff]
        %v538 = vld [vmem:[#allocation6 + $0x638] sm:$0xff]
        %v539 = vld [vmem:[#allocation6 + $0x640] sm:$0xff]
        %v540 = vld [vmem:[#allocation6 + $0x648] sm:$0xff]
        %v541 = vld [vmem:[#allocation6 + $0x650] sm:$0xff]
        %v542 = vld [vmem:[#allocation6 + $0x658] sm:$0xff]
        %v543 = vld [vmem:[#allocation6 + $0x660] sm:$0xff]
        %v544 = vld [vmem:[#allocation6 + $0x668] sm:$0xff]
        %v545 = vld [vmem:[#allocation6 + $0x670] sm:$0xff]
        %v546 = vld [vmem:[#allocation6 + $0x678] sm:$0xff]
        %v547 = vld [vmem:[#allocation6 + $0x680] sm:$0xff]
        %v548 = vld [vmem:[#allocation6 + $0x688] sm:$0xff]
        %v549 = vld [vmem:[#allocation6 + $0x690] sm:$0xff]
        %v550 = vld [vmem:[#allocation6 + $0x698] sm:$0xff]
        %v551 = vld [vmem:[#allocation6 + $0x6a0] sm:$0xff]
        %v552 = vld [vmem:[#allocation6 + $0x6a8] sm:$0xff]
        %v553 = vld [vmem:[#allocation6 + $0x6b0] sm:$0xff]
        %v554 = vld [vmem:[#allocation6 + $0x6b8] sm:$0xff]
        %v555 = vld [vmem:[#allocation6 + $0x6c0] sm:$0xff]
        %v556 = vld [vmem:[#allocation6 + $0x6c8] sm:$0xff]
        %v557 = vld [vmem:[#allocation6 + $0x6d0] sm:$0xff]
        %v558 = vld [vmem:[#allocation6 + $0x6d8] sm:$0xff]
        %v559 = vld [vmem:[#allocation6 + $0x6e0] sm:$0xff]
        %v560 = vld [vmem:[#allocation6 + $0x6e8] sm:$0xff]
        %v561 = vld [vmem:[#allocation6 + $0x6f0] sm:$0xff]
        %v562 = vld [vmem:[#allocation6 + $0x6f8] sm:$0xff]
        %v563 = vld [vmem:[#allocation6 + $0x700] sm:$0xff]
        %v564 = vld [vmem:[#allocation6 + $0x708] sm:$0xff]
        %v565 = vld [vmem:[#allocation6 + $0x710] sm:$0xff]
        %v566 = vld [vmem:[#allocation6 + $0x718] sm:$0xff]
        %v567 = vld [vmem:[#allocation6 + $0x720] sm:$0xff]
        %v568 = vld [vmem:[#allocation6 + $0x728] sm:$0xff]
        %v569 = vld [vmem:[#allocation6 + $0x730] sm:$0xff]
        %v570 = vld [vmem:[#allocation6 + $0x738] sm:$0xff]
        %v571 = vld [vmem:[#allocation6 + $0x740] sm:$0xff]
        %v572 = vld [vmem:[#allocation6 + $0x748] sm:$0xff]
        %v573 = vld [vmem:[#allocation6 + $0x750] sm:$0xff]
        %v574 = vld [vmem:[#allocation6 + $0x758] sm:$0xff]
        %v575 = vld [vmem:[#allocation6 + $0x760] sm:$0xff]
        %v576 = vld [vmem:[#allocation6 + $0x768] sm:$0xff]
        %v577 = vld [vmem:[#allocation6 + $0x770] sm:$0xff]
        %v578 = vld [vmem:[#allocation6 + $0x778] sm:$0xff]
        %v579 = vld [vmem:[#allocation6 + $0x780] sm:$0xff]
        %v580 = vld [vmem:[#allocation6 + $0x788] sm:$0xff]
        %v581 = vld [vmem:[#allocation6 + $0x790] sm:$0xff]
        %v582 = vld [vmem:[#allocation6 + $0x798] sm:$0xff]
        %v583 = vld [vmem:[#allocation6 + $0x7a0] sm:$0xff]
        %v584 = vld [vmem:[#allocation6 + $0x7a8] sm:$0xff]
        %v585 = vld [vmem:[#allocation6 + $0x7b0] sm:$0xff]
        %v586 = vld [vmem:[#allocation6 + $0x7b8] sm:$0xff]
        %v587 = vld [vmem:[#allocation6 + $0x7c0] sm:$0xff]
        %v588 = vld [vmem:[#allocation6 + $0x7c8] sm:$0xff]
        %v589 = vld [vmem:[#allocation6 + $0x7d0] sm:$0xff]
        %v590 = vld [vmem:[#allocation6 + $0x7d8] sm:$0xff]
        %v591 = vld [vmem:[#allocation6 + $0x7e0] sm:$0xff]
        %v592 = vld [vmem:[#allocation6 + $0x7e8] sm:$0xff]
        %v593 = vld [vmem:[#allocation6 + $0x7f0] sm:$0xff]
        %v594 = vld [vmem:[#allocation6 + $0x7f8] sm:$0xff]
        %v595 = vld [vmem:[#allocation6 + $0x800] sm:$0xff]
        %v596 = vld [vmem:[#allocation6 + $0x808] sm:$0xff]
        %v597 = vld [vmem:[#allocation6 + $0x810] sm:$0xff]
        %v598 = vld [vmem:[#allocation6 + $0x818] sm:$0xff]
        %v599 = vld [vmem:[#allocation6 + $0x820] sm:$0xff]
        %v600 = vld [vmem:[#allocation6 + $0x828] sm:$0xff]
        %v601 = vld [vmem:[#allocation6 + $0x830] sm:$0xff]
        %v602 = vld [vmem:[#allocation6 + $0x838] sm:$0xff]
        %v603 = vld [vmem:[#allocation6 + $0x840] sm:$0xff]
        %v604 = vld [vmem:[#allocation6 + $0x848] sm:$0xff]
        %v605 = vld [vmem:[#allocation6 + $0x850] sm:$0xff]
        %v606 = vld [vmem:[#allocation6 + $0x858] sm:$0xff]
        %v607 = vld [vmem:[#allocation6 + $0x860] sm:$0xff]
        %v608 = vld [vmem:[#allocation6 + $0x868] sm:$0xff]
        %v609 = vld [vmem:[#allocation6 + $0x870] sm:$0xff]
        %v610 = vld [vmem:[#allocation6 + $0x878] sm:$0xff]
        %v611 = vld [vmem:[#allocation6 + $0x880] sm:$0xff]
        %v612 = vld [vmem:[#allocation6 + $0x888] sm:$0xff]
        %v613 = vld [vmem:[#allocation6 + $0x890] sm:$0xff]
        %v614 = vld [vmem:[#allocation6 + $0x898] sm:$0xff]
        %v615 = vld [vmem:[#allocation6 + $0x8a0] sm:$0xff]
        %v616 = vld [vmem:[#allocation6 + $0x8a8] sm:$0xff]
        %v617 = vld [vmem:[#allocation6 + $0x8b0] sm:$0xff]
        %v618 = vld [vmem:[#allocation6 + $0x8b8] sm:$0xff]
        %v619 = vld [vmem:[#allocation6 + $0x8c0] sm:$0xff]
        %v620 = vld [vmem:[#allocation6 + $0x8c8] sm:$0xff]
        %v621 = vld [vmem:[#allocation6 + $0x8d0] sm:$0xff]
        %v622 = vld [vmem:[#allocation6 + $0x8d8] sm:$0xff]
        %v623 = vld [vmem:[#allocation6 + $0x8e0] sm:$0xff]
        %v624 = vld [vmem:[#allocation6 + $0x8e8] sm:$0xff]
        %v625 = vld [vmem:[#allocation6 + $0x8f0] sm:$0xff]
        %v626 = vld [vmem:[#allocation6 + $0x8f8] sm:$0xff]
        %v627 = vld [vmem:[#allocation6 + $0x900] sm:$0xff]
        %v628 = vld [vmem:[#allocation6 + $0x908] sm:$0xff]
        %v629 = vld [vmem:[#allocation6 + $0x910] sm:$0xff]
        %v630 = vld [vmem:[#allocation6 + $0x918] sm:$0xff]
        %v631 = vld [vmem:[#allocation6 + $0x920] sm:$0xff]
        %v632 = vld [vmem:[#allocation6 + $0x928] sm:$0xff]
        %v633 = vld [vmem:[#allocation6 + $0x930] sm:$0xff]
        %v634 = vld [vmem:[#allocation6 + $0x938] sm:$0xff]
        %v635 = vld [vmem:[#allocation6 + $0x940] sm:$0xff]
        %v636 = vld [vmem:[#allocation6 + $0x948] sm:$0xff]
        %v637 = vld [vmem:[#allocation6 + $0x950] sm:$0xff]
        %v638 = vld [vmem:[#allocation6 + $0x958] sm:$0xff]
        %v639 = vld [vmem:[#allocation6 + $0x960] sm:$0xff]
        %v640 = vld [vmem:[#allocation6 + $0x968] sm:$0xff]
        %v641 = vld [vmem:[#allocation6 + $0x970] sm:$0xff]
        %v642 = vld [vmem:[#allocation6 + $0x978] sm:$0xff]
        %v643 = vld [vmem:[#allocation6 + $0x980] sm:$0xff]
        %v644 = vld [vmem:[#allocation6 + $0x988] sm:$0xff]
        %v645 = vld [vmem:[#allocation6 + $0x990] sm:$0xff]
        %v646 = vld [vmem:[#allocation6 + $0x998] sm:$0xff]
        %v647 = vld [vmem:[#allocation6 + $0x9a0] sm:$0xff]
        %v648 = vld [vmem:[#allocation6 + $0x9a8] sm:$0xff]
        %v649 = vld [vmem:[#allocation6 + $0x9b0] sm:$0xff]
        %v650 = vld [vmem:[#allocation6 + $0x9b8] sm:$0xff]
        %v651 = vld [vmem:[#allocation6 + $0x9c0] sm:$0xff]
        %v652 = vld [vmem:[#allocation6 + $0x9c8] sm:$0xff]
        %v653 = vld [vmem:[#allocation6 + $0x9d0] sm:$0xff]
        %v654 = vld [vmem:[#allocation6 + $0x9d8] sm:$0xff]
        %v655 = vld [vmem:[#allocation6 + $0x9e0] sm:$0xff]
        %v656 = vld [vmem:[#allocation6 + $0x9e8] sm:$0xff]
        %v657 = vld [vmem:[#allocation6 + $0x9f0] sm:$0xff]
        %v658 = vld [vmem:[#allocation6 + $0x9f8] sm:$0xff]
        %v659 = vld [vmem:[#allocation6 + $0xa00] sm:$0xff]
        %v660 = vld [vmem:[#allocation6 + $0xa08] sm:$0xff]
        %v661 = vld [vmem:[#allocation6 + $0xa10] sm:$0xff]
        %v662 = vld [vmem:[#allocation6 + $0xa18] sm:$0xff]
        %v663 = vld [vmem:[#allocation6 + $0xa20] sm:$0xff]
        %v664 = vld [vmem:[#allocation6 + $0xa28] sm:$0xff]
        %v665 = vld [vmem:[#allocation6 + $0xa30] sm:$0xff]
        %v666 = vld [vmem:[#allocation6 + $0xa38] sm:$0xff]
        %v667 = vld [vmem:[#allocation6 + $0xa40] sm:$0xff]
        %v668 = vld [vmem:[#allocation6 + $0xa48] sm:$0xff]
        %v669 = vld [vmem:[#allocation6 + $0xa50] sm:$0xff]
        %v670 = vld [vmem:[#allocation6 + $0xa58] sm:$0xff]
        %v671 = vld [vmem:[#allocation6 + $0xa60] sm:$0xff]
        %v672 = vld [vmem:[#allocation6 + $0xa68] sm:$0xff]
        %v673 = vld [vmem:[#allocation6 + $0xa70] sm:$0xff]
        %v674 = vld [vmem:[#allocation6 + $0xa78] sm:$0xff]
        %v675 = vld [vmem:[#allocation6 + $0xa80] sm:$0xff]
        %v676 = vld [vmem:[#allocation6 + $0xa88] sm:$0xff]
        %v677 = vld [vmem:[#allocation6 + $0xa90] sm:$0xff]
        %v678 = vld [vmem:[#allocation6 + $0xa98] sm:$0xff]
        %v679 = vld [vmem:[#allocation6 + $0xaa0] sm:$0xff]
        %v680 = vld [vmem:[#allocation6 + $0xaa8] sm:$0xff]
        %v681 = vld [vmem:[#allocation6 + $0xab0] sm:$0xff]
        %v682 = vld [vmem:[#allocation6 + $0xab8] sm:$0xff]
        %v683 = vld [vmem:[#allocation6 + $0xac0] sm:$0xff]
        %v684 = vld [vmem:[#allocation6 + $0xac8] sm:$0xff]
        %v685 = vld [vmem:[#allocation6 + $0xad0] sm:$0xff]
        %v686 = vld [vmem:[#allocation6 + $0xad8] sm:$0xff]
        %v687 = vld [vmem:[#allocation6 + $0xae0] sm:$0xff]
        %v688 = vld [vmem:[#allocation6 + $0xae8] sm:$0xff]
        %v689 = vld [vmem:[#allocation6 + $0xaf0] sm:$0xff]
        %v690 = vld [vmem:[#allocation6 + $0xaf8] sm:$0xff]
        %v691 = vld [vmem:[#allocation6 + $0xb00] sm:$0xff]
        %v692 = vld [vmem:[#allocation6 + $0xb08] sm:$0xff]
        %v693 = vld [vmem:[#allocation6 + $0xb10] sm:$0xff]
        %v694 = vld [vmem:[#allocation6 + $0xb18] sm:$0xff]
        %v695 = vld [vmem:[#allocation6 + $0xb20] sm:$0xff]
        %v696 = vld [vmem:[#allocation6 + $0xb28] sm:$0xff]
        %v697 = vld [vmem:[#allocation6 + $0xb30] sm:$0xff]
        %v698 = vld [vmem:[#allocation6 + $0xb38] sm:$0xff]
        %v699 = vld [vmem:[#allocation6 + $0xb40] sm:$0xff]
        %v700 = vld [vmem:[#allocation6 + $0xb48] sm:$0xff]
        %v701 = vld [vmem:[#allocation6 + $0xb50] sm:$0xff]
        %v702 = vld [vmem:[#allocation6 + $0xb58] sm:$0xff]
        %v703 = vld [vmem:[#allocation6 + $0xb60] sm:$0xff]
        %v704 = vld [vmem:[#allocation6 + $0xb68] sm:$0xff]
        %v705 = vld [vmem:[#allocation6 + $0xb70] sm:$0xff]
        %v706 = vld [vmem:[#allocation6 + $0xb78] sm:$0xff]
        %v707 = vld [vmem:[#allocation6 + $0xb80] sm:$0xff]
        %v708 = vld [vmem:[#allocation6 + $0xb88] sm:$0xff]
        %v709 = vld [vmem:[#allocation6 + $0xb90] sm:$0xff]
        %v710 = vld [vmem:[#allocation6 + $0xb98] sm:$0xff]
        %v711 = vld [vmem:[#allocation6 + $0xba0] sm:$0xff]
        %v712 = vld [vmem:[#allocation6 + $0xba8] sm:$0xff]
        %v713 = vld [vmem:[#allocation6 + $0xbb0] sm:$0xff]
        %v714 = vld [vmem:[#allocation6 + $0xbb8] sm:$0xff]
        %v715 = vld [vmem:[#allocation6 + $0xbc0] sm:$0xff]
        %v716 = vld [vmem:[#allocation6 + $0xbc8] sm:$0xff]
        %v717 = vld [vmem:[#allocation6 + $0xbd0] sm:$0xff]
        %v718 = vld [vmem:[#allocation6 + $0xbd8] sm:$0xff]
        %v719 = vld [vmem:[#allocation6 + $0xbe0] sm:$0xff]
        %v720 = vld [vmem:[#allocation6 + $0xbe8] sm:$0xff]
        %v721 = vld [vmem:[#allocation6 + $0xbf0] sm:$0xff]
        %v722 = vld [vmem:[#allocation6 + $0xbf8] sm:$0xff]
        %v723 = vld [vmem:[#allocation8] sm:$0xff]
        %v724 = vld [vmem:[#allocation8 + $0x8] sm:$0xf]
        %v727 = vperm.slane %v723, 0
        %v728 = vperm.slane %v723, 1
        %v729 = vperm.slane %v723, 2
        %v730 = vperm.slane %v723, 3
        %v731 = vperm.slane %v723, 4
        %v732 = vperm.slane %v723, 5
        %v733 = vperm.slane %v723, 6
        %v734 = vperm.slane %v723, 7
        %v735 = vperm.slane %v724, 0
        %v736 = vperm.slane %v724, 1
        %v737 = vperm.slane %v724, 2
        %v738 = vperm.slane %v724, 3
        %v783 = vunpack.c.l.b16 %v307
        %v784 = vunpack.c.h.b16 %v307
        %v785 = vunpack.c.l.b16 %v308
        %v786 = vunpack.c.h.b16 %v308
        %v787 = vunpack.c.l.b16 %v309
        %v788 = vunpack.c.h.b16 %v309
        %v789 = vunpack.c.l.b16 %v310
        %v790 = vunpack.c.h.b16 %v310
        %v791 = vunpack.c.l.b16 %v311
        %v792 = vunpack.c.h.b16 %v311
        %v793 = vunpack.c.l.b16 %v312
        %v794 = vunpack.c.h.b16 %v312
        %v795 = vunpack.c.l.b16 %v313
        %v796 = vunpack.c.h.b16 %v313
        %v797 = vunpack.c.l.b16 %v314
        %v798 = vunpack.c.h.b16 %v314
        %v799 = vunpack.c.l.b16 %v315
        %v800 = vunpack.c.h.b16 %v315
        %v801 = vunpack.c.l.b16 %v316
        %v802 = vunpack.c.h.b16 %v316
        %v803 = vunpack.c.l.b16 %v317
        %v804 = vunpack.c.h.b16 %v317
        %v805 = vunpack.c.l.b16 %v318
        %v806 = vunpack.c.h.b16 %v318
        %v807 = vunpack.c.l.b16 %v319
        %v808 = vunpack.c.h.b16 %v319
        %v809 = vunpack.c.l.b16 %v320
        %v810 = vunpack.c.h.b16 %v320
        %v811 = vunpack.c.l.b16 %v321
        %v812 = vunpack.c.h.b16 %v321
        %v813 = vunpack.c.l.b16 %v322
        %v814 = vunpack.c.h.b16 %v322
        %v815 = vunpack.c.l.b16 %v323
        %v816 = vunpack.c.h.b16 %v323
        %v817 = vunpack.c.l.b16 %v324
        %v818 = vunpack.c.h.b16 %v324
        %v819 = vunpack.c.l.b16 %v325
        %v820 = vunpack.c.h.b16 %v325
        %v821 = vunpack.c.l.b16 %v326
        %v822 = vunpack.c.h.b16 %v326
        %v823 = vunpack.c.l.b16 %v327
        %v824 = vunpack.c.h.b16 %v327
        %v825 = vunpack.c.l.b16 %v328
        %v826 = vunpack.c.h.b16 %v328
        %v827 = vunpack.c.l.b16 %v329
        %v828 = vunpack.c.h.b16 %v329
        %v829 = vunpack.c.l.b16 %v330
        %v830 = vunpack.c.h.b16 %v330
        %v831 = vunpack.c.l.b16 %v331
        %v832 = vunpack.c.h.b16 %v331
        %v833 = vunpack.c.l.b16 %v332
        %v834 = vunpack.c.h.b16 %v332
        %v835 = vunpack.c.l.b16 %v333
        %v836 = vunpack.c.h.b16 %v333
        %v837 = vunpack.c.l.b16 %v334
        %v838 = vunpack.c.h.b16 %v334
        %v839 = vunpack.c.l.b16 %v335
        %v840 = vunpack.c.h.b16 %v335
        %v841 = vunpack.c.l.b16 %v336
        %v842 = vunpack.c.h.b16 %v336
        %v843 = vunpack.c.l.b16 %v337
        %v844 = vunpack.c.h.b16 %v337
        %v845 = vunpack.c.l.b16 %v338
        %v846 = vunpack.c.h.b16 %v338
        %v847 = vpack.c.b16 %v787, %v783
        %v848 = vpack.c.b16 %v788, %v784
        %v849 = vpack.c.b16 %v789, %v785
        %v850 = vpack.c.b16 %v790, %v786
        %v851 = vpack.c.b16 %v795, %v791
        %v852 = vpack.c.b16 %v796, %v792
        %v853 = vpack.c.b16 %v797, %v793
        %v854 = vpack.c.b16 %v798, %v794
        %v855 = vpack.c.b16 %v803, %v799
        %v856 = vpack.c.b16 %v804, %v800
        %v857 = vpack.c.b16 %v805, %v801
        %v858 = vpack.c.b16 %v806, %v802
        %v859 = vpack.c.b16 %v811, %v807
        %v860 = vpack.c.b16 %v812, %v808
        %v861 = vpack.c.b16 %v813, %v809
        %v862 = vpack.c.b16 %v814, %v810
        %v863 = vpack.c.b16 %v819, %v815
        %v864 = vpack.c.b16 %v820, %v816
        %v865 = vpack.c.b16 %v821, %v817
        %v866 = vpack.c.b16 %v822, %v818
        %v867 = vpack.c.b16 %v827, %v823
        %v868 = vpack.c.b16 %v828, %v824
        %v869 = vpack.c.b16 %v829, %v825
        %v870 = vpack.c.b16 %v830, %v826
        %v871 = vpack.c.b16 %v835, %v831
        %v872 = vpack.c.b16 %v836, %v832
        %v873 = vpack.c.b16 %v837, %v833
        %v874 = vpack.c.b16 %v838, %v834
        %v875 = vpack.c.b16 %v843, %v839
        %v876 = vpack.c.b16 %v844, %v840
        %v877 = vpack.c.b16 %v845, %v841
        %v878 = vpack.c.b16 %v846, %v842
        %v1295 = vunpack.c.l.b16 %v339
        %v1296 = vunpack.c.h.b16 %v339
        %v1297 = vunpack.c.l.b16 %v340
        %v1298 = vunpack.c.h.b16 %v340
        %v1299 = vunpack.c.l.b16 %v341
        %v1300 = vunpack.c.h.b16 %v341
        %v1301 = vunpack.c.l.b16 %v342
        %v1302 = vunpack.c.h.b16 %v342
        %v1303 = vunpack.c.l.b16 %v343
        %v1304 = vunpack.c.h.b16 %v343
        %v1305 = vunpack.c.l.b16 %v344
        %v1306 = vunpack.c.h.b16 %v344
        %v1307 = vunpack.c.l.b16 %v345
        %v1308 = vunpack.c.h.b16 %v345
        %v1309 = vunpack.c.l.b16 %v346
        %v1310 = vunpack.c.h.b16 %v346
        %v1311 = vunpack.c.l.b16 %v347
        %v1312 = vunpack.c.h.b16 %v347
        %v1313 = vunpack.c.l.b16 %v348
        %v1314 = vunpack.c.h.b16 %v348
        %v1315 = vunpack.c.l.b16 %v349
        %v1316 = vunpack.c.h.b16 %v349
        %v1317 = vunpack.c.l.b16 %v350
        %v1318 = vunpack.c.h.b16 %v350
        %v1319 = vunpack.c.l.b16 %v351
        %v1320 = vunpack.c.h.b16 %v351
        %v1321 = vunpack.c.l.b16 %v352
        %v1322 = vunpack.c.h.b16 %v352
        %v1323 = vunpack.c.l.b16 %v353
        %v1324 = vunpack.c.h.b16 %v353
        %v1325 = vunpack.c.l.b16 %v354
        %v1326 = vunpack.c.h.b16 %v354
        %v1327 = vunpack.c.l.b16 %v355
        %v1328 = vunpack.c.h.b16 %v355
        %v1329 = vunpack.c.l.b16 %v356
        %v1330 = vunpack.c.h.b16 %v356
        %v1331 = vunpack.c.l.b16 %v357
        %v1332 = vunpack.c.h.b16 %v357
        %v1333 = vunpack.c.l.b16 %v358
        %v1334 = vunpack.c.h.b16 %v358
        %v1335 = vunpack.c.l.b16 %v359
        %v1336 = vunpack.c.h.b16 %v359
        %v1337 = vunpack.c.l.b16 %v360
        %v1338 = vunpack.c.h.b16 %v360
        %v1339 = vunpack.c.l.b16 %v361
        %v1340 = vunpack.c.h.b16 %v361
        %v1341 = vunpack.c.l.b16 %v362
        %v1342 = vunpack.c.h.b16 %v362
        %v1343 = vunpack.c.l.b16 %v363
        %v1344 = vunpack.c.h.b16 %v363
        %v1345 = vunpack.c.l.b16 %v364
        %v1346 = vunpack.c.h.b16 %v364
        %v1347 = vunpack.c.l.b16 %v365
        %v1348 = vunpack.c.h.b16 %v365
        %v1349 = vunpack.c.l.b16 %v366
        %v1350 = vunpack.c.h.b16 %v366
        %v1351 = vunpack.c.l.b16 %v367
        %v1352 = vunpack.c.h.b16 %v367
        %v1353 = vunpack.c.l.b16 %v368
        %v1354 = vunpack.c.h.b16 %v368
        %v1355 = vunpack.c.l.b16 %v369
        %v1356 = vunpack.c.h.b16 %v369
        %v1357 = vunpack.c.l.b16 %v370
        %v1358 = vunpack.c.h.b16 %v370
        %v1359 = vunpack.c.l.b16 %v371
        %v1360 = vunpack.c.h.b16 %v371
        %v1361 = vunpack.c.l.b16 %v372
        %v1362 = vunpack.c.h.b16 %v372
        %v1363 = vunpack.c.l.b16 %v373
        %v1364 = vunpack.c.h.b16 %v373
        %v1365 = vunpack.c.l.b16 %v374
        %v1366 = vunpack.c.h.b16 %v374
        %v1367 = vunpack.c.l.b16 %v375
        %v1368 = vunpack.c.h.b16 %v375
        %v1369 = vunpack.c.l.b16 %v376
        %v1370 = vunpack.c.h.b16 %v376
        %v1371 = vunpack.c.l.b16 %v377
        %v1372 = vunpack.c.h.b16 %v377
        %v1373 = vunpack.c.l.b16 %v378
        %v1374 = vunpack.c.h.b16 %v378
        %v1375 = vunpack.c.l.b16 %v379
        %v1376 = vunpack.c.h.b16 %v379
        %v1377 = vunpack.c.l.b16 %v380
        %v1378 = vunpack.c.h.b16 %v380
        %v1379 = vunpack.c.l.b16 %v381
        %v1380 = vunpack.c.h.b16 %v381
        %v1381 = vunpack.c.l.b16 %v382
        %v1382 = vunpack.c.h.b16 %v382
        %v1383 = vunpack.c.l.b16 %v383
        %v1384 = vunpack.c.h.b16 %v383
        %v1385 = vunpack.c.l.b16 %v384
        %v1386 = vunpack.c.h.b16 %v384
        %v1387 = vunpack.c.l.b16 %v385
        %v1388 = vunpack.c.h.b16 %v385
        %v1389 = vunpack.c.l.b16 %v386
        %v1390 = vunpack.c.h.b16 %v386
        %v1391 = vunpack.c.l.b16 %v387
        %v1392 = vunpack.c.h.b16 %v387
        %v1393 = vunpack.c.l.b16 %v388
        %v1394 = vunpack.c.h.b16 %v388
        %v1395 = vunpack.c.l.b16 %v389
        %v1396 = vunpack.c.h.b16 %v389
        %v1397 = vunpack.c.l.b16 %v390
        %v1398 = vunpack.c.h.b16 %v390
        %v1399 = vunpack.c.l.b16 %v391
        %v1400 = vunpack.c.h.b16 %v391
        %v1401 = vunpack.c.l.b16 %v392
        %v1402 = vunpack.c.h.b16 %v392
        %v1403 = vunpack.c.l.b16 %v393
        %v1404 = vunpack.c.h.b16 %v393
        %v1405 = vunpack.c.l.b16 %v394
        %v1406 = vunpack.c.h.b16 %v394
        %v1407 = vunpack.c.l.b16 %v395
        %v1408 = vunpack.c.h.b16 %v395
        %v1409 = vunpack.c.l.b16 %v396
        %v1410 = vunpack.c.h.b16 %v396
        %v1411 = vunpack.c.l.b16 %v397
        %v1412 = vunpack.c.h.b16 %v397
        %v1413 = vunpack.c.l.b16 %v398
        %v1414 = vunpack.c.h.b16 %v398
        %v1415 = vunpack.c.l.b16 %v399
        %v1416 = vunpack.c.h.b16 %v399
        %v1417 = vunpack.c.l.b16 %v400
        %v1418 = vunpack.c.h.b16 %v400
        %v1419 = vunpack.c.l.b16 %v401
        %v1420 = vunpack.c.h.b16 %v401
        %v1421 = vunpack.c.l.b16 %v402
        %v1422 = vunpack.c.h.b16 %v402
        %v1423 = vunpack.c.l.b16 %v403
        %v1424 = vunpack.c.h.b16 %v403
        %v1425 = vunpack.c.l.b16 %v404
        %v1426 = vunpack.c.h.b16 %v404
        %v1427 = vunpack.c.l.b16 %v405
        %v1428 = vunpack.c.h.b16 %v405
        %v1429 = vunpack.c.l.b16 %v406
        %v1430 = vunpack.c.h.b16 %v406
        %v1431 = vunpack.c.l.b16 %v407
        %v1432 = vunpack.c.h.b16 %v407
        %v1433 = vunpack.c.l.b16 %v408
        %v1434 = vunpack.c.h.b16 %v408
        %v1435 = vunpack.c.l.b16 %v409
        %v1436 = vunpack.c.h.b16 %v409
        %v1437 = vunpack.c.l.b16 %v410
        %v1438 = vunpack.c.h.b16 %v410
        %v1439 = vunpack.c.l.b16 %v411
        %v1440 = vunpack.c.h.b16 %v411
        %v1441 = vunpack.c.l.b16 %v412
        %v1442 = vunpack.c.h.b16 %v412
        %v1443 = vunpack.c.l.b16 %v413
        %v1444 = vunpack.c.h.b16 %v413
        %v1445 = vunpack.c.l.b16 %v414
        %v1446 = vunpack.c.h.b16 %v414
        %v1447 = vunpack.c.l.b16 %v415
        %v1448 = vunpack.c.h.b16 %v415
        %v1449 = vunpack.c.l.b16 %v416
        %v1450 = vunpack.c.h.b16 %v416
        %v1451 = vunpack.c.l.b16 %v417
        %v1452 = vunpack.c.h.b16 %v417
        %v1453 = vunpack.c.l.b16 %v418
        %v1454 = vunpack.c.h.b16 %v418
        %v1455 = vunpack.c.l.b16 %v419
        %v1456 = vunpack.c.h.b16 %v419
        %v1457 = vunpack.c.l.b16 %v420
        %v1458 = vunpack.c.h.b16 %v420
        %v1459 = vunpack.c.l.b16 %v421
        %v1460 = vunpack.c.h.b16 %v421
        %v1461 = vunpack.c.l.b16 %v422
        %v1462 = vunpack.c.h.b16 %v422
        %v1463 = vunpack.c.l.b16 %v423
        %v1464 = vunpack.c.h.b16 %v423
        %v1465 = vunpack.c.l.b16 %v424
        %v1466 = vunpack.c.h.b16 %v424
        %v1467 = vunpack.c.l.b16 %v425
        %v1468 = vunpack.c.h.b16 %v425
        %v1469 = vunpack.c.l.b16 %v426
        %v1470 = vunpack.c.h.b16 %v426
        %v1471 = vunpack.c.l.b16 %v427
        %v1472 = vunpack.c.h.b16 %v427
        %v1473 = vunpack.c.l.b16 %v428
        %v1474 = vunpack.c.h.b16 %v428
        %v1475 = vunpack.c.l.b16 %v429
        %v1476 = vunpack.c.h.b16 %v429
        %v1477 = vunpack.c.l.b16 %v430
        %v1478 = vunpack.c.h.b16 %v430
        %v1479 = vunpack.c.l.b16 %v431
        %v1480 = vunpack.c.h.b16 %v431
        %v1481 = vunpack.c.l.b16 %v432
        %v1482 = vunpack.c.h.b16 %v432
        %v1483 = vunpack.c.l.b16 %v433
        %v1484 = vunpack.c.h.b16 %v433
        %v1485 = vunpack.c.l.b16 %v434
        %v1486 = vunpack.c.h.b16 %v434
        %v1487 = vunpack.c.l.b16 %v435
        %v1488 = vunpack.c.h.b16 %v435
        %v1489 = vunpack.c.l.b16 %v436
        %v1490 = vunpack.c.h.b16 %v436
        %v1491 = vunpack.c.l.b16 %v437
        %v1492 = vunpack.c.h.b16 %v437
        %v1493 = vunpack.c.l.b16 %v438
        %v1494 = vunpack.c.h.b16 %v438
        %v1495 = vunpack.c.l.b16 %v439
        %v1496 = vunpack.c.h.b16 %v439
        %v1497 = vunpack.c.l.b16 %v440
        %v1498 = vunpack.c.h.b16 %v440
        %v1499 = vunpack.c.l.b16 %v441
        %v1500 = vunpack.c.h.b16 %v441
        %v1501 = vunpack.c.l.b16 %v442
        %v1502 = vunpack.c.h.b16 %v442
        %v1503 = vunpack.c.l.b16 %v443
        %v1504 = vunpack.c.h.b16 %v443
        %v1505 = vunpack.c.l.b16 %v444
        %v1506 = vunpack.c.h.b16 %v444
        %v1507 = vunpack.c.l.b16 %v445
        %v1508 = vunpack.c.h.b16 %v445
        %v1509 = vunpack.c.l.b16 %v446
        %v1510 = vunpack.c.h.b16 %v446
        %v1511 = vunpack.c.l.b16 %v447
        %v1512 = vunpack.c.h.b16 %v447
        %v1513 = vunpack.c.l.b16 %v448
        %v1514 = vunpack.c.h.b16 %v448
        %v1515 = vunpack.c.l.b16 %v449
        %v1516 = vunpack.c.h.b16 %v449
        %v1517 = vunpack.c.l.b16 %v450
        %v1518 = vunpack.c.h.b16 %v450
        %v1519 = vunpack.c.l.b16 %v451
        %v1520 = vunpack.c.h.b16 %v451
        %v1521 = vunpack.c.l.b16 %v452
        %v1522 = vunpack.c.h.b16 %v452
        %v1523 = vunpack.c.l.b16 %v453
        %v1524 = vunpack.c.h.b16 %v453
        %v1525 = vunpack.c.l.b16 %v454
        %v1526 = vunpack.c.h.b16 %v454
        %v1527 = vunpack.c.l.b16 %v455
        %v1528 = vunpack.c.h.b16 %v455
        %v1529 = vunpack.c.l.b16 %v456
        %v1530 = vunpack.c.h.b16 %v456
        %v1531 = vunpack.c.l.b16 %v457
        %v1532 = vunpack.c.h.b16 %v457
        %v1533 = vunpack.c.l.b16 %v458
        %v1534 = vunpack.c.h.b16 %v458
        %v1535 = vunpack.c.l.b16 %v459
        %v1536 = vunpack.c.h.b16 %v459
        %v1537 = vunpack.c.l.b16 %v460
        %v1538 = vunpack.c.h.b16 %v460
        %v1539 = vunpack.c.l.b16 %v461
        %v1540 = vunpack.c.h.b16 %v461
        %v1541 = vunpack.c.l.b16 %v462
        %v1542 = vunpack.c.h.b16 %v462
        %v1543 = vunpack.c.l.b16 %v463
        %v1544 = vunpack.c.h.b16 %v463
        %v1545 = vunpack.c.l.b16 %v464
        %v1546 = vunpack.c.h.b16 %v464
        %v1547 = vunpack.c.l.b16 %v465
        %v1548 = vunpack.c.h.b16 %v465
        %v1549 = vunpack.c.l.b16 %v466
        %v1550 = vunpack.c.h.b16 %v466
        %v1551 = vunpack.c.l.b16 %v467
        %v1552 = vunpack.c.h.b16 %v467
        %v1553 = vunpack.c.l.b16 %v468
        %v1554 = vunpack.c.h.b16 %v468
        %v1555 = vunpack.c.l.b16 %v469
        %v1556 = vunpack.c.h.b16 %v469
        %v1557 = vunpack.c.l.b16 %v470
        %v1558 = vunpack.c.h.b16 %v470
        %v1559 = vunpack.c.l.b16 %v471
        %v1560 = vunpack.c.h.b16 %v471
        %v1561 = vunpack.c.l.b16 %v472
        %v1562 = vunpack.c.h.b16 %v472
        %v1563 = vunpack.c.l.b16 %v473
        %v1564 = vunpack.c.h.b16 %v473
        %v1565 = vunpack.c.l.b16 %v474
        %v1566 = vunpack.c.h.b16 %v474
        %v1567 = vunpack.c.l.b16 %v475
        %v1568 = vunpack.c.h.b16 %v475
        %v1569 = vunpack.c.l.b16 %v476
        %v1570 = vunpack.c.h.b16 %v476
        %v1571 = vunpack.c.l.b16 %v477
        %v1572 = vunpack.c.h.b16 %v477
        %v1573 = vunpack.c.l.b16 %v478
        %v1574 = vunpack.c.h.b16 %v478
        %v1575 = vunpack.c.l.b16 %v479
        %v1576 = vunpack.c.h.b16 %v479
        %v1577 = vunpack.c.l.b16 %v480
        %v1578 = vunpack.c.h.b16 %v480
        %v1579 = vunpack.c.l.b16 %v481
        %v1580 = vunpack.c.h.b16 %v481
        %v1581 = vunpack.c.l.b16 %v482
        %v1582 = vunpack.c.h.b16 %v482
        %v1583 = vunpack.c.l.b16 %v483
        %v1584 = vunpack.c.h.b16 %v483
        %v1585 = vunpack.c.l.b16 %v484
        %v1586 = vunpack.c.h.b16 %v484
        %v1587 = vunpack.c.l.b16 %v485
        %v1588 = vunpack.c.h.b16 %v485
        %v1589 = vunpack.c.l.b16 %v486
        %v1590 = vunpack.c.h.b16 %v486
        %v1591 = vunpack.c.l.b16 %v487
        %v1592 = vunpack.c.h.b16 %v487
        %v1593 = vunpack.c.l.b16 %v488
        %v1594 = vunpack.c.h.b16 %v488
        %v1595 = vunpack.c.l.b16 %v489
        %v1596 = vunpack.c.h.b16 %v489
        %v1597 = vunpack.c.l.b16 %v490
        %v1598 = vunpack.c.h.b16 %v490
        %v1599 = vunpack.c.l.b16 %v491
        %v1600 = vunpack.c.h.b16 %v491
        %v1601 = vunpack.c.l.b16 %v492
        %v1602 = vunpack.c.h.b16 %v492
        %v1603 = vunpack.c.l.b16 %v493
        %v1604 = vunpack.c.h.b16 %v493
        %v1605 = vunpack.c.l.b16 %v494
        %v1606 = vunpack.c.h.b16 %v494
        %v1607 = vunpack.c.l.b16 %v495
        %v1608 = vunpack.c.h.b16 %v495
        %v1609 = vunpack.c.l.b16 %v496
        %v1610 = vunpack.c.h.b16 %v496
        %v1611 = vunpack.c.l.b16 %v497
        %v1612 = vunpack.c.h.b16 %v497
        %v1613 = vunpack.c.l.b16 %v498
        %v1614 = vunpack.c.h.b16 %v498
        %v1615 = vunpack.c.l.b16 %v499
        %v1616 = vunpack.c.h.b16 %v499
        %v1617 = vunpack.c.l.b16 %v500
        %v1618 = vunpack.c.h.b16 %v500
        %v1619 = vunpack.c.l.b16 %v501
        %v1620 = vunpack.c.h.b16 %v501
        %v1621 = vunpack.c.l.b16 %v502
        %v1622 = vunpack.c.h.b16 %v502
        %v1623 = vunpack.c.l.b16 %v503
        %v1624 = vunpack.c.h.b16 %v503
        %v1625 = vunpack.c.l.b16 %v504
        %v1626 = vunpack.c.h.b16 %v504
        %v1627 = vunpack.c.l.b16 %v505
        %v1628 = vunpack.c.h.b16 %v505
        %v1629 = vunpack.c.l.b16 %v506
        %v1630 = vunpack.c.h.b16 %v506
        %v1631 = vunpack.c.l.b16 %v507
        %v1632 = vunpack.c.h.b16 %v507
        %v1633 = vunpack.c.l.b16 %v508
        %v1634 = vunpack.c.h.b16 %v508
        %v1635 = vunpack.c.l.b16 %v509
        %v1636 = vunpack.c.h.b16 %v509
        %v1637 = vunpack.c.l.b16 %v510
        %v1638 = vunpack.c.h.b16 %v510
        %v1639 = vunpack.c.l.b16 %v511
        %v1640 = vunpack.c.h.b16 %v511
        %v1641 = vunpack.c.l.b16 %v512
        %v1642 = vunpack.c.h.b16 %v512
        %v1643 = vunpack.c.l.b16 %v513
        %v1644 = vunpack.c.h.b16 %v513
        %v1645 = vunpack.c.l.b16 %v514
        %v1646 = vunpack.c.h.b16 %v514
        %v1647 = vunpack.c.l.b16 %v515
        %v1648 = vunpack.c.h.b16 %v515
        %v1649 = vunpack.c.l.b16 %v516
        %v1650 = vunpack.c.h.b16 %v516
        %v1651 = vunpack.c.l.b16 %v517
        %v1652 = vunpack.c.h.b16 %v517
        %v1653 = vunpack.c.l.b16 %v518
        %v1654 = vunpack.c.h.b16 %v518
        %v1655 = vunpack.c.l.b16 %v519
        %v1656 = vunpack.c.h.b16 %v519
        %v1657 = vunpack.c.l.b16 %v520
        %v1658 = vunpack.c.h.b16 %v520
        %v1659 = vunpack.c.l.b16 %v521
        %v1660 = vunpack.c.h.b16 %v521
        %v1661 = vunpack.c.l.b16 %v522
        %v1662 = vunpack.c.h.b16 %v522
        %v1663 = vunpack.c.l.b16 %v523
        %v1664 = vunpack.c.h.b16 %v523
        %v1665 = vunpack.c.l.b16 %v524
        %v1666 = vunpack.c.h.b16 %v524
        %v1667 = vunpack.c.l.b16 %v525
        %v1668 = vunpack.c.h.b16 %v525
        %v1669 = vunpack.c.l.b16 %v526
        %v1670 = vunpack.c.h.b16 %v526
        %v1671 = vunpack.c.l.b16 %v527
        %v1672 = vunpack.c.h.b16 %v527
        %v1673 = vunpack.c.l.b16 %v528
        %v1674 = vunpack.c.h.b16 %v528
        %v1675 = vunpack.c.l.b16 %v529
        %v1676 = vunpack.c.h.b16 %v529
        %v1677 = vunpack.c.l.b16 %v530
        %v1678 = vunpack.c.h.b16 %v530
        %v1679 = vunpack.c.l.b16 %v531
        %v1680 = vunpack.c.h.b16 %v531
        %v1681 = vunpack.c.l.b16 %v532
        %v1682 = vunpack.c.h.b16 %v532
        %v1683 = vunpack.c.l.b16 %v533
        %v1684 = vunpack.c.h.b16 %v533
        %v1685 = vunpack.c.l.b16 %v534
        %v1686 = vunpack.c.h.b16 %v534
        %v1687 = vunpack.c.l.b16 %v535
        %v1688 = vunpack.c.h.b16 %v535
        %v1689 = vunpack.c.l.b16 %v536
        %v1690 = vunpack.c.h.b16 %v536
        %v1691 = vunpack.c.l.b16 %v537
        %v1692 = vunpack.c.h.b16 %v537
        %v1693 = vunpack.c.l.b16 %v538
        %v1694 = vunpack.c.h.b16 %v538
        %v1695 = vunpack.c.l.b16 %v539
        %v1696 = vunpack.c.h.b16 %v539
        %v1697 = vunpack.c.l.b16 %v540
        %v1698 = vunpack.c.h.b16 %v540
        %v1699 = vunpack.c.l.b16 %v541
        %v1700 = vunpack.c.h.b16 %v541
        %v1701 = vunpack.c.l.b16 %v542
        %v1702 = vunpack.c.h.b16 %v542
        %v1703 = vunpack.c.l.b16 %v543
        %v1704 = vunpack.c.h.b16 %v543
        %v1705 = vunpack.c.l.b16 %v544
        %v1706 = vunpack.c.h.b16 %v544
        %v1707 = vunpack.c.l.b16 %v545
        %v1708 = vunpack.c.h.b16 %v545
        %v1709 = vunpack.c.l.b16 %v546
        %v1710 = vunpack.c.h.b16 %v546
        %v1711 = vunpack.c.l.b16 %v547
        %v1712 = vunpack.c.h.b16 %v547
        %v1713 = vunpack.c.l.b16 %v548
        %v1714 = vunpack.c.h.b16 %v548
        %v1715 = vunpack.c.l.b16 %v549
        %v1716 = vunpack.c.h.b16 %v549
        %v1717 = vunpack.c.l.b16 %v550
        %v1718 = vunpack.c.h.b16 %v550
        %v1719 = vunpack.c.l.b16 %v551
        %v1720 = vunpack.c.h.b16 %v551
        %v1721 = vunpack.c.l.b16 %v552
        %v1722 = vunpack.c.h.b16 %v552
        %v1723 = vunpack.c.l.b16 %v553
        %v1724 = vunpack.c.h.b16 %v553
        %v1725 = vunpack.c.l.b16 %v554
        %v1726 = vunpack.c.h.b16 %v554
        %v1727 = vunpack.c.l.b16 %v555
        %v1728 = vunpack.c.h.b16 %v555
        %v1729 = vunpack.c.l.b16 %v556
        %v1730 = vunpack.c.h.b16 %v556
        %v1731 = vunpack.c.l.b16 %v557
        %v1732 = vunpack.c.h.b16 %v557
        %v1733 = vunpack.c.l.b16 %v558
        %v1734 = vunpack.c.h.b16 %v558
        %v1735 = vunpack.c.l.b16 %v559
        %v1736 = vunpack.c.h.b16 %v559
        %v1737 = vunpack.c.l.b16 %v560
        %v1738 = vunpack.c.h.b16 %v560
        %v1739 = vunpack.c.l.b16 %v561
        %v1740 = vunpack.c.h.b16 %v561
        %v1741 = vunpack.c.l.b16 %v562
        %v1742 = vunpack.c.h.b16 %v562
        %v1743 = vunpack.c.l.b16 %v563
        %v1744 = vunpack.c.h.b16 %v563
        %v1745 = vunpack.c.l.b16 %v564
        %v1746 = vunpack.c.h.b16 %v564
        %v1747 = vunpack.c.l.b16 %v565
        %v1748 = vunpack.c.h.b16 %v565
        %v1749 = vunpack.c.l.b16 %v566
        %v1750 = vunpack.c.h.b16 %v566
        %v1751 = vunpack.c.l.b16 %v567
        %v1752 = vunpack.c.h.b16 %v567
        %v1753 = vunpack.c.l.b16 %v568
        %v1754 = vunpack.c.h.b16 %v568
        %v1755 = vunpack.c.l.b16 %v569
        %v1756 = vunpack.c.h.b16 %v569
        %v1757 = vunpack.c.l.b16 %v570
        %v1758 = vunpack.c.h.b16 %v570
        %v1759 = vunpack.c.l.b16 %v571
        %v1760 = vunpack.c.h.b16 %v571
        %v1761 = vunpack.c.l.b16 %v572
        %v1762 = vunpack.c.h.b16 %v572
        %v1763 = vunpack.c.l.b16 %v573
        %v1764 = vunpack.c.h.b16 %v573
        %v1765 = vunpack.c.l.b16 %v574
        %v1766 = vunpack.c.h.b16 %v574
        %v1767 = vunpack.c.l.b16 %v575
        %v1768 = vunpack.c.h.b16 %v575
        %v1769 = vunpack.c.l.b16 %v576
        %v1770 = vunpack.c.h.b16 %v576
        %v1771 = vunpack.c.l.b16 %v577
        %v1772 = vunpack.c.h.b16 %v577
        %v1773 = vunpack.c.l.b16 %v578
        %v1774 = vunpack.c.h.b16 %v578
        %v1775 = vunpack.c.l.b16 %v579
        %v1776 = vunpack.c.h.b16 %v579
        %v1777 = vunpack.c.l.b16 %v580
        %v1778 = vunpack.c.h.b16 %v580
        %v1779 = vunpack.c.l.b16 %v581
        %v1780 = vunpack.c.h.b16 %v581
        %v1781 = vunpack.c.l.b16 %v582
        %v1782 = vunpack.c.h.b16 %v582
        %v1783 = vunpack.c.l.b16 %v583
        %v1784 = vunpack.c.h.b16 %v583
        %v1785 = vunpack.c.l.b16 %v584
        %v1786 = vunpack.c.h.b16 %v584
        %v1787 = vunpack.c.l.b16 %v585
        %v1788 = vunpack.c.h.b16 %v585
        %v1789 = vunpack.c.l.b16 %v586
        %v1790 = vunpack.c.h.b16 %v586
        %v1791 = vunpack.c.l.b16 %v587
        %v1792 = vunpack.c.h.b16 %v587
        %v1793 = vunpack.c.l.b16 %v588
        %v1794 = vunpack.c.h.b16 %v588
        %v1795 = vunpack.c.l.b16 %v589
        %v1796 = vunpack.c.h.b16 %v589
        %v1797 = vunpack.c.l.b16 %v590
        %v1798 = vunpack.c.h.b16 %v590
        %v1799 = vunpack.c.l.b16 %v591
        %v1800 = vunpack.c.h.b16 %v591
        %v1801 = vunpack.c.l.b16 %v592
        %v1802 = vunpack.c.h.b16 %v592
        %v1803 = vunpack.c.l.b16 %v593
        %v1804 = vunpack.c.h.b16 %v593
        %v1805 = vunpack.c.l.b16 %v594
        %v1806 = vunpack.c.h.b16 %v594
        %v1807 = vunpack.c.l.b16 %v595
        %v1808 = vunpack.c.h.b16 %v595
        %v1809 = vunpack.c.l.b16 %v596
        %v1810 = vunpack.c.h.b16 %v596
        %v1811 = vunpack.c.l.b16 %v597
        %v1812 = vunpack.c.h.b16 %v597
        %v1813 = vunpack.c.l.b16 %v598
        %v1814 = vunpack.c.h.b16 %v598
        %v1815 = vunpack.c.l.b16 %v599
        %v1816 = vunpack.c.h.b16 %v599
        %v1817 = vunpack.c.l.b16 %v600
        %v1818 = vunpack.c.h.b16 %v600
        %v1819 = vunpack.c.l.b16 %v601
        %v1820 = vunpack.c.h.b16 %v601
        %v1821 = vunpack.c.l.b16 %v602
        %v1822 = vunpack.c.h.b16 %v602
        %v1823 = vunpack.c.l.b16 %v603
        %v1824 = vunpack.c.h.b16 %v603
        %v1825 = vunpack.c.l.b16 %v604
        %v1826 = vunpack.c.h.b16 %v604
        %v1827 = vunpack.c.l.b16 %v605
        %v1828 = vunpack.c.h.b16 %v605
        %v1829 = vunpack.c.l.b16 %v606
        %v1830 = vunpack.c.h.b16 %v606
        %v1831 = vunpack.c.l.b16 %v607
        %v1832 = vunpack.c.h.b16 %v607
        %v1833 = vunpack.c.l.b16 %v608
        %v1834 = vunpack.c.h.b16 %v608
        %v1835 = vunpack.c.l.b16 %v609
        %v1836 = vunpack.c.h.b16 %v609
        %v1837 = vunpack.c.l.b16 %v610
        %v1838 = vunpack.c.h.b16 %v610
        %v1839 = vunpack.c.l.b16 %v611
        %v1840 = vunpack.c.h.b16 %v611
        %v1841 = vunpack.c.l.b16 %v612
        %v1842 = vunpack.c.h.b16 %v612
        %v1843 = vunpack.c.l.b16 %v613
        %v1844 = vunpack.c.h.b16 %v613
        %v1845 = vunpack.c.l.b16 %v614
        %v1846 = vunpack.c.h.b16 %v614
        %v1847 = vunpack.c.l.b16 %v615
        %v1848 = vunpack.c.h.b16 %v615
        %v1849 = vunpack.c.l.b16 %v616
        %v1850 = vunpack.c.h.b16 %v616
        %v1851 = vunpack.c.l.b16 %v617
        %v1852 = vunpack.c.h.b16 %v617
        %v1853 = vunpack.c.l.b16 %v618
        %v1854 = vunpack.c.h.b16 %v618
        %v1855 = vunpack.c.l.b16 %v619
        %v1856 = vunpack.c.h.b16 %v619
        %v1857 = vunpack.c.l.b16 %v620
        %v1858 = vunpack.c.h.b16 %v620
        %v1859 = vunpack.c.l.b16 %v621
        %v1860 = vunpack.c.h.b16 %v621
        %v1861 = vunpack.c.l.b16 %v622
        %v1862 = vunpack.c.h.b16 %v622
        %v1863 = vunpack.c.l.b16 %v623
        %v1864 = vunpack.c.h.b16 %v623
        %v1865 = vunpack.c.l.b16 %v624
        %v1866 = vunpack.c.h.b16 %v624
        %v1867 = vunpack.c.l.b16 %v625
        %v1868 = vunpack.c.h.b16 %v625
        %v1869 = vunpack.c.l.b16 %v626
        %v1870 = vunpack.c.h.b16 %v626
        %v1871 = vunpack.c.l.b16 %v627
        %v1872 = vunpack.c.h.b16 %v627
        %v1873 = vunpack.c.l.b16 %v628
        %v1874 = vunpack.c.h.b16 %v628
        %v1875 = vunpack.c.l.b16 %v629
        %v1876 = vunpack.c.h.b16 %v629
        %v1877 = vunpack.c.l.b16 %v630
        %v1878 = vunpack.c.h.b16 %v630
        %v1879 = vunpack.c.l.b16 %v631
        %v1880 = vunpack.c.h.b16 %v631
        %v1881 = vunpack.c.l.b16 %v632
        %v1882 = vunpack.c.h.b16 %v632
        %v1883 = vunpack.c.l.b16 %v633
        %v1884 = vunpack.c.h.b16 %v633
        %v1885 = vunpack.c.l.b16 %v634
        %v1886 = vunpack.c.h.b16 %v634
        %v1887 = vunpack.c.l.b16 %v635
        %v1888 = vunpack.c.h.b16 %v635
        %v1889 = vunpack.c.l.b16 %v636
        %v1890 = vunpack.c.h.b16 %v636
        %v1891 = vunpack.c.l.b16 %v637
        %v1892 = vunpack.c.h.b16 %v637
        %v1893 = vunpack.c.l.b16 %v638
        %v1894 = vunpack.c.h.b16 %v638
        %v1895 = vunpack.c.l.b16 %v639
        %v1896 = vunpack.c.h.b16 %v639
        %v1897 = vunpack.c.l.b16 %v640
        %v1898 = vunpack.c.h.b16 %v640
        %v1899 = vunpack.c.l.b16 %v641
        %v1900 = vunpack.c.h.b16 %v641
        %v1901 = vunpack.c.l.b16 %v642
        %v1902 = vunpack.c.h.b16 %v642
        %v1903 = vunpack.c.l.b16 %v643
        %v1904 = vunpack.c.h.b16 %v643
        %v1905 = vunpack.c.l.b16 %v644
        %v1906 = vunpack.c.h.b16 %v644
        %v1907 = vunpack.c.l.b16 %v645
        %v1908 = vunpack.c.h.b16 %v645
        %v1909 = vunpack.c.l.b16 %v646
        %v1910 = vunpack.c.h.b16 %v646
        %v1911 = vunpack.c.l.b16 %v647
        %v1912 = vunpack.c.h.b16 %v647
        %v1913 = vunpack.c.l.b16 %v648
        %v1914 = vunpack.c.h.b16 %v648
        %v1915 = vunpack.c.l.b16 %v649
        %v1916 = vunpack.c.h.b16 %v649
        %v1917 = vunpack.c.l.b16 %v650
        %v1918 = vunpack.c.h.b16 %v650
        %v1919 = vunpack.c.l.b16 %v651
        %v1920 = vunpack.c.h.b16 %v651
        %v1921 = vunpack.c.l.b16 %v652
        %v1922 = vunpack.c.h.b16 %v652
        %v1923 = vunpack.c.l.b16 %v653
        %v1924 = vunpack.c.h.b16 %v653
        %v1925 = vunpack.c.l.b16 %v654
        %v1926 = vunpack.c.h.b16 %v654
        %v1927 = vunpack.c.l.b16 %v655
        %v1928 = vunpack.c.h.b16 %v655
        %v1929 = vunpack.c.l.b16 %v656
        %v1930 = vunpack.c.h.b16 %v656
        %v1931 = vunpack.c.l.b16 %v657
        %v1932 = vunpack.c.h.b16 %v657
        %v1933 = vunpack.c.l.b16 %v658
        %v1934 = vunpack.c.h.b16 %v658
        %v1935 = vunpack.c.l.b16 %v659
        %v1936 = vunpack.c.h.b16 %v659
        %v1937 = vunpack.c.l.b16 %v660
        %v1938 = vunpack.c.h.b16 %v660
        %v1939 = vunpack.c.l.b16 %v661
        %v1940 = vunpack.c.h.b16 %v661
        %v1941 = vunpack.c.l.b16 %v662
        %v1942 = vunpack.c.h.b16 %v662
        %v1943 = vunpack.c.l.b16 %v663
        %v1944 = vunpack.c.h.b16 %v663
        %v1945 = vunpack.c.l.b16 %v664
        %v1946 = vunpack.c.h.b16 %v664
        %v1947 = vunpack.c.l.b16 %v665
        %v1948 = vunpack.c.h.b16 %v665
        %v1949 = vunpack.c.l.b16 %v666
        %v1950 = vunpack.c.h.b16 %v666
        %v1951 = vunpack.c.l.b16 %v667
        %v1952 = vunpack.c.h.b16 %v667
        %v1953 = vunpack.c.l.b16 %v668
        %v1954 = vunpack.c.h.b16 %v668
        %v1955 = vunpack.c.l.b16 %v669
        %v1956 = vunpack.c.h.b16 %v669
        %v1957 = vunpack.c.l.b16 %v670
        %v1958 = vunpack.c.h.b16 %v670
        %v1959 = vunpack.c.l.b16 %v671
        %v1960 = vunpack.c.h.b16 %v671
        %v1961 = vunpack.c.l.b16 %v672
        %v1962 = vunpack.c.h.b16 %v672
        %v1963 = vunpack.c.l.b16 %v673
        %v1964 = vunpack.c.h.b16 %v673
        %v1965 = vunpack.c.l.b16 %v674
        %v1966 = vunpack.c.h.b16 %v674
        %v1967 = vunpack.c.l.b16 %v675
        %v1968 = vunpack.c.h.b16 %v675
        %v1969 = vunpack.c.l.b16 %v676
        %v1970 = vunpack.c.h.b16 %v676
        %v1971 = vunpack.c.l.b16 %v677
        %v1972 = vunpack.c.h.b16 %v677
        %v1973 = vunpack.c.l.b16 %v678
        %v1974 = vunpack.c.h.b16 %v678
        %v1975 = vunpack.c.l.b16 %v679
        %v1976 = vunpack.c.h.b16 %v679
        %v1977 = vunpack.c.l.b16 %v680
        %v1978 = vunpack.c.h.b16 %v680
        %v1979 = vunpack.c.l.b16 %v681
        %v1980 = vunpack.c.h.b16 %v681
        %v1981 = vunpack.c.l.b16 %v682
        %v1982 = vunpack.c.h.b16 %v682
        %v1983 = vunpack.c.l.b16 %v683
        %v1984 = vunpack.c.h.b16 %v683
        %v1985 = vunpack.c.l.b16 %v684
        %v1986 = vunpack.c.h.b16 %v684
        %v1987 = vunpack.c.l.b16 %v685
        %v1988 = vunpack.c.h.b16 %v685
        %v1989 = vunpack.c.l.b16 %v686
        %v1990 = vunpack.c.h.b16 %v686
        %v1991 = vunpack.c.l.b16 %v687
        %v1992 = vunpack.c.h.b16 %v687
        %v1993 = vunpack.c.l.b16 %v688
        %v1994 = vunpack.c.h.b16 %v688
        %v1995 = vunpack.c.l.b16 %v689
        %v1996 = vunpack.c.h.b16 %v689
        %v1997 = vunpack.c.l.b16 %v690
        %v1998 = vunpack.c.h.b16 %v690
        %v1999 = vunpack.c.l.b16 %v691
        %v2000 = vunpack.c.h.b16 %v691
        %v2001 = vunpack.c.l.b16 %v692
        %v2002 = vunpack.c.h.b16 %v692
        %v2003 = vunpack.c.l.b16 %v693
        %v2004 = vunpack.c.h.b16 %v693
        %v2005 = vunpack.c.l.b16 %v694
        %v2006 = vunpack.c.h.b16 %v694
        %v2007 = vunpack.c.l.b16 %v695
        %v2008 = vunpack.c.h.b16 %v695
        %v2009 = vunpack.c.l.b16 %v696
        %v2010 = vunpack.c.h.b16 %v696
        %v2011 = vunpack.c.l.b16 %v697
        %v2012 = vunpack.c.h.b16 %v697
        %v2013 = vunpack.c.l.b16 %v698
        %v2014 = vunpack.c.h.b16 %v698
        %v2015 = vunpack.c.l.b16 %v699
        %v2016 = vunpack.c.h.b16 %v699
        %v2017 = vunpack.c.l.b16 %v700
        %v2018 = vunpack.c.h.b16 %v700
        %v2019 = vunpack.c.l.b16 %v701
        %v2020 = vunpack.c.h.b16 %v701
        %v2021 = vunpack.c.l.b16 %v702
        %v2022 = vunpack.c.h.b16 %v702
        %v2023 = vunpack.c.l.b16 %v703
        %v2024 = vunpack.c.h.b16 %v703
        %v2025 = vunpack.c.l.b16 %v704
        %v2026 = vunpack.c.h.b16 %v704
        %v2027 = vunpack.c.l.b16 %v705
        %v2028 = vunpack.c.h.b16 %v705
        %v2029 = vunpack.c.l.b16 %v706
        %v2030 = vunpack.c.h.b16 %v706
        %v2031 = vunpack.c.l.b16 %v707
        %v2032 = vunpack.c.h.b16 %v707
        %v2033 = vunpack.c.l.b16 %v708
        %v2034 = vunpack.c.h.b16 %v708
        %v2035 = vunpack.c.l.b16 %v709
        %v2036 = vunpack.c.h.b16 %v709
        %v2037 = vunpack.c.l.b16 %v710
        %v2038 = vunpack.c.h.b16 %v710
        %v2039 = vunpack.c.l.b16 %v711
        %v2040 = vunpack.c.h.b16 %v711
        %v2041 = vunpack.c.l.b16 %v712
        %v2042 = vunpack.c.h.b16 %v712
        %v2043 = vunpack.c.l.b16 %v713
        %v2044 = vunpack.c.h.b16 %v713
        %v2045 = vunpack.c.l.b16 %v714
        %v2046 = vunpack.c.h.b16 %v714
        %v2047 = vunpack.c.l.b16 %v715
        %v2048 = vunpack.c.h.b16 %v715
        %v2049 = vunpack.c.l.b16 %v716
        %v2050 = vunpack.c.h.b16 %v716
        %v2051 = vunpack.c.l.b16 %v717
        %v2052 = vunpack.c.h.b16 %v717
        %v2053 = vunpack.c.l.b16 %v718
        %v2054 = vunpack.c.h.b16 %v718
        %v2055 = vunpack.c.l.b16 %v719
        %v2056 = vunpack.c.h.b16 %v719
        %v2057 = vunpack.c.l.b16 %v720
        %v2058 = vunpack.c.h.b16 %v720
        %v2059 = vunpack.c.l.b16 %v721
        %v2060 = vunpack.c.h.b16 %v721
        %v2061 = vunpack.c.l.b16 %v722
        %v2062 = vunpack.c.h.b16 %v722
        %v2063 = vpack.c.b16 %v1307, %v1295
        %v2064 = vpack.c.b16 %v1308, %v1296
        %v2065 = vpack.c.b16 %v1309, %v1297
        %v2066 = vpack.c.b16 %v1310, %v1298
        %v2067 = vpack.c.b16 %v1311, %v1299
        %v2068 = vpack.c.b16 %v1312, %v1300
        %v2069 = vpack.c.b16 %v1313, %v1301
        %v2070 = vpack.c.b16 %v1314, %v1302
        %v2071 = vpack.c.b16 %v1315, %v1303
        %v2072 = vpack.c.b16 %v1316, %v1304
        %v2073 = vpack.c.b16 %v1317, %v1305
        %v2074 = vpack.c.b16 %v1318, %v1306
        %v2075 = vpack.c.b16 %v1331, %v1319
        %v2076 = vpack.c.b16 %v1332, %v1320
        %v2077 = vpack.c.b16 %v1333, %v1321
        %v2078 = vpack.c.b16 %v1334, %v1322
        %v2079 = vpack.c.b16 %v1335, %v1323
        %v2080 = vpack.c.b16 %v1336, %v1324
        %v2081 = vpack.c.b16 %v1337, %v1325
        %v2082 = vpack.c.b16 %v1338, %v1326
        %v2083 = vpack.c.b16 %v1339, %v1327
        %v2084 = vpack.c.b16 %v1340, %v1328
        %v2085 = vpack.c.b16 %v1341, %v1329
        %v2086 = vpack.c.b16 %v1342, %v1330
        %v2087 = vpack.c.b16 %v1355, %v1343
        %v2088 = vpack.c.b16 %v1356, %v1344
        %v2089 = vpack.c.b16 %v1357, %v1345
        %v2090 = vpack.c.b16 %v1358, %v1346
        %v2091 = vpack.c.b16 %v1359, %v1347
        %v2092 = vpack.c.b16 %v1360, %v1348
        %v2093 = vpack.c.b16 %v1361, %v1349
        %v2094 = vpack.c.b16 %v1362, %v1350
        %v2095 = vpack.c.b16 %v1363, %v1351
        %v2096 = vpack.c.b16 %v1364, %v1352
        %v2097 = vpack.c.b16 %v1365, %v1353
        %v2098 = vpack.c.b16 %v1366, %v1354
        %v2099 = vpack.c.b16 %v1379, %v1367
        %v2100 = vpack.c.b16 %v1380, %v1368
        %v2101 = vpack.c.b16 %v1381, %v1369
        %v2102 = vpack.c.b16 %v1382, %v1370
        %v2103 = vpack.c.b16 %v1383, %v1371
        %v2104 = vpack.c.b16 %v1384, %v1372
        %v2105 = vpack.c.b16 %v1385, %v1373
        %v2106 = vpack.c.b16 %v1386, %v1374
        %v2107 = vpack.c.b16 %v1387, %v1375
        %v2108 = vpack.c.b16 %v1388, %v1376
        %v2109 = vpack.c.b16 %v1389, %v1377
        %v2110 = vpack.c.b16 %v1390, %v1378
        %v2111 = vpack.c.b16 %v1403, %v1391
        %v2112 = vpack.c.b16 %v1404, %v1392
        %v2113 = vpack.c.b16 %v1405, %v1393
        %v2114 = vpack.c.b16 %v1406, %v1394
        %v2115 = vpack.c.b16 %v1407, %v1395
        %v2116 = vpack.c.b16 %v1408, %v1396
        %v2117 = vpack.c.b16 %v1409, %v1397
        %v2118 = vpack.c.b16 %v1410, %v1398
        %v2119 = vpack.c.b16 %v1411, %v1399
        %v2120 = vpack.c.b16 %v1412, %v1400
        %v2121 = vpack.c.b16 %v1413, %v1401
        %v2122 = vpack.c.b16 %v1414, %v1402
        %v2123 = vpack.c.b16 %v1427, %v1415
        %v2124 = vpack.c.b16 %v1428, %v1416
        %v2125 = vpack.c.b16 %v1429, %v1417
        %v2126 = vpack.c.b16 %v1430, %v1418
        %v2127 = vpack.c.b16 %v1431, %v1419
        %v2128 = vpack.c.b16 %v1432, %v1420
        %v2129 = vpack.c.b16 %v1433, %v1421
        %v2130 = vpack.c.b16 %v1434, %v1422
        %v2131 = vpack.c.b16 %v1435, %v1423
        %v2132 = vpack.c.b16 %v1436, %v1424
        %v2133 = vpack.c.b16 %v1437, %v1425
        %v2134 = vpack.c.b16 %v1438, %v1426
        %v2135 = vpack.c.b16 %v1451, %v1439
        %v2136 = vpack.c.b16 %v1452, %v1440
        %v2137 = vpack.c.b16 %v1453, %v1441
        %v2138 = vpack.c.b16 %v1454, %v1442
        %v2139 = vpack.c.b16 %v1455, %v1443
        %v2140 = vpack.c.b16 %v1456, %v1444
        %v2141 = vpack.c.b16 %v1457, %v1445
        %v2142 = vpack.c.b16 %v1458, %v1446
        %v2143 = vpack.c.b16 %v1459, %v1447
        %v2144 = vpack.c.b16 %v1460, %v1448
        %v2145 = vpack.c.b16 %v1461, %v1449
        %v2146 = vpack.c.b16 %v1462, %v1450
        %v2147 = vpack.c.b16 %v1475, %v1463
        %v2148 = vpack.c.b16 %v1476, %v1464
        %v2149 = vpack.c.b16 %v1477, %v1465
        %v2150 = vpack.c.b16 %v1478, %v1466
        %v2151 = vpack.c.b16 %v1479, %v1467
        %v2152 = vpack.c.b16 %v1480, %v1468
        %v2153 = vpack.c.b16 %v1481, %v1469
        %v2154 = vpack.c.b16 %v1482, %v1470
        %v2155 = vpack.c.b16 %v1483, %v1471
        %v2156 = vpack.c.b16 %v1484, %v1472
        %v2157 = vpack.c.b16 %v1485, %v1473
        %v2158 = vpack.c.b16 %v1486, %v1474
        %v2159 = vpack.c.b16 %v1499, %v1487
        %v2160 = vpack.c.b16 %v1500, %v1488
        %v2161 = vpack.c.b16 %v1501, %v1489
        %v2162 = vpack.c.b16 %v1502, %v1490
        %v2163 = vpack.c.b16 %v1503, %v1491
        %v2164 = vpack.c.b16 %v1504, %v1492
        %v2165 = vpack.c.b16 %v1505, %v1493
        %v2166 = vpack.c.b16 %v1506, %v1494
        %v2167 = vpack.c.b16 %v1507, %v1495
        %v2168 = vpack.c.b16 %v1508, %v1496
        %v2169 = vpack.c.b16 %v1509, %v1497
        %v2170 = vpack.c.b16 %v1510, %v1498
        %v2171 = vpack.c.b16 %v1523, %v1511
        %v2172 = vpack.c.b16 %v1524, %v1512
        %v2173 = vpack.c.b16 %v1525, %v1513
        %v2174 = vpack.c.b16 %v1526, %v1514
        %v2175 = vpack.c.b16 %v1527, %v1515
        %v2176 = vpack.c.b16 %v1528, %v1516
        %v2177 = vpack.c.b16 %v1529, %v1517
        %v2178 = vpack.c.b16 %v1530, %v1518
        %v2179 = vpack.c.b16 %v1531, %v1519
        %v2180 = vpack.c.b16 %v1532, %v1520
        %v2181 = vpack.c.b16 %v1533, %v1521
        %v2182 = vpack.c.b16 %v1534, %v1522
        %v2183 = vpack.c.b16 %v1547, %v1535
        %v2184 = vpack.c.b16 %v1548, %v1536
        %v2185 = vpack.c.b16 %v1549, %v1537
        %v2186 = vpack.c.b16 %v1550, %v1538
        %v2187 = vpack.c.b16 %v1551, %v1539
        %v2188 = vpack.c.b16 %v1552, %v1540
        %v2189 = vpack.c.b16 %v1553, %v1541
        %v2190 = vpack.c.b16 %v1554, %v1542
        %v2191 = vpack.c.b16 %v1555, %v1543
        %v2192 = vpack.c.b16 %v1556, %v1544
        %v2193 = vpack.c.b16 %v1557, %v1545
        %v2194 = vpack.c.b16 %v1558, %v1546
        %v2195 = vpack.c.b16 %v1571, %v1559
        %v2196 = vpack.c.b16 %v1572, %v1560
        %v2197 = vpack.c.b16 %v1573, %v1561
        %v2198 = vpack.c.b16 %v1574, %v1562
        %v2199 = vpack.c.b16 %v1575, %v1563
        %v2200 = vpack.c.b16 %v1576, %v1564
        %v2201 = vpack.c.b16 %v1577, %v1565
        %v2202 = vpack.c.b16 %v1578, %v1566
        %v2203 = vpack.c.b16 %v1579, %v1567
        %v2204 = vpack.c.b16 %v1580, %v1568
        %v2205 = vpack.c.b16 %v1581, %v1569
        %v2206 = vpack.c.b16 %v1582, %v1570
        %v2207 = vpack.c.b16 %v1595, %v1583
        %v2208 = vpack.c.b16 %v1596, %v1584
        %v2209 = vpack.c.b16 %v1597, %v1585
        %v2210 = vpack.c.b16 %v1598, %v1586
        %v2211 = vpack.c.b16 %v1599, %v1587
        %v2212 = vpack.c.b16 %v1600, %v1588
        %v2213 = vpack.c.b16 %v1601, %v1589
        %v2214 = vpack.c.b16 %v1602, %v1590
        %v2215 = vpack.c.b16 %v1603, %v1591
        %v2216 = vpack.c.b16 %v1604, %v1592
        %v2217 = vpack.c.b16 %v1605, %v1593
        %v2218 = vpack.c.b16 %v1606, %v1594
        %v2219 = vpack.c.b16 %v1619, %v1607
        %v2220 = vpack.c.b16 %v1620, %v1608
        %v2221 = vpack.c.b16 %v1621, %v1609
        %v2222 = vpack.c.b16 %v1622, %v1610
        %v2223 = vpack.c.b16 %v1623, %v1611
        %v2224 = vpack.c.b16 %v1624, %v1612
        %v2225 = vpack.c.b16 %v1625, %v1613
        %v2226 = vpack.c.b16 %v1626, %v1614
        %v2227 = vpack.c.b16 %v1627, %v1615
        %v2228 = vpack.c.b16 %v1628, %v1616
        %v2229 = vpack.c.b16 %v1629, %v1617
        %v2230 = vpack.c.b16 %v1630, %v1618
        %v2231 = vpack.c.b16 %v1643, %v1631
        %v2232 = vpack.c.b16 %v1644, %v1632
        %v2233 = vpack.c.b16 %v1645, %v1633
        %v2234 = vpack.c.b16 %v1646, %v1634
        %v2235 = vpack.c.b16 %v1647, %v1635
        %v2236 = vpack.c.b16 %v1648, %v1636
        %v2237 = vpack.c.b16 %v1649, %v1637
        %v2238 = vpack.c.b16 %v1650, %v1638
        %v2239 = vpack.c.b16 %v1651, %v1639
        %v2240 = vpack.c.b16 %v1652, %v1640
        %v2241 = vpack.c.b16 %v1653, %v1641
        %v2242 = vpack.c.b16 %v1654, %v1642
        %v2243 = vpack.c.b16 %v1667, %v1655
        %v2244 = vpack.c.b16 %v1668, %v1656
        %v2245 = vpack.c.b16 %v1669, %v1657
        %v2246 = vpack.c.b16 %v1670, %v1658
        %v2247 = vpack.c.b16 %v1671, %v1659
        %v2248 = vpack.c.b16 %v1672, %v1660
        %v2249 = vpack.c.b16 %v1673, %v1661
        %v2250 = vpack.c.b16 %v1674, %v1662
        %v2251 = vpack.c.b16 %v1675, %v1663
        %v2252 = vpack.c.b16 %v1676, %v1664
        %v2253 = vpack.c.b16 %v1677, %v1665
        %v2254 = vpack.c.b16 %v1678, %v1666
        %v2255 = vpack.c.b16 %v1691, %v1679
        %v2256 = vpack.c.b16 %v1692, %v1680
        %v2257 = vpack.c.b16 %v1693, %v1681
        %v2258 = vpack.c.b16 %v1694, %v1682
        %v2259 = vpack.c.b16 %v1695, %v1683
        %v2260 = vpack.c.b16 %v1696, %v1684
        %v2261 = vpack.c.b16 %v1697, %v1685
        %v2262 = vpack.c.b16 %v1698, %v1686
        %v2263 = vpack.c.b16 %v1699, %v1687
        %v2264 = vpack.c.b16 %v1700, %v1688
        %v2265 = vpack.c.b16 %v1701, %v1689
        %v2266 = vpack.c.b16 %v1702, %v1690
        %v2267 = vpack.c.b16 %v1715, %v1703
        %v2268 = vpack.c.b16 %v1716, %v1704
        %v2269 = vpack.c.b16 %v1717, %v1705
        %v2270 = vpack.c.b16 %v1718, %v1706
        %v2271 = vpack.c.b16 %v1719, %v1707
        %v2272 = vpack.c.b16 %v1720, %v1708
        %v2273 = vpack.c.b16 %v1721, %v1709
        %v2274 = vpack.c.b16 %v1722, %v1710
        %v2275 = vpack.c.b16 %v1723, %v1711
        %v2276 = vpack.c.b16 %v1724, %v1712
        %v2277 = vpack.c.b16 %v1725, %v1713
        %v2278 = vpack.c.b16 %v1726, %v1714
        %v2279 = vpack.c.b16 %v1739, %v1727
        %v2280 = vpack.c.b16 %v1740, %v1728
        %v2281 = vpack.c.b16 %v1741, %v1729
        %v2282 = vpack.c.b16 %v1742, %v1730
        %v2283 = vpack.c.b16 %v1743, %v1731
        %v2284 = vpack.c.b16 %v1744, %v1732
        %v2285 = vpack.c.b16 %v1745, %v1733
        %v2286 = vpack.c.b16 %v1746, %v1734
        %v2287 = vpack.c.b16 %v1747, %v1735
        %v2288 = vpack.c.b16 %v1748, %v1736
        %v2289 = vpack.c.b16 %v1749, %v1737
        %v2290 = vpack.c.b16 %v1750, %v1738
        %v2291 = vpack.c.b16 %v1763, %v1751
        %v2292 = vpack.c.b16 %v1764, %v1752
        %v2293 = vpack.c.b16 %v1765, %v1753
        %v2294 = vpack.c.b16 %v1766, %v1754
        %v2295 = vpack.c.b16 %v1767, %v1755
        %v2296 = vpack.c.b16 %v1768, %v1756
        %v2297 = vpack.c.b16 %v1769, %v1757
        %v2298 = vpack.c.b16 %v1770, %v1758
        %v2299 = vpack.c.b16 %v1771, %v1759
        %v2300 = vpack.c.b16 %v1772, %v1760
        %v2301 = vpack.c.b16 %v1773, %v1761
        %v2302 = vpack.c.b16 %v1774, %v1762
        %v2303 = vpack.c.b16 %v1787, %v1775
        %v2304 = vpack.c.b16 %v1788, %v1776
        %v2305 = vpack.c.b16 %v1789, %v1777
        %v2306 = vpack.c.b16 %v1790, %v1778
        %v2307 = vpack.c.b16 %v1791, %v1779
        %v2308 = vpack.c.b16 %v1792, %v1780
        %v2309 = vpack.c.b16 %v1793, %v1781
        %v2310 = vpack.c.b16 %v1794, %v1782
        %v2311 = vpack.c.b16 %v1795, %v1783
        %v2312 = vpack.c.b16 %v1796, %v1784
        %v2313 = vpack.c.b16 %v1797, %v1785
        %v2314 = vpack.c.b16 %v1798, %v1786
        %v2315 = vpack.c.b16 %v1811, %v1799
        %v2316 = vpack.c.b16 %v1812, %v1800
        %v2317 = vpack.c.b16 %v1813, %v1801
        %v2318 = vpack.c.b16 %v1814, %v1802
        %v2319 = vpack.c.b16 %v1815, %v1803
        %v2320 = vpack.c.b16 %v1816, %v1804
        %v2321 = vpack.c.b16 %v1817, %v1805
        %v2322 = vpack.c.b16 %v1818, %v1806
        %v2323 = vpack.c.b16 %v1819, %v1807
        %v2324 = vpack.c.b16 %v1820, %v1808
        %v2325 = vpack.c.b16 %v1821, %v1809
        %v2326 = vpack.c.b16 %v1822, %v1810
        %v2327 = vpack.c.b16 %v1835, %v1823
        %v2328 = vpack.c.b16 %v1836, %v1824
        %v2329 = vpack.c.b16 %v1837, %v1825
        %v2330 = vpack.c.b16 %v1838, %v1826
        %v2331 = vpack.c.b16 %v1839, %v1827
        %v2332 = vpack.c.b16 %v1840, %v1828
        %v2333 = vpack.c.b16 %v1841, %v1829
        %v2334 = vpack.c.b16 %v1842, %v1830
        %v2335 = vpack.c.b16 %v1843, %v1831
        %v2336 = vpack.c.b16 %v1844, %v1832
        %v2337 = vpack.c.b16 %v1845, %v1833
        %v2338 = vpack.c.b16 %v1846, %v1834
        %v2339 = vpack.c.b16 %v1859, %v1847
        %v2340 = vpack.c.b16 %v1860, %v1848
        %v2341 = vpack.c.b16 %v1861, %v1849
        %v2342 = vpack.c.b16 %v1862, %v1850
        %v2343 = vpack.c.b16 %v1863, %v1851
        %v2344 = vpack.c.b16 %v1864, %v1852
        %v2345 = vpack.c.b16 %v1865, %v1853
        %v2346 = vpack.c.b16 %v1866, %v1854
        %v2347 = vpack.c.b16 %v1867, %v1855
        %v2348 = vpack.c.b16 %v1868, %v1856
        %v2349 = vpack.c.b16 %v1869, %v1857
        %v2350 = vpack.c.b16 %v1870, %v1858
        %v2351 = vpack.c.b16 %v1883, %v1871
        %v2352 = vpack.c.b16 %v1884, %v1872
        %v2353 = vpack.c.b16 %v1885, %v1873
        %v2354 = vpack.c.b16 %v1886, %v1874
        %v2355 = vpack.c.b16 %v1887, %v1875
        %v2356 = vpack.c.b16 %v1888, %v1876
        %v2357 = vpack.c.b16 %v1889, %v1877
        %v2358 = vpack.c.b16 %v1890, %v1878
        %v2359 = vpack.c.b16 %v1891, %v1879
        %v2360 = vpack.c.b16 %v1892, %v1880
        %v2361 = vpack.c.b16 %v1893, %v1881
        %v2362 = vpack.c.b16 %v1894, %v1882
        %v2363 = vpack.c.b16 %v1907, %v1895
        %v2364 = vpack.c.b16 %v1908, %v1896
        %v2365 = vpack.c.b16 %v1909, %v1897
        %v2366 = vpack.c.b16 %v1910, %v1898
        %v2367 = vpack.c.b16 %v1911, %v1899
        %v2368 = vpack.c.b16 %v1912, %v1900
        %v2369 = vpack.c.b16 %v1913, %v1901
        %v2370 = vpack.c.b16 %v1914, %v1902
        %v2371 = vpack.c.b16 %v1915, %v1903
        %v2372 = vpack.c.b16 %v1916, %v1904
        %v2373 = vpack.c.b16 %v1917, %v1905
        %v2374 = vpack.c.b16 %v1918, %v1906
        %v2375 = vpack.c.b16 %v1931, %v1919
        %v2376 = vpack.c.b16 %v1932, %v1920
        %v2377 = vpack.c.b16 %v1933, %v1921
        %v2378 = vpack.c.b16 %v1934, %v1922
        %v2379 = vpack.c.b16 %v1935, %v1923
        %v2380 = vpack.c.b16 %v1936, %v1924
        %v2381 = vpack.c.b16 %v1937, %v1925
        %v2382 = vpack.c.b16 %v1938, %v1926
        %v2383 = vpack.c.b16 %v1939, %v1927
        %v2384 = vpack.c.b16 %v1940, %v1928
        %v2385 = vpack.c.b16 %v1941, %v1929
        %v2386 = vpack.c.b16 %v1942, %v1930
        %v2387 = vpack.c.b16 %v1955, %v1943
        %v2388 = vpack.c.b16 %v1956, %v1944
        %v2389 = vpack.c.b16 %v1957, %v1945
        %v2390 = vpack.c.b16 %v1958, %v1946
        %v2391 = vpack.c.b16 %v1959, %v1947
        %v2392 = vpack.c.b16 %v1960, %v1948
        %v2393 = vpack.c.b16 %v1961, %v1949
        %v2394 = vpack.c.b16 %v1962, %v1950
        %v2395 = vpack.c.b16 %v1963, %v1951
        %v2396 = vpack.c.b16 %v1964, %v1952
        %v2397 = vpack.c.b16 %v1965, %v1953
        %v2398 = vpack.c.b16 %v1966, %v1954
        %v2399 = vpack.c.b16 %v1979, %v1967
        %v2400 = vpack.c.b16 %v1980, %v1968
        %v2401 = vpack.c.b16 %v1981, %v1969
        %v2402 = vpack.c.b16 %v1982, %v1970
        %v2403 = vpack.c.b16 %v1983, %v1971
        %v2404 = vpack.c.b16 %v1984, %v1972
        %v2405 = vpack.c.b16 %v1985, %v1973
        %v2406 = vpack.c.b16 %v1986, %v1974
        %v2407 = vpack.c.b16 %v1987, %v1975
        %v2408 = vpack.c.b16 %v1988, %v1976
        %v2409 = vpack.c.b16 %v1989, %v1977
        %v2410 = vpack.c.b16 %v1990, %v1978
        %v2411 = vpack.c.b16 %v2003, %v1991
        %v2412 = vpack.c.b16 %v2004, %v1992
        %v2413 = vpack.c.b16 %v2005, %v1993
        %v2414 = vpack.c.b16 %v2006, %v1994
        %v2415 = vpack.c.b16 %v2007, %v1995
        %v2416 = vpack.c.b16 %v2008, %v1996
        %v2417 = vpack.c.b16 %v2009, %v1997
        %v2418 = vpack.c.b16 %v2010, %v1998
        %v2419 = vpack.c.b16 %v2011, %v1999
        %v2420 = vpack.c.b16 %v2012, %v2000
        %v2421 = vpack.c.b16 %v2013, %v2001
        %v2422 = vpack.c.b16 %v2014, %v2002
        %v2423 = vpack.c.b16 %v2027, %v2015
        %v2424 = vpack.c.b16 %v2028, %v2016
        %v2425 = vpack.c.b16 %v2029, %v2017
        %v2426 = vpack.c.b16 %v2030, %v2018
        %v2427 = vpack.c.b16 %v2031, %v2019
        %v2428 = vpack.c.b16 %v2032, %v2020
        %v2429 = vpack.c.b16 %v2033, %v2021
        %v2430 = vpack.c.b16 %v2034, %v2022
        %v2431 = vpack.c.b16 %v2035, %v2023
        %v2432 = vpack.c.b16 %v2036, %v2024
        %v2433 = vpack.c.b16 %v2037, %v2025
        %v2434 = vpack.c.b16 %v2038, %v2026
        %v2435 = vpack.c.b16 %v2051, %v2039
        %v2436 = vpack.c.b16 %v2052, %v2040
        %v2437 = vpack.c.b16 %v2053, %v2041
        %v2438 = vpack.c.b16 %v2054, %v2042
        %v2439 = vpack.c.b16 %v2055, %v2043
        %v2440 = vpack.c.b16 %v2056, %v2044
        %v2441 = vpack.c.b16 %v2057, %v2045
        %v2442 = vpack.c.b16 %v2058, %v2046
        %v2443 = vpack.c.b16 %v2059, %v2047
        %v2444 = vpack.c.b16 %v2060, %v2048
        %v2445 = vpack.c.b16 %v2061, %v2049
        %v2446 = vpack.c.b16 %v2062, %v2050
        %2831 = vmatpush.bf16.msra.mxu0 %v2147
        %2832 = vmatpush.bf16.msra.mxu0 %v2135
        %2833 = vmatpush.bf16.msra.mxu0 %v2123
        %2834 = vmatpush.bf16.msra.mxu0 %v2111
        %2835 = vmatpush.bf16.msra.mxu0 %v2099
        %2836 = vmatpush.bf16.msra.mxu0 %v2087
        %2837 = vmatpush.bf16.msra.mxu0 %v2075
        %2838 = vmatpush.bf16.msra.mxu0 %v2063
        %2839 = vmatmul.bf16.gmra.mxu0 %v847
        %v2840 = vpop.f32.mrf.mxu0
        %v2841 = vadd.f32 %v727, %v2840
        %v2842 = vpop.f32.mrf.mxu0
        %v2843 = vadd.f32 %v727, %v2842
        %2844 = vmatmul.bf16.gmra.mxu0 %v851
        %v2845 = vpop.f32.mrf.mxu0
        %v2846 = vadd.f32 %v727, %v2845
        %v2847 = vpop.f32.mrf.mxu0
        %v2848 = vadd.f32 %v727, %v2847
        %2849 = vmatmul.bf16.gmra.mxu0 %v855
        %v2850 = vpop.f32.mrf.mxu0
        %v2851 = vadd.f32 %v727, %v2850
        %v2852 = vpop.f32.mrf.mxu0
        %v2853 = vadd.f32 %v727, %v2852
        %2854 = vmatmul.bf16.gmra.mxu0 %v859
        %v2855 = vpop.f32.mrf.mxu0
        %v2856 = vadd.f32 %v727, %v2855
        %v2857 = vpop.f32.mrf.mxu0
        %v2858 = vadd.f32 %v727, %v2857
        %2859 = vmatmul.bf16.gmra.mxu0 %v863
        %v2860 = vpop.f32.mrf.mxu0
        %v2861 = vadd.f32 %v727, %v2860
        %v2862 = vpop.f32.mrf.mxu0
        %v2863 = vadd.f32 %v727, %v2862
        %2864 = vmatmul.bf16.gmra.mxu0 %v867
        %v2865 = vpop.f32.mrf.mxu0
        %v2866 = vadd.f32 %v727, %v2865
        %v2867 = vpop.f32.mrf.mxu0
        %v2868 = vadd.f32 %v727, %v2867
        %2869 = vmatmul.bf16.gmra.mxu0 %v871
        %v2870 = vpop.f32.mrf.mxu0
        %v2871 = vadd.f32 %v727, %v2870
        %v2872 = vpop.f32.mrf.mxu0
        %v2873 = vadd.f32 %v727, %v2872
        %2874 = vmatmul.bf16.gmra.mxu0 %v875
        %v2875 = vpop.f32.mrf.mxu0
        %v2876 = vadd.f32 %v727, %v2875
        %v2877 = vpop.f32.mrf.mxu0
        %v2878 = vadd.f32 %v727, %v2877
        %2879 = vdwg.mxu0
        %2880 = vmatpush.bf16.msra.mxu0 %v2243
        %2881 = vmatpush.bf16.msra.mxu0 %v2231
        %2882 = vmatpush.bf16.msra.mxu0 %v2219
        %2883 = vmatpush.bf16.msra.mxu0 %v2207
        %2884 = vmatpush.bf16.msra.mxu0 %v2195
        %2885 = vmatpush.bf16.msra.mxu0 %v2183
        %2886 = vmatpush.bf16.msra.mxu0 %v2171
        %2887 = vmatpush.bf16.msra.mxu0 %v2159
        %2888 = vmatmul.bf16.gmra.mxu0 %v848
        %v2889 = vpop.f32.mrf.mxu0
        %v2890 = vadd.f32 %v2841, %v2889
        %v2891 = vpop.f32.mrf.mxu0
        %v2892 = vadd.f32 %v2843, %v2891
        %2893 = vmatmul.bf16.gmra.mxu0 %v852
        %v2894 = vpop.f32.mrf.mxu0
        %v2895 = vadd.f32 %v2846, %v2894
        %v2896 = vpop.f32.mrf.mxu0
        %v2897 = vadd.f32 %v2848, %v2896
        %2898 = vmatmul.bf16.gmra.mxu0 %v856
        %v2899 = vpop.f32.mrf.mxu0
        %v2900 = vadd.f32 %v2851, %v2899
        %v2901 = vpop.f32.mrf.mxu0
        %v2902 = vadd.f32 %v2853, %v2901
        %2903 = vmatmul.bf16.gmra.mxu0 %v860
        %v2904 = vpop.f32.mrf.mxu0
        %v2905 = vadd.f32 %v2856, %v2904
        %v2906 = vpop.f32.mrf.mxu0
        %v2907 = vadd.f32 %v2858, %v2906
        %2908 = vmatmul.bf16.gmra.mxu0 %v864
        %v2909 = vpop.f32.mrf.mxu0
        %v2910 = vadd.f32 %v2861, %v2909
        %v2911 = vpop.f32.mrf.mxu0
        %v2912 = vadd.f32 %v2863, %v2911
        %2913 = vmatmul.bf16.gmra.mxu0 %v868
        %v2914 = vpop.f32.mrf.mxu0
        %v2915 = vadd.f32 %v2866, %v2914
        %v2916 = vpop.f32.mrf.mxu0
        %v2917 = vadd.f32 %v2868, %v2916
        %2918 = vmatmul.bf16.gmra.mxu0 %v872
        %v2919 = vpop.f32.mrf.mxu0
        %v2920 = vadd.f32 %v2871, %v2919
        %v2921 = vpop.f32.mrf.mxu0
        %v2922 = vadd.f32 %v2873, %v2921
        %2923 = vmatmul.bf16.gmra.mxu0 %v876
        %v2924 = vpop.f32.mrf.mxu0
        %v2925 = vadd.f32 %v2876, %v2924
        %v2926 = vpop.f32.mrf.mxu0
        %v2927 = vadd.f32 %v2878, %v2926
        %2928 = vdwg.mxu0
        %2929 = vmatpush.bf16.msra.mxu0 %v2339
        %2930 = vmatpush.bf16.msra.mxu0 %v2327
        %2931 = vmatpush.bf16.msra.mxu0 %v2315
        %2932 = vmatpush.bf16.msra.mxu0 %v2303
        %2933 = vmatpush.bf16.msra.mxu0 %v2291
        %2934 = vmatpush.bf16.msra.mxu0 %v2279
        %2935 = vmatpush.bf16.msra.mxu0 %v2267
        %2936 = vmatpush.bf16.msra.mxu0 %v2255
        %2937 = vmatmul.bf16.gmra.mxu0 %v849
        %v2938 = vpop.f32.mrf.mxu0
        %v2939 = vadd.f32 %v2890, %v2938
        %v2940 = vpop.f32.mrf.mxu0
        %v2941 = vadd.f32 %v2892, %v2940
        %2942 = vmatmul.bf16.gmra.mxu0 %v853
        %v2943 = vpop.f32.mrf.mxu0
        %v2944 = vadd.f32 %v2895, %v2943
        %v2945 = vpop.f32.mrf.mxu0
        %v2946 = vadd.f32 %v2897, %v2945
        %2947 = vmatmul.bf16.gmra.mxu0 %v857
        %v2948 = vpop.f32.mrf.mxu0
        %v2949 = vadd.f32 %v2900, %v2948
        %v2950 = vpop.f32.mrf.mxu0
        %v2951 = vadd.f32 %v2902, %v2950
        %2952 = vmatmul.bf16.gmra.mxu0 %v861
        %v2953 = vpop.f32.mrf.mxu0
        %v2954 = vadd.f32 %v2905, %v2953
        %v2955 = vpop.f32.mrf.mxu0
        %v2956 = vadd.f32 %v2907, %v2955
        %2957 = vmatmul.bf16.gmra.mxu0 %v865
        %v2958 = vpop.f32.mrf.mxu0
        %v2959 = vadd.f32 %v2910, %v2958
        %v2960 = vpop.f32.mrf.mxu0
        %v2961 = vadd.f32 %v2912, %v2960
        %2962 = vmatmul.bf16.gmra.mxu0 %v869
        %v2963 = vpop.f32.mrf.mxu0
        %v2964 = vadd.f32 %v2915, %v2963
        %v2965 = vpop.f32.mrf.mxu0
        %v2966 = vadd.f32 %v2917, %v2965
        %2967 = vmatmul.bf16.gmra.mxu0 %v873
        %v2968 = vpop.f32.mrf.mxu0
        %v2969 = vadd.f32 %v2920, %v2968
        %v2970 = vpop.f32.mrf.mxu0
        %v2971 = vadd.f32 %v2922, %v2970
        %2972 = vmatmul.bf16.gmra.mxu0 %v877
        %v2973 = vpop.f32.mrf.mxu0
        %v2974 = vadd.f32 %v2925, %v2973
        %v2975 = vpop.f32.mrf.mxu0
        %v2976 = vadd.f32 %v2927, %v2975
        %2977 = vdwg.mxu0
        %2978 = vmatpush.bf16.msra.mxu0 %v2435
        %2979 = vmatpush.bf16.msra.mxu0 %v2423
        %2980 = vmatpush.bf16.msra.mxu0 %v2411
        %2981 = vmatpush.bf16.msra.mxu0 %v2399
        %2982 = vmatpush.bf16.msra.mxu0 %v2387
        %2983 = vmatpush.bf16.msra.mxu0 %v2375
        %2984 = vmatpush.bf16.msra.mxu0 %v2363
        %2985 = vmatpush.bf16.msra.mxu0 %v2351
        %2986 = vmatmul.bf16.gmra.mxu0 %v850
        %v2987 = vpop.f32.mrf.mxu0
        %v2988 = vadd.f32 %v2939, %v2987
        %v2989 = vpop.f32.mrf.mxu0
        %v2990 = vadd.f32 %v2941, %v2989
        %2991 = vmatmul.bf16.gmra.mxu0 %v854
        %v2992 = vpop.f32.mrf.mxu0
        %v2993 = vadd.f32 %v2944, %v2992
        %v2994 = vpop.f32.mrf.mxu0
        %v2995 = vadd.f32 %v2946, %v2994
        %2996 = vmatmul.bf16.gmra.mxu0 %v858
        %v2997 = vpop.f32.mrf.mxu0
        %v2998 = vadd.f32 %v2949, %v2997
        %v2999 = vpop.f32.mrf.mxu0
        %v3000 = vadd.f32 %v2951, %v2999
        %3001 = vmatmul.bf16.gmra.mxu0 %v862
        %v3002 = vpop.f32.mrf.mxu0
        %v3003 = vadd.f32 %v2954, %v3002
        %v3004 = vpop.f32.mrf.mxu0
        %v3005 = vadd.f32 %v2956, %v3004
        %3006 = vmatmul.bf16.gmra.mxu0 %v866
        %v3007 = vpop.f32.mrf.mxu0
        %v3008 = vadd.f32 %v2959, %v3007
        %v3009 = vpop.f32.mrf.mxu0
        %v3010 = vadd.f32 %v2961, %v3009
        %3011 = vmatmul.bf16.gmra.mxu0 %v870
        %v3012 = vpop.f32.mrf.mxu0
        %v3013 = vadd.f32 %v2964, %v3012
        %v3014 = vpop.f32.mrf.mxu0
        %v3015 = vadd.f32 %v2966, %v3014
        %3016 = vmatmul.bf16.gmra.mxu0 %v874
        %v3017 = vpop.f32.mrf.mxu0
        %v3018 = vadd.f32 %v2969, %v3017
        %v3019 = vpop.f32.mrf.mxu0
        %v3020 = vadd.f32 %v2971, %v3019
        %3021 = vmatmul.bf16.gmra.mxu0 %v878
        %v3022 = vpop.f32.mrf.mxu0
        %v3023 = vadd.f32 %v2974, %v3022
        %v3024 = vpop.f32.mrf.mxu0
        %v3025 = vadd.f32 %v2976, %v3024
        %3026 = vdwg.mxu0
        %3027 = vmatpush.bf16.msra.mxu0 %v2148
        %3028 = vmatpush.bf16.msra.mxu0 %v2136
        %3029 = vmatpush.bf16.msra.mxu0 %v2124
        %3030 = vmatpush.bf16.msra.mxu0 %v2112
        %3031 = vmatpush.bf16.msra.mxu0 %v2100
        %3032 = vmatpush.bf16.msra.mxu0 %v2088
        %3033 = vmatpush.bf16.msra.mxu0 %v2076
        %3034 = vmatpush.bf16.msra.mxu0 %v2064
        %3035 = vmatmul.bf16.gmra.mxu0 %v847
        %v3036 = vpop.f32.mrf.mxu0
        %v3037 = vadd.f32 %v728, %v3036
        %v3038 = vpop.f32.mrf.mxu0
        %v3039 = vadd.f32 %v728, %v3038
        %3040 = vmatmul.bf16.gmra.mxu0 %v851
        %v3041 = vpop.f32.mrf.mxu0
        %v3042 = vadd.f32 %v728, %v3041
        %v3043 = vpop.f32.mrf.mxu0
        %v3044 = vadd.f32 %v728, %v3043
        %3045 = vmatmul.bf16.gmra.mxu0 %v855
        %v3046 = vpop.f32.mrf.mxu0
        %v3047 = vadd.f32 %v728, %v3046
        %v3048 = vpop.f32.mrf.mxu0
        %v3049 = vadd.f32 %v728, %v3048
        %3050 = vmatmul.bf16.gmra.mxu0 %v859
        %v3051 = vpop.f32.mrf.mxu0
        %v3052 = vadd.f32 %v728, %v3051
        %v3053 = vpop.f32.mrf.mxu0
        %v3054 = vadd.f32 %v728, %v3053
        %3055 = vmatmul.bf16.gmra.mxu0 %v863
        %v3056 = vpop.f32.mrf.mxu0
        %v3057 = vadd.f32 %v728, %v3056
        %v3058 = vpop.f32.mrf.mxu0
        %v3059 = vadd.f32 %v728, %v3058
        %3060 = vmatmul.bf16.gmra.mxu0 %v867
        %v3061 = vpop.f32.mrf.mxu0
        %v3062 = vadd.f32 %v728, %v3061
        %v3063 = vpop.f32.mrf.mxu0
        %v3064 = vadd.f32 %v728, %v3063
        %3065 = vmatmul.bf16.gmra.mxu0 %v871
        %v3066 = vpop.f32.mrf.mxu0
        %v3067 = vadd.f32 %v728, %v3066
        %v3068 = vpop.f32.mrf.mxu0
        %v3069 = vadd.f32 %v728, %v3068
        %3070 = vmatmul.bf16.gmra.mxu0 %v875
        %v3071 = vpop.f32.mrf.mxu0
        %v3072 = vadd.f32 %v728, %v3071
        %v3073 = vpop.f32.mrf.mxu0
        %v3074 = vadd.f32 %v728, %v3073
        %3075 = vdwg.mxu0
        %3076 = vmatpush.bf16.msra.mxu0 %v2244
        %3077 = vmatpush.bf16.msra.mxu0 %v2232
        %3078 = vmatpush.bf16.msra.mxu0 %v2220
        %3079 = vmatpush.bf16.msra.mxu0 %v2208
        %3080 = vmatpush.bf16.msra.mxu0 %v2196
        %3081 = vmatpush.bf16.msra.mxu0 %v2184
        %3082 = vmatpush.bf16.msra.mxu0 %v2172
        %3083 = vmatpush.bf16.msra.mxu0 %v2160
        %3084 = vmatmul.bf16.gmra.mxu0 %v848
        %v3085 = vpop.f32.mrf.mxu0
        %v3086 = vadd.f32 %v3037, %v3085
        %v3087 = vpop.f32.mrf.mxu0
        %v3088 = vadd.f32 %v3039, %v3087
        %3089 = vmatmul.bf16.gmra.mxu0 %v852
        %v3090 = vpop.f32.mrf.mxu0
        %v3091 = vadd.f32 %v3042, %v3090
        %v3092 = vpop.f32.mrf.mxu0
        %v3093 = vadd.f32 %v3044, %v3092
        %3094 = vmatmul.bf16.gmra.mxu0 %v856
        %v3095 = vpop.f32.mrf.mxu0
        %v3096 = vadd.f32 %v3047, %v3095
        %v3097 = vpop.f32.mrf.mxu0
        %v3098 = vadd.f32 %v3049, %v3097
        %3099 = vmatmul.bf16.gmra.mxu0 %v860
        %v3100 = vpop.f32.mrf.mxu0
        %v3101 = vadd.f32 %v3052, %v3100
        %v3102 = vpop.f32.mrf.mxu0
        %v3103 = vadd.f32 %v3054, %v3102
        %3104 = vmatmul.bf16.gmra.mxu0 %v864
        %v3105 = vpop.f32.mrf.mxu0
        %v3106 = vadd.f32 %v3057, %v3105
        %v3107 = vpop.f32.mrf.mxu0
        %v3108 = vadd.f32 %v3059, %v3107
        %3109 = vmatmul.bf16.gmra.mxu0 %v868
        %v3110 = vpop.f32.mrf.mxu0
        %v3111 = vadd.f32 %v3062, %v3110
        %v3112 = vpop.f32.mrf.mxu0
        %v3113 = vadd.f32 %v3064, %v3112
        %3114 = vmatmul.bf16.gmra.mxu0 %v872
        %v3115 = vpop.f32.mrf.mxu0
        %v3116 = vadd.f32 %v3067, %v3115
        %v3117 = vpop.f32.mrf.mxu0
        %v3118 = vadd.f32 %v3069, %v3117
        %3119 = vmatmul.bf16.gmra.mxu0 %v876
        %v3120 = vpop.f32.mrf.mxu0
        %v3121 = vadd.f32 %v3072, %v3120
        %v3122 = vpop.f32.mrf.mxu0
        %v3123 = vadd.f32 %v3074, %v3122
        %3124 = vdwg.mxu0
        %3125 = vmatpush.bf16.msra.mxu0 %v2340
        %3126 = vmatpush.bf16.msra.mxu0 %v2328
        %3127 = vmatpush.bf16.msra.mxu0 %v2316
        %3128 = vmatpush.bf16.msra.mxu0 %v2304
        %3129 = vmatpush.bf16.msra.mxu0 %v2292
        %3130 = vmatpush.bf16.msra.mxu0 %v2280
        %3131 = vmatpush.bf16.msra.mxu0 %v2268
        %3132 = vmatpush.bf16.msra.mxu0 %v2256
        %3133 = vmatmul.bf16.gmra.mxu0 %v849
        %v3134 = vpop.f32.mrf.mxu0
        %v3135 = vadd.f32 %v3086, %v3134
        %v3136 = vpop.f32.mrf.mxu0
        %v3137 = vadd.f32 %v3088, %v3136
        %3138 = vmatmul.bf16.gmra.mxu0 %v853
        %v3139 = vpop.f32.mrf.mxu0
        %v3140 = vadd.f32 %v3091, %v3139
        %v3141 = vpop.f32.mrf.mxu0
        %v3142 = vadd.f32 %v3093, %v3141
        %3143 = vmatmul.bf16.gmra.mxu0 %v857
        %v3144 = vpop.f32.mrf.mxu0
        %v3145 = vadd.f32 %v3096, %v3144
        %v3146 = vpop.f32.mrf.mxu0
        %v3147 = vadd.f32 %v3098, %v3146
        %3148 = vmatmul.bf16.gmra.mxu0 %v861
        %v3149 = vpop.f32.mrf.mxu0
        %v3150 = vadd.f32 %v3101, %v3149
        %v3151 = vpop.f32.mrf.mxu0
        %v3152 = vadd.f32 %v3103, %v3151
        %3153 = vmatmul.bf16.gmra.mxu0 %v865
        %v3154 = vpop.f32.mrf.mxu0
        %v3155 = vadd.f32 %v3106, %v3154
        %v3156 = vpop.f32.mrf.mxu0
        %v3157 = vadd.f32 %v3108, %v3156
        %3158 = vmatmul.bf16.gmra.mxu0 %v869
        %v3159 = vpop.f32.mrf.mxu0
        %v3160 = vadd.f32 %v3111, %v3159
        %v3161 = vpop.f32.mrf.mxu0
        %v3162 = vadd.f32 %v3113, %v3161
        %3163 = vmatmul.bf16.gmra.mxu0 %v873
        %v3164 = vpop.f32.mrf.mxu0
        %v3165 = vadd.f32 %v3116, %v3164
        %v3166 = vpop.f32.mrf.mxu0
        %v3167 = vadd.f32 %v3118, %v3166
        %3168 = vmatmul.bf16.gmra.mxu0 %v877
        %v3169 = vpop.f32.mrf.mxu0
        %v3170 = vadd.f32 %v3121, %v3169
        %v3171 = vpop.f32.mrf.mxu0
        %v3172 = vadd.f32 %v3123, %v3171
        %3173 = vdwg.mxu0
        %3174 = vmatpush.bf16.msra.mxu0 %v2436
        %3175 = vmatpush.bf16.msra.mxu0 %v2424
        %3176 = vmatpush.bf16.msra.mxu0 %v2412
        %3177 = vmatpush.bf16.msra.mxu0 %v2400
        %3178 = vmatpush.bf16.msra.mxu0 %v2388
        %3179 = vmatpush.bf16.msra.mxu0 %v2376
        %3180 = vmatpush.bf16.msra.mxu0 %v2364
        %3181 = vmatpush.bf16.msra.mxu0 %v2352
        %3182 = vmatmul.bf16.gmra.mxu0 %v850
        %v3183 = vpop.f32.mrf.mxu0
        %v3184 = vadd.f32 %v3135, %v3183
        %v3185 = vpop.f32.mrf.mxu0
        %v3186 = vadd.f32 %v3137, %v3185
        %3187 = vmatmul.bf16.gmra.mxu0 %v854
        %v3188 = vpop.f32.mrf.mxu0
        %v3189 = vadd.f32 %v3140, %v3188
        %v3190 = vpop.f32.mrf.mxu0
        %v3191 = vadd.f32 %v3142, %v3190
        %3192 = vmatmul.bf16.gmra.mxu0 %v858
        %v3193 = vpop.f32.mrf.mxu0
        %v3194 = vadd.f32 %v3145, %v3193
        %v3195 = vpop.f32.mrf.mxu0
        %v3196 = vadd.f32 %v3147, %v3195
        %3197 = vmatmul.bf16.gmra.mxu0 %v862
        %v3198 = vpop.f32.mrf.mxu0
        %v3199 = vadd.f32 %v3150, %v3198
        %v3200 = vpop.f32.mrf.mxu0
        %v3201 = vadd.f32 %v3152, %v3200
        %3202 = vmatmul.bf16.gmra.mxu0 %v866
        %v3203 = vpop.f32.mrf.mxu0
        %v3204 = vadd.f32 %v3155, %v3203
        %v3205 = vpop.f32.mrf.mxu0
        %v3206 = vadd.f32 %v3157, %v3205
        %3207 = vmatmul.bf16.gmra.mxu0 %v870
        %v3208 = vpop.f32.mrf.mxu0
        %v3209 = vadd.f32 %v3160, %v3208
        %v3210 = vpop.f32.mrf.mxu0
        %v3211 = vadd.f32 %v3162, %v3210
        %3212 = vmatmul.bf16.gmra.mxu0 %v874
        %v3213 = vpop.f32.mrf.mxu0
        %v3214 = vadd.f32 %v3165, %v3213
        %v3215 = vpop.f32.mrf.mxu0
        %v3216 = vadd.f32 %v3167, %v3215
        %3217 = vmatmul.bf16.gmra.mxu0 %v878
        %v3218 = vpop.f32.mrf.mxu0
        %v3219 = vadd.f32 %v3170, %v3218
        %v3220 = vpop.f32.mrf.mxu0
        %v3221 = vadd.f32 %v3172, %v3220
        %3222 = vdwg.mxu0
        %3223 = vmatpush.bf16.msra.mxu0 %v2149
        %3224 = vmatpush.bf16.msra.mxu0 %v2137
        %3225 = vmatpush.bf16.msra.mxu0 %v2125
        %3226 = vmatpush.bf16.msra.mxu0 %v2113
        %3227 = vmatpush.bf16.msra.mxu0 %v2101
        %3228 = vmatpush.bf16.msra.mxu0 %v2089
        %3229 = vmatpush.bf16.msra.mxu0 %v2077
        %3230 = vmatpush.bf16.msra.mxu0 %v2065
        %3231 = vmatmul.bf16.gmra.mxu0 %v847
        %v3232 = vpop.f32.mrf.mxu0
        %v3233 = vadd.f32 %v729, %v3232
        %v3234 = vpop.f32.mrf.mxu0
        %v3235 = vadd.f32 %v729, %v3234
        %3236 = vmatmul.bf16.gmra.mxu0 %v851
        %v3237 = vpop.f32.mrf.mxu0
        %v3238 = vadd.f32 %v729, %v3237
        %v3239 = vpop.f32.mrf.mxu0
        %v3240 = vadd.f32 %v729, %v3239
        %3241 = vmatmul.bf16.gmra.mxu0 %v855
        %v3242 = vpop.f32.mrf.mxu0
        %v3243 = vadd.f32 %v729, %v3242
        %v3244 = vpop.f32.mrf.mxu0
        %v3245 = vadd.f32 %v729, %v3244
        %3246 = vmatmul.bf16.gmra.mxu0 %v859
        %v3247 = vpop.f32.mrf.mxu0
        %v3248 = vadd.f32 %v729, %v3247
        %v3249 = vpop.f32.mrf.mxu0
        %v3250 = vadd.f32 %v729, %v3249
        %3251 = vmatmul.bf16.gmra.mxu0 %v863
        %v3252 = vpop.f32.mrf.mxu0
        %v3253 = vadd.f32 %v729, %v3252
        %v3254 = vpop.f32.mrf.mxu0
        %v3255 = vadd.f32 %v729, %v3254
        %3256 = vmatmul.bf16.gmra.mxu0 %v867
        %v3257 = vpop.f32.mrf.mxu0
        %v3258 = vadd.f32 %v729, %v3257
        %v3259 = vpop.f32.mrf.mxu0
        %v3260 = vadd.f32 %v729, %v3259
        %3261 = vmatmul.bf16.gmra.mxu0 %v871
        %v3262 = vpop.f32.mrf.mxu0
        %v3263 = vadd.f32 %v729, %v3262
        %v3264 = vpop.f32.mrf.mxu0
        %v3265 = vadd.f32 %v729, %v3264
        %3266 = vmatmul.bf16.gmra.mxu0 %v875
        %v3267 = vpop.f32.mrf.mxu0
        %v3268 = vadd.f32 %v729, %v3267
        %v3269 = vpop.f32.mrf.mxu0
        %v3270 = vadd.f32 %v729, %v3269
        %3271 = vdwg.mxu0
        %3272 = vmatpush.bf16.msra.mxu0 %v2245
        %3273 = vmatpush.bf16.msra.mxu0 %v2233
        %3274 = vmatpush.bf16.msra.mxu0 %v2221
        %3275 = vmatpush.bf16.msra.mxu0 %v2209
        %3276 = vmatpush.bf16.msra.mxu0 %v2197
        %3277 = vmatpush.bf16.msra.mxu0 %v2185
        %3278 = vmatpush.bf16.msra.mxu0 %v2173
        %3279 = vmatpush.bf16.msra.mxu0 %v2161
        %3280 = vmatmul.bf16.gmra.mxu0 %v848
        %v3281 = vpop.f32.mrf.mxu0
        %v3282 = vadd.f32 %v3233, %v3281
        %v3283 = vpop.f32.mrf.mxu0
        %v3284 = vadd.f32 %v3235, %v3283
        %3285 = vmatmul.bf16.gmra.mxu0 %v852
        %v3286 = vpop.f32.mrf.mxu0
        %v3287 = vadd.f32 %v3238, %v3286
        %v3288 = vpop.f32.mrf.mxu0
        %v3289 = vadd.f32 %v3240, %v3288
        %3290 = vmatmul.bf16.gmra.mxu0 %v856
        %v3291 = vpop.f32.mrf.mxu0
        %v3292 = vadd.f32 %v3243, %v3291
        %v3293 = vpop.f32.mrf.mxu0
        %v3294 = vadd.f32 %v3245, %v3293
        %3295 = vmatmul.bf16.gmra.mxu0 %v860
        %v3296 = vpop.f32.mrf.mxu0
        %v3297 = vadd.f32 %v3248, %v3296
        %v3298 = vpop.f32.mrf.mxu0
        %v3299 = vadd.f32 %v3250, %v3298
        %3300 = vmatmul.bf16.gmra.mxu0 %v864
        %v3301 = vpop.f32.mrf.mxu0
        %v3302 = vadd.f32 %v3253, %v3301
        %v3303 = vpop.f32.mrf.mxu0
        %v3304 = vadd.f32 %v3255, %v3303
        %3305 = vmatmul.bf16.gmra.mxu0 %v868
        %v3306 = vpop.f32.mrf.mxu0
        %v3307 = vadd.f32 %v3258, %v3306
        %v3308 = vpop.f32.mrf.mxu0
        %v3309 = vadd.f32 %v3260, %v3308
        %3310 = vmatmul.bf16.gmra.mxu0 %v872
        %v3311 = vpop.f32.mrf.mxu0
        %v3312 = vadd.f32 %v3263, %v3311
        %v3313 = vpop.f32.mrf.mxu0
        %v3314 = vadd.f32 %v3265, %v3313
        %3315 = vmatmul.bf16.gmra.mxu0 %v876
        %v3316 = vpop.f32.mrf.mxu0
        %v3317 = vadd.f32 %v3268, %v3316
        %v3318 = vpop.f32.mrf.mxu0
        %v3319 = vadd.f32 %v3270, %v3318
        %3320 = vdwg.mxu0
        %3321 = vmatpush.bf16.msra.mxu0 %v2341
        %3322 = vmatpush.bf16.msra.mxu0 %v2329
        %3323 = vmatpush.bf16.msra.mxu0 %v2317
        %3324 = vmatpush.bf16.msra.mxu0 %v2305
        %3325 = vmatpush.bf16.msra.mxu0 %v2293
        %3326 = vmatpush.bf16.msra.mxu0 %v2281
        %3327 = vmatpush.bf16.msra.mxu0 %v2269
        %3328 = vmatpush.bf16.msra.mxu0 %v2257
        %3329 = vmatmul.bf16.gmra.mxu0 %v849
        %v3330 = vpop.f32.mrf.mxu0
        %v3331 = vadd.f32 %v3282, %v3330
        %v3332 = vpop.f32.mrf.mxu0
        %v3333 = vadd.f32 %v3284, %v3332
        %3334 = vmatmul.bf16.gmra.mxu0 %v853
        %v3335 = vpop.f32.mrf.mxu0
        %v3336 = vadd.f32 %v3287, %v3335
        %v3337 = vpop.f32.mrf.mxu0
        %v3338 = vadd.f32 %v3289, %v3337
        %3339 = vmatmul.bf16.gmra.mxu0 %v857
        %v3340 = vpop.f32.mrf.mxu0
        %v3341 = vadd.f32 %v3292, %v3340
        %v3342 = vpop.f32.mrf.mxu0
        %v3343 = vadd.f32 %v3294, %v3342
        %3344 = vmatmul.bf16.gmra.mxu0 %v861
        %v3345 = vpop.f32.mrf.mxu0
        %v3346 = vadd.f32 %v3297, %v3345
        %v3347 = vpop.f32.mrf.mxu0
        %v3348 = vadd.f32 %v3299, %v3347
        %3349 = vmatmul.bf16.gmra.mxu0 %v865
        %v3350 = vpop.f32.mrf.mxu0
        %v3351 = vadd.f32 %v3302, %v3350
        %v3352 = vpop.f32.mrf.mxu0
        %v3353 = vadd.f32 %v3304, %v3352
        %3354 = vmatmul.bf16.gmra.mxu0 %v869
        %v3355 = vpop.f32.mrf.mxu0
        %v3356 = vadd.f32 %v3307, %v3355
        %v3357 = vpop.f32.mrf.mxu0
        %v3358 = vadd.f32 %v3309, %v3357
        %3359 = vmatmul.bf16.gmra.mxu0 %v873
        %v3360 = vpop.f32.mrf.mxu0
        %v3361 = vadd.f32 %v3312, %v3360
        %v3362 = vpop.f32.mrf.mxu0
        %v3363 = vadd.f32 %v3314, %v3362
        %3364 = vmatmul.bf16.gmra.mxu0 %v877
        %v3365 = vpop.f32.mrf.mxu0
        %v3366 = vadd.f32 %v3317, %v3365
        %v3367 = vpop.f32.mrf.mxu0
        %v3368 = vadd.f32 %v3319, %v3367
        %3369 = vdwg.mxu0
        %3370 = vmatpush.bf16.msra.mxu0 %v2437
        %3371 = vmatpush.bf16.msra.mxu0 %v2425
        %3372 = vmatpush.bf16.msra.mxu0 %v2413
        %3373 = vmatpush.bf16.msra.mxu0 %v2401
        %3374 = vmatpush.bf16.msra.mxu0 %v2389
        %3375 = vmatpush.bf16.msra.mxu0 %v2377
        %3376 = vmatpush.bf16.msra.mxu0 %v2365
        %3377 = vmatpush.bf16.msra.mxu0 %v2353
        %3378 = vmatmul.bf16.gmra.mxu0 %v850
        %v3379 = vpop.f32.mrf.mxu0
        %v3380 = vadd.f32 %v3331, %v3379
        %v3381 = vpop.f32.mrf.mxu0
        %v3382 = vadd.f32 %v3333, %v3381
        %3383 = vmatmul.bf16.gmra.mxu0 %v854
        %v3384 = vpop.f32.mrf.mxu0
        %v3385 = vadd.f32 %v3336, %v3384
        %v3386 = vpop.f32.mrf.mxu0
        %v3387 = vadd.f32 %v3338, %v3386
        %3388 = vmatmul.bf16.gmra.mxu0 %v858
        %v3389 = vpop.f32.mrf.mxu0
        %v3390 = vadd.f32 %v3341, %v3389
        %v3391 = vpop.f32.mrf.mxu0
        %v3392 = vadd.f32 %v3343, %v3391
        %3393 = vmatmul.bf16.gmra.mxu0 %v862
        %v3394 = vpop.f32.mrf.mxu0
        %v3395 = vadd.f32 %v3346, %v3394
        %v3396 = vpop.f32.mrf.mxu0
        %v3397 = vadd.f32 %v3348, %v3396
        %3398 = vmatmul.bf16.gmra.mxu0 %v866
        %v3399 = vpop.f32.mrf.mxu0
        %v3400 = vadd.f32 %v3351, %v3399
        %v3401 = vpop.f32.mrf.mxu0
        %v3402 = vadd.f32 %v3353, %v3401
        %3403 = vmatmul.bf16.gmra.mxu0 %v870
        %v3404 = vpop.f32.mrf.mxu0
        %v3405 = vadd.f32 %v3356, %v3404
        %v3406 = vpop.f32.mrf.mxu0
        %v3407 = vadd.f32 %v3358, %v3406
        %3408 = vmatmul.bf16.gmra.mxu0 %v874
        %v3409 = vpop.f32.mrf.mxu0
        %v3410 = vadd.f32 %v3361, %v3409
        %v3411 = vpop.f32.mrf.mxu0
        %v3412 = vadd.f32 %v3363, %v3411
        %3413 = vmatmul.bf16.gmra.mxu0 %v878
        %v3414 = vpop.f32.mrf.mxu0
        %v3415 = vadd.f32 %v3366, %v3414
        %v3416 = vpop.f32.mrf.mxu0
        %v3417 = vadd.f32 %v3368, %v3416
        %3418 = vdwg.mxu0
        %3419 = vmatpush.bf16.msra.mxu0 %v2150
        %3420 = vmatpush.bf16.msra.mxu0 %v2138
        %3421 = vmatpush.bf16.msra.mxu0 %v2126
        %3422 = vmatpush.bf16.msra.mxu0 %v2114
        %3423 = vmatpush.bf16.msra.mxu0 %v2102
        %3424 = vmatpush.bf16.msra.mxu0 %v2090
        %3425 = vmatpush.bf16.msra.mxu0 %v2078
        %3426 = vmatpush.bf16.msra.mxu0 %v2066
        %3427 = vmatmul.bf16.gmra.mxu0 %v847
        %v3428 = vpop.f32.mrf.mxu0
        %v3429 = vadd.f32 %v730, %v3428
        %v3430 = vpop.f32.mrf.mxu0
        %v3431 = vadd.f32 %v730, %v3430
        %3432 = vmatmul.bf16.gmra.mxu0 %v851
        %v3433 = vpop.f32.mrf.mxu0
        %v3434 = vadd.f32 %v730, %v3433
        %v3435 = vpop.f32.mrf.mxu0
        %v3436 = vadd.f32 %v730, %v3435
        %3437 = vmatmul.bf16.gmra.mxu0 %v855
        %v3438 = vpop.f32.mrf.mxu0
        %v3439 = vadd.f32 %v730, %v3438
        %v3440 = vpop.f32.mrf.mxu0
        %v3441 = vadd.f32 %v730, %v3440
        %3442 = vmatmul.bf16.gmra.mxu0 %v859
        %v3443 = vpop.f32.mrf.mxu0
        %v3444 = vadd.f32 %v730, %v3443
        %v3445 = vpop.f32.mrf.mxu0
        %v3446 = vadd.f32 %v730, %v3445
        %3447 = vmatmul.bf16.gmra.mxu0 %v863
        %v3448 = vpop.f32.mrf.mxu0
        %v3449 = vadd.f32 %v730, %v3448
        %v3450 = vpop.f32.mrf.mxu0
        %v3451 = vadd.f32 %v730, %v3450
        %3452 = vmatmul.bf16.gmra.mxu0 %v867
        %v3453 = vpop.f32.mrf.mxu0
        %v3454 = vadd.f32 %v730, %v3453
        %v3455 = vpop.f32.mrf.mxu0
        %v3456 = vadd.f32 %v730, %v3455
        %3457 = vmatmul.bf16.gmra.mxu0 %v871
        %v3458 = vpop.f32.mrf.mxu0
        %v3459 = vadd.f32 %v730, %v3458
        %v3460 = vpop.f32.mrf.mxu0
        %v3461 = vadd.f32 %v730, %v3460
        %3462 = vmatmul.bf16.gmra.mxu0 %v875
        %v3463 = vpop.f32.mrf.mxu0
        %v3464 = vadd.f32 %v730, %v3463
        %v3465 = vpop.f32.mrf.mxu0
        %v3466 = vadd.f32 %v730, %v3465
        %3467 = vdwg.mxu0
        %3468 = vmatpush.bf16.msra.mxu0 %v2246
        %3469 = vmatpush.bf16.msra.mxu0 %v2234
        %3470 = vmatpush.bf16.msra.mxu0 %v2222
        %3471 = vmatpush.bf16.msra.mxu0 %v2210
        %3472 = vmatpush.bf16.msra.mxu0 %v2198
        %3473 = vmatpush.bf16.msra.mxu0 %v2186
        %3474 = vmatpush.bf16.msra.mxu0 %v2174
        %3475 = vmatpush.bf16.msra.mxu0 %v2162
        %3476 = vmatmul.bf16.gmra.mxu0 %v848
        %v3477 = vpop.f32.mrf.mxu0
        %v3478 = vadd.f32 %v3429, %v3477
        %v3479 = vpop.f32.mrf.mxu0
        %v3480 = vadd.f32 %v3431, %v3479
        %3481 = vmatmul.bf16.gmra.mxu0 %v852
        %v3482 = vpop.f32.mrf.mxu0
        %v3483 = vadd.f32 %v3434, %v3482
        %v3484 = vpop.f32.mrf.mxu0
        %v3485 = vadd.f32 %v3436, %v3484
        %3486 = vmatmul.bf16.gmra.mxu0 %v856
        %v3487 = vpop.f32.mrf.mxu0
        %v3488 = vadd.f32 %v3439, %v3487
        %v3489 = vpop.f32.mrf.mxu0
        %v3490 = vadd.f32 %v3441, %v3489
        %3491 = vmatmul.bf16.gmra.mxu0 %v860
        %v3492 = vpop.f32.mrf.mxu0
        %v3493 = vadd.f32 %v3444, %v3492
        %v3494 = vpop.f32.mrf.mxu0
        %v3495 = vadd.f32 %v3446, %v3494
        %3496 = vmatmul.bf16.gmra.mxu0 %v864
        %v3497 = vpop.f32.mrf.mxu0
        %v3498 = vadd.f32 %v3449, %v3497
        %v3499 = vpop.f32.mrf.mxu0
        %v3500 = vadd.f32 %v3451, %v3499
        %3501 = vmatmul.bf16.gmra.mxu0 %v868
        %v3502 = vpop.f32.mrf.mxu0
        %v3503 = vadd.f32 %v3454, %v3502
        %v3504 = vpop.f32.mrf.mxu0
        %v3505 = vadd.f32 %v3456, %v3504
        %3506 = vmatmul.bf16.gmra.mxu0 %v872
        %v3507 = vpop.f32.mrf.mxu0
        %v3508 = vadd.f32 %v3459, %v3507
        %v3509 = vpop.f32.mrf.mxu0
        %v3510 = vadd.f32 %v3461, %v3509
        %3511 = vmatmul.bf16.gmra.mxu0 %v876
        %v3512 = vpop.f32.mrf.mxu0
        %v3513 = vadd.f32 %v3464, %v3512
        %v3514 = vpop.f32.mrf.mxu0
        %v3515 = vadd.f32 %v3466, %v3514
        %3516 = vdwg.mxu0
        %3517 = vmatpush.bf16.msra.mxu0 %v2342
        %3518 = vmatpush.bf16.msra.mxu0 %v2330
        %3519 = vmatpush.bf16.msra.mxu0 %v2318
        %3520 = vmatpush.bf16.msra.mxu0 %v2306
        %3521 = vmatpush.bf16.msra.mxu0 %v2294
        %3522 = vmatpush.bf16.msra.mxu0 %v2282
        %3523 = vmatpush.bf16.msra.mxu0 %v2270
        %3524 = vmatpush.bf16.msra.mxu0 %v2258
        %3525 = vmatmul.bf16.gmra.mxu0 %v849
        %v3526 = vpop.f32.mrf.mxu0
        %v3527 = vadd.f32 %v3478, %v3526
        %v3528 = vpop.f32.mrf.mxu0
        %v3529 = vadd.f32 %v3480, %v3528
        %3530 = vmatmul.bf16.gmra.mxu0 %v853
        %v3531 = vpop.f32.mrf.mxu0
        %v3532 = vadd.f32 %v3483, %v3531
        %v3533 = vpop.f32.mrf.mxu0
        %v3534 = vadd.f32 %v3485, %v3533
        %3535 = vmatmul.bf16.gmra.mxu0 %v857
        %v3536 = vpop.f32.mrf.mxu0
        %v3537 = vadd.f32 %v3488, %v3536
        %v3538 = vpop.f32.mrf.mxu0
        %v3539 = vadd.f32 %v3490, %v3538
        %3540 = vmatmul.bf16.gmra.mxu0 %v861
        %v3541 = vpop.f32.mrf.mxu0
        %v3542 = vadd.f32 %v3493, %v3541
        %v3543 = vpop.f32.mrf.mxu0
        %v3544 = vadd.f32 %v3495, %v3543
        %3545 = vmatmul.bf16.gmra.mxu0 %v865
        %v3546 = vpop.f32.mrf.mxu0
        %v3547 = vadd.f32 %v3498, %v3546
        %v3548 = vpop.f32.mrf.mxu0
        %v3549 = vadd.f32 %v3500, %v3548
        %3550 = vmatmul.bf16.gmra.mxu0 %v869
        %v3551 = vpop.f32.mrf.mxu0
        %v3552 = vadd.f32 %v3503, %v3551
        %v3553 = vpop.f32.mrf.mxu0
        %v3554 = vadd.f32 %v3505, %v3553
        %3555 = vmatmul.bf16.gmra.mxu0 %v873
        %v3556 = vpop.f32.mrf.mxu0
        %v3557 = vadd.f32 %v3508, %v3556
        %v3558 = vpop.f32.mrf.mxu0
        %v3559 = vadd.f32 %v3510, %v3558
        %3560 = vmatmul.bf16.gmra.mxu0 %v877
        %v3561 = vpop.f32.mrf.mxu0
        %v3562 = vadd.f32 %v3513, %v3561
        %v3563 = vpop.f32.mrf.mxu0
        %v3564 = vadd.f32 %v3515, %v3563
        %3565 = vdwg.mxu0
        %3566 = vmatpush.bf16.msra.mxu0 %v2438
        %3567 = vmatpush.bf16.msra.mxu0 %v2426
        %3568 = vmatpush.bf16.msra.mxu0 %v2414
        %3569 = vmatpush.bf16.msra.mxu0 %v2402
        %3570 = vmatpush.bf16.msra.mxu0 %v2390
        %3571 = vmatpush.bf16.msra.mxu0 %v2378
        %3572 = vmatpush.bf16.msra.mxu0 %v2366
        %3573 = vmatpush.bf16.msra.mxu0 %v2354
        %3574 = vmatmul.bf16.gmra.mxu0 %v850
        %v3575 = vpop.f32.mrf.mxu0
        %v3576 = vadd.f32 %v3527, %v3575
        %v3577 = vpop.f32.mrf.mxu0
        %v3578 = vadd.f32 %v3529, %v3577
        %3579 = vmatmul.bf16.gmra.mxu0 %v854
        %v3580 = vpop.f32.mrf.mxu0
        %v3581 = vadd.f32 %v3532, %v3580
        %v3582 = vpop.f32.mrf.mxu0
        %v3583 = vadd.f32 %v3534, %v3582
        %3584 = vmatmul.bf16.gmra.mxu0 %v858
        %v3585 = vpop.f32.mrf.mxu0
        %v3586 = vadd.f32 %v3537, %v3585
        %v3587 = vpop.f32.mrf.mxu0
        %v3588 = vadd.f32 %v3539, %v3587
        %3589 = vmatmul.bf16.gmra.mxu0 %v862
        %v3590 = vpop.f32.mrf.mxu0
        %v3591 = vadd.f32 %v3542, %v3590
        %v3592 = vpop.f32.mrf.mxu0
        %v3593 = vadd.f32 %v3544, %v3592
        %3594 = vmatmul.bf16.gmra.mxu0 %v866
        %v3595 = vpop.f32.mrf.mxu0
        %v3596 = vadd.f32 %v3547, %v3595
        %v3597 = vpop.f32.mrf.mxu0
        %v3598 = vadd.f32 %v3549, %v3597
        %3599 = vmatmul.bf16.gmra.mxu0 %v870
        %v3600 = vpop.f32.mrf.mxu0
        %v3601 = vadd.f32 %v3552, %v3600
        %v3602 = vpop.f32.mrf.mxu0
        %v3603 = vadd.f32 %v3554, %v3602
        %3604 = vmatmul.bf16.gmra.mxu0 %v874
        %v3605 = vpop.f32.mrf.mxu0
        %v3606 = vadd.f32 %v3557, %v3605
        %v3607 = vpop.f32.mrf.mxu0
        %v3608 = vadd.f32 %v3559, %v3607
        %3609 = vmatmul.bf16.gmra.mxu0 %v878
        %v3610 = vpop.f32.mrf.mxu0
        %v3611 = vadd.f32 %v3562, %v3610
        %v3612 = vpop.f32.mrf.mxu0
        %v3613 = vadd.f32 %v3564, %v3612
        %3614 = vdwg.mxu0
        %3615 = vmatpush.bf16.msra.mxu0 %v2151
        %3616 = vmatpush.bf16.msra.mxu0 %v2139
        %3617 = vmatpush.bf16.msra.mxu0 %v2127
        %3618 = vmatpush.bf16.msra.mxu0 %v2115
        %3619 = vmatpush.bf16.msra.mxu0 %v2103
        %3620 = vmatpush.bf16.msra.mxu0 %v2091
        %3621 = vmatpush.bf16.msra.mxu0 %v2079
        %3622 = vmatpush.bf16.msra.mxu0 %v2067
        %3623 = vmatmul.bf16.gmra.mxu0 %v847
        %v3624 = vpop.f32.mrf.mxu0
        %v3625 = vadd.f32 %v731, %v3624
        %v3626 = vpop.f32.mrf.mxu0
        %v3627 = vadd.f32 %v731, %v3626
        %3628 = vmatmul.bf16.gmra.mxu0 %v851
        %v3629 = vpop.f32.mrf.mxu0
        %v3630 = vadd.f32 %v731, %v3629
        %v3631 = vpop.f32.mrf.mxu0
        %v3632 = vadd.f32 %v731, %v3631
        %3633 = vmatmul.bf16.gmra.mxu0 %v855
        %v3634 = vpop.f32.mrf.mxu0
        %v3635 = vadd.f32 %v731, %v3634
        %v3636 = vpop.f32.mrf.mxu0
        %v3637 = vadd.f32 %v731, %v3636
        %3638 = vmatmul.bf16.gmra.mxu0 %v859
        %v3639 = vpop.f32.mrf.mxu0
        %v3640 = vadd.f32 %v731, %v3639
        %v3641 = vpop.f32.mrf.mxu0
        %v3642 = vadd.f32 %v731, %v3641
        %3643 = vmatmul.bf16.gmra.mxu0 %v863
        %v3644 = vpop.f32.mrf.mxu0
        %v3645 = vadd.f32 %v731, %v3644
        %v3646 = vpop.f32.mrf.mxu0
        %v3647 = vadd.f32 %v731, %v3646
        %3648 = vmatmul.bf16.gmra.mxu0 %v867
        %v3649 = vpop.f32.mrf.mxu0
        %v3650 = vadd.f32 %v731, %v3649
        %v3651 = vpop.f32.mrf.mxu0
        %v3652 = vadd.f32 %v731, %v3651
        %3653 = vmatmul.bf16.gmra.mxu0 %v871
        %v3654 = vpop.f32.mrf.mxu0
        %v3655 = vadd.f32 %v731, %v3654
        %v3656 = vpop.f32.mrf.mxu0
        %v3657 = vadd.f32 %v731, %v3656
        %3658 = vmatmul.bf16.gmra.mxu0 %v875
        %v3659 = vpop.f32.mrf.mxu0
        %v3660 = vadd.f32 %v731, %v3659
        %v3661 = vpop.f32.mrf.mxu0
        %v3662 = vadd.f32 %v731, %v3661
        %3663 = vdwg.mxu0
        %3664 = vmatpush.bf16.msra.mxu0 %v2247
        %3665 = vmatpush.bf16.msra.mxu0 %v2235
        %3666 = vmatpush.bf16.msra.mxu0 %v2223
        %3667 = vmatpush.bf16.msra.mxu0 %v2211
        %3668 = vmatpush.bf16.msra.mxu0 %v2199
        %3669 = vmatpush.bf16.msra.mxu0 %v2187
        %3670 = vmatpush.bf16.msra.mxu0 %v2175
        %3671 = vmatpush.bf16.msra.mxu0 %v2163
        %3672 = vmatmul.bf16.gmra.mxu0 %v848
        %v3673 = vpop.f32.mrf.mxu0
        %v3674 = vadd.f32 %v3625, %v3673
        %v3675 = vpop.f32.mrf.mxu0
        %v3676 = vadd.f32 %v3627, %v3675
        %3677 = vmatmul.bf16.gmra.mxu0 %v852
        %v3678 = vpop.f32.mrf.mxu0
        %v3679 = vadd.f32 %v3630, %v3678
        %v3680 = vpop.f32.mrf.mxu0
        %v3681 = vadd.f32 %v3632, %v3680
        %3682 = vmatmul.bf16.gmra.mxu0 %v856
        %v3683 = vpop.f32.mrf.mxu0
        %v3684 = vadd.f32 %v3635, %v3683
        %v3685 = vpop.f32.mrf.mxu0
        %v3686 = vadd.f32 %v3637, %v3685
        %3687 = vmatmul.bf16.gmra.mxu0 %v860
        %v3688 = vpop.f32.mrf.mxu0
        %v3689 = vadd.f32 %v3640, %v3688
        %v3690 = vpop.f32.mrf.mxu0
        %v3691 = vadd.f32 %v3642, %v3690
        %3692 = vmatmul.bf16.gmra.mxu0 %v864
        %v3693 = vpop.f32.mrf.mxu0
        %v3694 = vadd.f32 %v3645, %v3693
        %v3695 = vpop.f32.mrf.mxu0
        %v3696 = vadd.f32 %v3647, %v3695
        %3697 = vmatmul.bf16.gmra.mxu0 %v868
        %v3698 = vpop.f32.mrf.mxu0
        %v3699 = vadd.f32 %v3650, %v3698
        %v3700 = vpop.f32.mrf.mxu0
        %v3701 = vadd.f32 %v3652, %v3700
        %3702 = vmatmul.bf16.gmra.mxu0 %v872
        %v3703 = vpop.f32.mrf.mxu0
        %v3704 = vadd.f32 %v3655, %v3703
        %v3705 = vpop.f32.mrf.mxu0
        %v3706 = vadd.f32 %v3657, %v3705
        %3707 = vmatmul.bf16.gmra.mxu0 %v876
        %v3708 = vpop.f32.mrf.mxu0
        %v3709 = vadd.f32 %v3660, %v3708
        %v3710 = vpop.f32.mrf.mxu0
        %v3711 = vadd.f32 %v3662, %v3710
        %3712 = vdwg.mxu0
        %3713 = vmatpush.bf16.msra.mxu0 %v2343
        %3714 = vmatpush.bf16.msra.mxu0 %v2331
        %3715 = vmatpush.bf16.msra.mxu0 %v2319
        %3716 = vmatpush.bf16.msra.mxu0 %v2307
        %3717 = vmatpush.bf16.msra.mxu0 %v2295
        %3718 = vmatpush.bf16.msra.mxu0 %v2283
        %3719 = vmatpush.bf16.msra.mxu0 %v2271
        %3720 = vmatpush.bf16.msra.mxu0 %v2259
        %3721 = vmatmul.bf16.gmra.mxu0 %v849
        %v3722 = vpop.f32.mrf.mxu0
        %v3723 = vadd.f32 %v3674, %v3722
        %v3724 = vpop.f32.mrf.mxu0
        %v3725 = vadd.f32 %v3676, %v3724
        %3726 = vmatmul.bf16.gmra.mxu0 %v853
        %v3727 = vpop.f32.mrf.mxu0
        %v3728 = vadd.f32 %v3679, %v3727
        %v3729 = vpop.f32.mrf.mxu0
        %v3730 = vadd.f32 %v3681, %v3729
        %3731 = vmatmul.bf16.gmra.mxu0 %v857
        %v3732 = vpop.f32.mrf.mxu0
        %v3733 = vadd.f32 %v3684, %v3732
        %v3734 = vpop.f32.mrf.mxu0
        %v3735 = vadd.f32 %v3686, %v3734
        %3736 = vmatmul.bf16.gmra.mxu0 %v861
        %v3737 = vpop.f32.mrf.mxu0
        %v3738 = vadd.f32 %v3689, %v3737
        %v3739 = vpop.f32.mrf.mxu0
        %v3740 = vadd.f32 %v3691, %v3739
        %3741 = vmatmul.bf16.gmra.mxu0 %v865
        %v3742 = vpop.f32.mrf.mxu0
        %v3743 = vadd.f32 %v3694, %v3742
        %v3744 = vpop.f32.mrf.mxu0
        %v3745 = vadd.f32 %v3696, %v3744
        %3746 = vmatmul.bf16.gmra.mxu0 %v869
        %v3747 = vpop.f32.mrf.mxu0
        %v3748 = vadd.f32 %v3699, %v3747
        %v3749 = vpop.f32.mrf.mxu0
        %v3750 = vadd.f32 %v3701, %v3749
        %3751 = vmatmul.bf16.gmra.mxu0 %v873
        %v3752 = vpop.f32.mrf.mxu0
        %v3753 = vadd.f32 %v3704, %v3752
        %v3754 = vpop.f32.mrf.mxu0
        %v3755 = vadd.f32 %v3706, %v3754
        %3756 = vmatmul.bf16.gmra.mxu0 %v877
        %v3757 = vpop.f32.mrf.mxu0
        %v3758 = vadd.f32 %v3709, %v3757
        %v3759 = vpop.f32.mrf.mxu0
        %v3760 = vadd.f32 %v3711, %v3759
        %3761 = vdwg.mxu0
        %3762 = vmatpush.bf16.msra.mxu0 %v2439
        %3763 = vmatpush.bf16.msra.mxu0 %v2427
        %3764 = vmatpush.bf16.msra.mxu0 %v2415
        %3765 = vmatpush.bf16.msra.mxu0 %v2403
        %3766 = vmatpush.bf16.msra.mxu0 %v2391
        %3767 = vmatpush.bf16.msra.mxu0 %v2379
        %3768 = vmatpush.bf16.msra.mxu0 %v2367
        %3769 = vmatpush.bf16.msra.mxu0 %v2355
        %3770 = vmatmul.bf16.gmra.mxu0 %v850
        %v3771 = vpop.f32.mrf.mxu0
        %v3772 = vadd.f32 %v3723, %v3771
        %v3773 = vpop.f32.mrf.mxu0
        %v3774 = vadd.f32 %v3725, %v3773
        %3775 = vmatmul.bf16.gmra.mxu0 %v854
        %v3776 = vpop.f32.mrf.mxu0
        %v3777 = vadd.f32 %v3728, %v3776
        %v3778 = vpop.f32.mrf.mxu0
        %v3779 = vadd.f32 %v3730, %v3778
        %3780 = vmatmul.bf16.gmra.mxu0 %v858
        %v3781 = vpop.f32.mrf.mxu0
        %v3782 = vadd.f32 %v3733, %v3781
        %v3783 = vpop.f32.mrf.mxu0
        %v3784 = vadd.f32 %v3735, %v3783
        %3785 = vmatmul.bf16.gmra.mxu0 %v862
        %v3786 = vpop.f32.mrf.mxu0
        %v3787 = vadd.f32 %v3738, %v3786
        %v3788 = vpop.f32.mrf.mxu0
        %v3789 = vadd.f32 %v3740, %v3788
        %3790 = vmatmul.bf16.gmra.mxu0 %v866
        %v3791 = vpop.f32.mrf.mxu0
        %v3792 = vadd.f32 %v3743, %v3791
        %v3793 = vpop.f32.mrf.mxu0
        %v3794 = vadd.f32 %v3745, %v3793
        %3795 = vmatmul.bf16.gmra.mxu0 %v870
        %v3796 = vpop.f32.mrf.mxu0
        %v3797 = vadd.f32 %v3748, %v3796
        %v3798 = vpop.f32.mrf.mxu0
        %v3799 = vadd.f32 %v3750, %v3798
        %3800 = vmatmul.bf16.gmra.mxu0 %v874
        %v3801 = vpop.f32.mrf.mxu0
        %v3802 = vadd.f32 %v3753, %v3801
        %v3803 = vpop.f32.mrf.mxu0
        %v3804 = vadd.f32 %v3755, %v3803
        %3805 = vmatmul.bf16.gmra.mxu0 %v878
        %v3806 = vpop.f32.mrf.mxu0
        %v3807 = vadd.f32 %v3758, %v3806
        %v3808 = vpop.f32.mrf.mxu0
        %v3809 = vadd.f32 %v3760, %v3808
        %3810 = vdwg.mxu0
        %3811 = vmatpush.bf16.msra.mxu0 %v2152
        %3812 = vmatpush.bf16.msra.mxu0 %v2140
        %3813 = vmatpush.bf16.msra.mxu0 %v2128
        %3814 = vmatpush.bf16.msra.mxu0 %v2116
        %3815 = vmatpush.bf16.msra.mxu0 %v2104
        %3816 = vmatpush.bf16.msra.mxu0 %v2092
        %3817 = vmatpush.bf16.msra.mxu0 %v2080
        %3818 = vmatpush.bf16.msra.mxu0 %v2068
        %3819 = vmatmul.bf16.gmra.mxu0 %v847
        %v3820 = vpop.f32.mrf.mxu0
        %v3821 = vadd.f32 %v732, %v3820
        %v3822 = vpop.f32.mrf.mxu0
        %v3823 = vadd.f32 %v732, %v3822
        %3824 = vmatmul.bf16.gmra.mxu0 %v851
        %v3825 = vpop.f32.mrf.mxu0
        %v3826 = vadd.f32 %v732, %v3825
        %v3827 = vpop.f32.mrf.mxu0
        %v3828 = vadd.f32 %v732, %v3827
        %3829 = vmatmul.bf16.gmra.mxu0 %v855
        %v3830 = vpop.f32.mrf.mxu0
        %v3831 = vadd.f32 %v732, %v3830
        %v3832 = vpop.f32.mrf.mxu0
        %v3833 = vadd.f32 %v732, %v3832
        %3834 = vmatmul.bf16.gmra.mxu0 %v859
        %v3835 = vpop.f32.mrf.mxu0
        %v3836 = vadd.f32 %v732, %v3835
        %v3837 = vpop.f32.mrf.mxu0
        %v3838 = vadd.f32 %v732, %v3837
        %3839 = vmatmul.bf16.gmra.mxu0 %v863
        %v3840 = vpop.f32.mrf.mxu0
        %v3841 = vadd.f32 %v732, %v3840
        %v3842 = vpop.f32.mrf.mxu0
        %v3843 = vadd.f32 %v732, %v3842
        %3844 = vmatmul.bf16.gmra.mxu0 %v867
        %v3845 = vpop.f32.mrf.mxu0
        %v3846 = vadd.f32 %v732, %v3845
        %v3847 = vpop.f32.mrf.mxu0
        %v3848 = vadd.f32 %v732, %v3847
        %3849 = vmatmul.bf16.gmra.mxu0 %v871
        %v3850 = vpop.f32.mrf.mxu0
        %v3851 = vadd.f32 %v732, %v3850
        %v3852 = vpop.f32.mrf.mxu0
        %v3853 = vadd.f32 %v732, %v3852
        %3854 = vmatmul.bf16.gmra.mxu0 %v875
        %v3855 = vpop.f32.mrf.mxu0
        %v3856 = vadd.f32 %v732, %v3855
        %v3857 = vpop.f32.mrf.mxu0
        %v3858 = vadd.f32 %v732, %v3857
        %3859 = vdwg.mxu0
        %3860 = vmatpush.bf16.msra.mxu0 %v2248
        %3861 = vmatpush.bf16.msra.mxu0 %v2236
        %3862 = vmatpush.bf16.msra.mxu0 %v2224
        %3863 = vmatpush.bf16.msra.mxu0 %v2212
        %3864 = vmatpush.bf16.msra.mxu0 %v2200
        %3865 = vmatpush.bf16.msra.mxu0 %v2188
        %3866 = vmatpush.bf16.msra.mxu0 %v2176
        %3867 = vmatpush.bf16.msra.mxu0 %v2164
        %3868 = vmatmul.bf16.gmra.mxu0 %v848
        %v3869 = vpop.f32.mrf.mxu0
        %v3870 = vadd.f32 %v3821, %v3869
        %v3871 = vpop.f32.mrf.mxu0
        %v3872 = vadd.f32 %v3823, %v3871
        %3873 = vmatmul.bf16.gmra.mxu0 %v852
        %v3874 = vpop.f32.mrf.mxu0
        %v3875 = vadd.f32 %v3826, %v3874
        %v3876 = vpop.f32.mrf.mxu0
        %v3877 = vadd.f32 %v3828, %v3876
        %3878 = vmatmul.bf16.gmra.mxu0 %v856
        %v3879 = vpop.f32.mrf.mxu0
        %v3880 = vadd.f32 %v3831, %v3879
        %v3881 = vpop.f32.mrf.mxu0
        %v3882 = vadd.f32 %v3833, %v3881
        %3883 = vmatmul.bf16.gmra.mxu0 %v860
        %v3884 = vpop.f32.mrf.mxu0
        %v3885 = vadd.f32 %v3836, %v3884
        %v3886 = vpop.f32.mrf.mxu0
        %v3887 = vadd.f32 %v3838, %v3886
        %3888 = vmatmul.bf16.gmra.mxu0 %v864
        %v3889 = vpop.f32.mrf.mxu0
        %v3890 = vadd.f32 %v3841, %v3889
        %v3891 = vpop.f32.mrf.mxu0
        %v3892 = vadd.f32 %v3843, %v3891
        %3893 = vmatmul.bf16.gmra.mxu0 %v868
        %v3894 = vpop.f32.mrf.mxu0
        %v3895 = vadd.f32 %v3846, %v3894
        %v3896 = vpop.f32.mrf.mxu0
        %v3897 = vadd.f32 %v3848, %v3896
        %3898 = vmatmul.bf16.gmra.mxu0 %v872
        %v3899 = vpop.f32.mrf.mxu0
        %v3900 = vadd.f32 %v3851, %v3899
        %v3901 = vpop.f32.mrf.mxu0
        %v3902 = vadd.f32 %v3853, %v3901
        %3903 = vmatmul.bf16.gmra.mxu0 %v876
        %v3904 = vpop.f32.mrf.mxu0
        %v3905 = vadd.f32 %v3856, %v3904
        %v3906 = vpop.f32.mrf.mxu0
        %v3907 = vadd.f32 %v3858, %v3906
        %3908 = vdwg.mxu0
        %3909 = vmatpush.bf16.msra.mxu0 %v2344
        %3910 = vmatpush.bf16.msra.mxu0 %v2332
        %3911 = vmatpush.bf16.msra.mxu0 %v2320
        %3912 = vmatpush.bf16.msra.mxu0 %v2308
        %3913 = vmatpush.bf16.msra.mxu0 %v2296
        %3914 = vmatpush.bf16.msra.mxu0 %v2284
        %3915 = vmatpush.bf16.msra.mxu0 %v2272
        %3916 = vmatpush.bf16.msra.mxu0 %v2260
        %3917 = vmatmul.bf16.gmra.mxu0 %v849
        %v3918 = vpop.f32.mrf.mxu0
        %v3919 = vadd.f32 %v3870, %v3918
        %v3920 = vpop.f32.mrf.mxu0
        %v3921 = vadd.f32 %v3872, %v3920
        %3922 = vmatmul.bf16.gmra.mxu0 %v853
        %v3923 = vpop.f32.mrf.mxu0
        %v3924 = vadd.f32 %v3875, %v3923
        %v3925 = vpop.f32.mrf.mxu0
        %v3926 = vadd.f32 %v3877, %v3925
        %3927 = vmatmul.bf16.gmra.mxu0 %v857
        %v3928 = vpop.f32.mrf.mxu0
        %v3929 = vadd.f32 %v3880, %v3928
        %v3930 = vpop.f32.mrf.mxu0
        %v3931 = vadd.f32 %v3882, %v3930
        %3932 = vmatmul.bf16.gmra.mxu0 %v861
        %v3933 = vpop.f32.mrf.mxu0
        %v3934 = vadd.f32 %v3885, %v3933
        %v3935 = vpop.f32.mrf.mxu0
        %v3936 = vadd.f32 %v3887, %v3935
        %3937 = vmatmul.bf16.gmra.mxu0 %v865
        %v3938 = vpop.f32.mrf.mxu0
        %v3939 = vadd.f32 %v3890, %v3938
        %v3940 = vpop.f32.mrf.mxu0
        %v3941 = vadd.f32 %v3892, %v3940
        %3942 = vmatmul.bf16.gmra.mxu0 %v869
        %v3943 = vpop.f32.mrf.mxu0
        %v3944 = vadd.f32 %v3895, %v3943
        %v3945 = vpop.f32.mrf.mxu0
        %v3946 = vadd.f32 %v3897, %v3945
        %3947 = vmatmul.bf16.gmra.mxu0 %v873
        %v3948 = vpop.f32.mrf.mxu0
        %v3949 = vadd.f32 %v3900, %v3948
        %v3950 = vpop.f32.mrf.mxu0
        %v3951 = vadd.f32 %v3902, %v3950
        %3952 = vmatmul.bf16.gmra.mxu0 %v877
        %v3953 = vpop.f32.mrf.mxu0
        %v3954 = vadd.f32 %v3905, %v3953
        %v3955 = vpop.f32.mrf.mxu0
        %v3956 = vadd.f32 %v3907, %v3955
        %3957 = vdwg.mxu0
        %3958 = vmatpush.bf16.msra.mxu0 %v2440
        %3959 = vmatpush.bf16.msra.mxu0 %v2428
        %3960 = vmatpush.bf16.msra.mxu0 %v2416
        %3961 = vmatpush.bf16.msra.mxu0 %v2404
        %3962 = vmatpush.bf16.msra.mxu0 %v2392
        %3963 = vmatpush.bf16.msra.mxu0 %v2380
        %3964 = vmatpush.bf16.msra.mxu0 %v2368
        %3965 = vmatpush.bf16.msra.mxu0 %v2356
        %3966 = vmatmul.bf16.gmra.mxu0 %v850
        %v3967 = vpop.f32.mrf.mxu0
        %v3968 = vadd.f32 %v3919, %v3967
        %v3969 = vpop.f32.mrf.mxu0
        %v3970 = vadd.f32 %v3921, %v3969
        %3971 = vmatmul.bf16.gmra.mxu0 %v854
        %v3972 = vpop.f32.mrf.mxu0
        %v3973 = vadd.f32 %v3924, %v3972
        %v3974 = vpop.f32.mrf.mxu0
        %v3975 = vadd.f32 %v3926, %v3974
        %3976 = vmatmul.bf16.gmra.mxu0 %v858
        %v3977 = vpop.f32.mrf.mxu0
        %v3978 = vadd.f32 %v3929, %v3977
        %v3979 = vpop.f32.mrf.mxu0
        %v3980 = vadd.f32 %v3931, %v3979
        %3981 = vmatmul.bf16.gmra.mxu0 %v862
        %v3982 = vpop.f32.mrf.mxu0
        %v3983 = vadd.f32 %v3934, %v3982
        %v3984 = vpop.f32.mrf.mxu0
        %v3985 = vadd.f32 %v3936, %v3984
        %3986 = vmatmul.bf16.gmra.mxu0 %v866
        %v3987 = vpop.f32.mrf.mxu0
        %v3988 = vadd.f32 %v3939, %v3987
        %v3989 = vpop.f32.mrf.mxu0
        %v3990 = vadd.f32 %v3941, %v3989
        %3991 = vmatmul.bf16.gmra.mxu0 %v870
        %v3992 = vpop.f32.mrf.mxu0
        %v3993 = vadd.f32 %v3944, %v3992
        %v3994 = vpop.f32.mrf.mxu0
        %v3995 = vadd.f32 %v3946, %v3994
        %3996 = vmatmul.bf16.gmra.mxu0 %v874
        %v3997 = vpop.f32.mrf.mxu0
        %v3998 = vadd.f32 %v3949, %v3997
        %v3999 = vpop.f32.mrf.mxu0
        %v4000 = vadd.f32 %v3951, %v3999
        %4001 = vmatmul.bf16.gmra.mxu0 %v878
        %v4002 = vpop.f32.mrf.mxu0
        %v4003 = vadd.f32 %v3954, %v4002
        %v4004 = vpop.f32.mrf.mxu0
        %v4005 = vadd.f32 %v3956, %v4004
        %4006 = vdwg.mxu0
        %4007 = vmatpush.bf16.msra.mxu0 %v2153
        %4008 = vmatpush.bf16.msra.mxu0 %v2141
        %4009 = vmatpush.bf16.msra.mxu0 %v2129
        %4010 = vmatpush.bf16.msra.mxu0 %v2117
        %4011 = vmatpush.bf16.msra.mxu0 %v2105
        %4012 = vmatpush.bf16.msra.mxu0 %v2093
        %4013 = vmatpush.bf16.msra.mxu0 %v2081
        %4014 = vmatpush.bf16.msra.mxu0 %v2069
        %4015 = vmatmul.bf16.gmra.mxu0 %v847
        %v4016 = vpop.f32.mrf.mxu0
        %v4017 = vadd.f32 %v733, %v4016
        %v4018 = vpop.f32.mrf.mxu0
        %v4019 = vadd.f32 %v733, %v4018
        %4020 = vmatmul.bf16.gmra.mxu0 %v851
        %v4021 = vpop.f32.mrf.mxu0
        %v4022 = vadd.f32 %v733, %v4021
        %v4023 = vpop.f32.mrf.mxu0
        %v4024 = vadd.f32 %v733, %v4023
        %4025 = vmatmul.bf16.gmra.mxu0 %v855
        %v4026 = vpop.f32.mrf.mxu0
        %v4027 = vadd.f32 %v733, %v4026
        %v4028 = vpop.f32.mrf.mxu0
        %v4029 = vadd.f32 %v733, %v4028
        %4030 = vmatmul.bf16.gmra.mxu0 %v859
        %v4031 = vpop.f32.mrf.mxu0
        %v4032 = vadd.f32 %v733, %v4031
        %v4033 = vpop.f32.mrf.mxu0
        %v4034 = vadd.f32 %v733, %v4033
        %4035 = vmatmul.bf16.gmra.mxu0 %v863
        %v4036 = vpop.f32.mrf.mxu0
        %v4037 = vadd.f32 %v733, %v4036
        %v4038 = vpop.f32.mrf.mxu0
        %v4039 = vadd.f32 %v733, %v4038
        %4040 = vmatmul.bf16.gmra.mxu0 %v867
        %v4041 = vpop.f32.mrf.mxu0
        %v4042 = vadd.f32 %v733, %v4041
        %v4043 = vpop.f32.mrf.mxu0
        %v4044 = vadd.f32 %v733, %v4043
        %4045 = vmatmul.bf16.gmra.mxu0 %v871
        %v4046 = vpop.f32.mrf.mxu0
        %v4047 = vadd.f32 %v733, %v4046
        %v4048 = vpop.f32.mrf.mxu0
        %v4049 = vadd.f32 %v733, %v4048
        %4050 = vmatmul.bf16.gmra.mxu0 %v875
        %v4051 = vpop.f32.mrf.mxu0
        %v4052 = vadd.f32 %v733, %v4051
        %v4053 = vpop.f32.mrf.mxu0
        %v4054 = vadd.f32 %v733, %v4053
        %4055 = vdwg.mxu0
        %4056 = vmatpush.bf16.msra.mxu0 %v2249
        %4057 = vmatpush.bf16.msra.mxu0 %v2237
        %4058 = vmatpush.bf16.msra.mxu0 %v2225
        %4059 = vmatpush.bf16.msra.mxu0 %v2213
        %4060 = vmatpush.bf16.msra.mxu0 %v2201
        %4061 = vmatpush.bf16.msra.mxu0 %v2189
        %4062 = vmatpush.bf16.msra.mxu0 %v2177
        %4063 = vmatpush.bf16.msra.mxu0 %v2165
        %4064 = vmatmul.bf16.gmra.mxu0 %v848
        %v4065 = vpop.f32.mrf.mxu0
        %v4066 = vadd.f32 %v4017, %v4065
        %v4067 = vpop.f32.mrf.mxu0
        %v4068 = vadd.f32 %v4019, %v4067
        %4069 = vmatmul.bf16.gmra.mxu0 %v852
        %v4070 = vpop.f32.mrf.mxu0
        %v4071 = vadd.f32 %v4022, %v4070
        %v4072 = vpop.f32.mrf.mxu0
        %v4073 = vadd.f32 %v4024, %v4072
        %4074 = vmatmul.bf16.gmra.mxu0 %v856
        %v4075 = vpop.f32.mrf.mxu0
        %v4076 = vadd.f32 %v4027, %v4075
        %v4077 = vpop.f32.mrf.mxu0
        %v4078 = vadd.f32 %v4029, %v4077
        %4079 = vmatmul.bf16.gmra.mxu0 %v860
        %v4080 = vpop.f32.mrf.mxu0
        %v4081 = vadd.f32 %v4032, %v4080
        %v4082 = vpop.f32.mrf.mxu0
        %v4083 = vadd.f32 %v4034, %v4082
        %4084 = vmatmul.bf16.gmra.mxu0 %v864
        %v4085 = vpop.f32.mrf.mxu0
        %v4086 = vadd.f32 %v4037, %v4085
        %v4087 = vpop.f32.mrf.mxu0
        %v4088 = vadd.f32 %v4039, %v4087
        %4089 = vmatmul.bf16.gmra.mxu0 %v868
        %v4090 = vpop.f32.mrf.mxu0
        %v4091 = vadd.f32 %v4042, %v4090
        %v4092 = vpop.f32.mrf.mxu0
        %v4093 = vadd.f32 %v4044, %v4092
        %4094 = vmatmul.bf16.gmra.mxu0 %v872
        %v4095 = vpop.f32.mrf.mxu0
        %v4096 = vadd.f32 %v4047, %v4095
        %v4097 = vpop.f32.mrf.mxu0
        %v4098 = vadd.f32 %v4049, %v4097
        %4099 = vmatmul.bf16.gmra.mxu0 %v876
        %v4100 = vpop.f32.mrf.mxu0
        %v4101 = vadd.f32 %v4052, %v4100
        %v4102 = vpop.f32.mrf.mxu0
        %v4103 = vadd.f32 %v4054, %v4102
        %4104 = vdwg.mxu0
        %4105 = vmatpush.bf16.msra.mxu0 %v2345
        %4106 = vmatpush.bf16.msra.mxu0 %v2333
        %4107 = vmatpush.bf16.msra.mxu0 %v2321
        %4108 = vmatpush.bf16.msra.mxu0 %v2309
        %4109 = vmatpush.bf16.msra.mxu0 %v2297
        %4110 = vmatpush.bf16.msra.mxu0 %v2285
        %4111 = vmatpush.bf16.msra.mxu0 %v2273
        %4112 = vmatpush.bf16.msra.mxu0 %v2261
        %4113 = vmatmul.bf16.gmra.mxu0 %v849
        %v4114 = vpop.f32.mrf.mxu0
        %v4115 = vadd.f32 %v4066, %v4114
        %v4116 = vpop.f32.mrf.mxu0
        %v4117 = vadd.f32 %v4068, %v4116
        %4118 = vmatmul.bf16.gmra.mxu0 %v853
        %v4119 = vpop.f32.mrf.mxu0
        %v4120 = vadd.f32 %v4071, %v4119
        %v4121 = vpop.f32.mrf.mxu0
        %v4122 = vadd.f32 %v4073, %v4121
        %4123 = vmatmul.bf16.gmra.mxu0 %v857
        %v4124 = vpop.f32.mrf.mxu0
        %v4125 = vadd.f32 %v4076, %v4124
        %v4126 = vpop.f32.mrf.mxu0
        %v4127 = vadd.f32 %v4078, %v4126
        %4128 = vmatmul.bf16.gmra.mxu0 %v861
        %v4129 = vpop.f32.mrf.mxu0
        %v4130 = vadd.f32 %v4081, %v4129
        %v4131 = vpop.f32.mrf.mxu0
        %v4132 = vadd.f32 %v4083, %v4131
        %4133 = vmatmul.bf16.gmra.mxu0 %v865
        %v4134 = vpop.f32.mrf.mxu0
        %v4135 = vadd.f32 %v4086, %v4134
        %v4136 = vpop.f32.mrf.mxu0
        %v4137 = vadd.f32 %v4088, %v4136
        %4138 = vmatmul.bf16.gmra.mxu0 %v869
        %v4139 = vpop.f32.mrf.mxu0
        %v4140 = vadd.f32 %v4091, %v4139
        %v4141 = vpop.f32.mrf.mxu0
        %v4142 = vadd.f32 %v4093, %v4141
        %4143 = vmatmul.bf16.gmra.mxu0 %v873
        %v4144 = vpop.f32.mrf.mxu0
        %v4145 = vadd.f32 %v4096, %v4144
        %v4146 = vpop.f32.mrf.mxu0
        %v4147 = vadd.f32 %v4098, %v4146
        %4148 = vmatmul.bf16.gmra.mxu0 %v877
        %v4149 = vpop.f32.mrf.mxu0
        %v4150 = vadd.f32 %v4101, %v4149
        %v4151 = vpop.f32.mrf.mxu0
        %v4152 = vadd.f32 %v4103, %v4151
        %4153 = vdwg.mxu0
        %4154 = vmatpush.bf16.msra.mxu0 %v2441
        %4155 = vmatpush.bf16.msra.mxu0 %v2429
        %4156 = vmatpush.bf16.msra.mxu0 %v2417
        %4157 = vmatpush.bf16.msra.mxu0 %v2405
        %4158 = vmatpush.bf16.msra.mxu0 %v2393
        %4159 = vmatpush.bf16.msra.mxu0 %v2381
        %4160 = vmatpush.bf16.msra.mxu0 %v2369
        %4161 = vmatpush.bf16.msra.mxu0 %v2357
        %4162 = vmatmul.bf16.gmra.mxu0 %v850
        %v4163 = vpop.f32.mrf.mxu0
        %v4164 = vadd.f32 %v4115, %v4163
        %v4165 = vpop.f32.mrf.mxu0
        %v4166 = vadd.f32 %v4117, %v4165
        %4167 = vmatmul.bf16.gmra.mxu0 %v854
        %v4168 = vpop.f32.mrf.mxu0
        %v4169 = vadd.f32 %v4120, %v4168
        %v4170 = vpop.f32.mrf.mxu0
        %v4171 = vadd.f32 %v4122, %v4170
        %4172 = vmatmul.bf16.gmra.mxu0 %v858
        %v4173 = vpop.f32.mrf.mxu0
        %v4174 = vadd.f32 %v4125, %v4173
        %v4175 = vpop.f32.mrf.mxu0
        %v4176 = vadd.f32 %v4127, %v4175
        %4177 = vmatmul.bf16.gmra.mxu0 %v862
        %v4178 = vpop.f32.mrf.mxu0
        %v4179 = vadd.f32 %v4130, %v4178
        %v4180 = vpop.f32.mrf.mxu0
        %v4181 = vadd.f32 %v4132, %v4180
        %4182 = vmatmul.bf16.gmra.mxu0 %v866
        %v4183 = vpop.f32.mrf.mxu0
        %v4184 = vadd.f32 %v4135, %v4183
        %v4185 = vpop.f32.mrf.mxu0
        %v4186 = vadd.f32 %v4137, %v4185
        %4187 = vmatmul.bf16.gmra.mxu0 %v870
        %v4188 = vpop.f32.mrf.mxu0
        %v4189 = vadd.f32 %v4140, %v4188
        %v4190 = vpop.f32.mrf.mxu0
        %v4191 = vadd.f32 %v4142, %v4190
        %4192 = vmatmul.bf16.gmra.mxu0 %v874
        %v4193 = vpop.f32.mrf.mxu0
        %v4194 = vadd.f32 %v4145, %v4193
        %v4195 = vpop.f32.mrf.mxu0
        %v4196 = vadd.f32 %v4147, %v4195
        %4197 = vmatmul.bf16.gmra.mxu0 %v878
        %v4198 = vpop.f32.mrf.mxu0
        %v4199 = vadd.f32 %v4150, %v4198
        %v4200 = vpop.f32.mrf.mxu0
        %v4201 = vadd.f32 %v4152, %v4200
        %4202 = vdwg.mxu0
        %4203 = vmatpush.bf16.msra.mxu0 %v2154
        %4204 = vmatpush.bf16.msra.mxu0 %v2142
        %4205 = vmatpush.bf16.msra.mxu0 %v2130
        %4206 = vmatpush.bf16.msra.mxu0 %v2118
        %4207 = vmatpush.bf16.msra.mxu0 %v2106
        %4208 = vmatpush.bf16.msra.mxu0 %v2094
        %4209 = vmatpush.bf16.msra.mxu0 %v2082
        %4210 = vmatpush.bf16.msra.mxu0 %v2070
        %4211 = vmatmul.bf16.gmra.mxu0 %v847
        %v4212 = vpop.f32.mrf.mxu0
        %v4213 = vadd.f32 %v734, %v4212
        %v4214 = vpop.f32.mrf.mxu0
        %v4215 = vadd.f32 %v734, %v4214
        %4216 = vmatmul.bf16.gmra.mxu0 %v851
        %v4217 = vpop.f32.mrf.mxu0
        %v4218 = vadd.f32 %v734, %v4217
        %v4219 = vpop.f32.mrf.mxu0
        %v4220 = vadd.f32 %v734, %v4219
        %4221 = vmatmul.bf16.gmra.mxu0 %v855
        %v4222 = vpop.f32.mrf.mxu0
        %v4223 = vadd.f32 %v734, %v4222
        %v4224 = vpop.f32.mrf.mxu0
        %v4225 = vadd.f32 %v734, %v4224
        %4226 = vmatmul.bf16.gmra.mxu0 %v859
        %v4227 = vpop.f32.mrf.mxu0
        %v4228 = vadd.f32 %v734, %v4227
        %v4229 = vpop.f32.mrf.mxu0
        %v4230 = vadd.f32 %v734, %v4229
        %4231 = vmatmul.bf16.gmra.mxu0 %v863
        %v4232 = vpop.f32.mrf.mxu0
        %v4233 = vadd.f32 %v734, %v4232
        %v4234 = vpop.f32.mrf.mxu0
        %v4235 = vadd.f32 %v734, %v4234
        %4236 = vmatmul.bf16.gmra.mxu0 %v867
        %v4237 = vpop.f32.mrf.mxu0
        %v4238 = vadd.f32 %v734, %v4237
        %v4239 = vpop.f32.mrf.mxu0
        %v4240 = vadd.f32 %v734, %v4239
        %4241 = vmatmul.bf16.gmra.mxu0 %v871
        %v4242 = vpop.f32.mrf.mxu0
        %v4243 = vadd.f32 %v734, %v4242
        %v4244 = vpop.f32.mrf.mxu0
        %v4245 = vadd.f32 %v734, %v4244
        %4246 = vmatmul.bf16.gmra.mxu0 %v875
        %v4247 = vpop.f32.mrf.mxu0
        %v4248 = vadd.f32 %v734, %v4247
        %v4249 = vpop.f32.mrf.mxu0
        %v4250 = vadd.f32 %v734, %v4249
        %4251 = vdwg.mxu0
        %4252 = vmatpush.bf16.msra.mxu0 %v2250
        %4253 = vmatpush.bf16.msra.mxu0 %v2238
        %4254 = vmatpush.bf16.msra.mxu0 %v2226
        %4255 = vmatpush.bf16.msra.mxu0 %v2214
        %4256 = vmatpush.bf16.msra.mxu0 %v2202
        %4257 = vmatpush.bf16.msra.mxu0 %v2190
        %4258 = vmatpush.bf16.msra.mxu0 %v2178
        %4259 = vmatpush.bf16.msra.mxu0 %v2166
        %4260 = vmatmul.bf16.gmra.mxu0 %v848
        %v4261 = vpop.f32.mrf.mxu0
        %v4262 = vadd.f32 %v4213, %v4261
        %v4263 = vpop.f32.mrf.mxu0
        %v4264 = vadd.f32 %v4215, %v4263
        %4265 = vmatmul.bf16.gmra.mxu0 %v852
        %v4266 = vpop.f32.mrf.mxu0
        %v4267 = vadd.f32 %v4218, %v4266
        %v4268 = vpop.f32.mrf.mxu0
        %v4269 = vadd.f32 %v4220, %v4268
        %4270 = vmatmul.bf16.gmra.mxu0 %v856
        %v4271 = vpop.f32.mrf.mxu0
        %v4272 = vadd.f32 %v4223, %v4271
        %v4273 = vpop.f32.mrf.mxu0
        %v4274 = vadd.f32 %v4225, %v4273
        %4275 = vmatmul.bf16.gmra.mxu0 %v860
        %v4276 = vpop.f32.mrf.mxu0
        %v4277 = vadd.f32 %v4228, %v4276
        %v4278 = vpop.f32.mrf.mxu0
        %v4279 = vadd.f32 %v4230, %v4278
        %4280 = vmatmul.bf16.gmra.mxu0 %v864
        %v4281 = vpop.f32.mrf.mxu0
        %v4282 = vadd.f32 %v4233, %v4281
        %v4283 = vpop.f32.mrf.mxu0
        %v4284 = vadd.f32 %v4235, %v4283
        %4285 = vmatmul.bf16.gmra.mxu0 %v868
        %v4286 = vpop.f32.mrf.mxu0
        %v4287 = vadd.f32 %v4238, %v4286
        %v4288 = vpop.f32.mrf.mxu0
        %v4289 = vadd.f32 %v4240, %v4288
        %4290 = vmatmul.bf16.gmra.mxu0 %v872
        %v4291 = vpop.f32.mrf.mxu0
        %v4292 = vadd.f32 %v4243, %v4291
        %v4293 = vpop.f32.mrf.mxu0
        %v4294 = vadd.f32 %v4245, %v4293
        %4295 = vmatmul.bf16.gmra.mxu0 %v876
        %v4296 = vpop.f32.mrf.mxu0
        %v4297 = vadd.f32 %v4248, %v4296
        %v4298 = vpop.f32.mrf.mxu0
        %v4299 = vadd.f32 %v4250, %v4298
        %4300 = vdwg.mxu0
        %4301 = vmatpush.bf16.msra.mxu0 %v2346
        %4302 = vmatpush.bf16.msra.mxu0 %v2334
        %4303 = vmatpush.bf16.msra.mxu0 %v2322
        %4304 = vmatpush.bf16.msra.mxu0 %v2310
        %4305 = vmatpush.bf16.msra.mxu0 %v2298
        %4306 = vmatpush.bf16.msra.mxu0 %v2286
        %4307 = vmatpush.bf16.msra.mxu0 %v2274
        %4308 = vmatpush.bf16.msra.mxu0 %v2262
        %4309 = vmatmul.bf16.gmra.mxu0 %v849
        %v4310 = vpop.f32.mrf.mxu0
        %v4311 = vadd.f32 %v4262, %v4310
        %v4312 = vpop.f32.mrf.mxu0
        %v4313 = vadd.f32 %v4264, %v4312
        %4314 = vmatmul.bf16.gmra.mxu0 %v853
        %v4315 = vpop.f32.mrf.mxu0
        %v4316 = vadd.f32 %v4267, %v4315
        %v4317 = vpop.f32.mrf.mxu0
        %v4318 = vadd.f32 %v4269, %v4317
        %4319 = vmatmul.bf16.gmra.mxu0 %v857
        %v4320 = vpop.f32.mrf.mxu0
        %v4321 = vadd.f32 %v4272, %v4320
        %v4322 = vpop.f32.mrf.mxu0
        %v4323 = vadd.f32 %v4274, %v4322
        %4324 = vmatmul.bf16.gmra.mxu0 %v861
        %v4325 = vpop.f32.mrf.mxu0
        %v4326 = vadd.f32 %v4277, %v4325
        %v4327 = vpop.f32.mrf.mxu0
        %v4328 = vadd.f32 %v4279, %v4327
        %4329 = vmatmul.bf16.gmra.mxu0 %v865
        %v4330 = vpop.f32.mrf.mxu0
        %v4331 = vadd.f32 %v4282, %v4330
        %v4332 = vpop.f32.mrf.mxu0
        %v4333 = vadd.f32 %v4284, %v4332
        %4334 = vmatmul.bf16.gmra.mxu0 %v869
        %v4335 = vpop.f32.mrf.mxu0
        %v4336 = vadd.f32 %v4287, %v4335
        %v4337 = vpop.f32.mrf.mxu0
        %v4338 = vadd.f32 %v4289, %v4337
        %4339 = vmatmul.bf16.gmra.mxu0 %v873
        %v4340 = vpop.f32.mrf.mxu0
        %v4341 = vadd.f32 %v4292, %v4340
        %v4342 = vpop.f32.mrf.mxu0
        %v4343 = vadd.f32 %v4294, %v4342
        %4344 = vmatmul.bf16.gmra.mxu0 %v877
        %v4345 = vpop.f32.mrf.mxu0
        %v4346 = vadd.f32 %v4297, %v4345
        %v4347 = vpop.f32.mrf.mxu0
        %v4348 = vadd.f32 %v4299, %v4347
        %4349 = vdwg.mxu0
        %4350 = vmatpush.bf16.msra.mxu0 %v2442
        %4351 = vmatpush.bf16.msra.mxu0 %v2430
        %4352 = vmatpush.bf16.msra.mxu0 %v2418
        %4353 = vmatpush.bf16.msra.mxu0 %v2406
        %4354 = vmatpush.bf16.msra.mxu0 %v2394
        %4355 = vmatpush.bf16.msra.mxu0 %v2382
        %4356 = vmatpush.bf16.msra.mxu0 %v2370
        %4357 = vmatpush.bf16.msra.mxu0 %v2358
        %4358 = vmatmul.bf16.gmra.mxu0 %v850
        %v4359 = vpop.f32.mrf.mxu0
        %v4360 = vadd.f32 %v4311, %v4359
        %v4361 = vpop.f32.mrf.mxu0
        %v4362 = vadd.f32 %v4313, %v4361
        %4363 = vmatmul.bf16.gmra.mxu0 %v854
        %v4364 = vpop.f32.mrf.mxu0
        %v4365 = vadd.f32 %v4316, %v4364
        %v4366 = vpop.f32.mrf.mxu0
        %v4367 = vadd.f32 %v4318, %v4366
        %4368 = vmatmul.bf16.gmra.mxu0 %v858
        %v4369 = vpop.f32.mrf.mxu0
        %v4370 = vadd.f32 %v4321, %v4369
        %v4371 = vpop.f32.mrf.mxu0
        %v4372 = vadd.f32 %v4323, %v4371
        %4373 = vmatmul.bf16.gmra.mxu0 %v862
        %v4374 = vpop.f32.mrf.mxu0
        %v4375 = vadd.f32 %v4326, %v4374
        %v4376 = vpop.f32.mrf.mxu0
        %v4377 = vadd.f32 %v4328, %v4376
        %4378 = vmatmul.bf16.gmra.mxu0 %v866
        %v4379 = vpop.f32.mrf.mxu0
        %v4380 = vadd.f32 %v4331, %v4379
        %v4381 = vpop.f32.mrf.mxu0
        %v4382 = vadd.f32 %v4333, %v4381
        %4383 = vmatmul.bf16.gmra.mxu0 %v870
        %v4384 = vpop.f32.mrf.mxu0
        %v4385 = vadd.f32 %v4336, %v4384
        %v4386 = vpop.f32.mrf.mxu0
        %v4387 = vadd.f32 %v4338, %v4386
        %4388 = vmatmul.bf16.gmra.mxu0 %v874
        %v4389 = vpop.f32.mrf.mxu0
        %v4390 = vadd.f32 %v4341, %v4389
        %v4391 = vpop.f32.mrf.mxu0
        %v4392 = vadd.f32 %v4343, %v4391
        %4393 = vmatmul.bf16.gmra.mxu0 %v878
        %v4394 = vpop.f32.mrf.mxu0
        %v4395 = vadd.f32 %v4346, %v4394
        %v4396 = vpop.f32.mrf.mxu0
        %v4397 = vadd.f32 %v4348, %v4396
        %4398 = vdwg.mxu0
        %4399 = vmatpush.bf16.msra.mxu0 %v2155
        %4400 = vmatpush.bf16.msra.mxu0 %v2143
        %4401 = vmatpush.bf16.msra.mxu0 %v2131
        %4402 = vmatpush.bf16.msra.mxu0 %v2119
        %4403 = vmatpush.bf16.msra.mxu0 %v2107
        %4404 = vmatpush.bf16.msra.mxu0 %v2095
        %4405 = vmatpush.bf16.msra.mxu0 %v2083
        %4406 = vmatpush.bf16.msra.mxu0 %v2071
        %4407 = vmatmul.bf16.gmra.mxu0 %v847
        %v4408 = vpop.f32.mrf.mxu0
        %v4409 = vadd.f32 %v735, %v4408
        %v4410 = vpop.f32.mrf.mxu0
        %v4411 = vadd.f32 %v735, %v4410
        %4412 = vmatmul.bf16.gmra.mxu0 %v851
        %v4413 = vpop.f32.mrf.mxu0
        %v4414 = vadd.f32 %v735, %v4413
        %v4415 = vpop.f32.mrf.mxu0
        %v4416 = vadd.f32 %v735, %v4415
        %4417 = vmatmul.bf16.gmra.mxu0 %v855
        %v4418 = vpop.f32.mrf.mxu0
        %v4419 = vadd.f32 %v735, %v4418
        %v4420 = vpop.f32.mrf.mxu0
        %v4421 = vadd.f32 %v735, %v4420
        %4422 = vmatmul.bf16.gmra.mxu0 %v859
        %v4423 = vpop.f32.mrf.mxu0
        %v4424 = vadd.f32 %v735, %v4423
        %v4425 = vpop.f32.mrf.mxu0
        %v4426 = vadd.f32 %v735, %v4425
        %4427 = vmatmul.bf16.gmra.mxu0 %v863
        %v4428 = vpop.f32.mrf.mxu0
        %v4429 = vadd.f32 %v735, %v4428
        %v4430 = vpop.f32.mrf.mxu0
        %v4431 = vadd.f32 %v735, %v4430
        %4432 = vmatmul.bf16.gmra.mxu0 %v867
        %v4433 = vpop.f32.mrf.mxu0
        %v4434 = vadd.f32 %v735, %v4433
        %v4435 = vpop.f32.mrf.mxu0
        %v4436 = vadd.f32 %v735, %v4435
        %4437 = vmatmul.bf16.gmra.mxu0 %v871
        %v4438 = vpop.f32.mrf.mxu0
        %v4439 = vadd.f32 %v735, %v4438
        %v4440 = vpop.f32.mrf.mxu0
        %v4441 = vadd.f32 %v735, %v4440
        %4442 = vmatmul.bf16.gmra.mxu0 %v875
        %v4443 = vpop.f32.mrf.mxu0
        %v4444 = vadd.f32 %v735, %v4443
        %v4445 = vpop.f32.mrf.mxu0
        %v4446 = vadd.f32 %v735, %v4445
        %4447 = vdwg.mxu0
        %4448 = vmatpush.bf16.msra.mxu0 %v2251
        %4449 = vmatpush.bf16.msra.mxu0 %v2239
        %4450 = vmatpush.bf16.msra.mxu0 %v2227
        %4451 = vmatpush.bf16.msra.mxu0 %v2215
        %4452 = vmatpush.bf16.msra.mxu0 %v2203
        %4453 = vmatpush.bf16.msra.mxu0 %v2191
        %4454 = vmatpush.bf16.msra.mxu0 %v2179
        %4455 = vmatpush.bf16.msra.mxu0 %v2167
        %4456 = vmatmul.bf16.gmra.mxu0 %v848
        %v4457 = vpop.f32.mrf.mxu0
        %v4458 = vadd.f32 %v4409, %v4457
        %v4459 = vpop.f32.mrf.mxu0
        %v4460 = vadd.f32 %v4411, %v4459
        %4461 = vmatmul.bf16.gmra.mxu0 %v852
        %v4462 = vpop.f32.mrf.mxu0
        %v4463 = vadd.f32 %v4414, %v4462
        %v4464 = vpop.f32.mrf.mxu0
        %v4465 = vadd.f32 %v4416, %v4464
        %4466 = vmatmul.bf16.gmra.mxu0 %v856
        %v4467 = vpop.f32.mrf.mxu0
        %v4468 = vadd.f32 %v4419, %v4467
        %v4469 = vpop.f32.mrf.mxu0
        %v4470 = vadd.f32 %v4421, %v4469
        %4471 = vmatmul.bf16.gmra.mxu0 %v860
        %v4472 = vpop.f32.mrf.mxu0
        %v4473 = vadd.f32 %v4424, %v4472
        %v4474 = vpop.f32.mrf.mxu0
        %v4475 = vadd.f32 %v4426, %v4474
        %4476 = vmatmul.bf16.gmra.mxu0 %v864
        %v4477 = vpop.f32.mrf.mxu0
        %v4478 = vadd.f32 %v4429, %v4477
        %v4479 = vpop.f32.mrf.mxu0
        %v4480 = vadd.f32 %v4431, %v4479
        %4481 = vmatmul.bf16.gmra.mxu0 %v868
        %v4482 = vpop.f32.mrf.mxu0
        %v4483 = vadd.f32 %v4434, %v4482
        %v4484 = vpop.f32.mrf.mxu0
        %v4485 = vadd.f32 %v4436, %v4484
        %4486 = vmatmul.bf16.gmra.mxu0 %v872
        %v4487 = vpop.f32.mrf.mxu0
        %v4488 = vadd.f32 %v4439, %v4487
        %v4489 = vpop.f32.mrf.mxu0
        %v4490 = vadd.f32 %v4441, %v4489
        %4491 = vmatmul.bf16.gmra.mxu0 %v876
        %v4492 = vpop.f32.mrf.mxu0
        %v4493 = vadd.f32 %v4444, %v4492
        %v4494 = vpop.f32.mrf.mxu0
        %v4495 = vadd.f32 %v4446, %v4494
        %4496 = vdwg.mxu0
        %4497 = vmatpush.bf16.msra.mxu0 %v2347
        %4498 = vmatpush.bf16.msra.mxu0 %v2335
        %4499 = vmatpush.bf16.msra.mxu0 %v2323
        %4500 = vmatpush.bf16.msra.mxu0 %v2311
        %4501 = vmatpush.bf16.msra.mxu0 %v2299
        %4502 = vmatpush.bf16.msra.mxu0 %v2287
        %4503 = vmatpush.bf16.msra.mxu0 %v2275
        %4504 = vmatpush.bf16.msra.mxu0 %v2263
        %4505 = vmatmul.bf16.gmra.mxu0 %v849
        %v4506 = vpop.f32.mrf.mxu0
        %v4507 = vadd.f32 %v4458, %v4506
        %v4508 = vpop.f32.mrf.mxu0
        %v4509 = vadd.f32 %v4460, %v4508
        %4510 = vmatmul.bf16.gmra.mxu0 %v853
        %v4511 = vpop.f32.mrf.mxu0
        %v4512 = vadd.f32 %v4463, %v4511
        %v4513 = vpop.f32.mrf.mxu0
        %v4514 = vadd.f32 %v4465, %v4513
        %4515 = vmatmul.bf16.gmra.mxu0 %v857
        %v4516 = vpop.f32.mrf.mxu0
        %v4517 = vadd.f32 %v4468, %v4516
        %v4518 = vpop.f32.mrf.mxu0
        %v4519 = vadd.f32 %v4470, %v4518
        %4520 = vmatmul.bf16.gmra.mxu0 %v861
        %v4521 = vpop.f32.mrf.mxu0
        %v4522 = vadd.f32 %v4473, %v4521
        %v4523 = vpop.f32.mrf.mxu0
        %v4524 = vadd.f32 %v4475, %v4523
        %4525 = vmatmul.bf16.gmra.mxu0 %v865
        %v4526 = vpop.f32.mrf.mxu0
        %v4527 = vadd.f32 %v4478, %v4526
        %v4528 = vpop.f32.mrf.mxu0
        %v4529 = vadd.f32 %v4480, %v4528
        %4530 = vmatmul.bf16.gmra.mxu0 %v869
        %v4531 = vpop.f32.mrf.mxu0
        %v4532 = vadd.f32 %v4483, %v4531
        %v4533 = vpop.f32.mrf.mxu0
        %v4534 = vadd.f32 %v4485, %v4533
        %4535 = vmatmul.bf16.gmra.mxu0 %v873
        %v4536 = vpop.f32.mrf.mxu0
        %v4537 = vadd.f32 %v4488, %v4536
        %v4538 = vpop.f32.mrf.mxu0
        %v4539 = vadd.f32 %v4490, %v4538
        %4540 = vmatmul.bf16.gmra.mxu0 %v877
        %v4541 = vpop.f32.mrf.mxu0
        %v4542 = vadd.f32 %v4493, %v4541
        %v4543 = vpop.f32.mrf.mxu0
        %v4544 = vadd.f32 %v4495, %v4543
        %4545 = vdwg.mxu0
        %4546 = vmatpush.bf16.msra.mxu0 %v2443
        %4547 = vmatpush.bf16.msra.mxu0 %v2431
        %4548 = vmatpush.bf16.msra.mxu0 %v2419
        %4549 = vmatpush.bf16.msra.mxu0 %v2407
        %4550 = vmatpush.bf16.msra.mxu0 %v2395
        %4551 = vmatpush.bf16.msra.mxu0 %v2383
        %4552 = vmatpush.bf16.msra.mxu0 %v2371
        %4553 = vmatpush.bf16.msra.mxu0 %v2359
        %4554 = vmatmul.bf16.gmra.mxu0 %v850
        %v4555 = vpop.f32.mrf.mxu0
        %v4556 = vadd.f32 %v4507, %v4555
        %v4557 = vpop.f32.mrf.mxu0
        %v4558 = vadd.f32 %v4509, %v4557
        %4559 = vmatmul.bf16.gmra.mxu0 %v854
        %v4560 = vpop.f32.mrf.mxu0
        %v4561 = vadd.f32 %v4512, %v4560
        %v4562 = vpop.f32.mrf.mxu0
        %v4563 = vadd.f32 %v4514, %v4562
        %4564 = vmatmul.bf16.gmra.mxu0 %v858
        %v4565 = vpop.f32.mrf.mxu0
        %v4566 = vadd.f32 %v4517, %v4565
        %v4567 = vpop.f32.mrf.mxu0
        %v4568 = vadd.f32 %v4519, %v4567
        %4569 = vmatmul.bf16.gmra.mxu0 %v862
        %v4570 = vpop.f32.mrf.mxu0
        %v4571 = vadd.f32 %v4522, %v4570
        %v4572 = vpop.f32.mrf.mxu0
        %v4573 = vadd.f32 %v4524, %v4572
        %4574 = vmatmul.bf16.gmra.mxu0 %v866
        %v4575 = vpop.f32.mrf.mxu0
        %v4576 = vadd.f32 %v4527, %v4575
        %v4577 = vpop.f32.mrf.mxu0
        %v4578 = vadd.f32 %v4529, %v4577
        %4579 = vmatmul.bf16.gmra.mxu0 %v870
        %v4580 = vpop.f32.mrf.mxu0
        %v4581 = vadd.f32 %v4532, %v4580
        %v4582 = vpop.f32.mrf.mxu0
        %v4583 = vadd.f32 %v4534, %v4582
        %4584 = vmatmul.bf16.gmra.mxu0 %v874
        %v4585 = vpop.f32.mrf.mxu0
        %v4586 = vadd.f32 %v4537, %v4585
        %v4587 = vpop.f32.mrf.mxu0
        %v4588 = vadd.f32 %v4539, %v4587
        %4589 = vmatmul.bf16.gmra.mxu0 %v878
        %v4590 = vpop.f32.mrf.mxu0
        %v4591 = vadd.f32 %v4542, %v4590
        %v4592 = vpop.f32.mrf.mxu0
        %v4593 = vadd.f32 %v4544, %v4592
        %4594 = vdwg.mxu0
        %4595 = vmatpush.bf16.msra.mxu0 %v2156
        %4596 = vmatpush.bf16.msra.mxu0 %v2144
        %4597 = vmatpush.bf16.msra.mxu0 %v2132
        %4598 = vmatpush.bf16.msra.mxu0 %v2120
        %4599 = vmatpush.bf16.msra.mxu0 %v2108
        %4600 = vmatpush.bf16.msra.mxu0 %v2096
        %4601 = vmatpush.bf16.msra.mxu0 %v2084
        %4602 = vmatpush.bf16.msra.mxu0 %v2072
        %4603 = vmatmul.bf16.gmra.mxu0 %v847
        %v4604 = vpop.f32.mrf.mxu0
        %v4605 = vadd.f32 %v736, %v4604
        %v4606 = vpop.f32.mrf.mxu0
        %v4607 = vadd.f32 %v736, %v4606
        %4608 = vmatmul.bf16.gmra.mxu0 %v851
        %v4609 = vpop.f32.mrf.mxu0
        %v4610 = vadd.f32 %v736, %v4609
        %v4611 = vpop.f32.mrf.mxu0
        %v4612 = vadd.f32 %v736, %v4611
        %4613 = vmatmul.bf16.gmra.mxu0 %v855
        %v4614 = vpop.f32.mrf.mxu0
        %v4615 = vadd.f32 %v736, %v4614
        %v4616 = vpop.f32.mrf.mxu0
        %v4617 = vadd.f32 %v736, %v4616
        %4618 = vmatmul.bf16.gmra.mxu0 %v859
        %v4619 = vpop.f32.mrf.mxu0
        %v4620 = vadd.f32 %v736, %v4619
        %v4621 = vpop.f32.mrf.mxu0
        %v4622 = vadd.f32 %v736, %v4621
        %4623 = vmatmul.bf16.gmra.mxu0 %v863
        %v4624 = vpop.f32.mrf.mxu0
        %v4625 = vadd.f32 %v736, %v4624
        %v4626 = vpop.f32.mrf.mxu0
        %v4627 = vadd.f32 %v736, %v4626
        %4628 = vmatmul.bf16.gmra.mxu0 %v867
        %v4629 = vpop.f32.mrf.mxu0
        %v4630 = vadd.f32 %v736, %v4629
        %v4631 = vpop.f32.mrf.mxu0
        %v4632 = vadd.f32 %v736, %v4631
        %4633 = vmatmul.bf16.gmra.mxu0 %v871
        %v4634 = vpop.f32.mrf.mxu0
        %v4635 = vadd.f32 %v736, %v4634
        %v4636 = vpop.f32.mrf.mxu0
        %v4637 = vadd.f32 %v736, %v4636
        %4638 = vmatmul.bf16.gmra.mxu0 %v875
        %v4639 = vpop.f32.mrf.mxu0
        %v4640 = vadd.f32 %v736, %v4639
        %v4641 = vpop.f32.mrf.mxu0
        %v4642 = vadd.f32 %v736, %v4641
        %4643 = vdwg.mxu0
        %4644 = vmatpush.bf16.msra.mxu0 %v2252
        %4645 = vmatpush.bf16.msra.mxu0 %v2240
        %4646 = vmatpush.bf16.msra.mxu0 %v2228
        %4647 = vmatpush.bf16.msra.mxu0 %v2216
        %4648 = vmatpush.bf16.msra.mxu0 %v2204
        %4649 = vmatpush.bf16.msra.mxu0 %v2192
        %4650 = vmatpush.bf16.msra.mxu0 %v2180
        %4651 = vmatpush.bf16.msra.mxu0 %v2168
        %4652 = vmatmul.bf16.gmra.mxu0 %v848
        %v4653 = vpop.f32.mrf.mxu0
        %v4654 = vadd.f32 %v4605, %v4653
        %v4655 = vpop.f32.mrf.mxu0
        %v4656 = vadd.f32 %v4607, %v4655
        %4657 = vmatmul.bf16.gmra.mxu0 %v852
        %v4658 = vpop.f32.mrf.mxu0
        %v4659 = vadd.f32 %v4610, %v4658
        %v4660 = vpop.f32.mrf.mxu0
        %v4661 = vadd.f32 %v4612, %v4660
        %4662 = vmatmul.bf16.gmra.mxu0 %v856
        %v4663 = vpop.f32.mrf.mxu0
        %v4664 = vadd.f32 %v4615, %v4663
        %v4665 = vpop.f32.mrf.mxu0
        %v4666 = vadd.f32 %v4617, %v4665
        %4667 = vmatmul.bf16.gmra.mxu0 %v860
        %v4668 = vpop.f32.mrf.mxu0
        %v4669 = vadd.f32 %v4620, %v4668
        %v4670 = vpop.f32.mrf.mxu0
        %v4671 = vadd.f32 %v4622, %v4670
        %4672 = vmatmul.bf16.gmra.mxu0 %v864
        %v4673 = vpop.f32.mrf.mxu0
        %v4674 = vadd.f32 %v4625, %v4673
        %v4675 = vpop.f32.mrf.mxu0
        %v4676 = vadd.f32 %v4627, %v4675
        %4677 = vmatmul.bf16.gmra.mxu0 %v868
        %v4678 = vpop.f32.mrf.mxu0
        %v4679 = vadd.f32 %v4630, %v4678
        %v4680 = vpop.f32.mrf.mxu0
        %v4681 = vadd.f32 %v4632, %v4680
        %4682 = vmatmul.bf16.gmra.mxu0 %v872
        %v4683 = vpop.f32.mrf.mxu0
        %v4684 = vadd.f32 %v4635, %v4683
        %v4685 = vpop.f32.mrf.mxu0
        %v4686 = vadd.f32 %v4637, %v4685
        %4687 = vmatmul.bf16.gmra.mxu0 %v876
        %v4688 = vpop.f32.mrf.mxu0
        %v4689 = vadd.f32 %v4640, %v4688
        %v4690 = vpop.f32.mrf.mxu0
        %v4691 = vadd.f32 %v4642, %v4690
        %4692 = vdwg.mxu0
        %4693 = vmatpush.bf16.msra.mxu0 %v2348
        %4694 = vmatpush.bf16.msra.mxu0 %v2336
        %4695 = vmatpush.bf16.msra.mxu0 %v2324
        %4696 = vmatpush.bf16.msra.mxu0 %v2312
        %4697 = vmatpush.bf16.msra.mxu0 %v2300
        %4698 = vmatpush.bf16.msra.mxu0 %v2288
        %4699 = vmatpush.bf16.msra.mxu0 %v2276
        %4700 = vmatpush.bf16.msra.mxu0 %v2264
        %4701 = vmatmul.bf16.gmra.mxu0 %v849
        %v4702 = vpop.f32.mrf.mxu0
        %v4703 = vadd.f32 %v4654, %v4702
        %v4704 = vpop.f32.mrf.mxu0
        %v4705 = vadd.f32 %v4656, %v4704
        %4706 = vmatmul.bf16.gmra.mxu0 %v853
        %v4707 = vpop.f32.mrf.mxu0
        %v4708 = vadd.f32 %v4659, %v4707
        %v4709 = vpop.f32.mrf.mxu0
        %v4710 = vadd.f32 %v4661, %v4709
        %4711 = vmatmul.bf16.gmra.mxu0 %v857
        %v4712 = vpop.f32.mrf.mxu0
        %v4713 = vadd.f32 %v4664, %v4712
        %v4714 = vpop.f32.mrf.mxu0
        %v4715 = vadd.f32 %v4666, %v4714
        %4716 = vmatmul.bf16.gmra.mxu0 %v861
        %v4717 = vpop.f32.mrf.mxu0
        %v4718 = vadd.f32 %v4669, %v4717
        %v4719 = vpop.f32.mrf.mxu0
        %v4720 = vadd.f32 %v4671, %v4719
        %4721 = vmatmul.bf16.gmra.mxu0 %v865
        %v4722 = vpop.f32.mrf.mxu0
        %v4723 = vadd.f32 %v4674, %v4722
        %v4724 = vpop.f32.mrf.mxu0
        %v4725 = vadd.f32 %v4676, %v4724
        %4726 = vmatmul.bf16.gmra.mxu0 %v869
        %v4727 = vpop.f32.mrf.mxu0
        %v4728 = vadd.f32 %v4679, %v4727
        %v4729 = vpop.f32.mrf.mxu0
        %v4730 = vadd.f32 %v4681, %v4729
        %4731 = vmatmul.bf16.gmra.mxu0 %v873
        %v4732 = vpop.f32.mrf.mxu0
        %v4733 = vadd.f32 %v4684, %v4732
        %v4734 = vpop.f32.mrf.mxu0
        %v4735 = vadd.f32 %v4686, %v4734
        %4736 = vmatmul.bf16.gmra.mxu0 %v877
        %v4737 = vpop.f32.mrf.mxu0
        %v4738 = vadd.f32 %v4689, %v4737
        %v4739 = vpop.f32.mrf.mxu0
        %v4740 = vadd.f32 %v4691, %v4739
        %4741 = vdwg.mxu0
        %4742 = vmatpush.bf16.msra.mxu0 %v2444
        %4743 = vmatpush.bf16.msra.mxu0 %v2432
        %4744 = vmatpush.bf16.msra.mxu0 %v2420
        %4745 = vmatpush.bf16.msra.mxu0 %v2408
        %4746 = vmatpush.bf16.msra.mxu0 %v2396
        %4747 = vmatpush.bf16.msra.mxu0 %v2384
        %4748 = vmatpush.bf16.msra.mxu0 %v2372
        %4749 = vmatpush.bf16.msra.mxu0 %v2360
        %4750 = vmatmul.bf16.gmra.mxu0 %v850
        %v4751 = vpop.f32.mrf.mxu0
        %v4752 = vadd.f32 %v4703, %v4751
        %v4753 = vpop.f32.mrf.mxu0
        %v4754 = vadd.f32 %v4705, %v4753
        %4755 = vmatmul.bf16.gmra.mxu0 %v854
        %v4756 = vpop.f32.mrf.mxu0
        %v4757 = vadd.f32 %v4708, %v4756
        %v4758 = vpop.f32.mrf.mxu0
        %v4759 = vadd.f32 %v4710, %v4758
        %4760 = vmatmul.bf16.gmra.mxu0 %v858
        %v4761 = vpop.f32.mrf.mxu0
        %v4762 = vadd.f32 %v4713, %v4761
        %v4763 = vpop.f32.mrf.mxu0
        %v4764 = vadd.f32 %v4715, %v4763
        %4765 = vmatmul.bf16.gmra.mxu0 %v862
        %v4766 = vpop.f32.mrf.mxu0
        %v4767 = vadd.f32 %v4718, %v4766
        %v4768 = vpop.f32.mrf.mxu0
        %v4769 = vadd.f32 %v4720, %v4768
        %4770 = vmatmul.bf16.gmra.mxu0 %v866
        %v4771 = vpop.f32.mrf.mxu0
        %v4772 = vadd.f32 %v4723, %v4771
        %v4773 = vpop.f32.mrf.mxu0
        %v4774 = vadd.f32 %v4725, %v4773
        %4775 = vmatmul.bf16.gmra.mxu0 %v870
        %v4776 = vpop.f32.mrf.mxu0
        %v4777 = vadd.f32 %v4728, %v4776
        %v4778 = vpop.f32.mrf.mxu0
        %v4779 = vadd.f32 %v4730, %v4778
        %4780 = vmatmul.bf16.gmra.mxu0 %v874
        %v4781 = vpop.f32.mrf.mxu0
        %v4782 = vadd.f32 %v4733, %v4781
        %v4783 = vpop.f32.mrf.mxu0
        %v4784 = vadd.f32 %v4735, %v4783
        %4785 = vmatmul.bf16.gmra.mxu0 %v878
        %v4786 = vpop.f32.mrf.mxu0
        %v4787 = vadd.f32 %v4738, %v4786
        %v4788 = vpop.f32.mrf.mxu0
        %v4789 = vadd.f32 %v4740, %v4788
        %4790 = vdwg.mxu0
        %4791 = vmatpush.bf16.msra.mxu0 %v2157
        %4792 = vmatpush.bf16.msra.mxu0 %v2145
        %4793 = vmatpush.bf16.msra.mxu0 %v2133
        %4794 = vmatpush.bf16.msra.mxu0 %v2121
        %4795 = vmatpush.bf16.msra.mxu0 %v2109
        %4796 = vmatpush.bf16.msra.mxu0 %v2097
        %4797 = vmatpush.bf16.msra.mxu0 %v2085
        %4798 = vmatpush.bf16.msra.mxu0 %v2073
        %4799 = vmatmul.bf16.gmra.mxu0 %v847
        %v4800 = vpop.f32.mrf.mxu0
        %v4801 = vadd.f32 %v737, %v4800
        %v4802 = vpop.f32.mrf.mxu0
        %v4803 = vadd.f32 %v737, %v4802
        %4804 = vmatmul.bf16.gmra.mxu0 %v851
        %v4805 = vpop.f32.mrf.mxu0
        %v4806 = vadd.f32 %v737, %v4805
        %v4807 = vpop.f32.mrf.mxu0
        %v4808 = vadd.f32 %v737, %v4807
        %4809 = vmatmul.bf16.gmra.mxu0 %v855
        %v4810 = vpop.f32.mrf.mxu0
        %v4811 = vadd.f32 %v737, %v4810
        %v4812 = vpop.f32.mrf.mxu0
        %v4813 = vadd.f32 %v737, %v4812
        %4814 = vmatmul.bf16.gmra.mxu0 %v859
        %v4815 = vpop.f32.mrf.mxu0
        %v4816 = vadd.f32 %v737, %v4815
        %v4817 = vpop.f32.mrf.mxu0
        %v4818 = vadd.f32 %v737, %v4817
        %4819 = vmatmul.bf16.gmra.mxu0 %v863
        %v4820 = vpop.f32.mrf.mxu0
        %v4821 = vadd.f32 %v737, %v4820
        %v4822 = vpop.f32.mrf.mxu0
        %v4823 = vadd.f32 %v737, %v4822
        %4824 = vmatmul.bf16.gmra.mxu0 %v867
        %v4825 = vpop.f32.mrf.mxu0
        %v4826 = vadd.f32 %v737, %v4825
        %v4827 = vpop.f32.mrf.mxu0
        %v4828 = vadd.f32 %v737, %v4827
        %4829 = vmatmul.bf16.gmra.mxu0 %v871
        %v4830 = vpop.f32.mrf.mxu0
        %v4831 = vadd.f32 %v737, %v4830
        %v4832 = vpop.f32.mrf.mxu0
        %v4833 = vadd.f32 %v737, %v4832
        %4834 = vmatmul.bf16.gmra.mxu0 %v875
        %v4835 = vpop.f32.mrf.mxu0
        %v4836 = vadd.f32 %v737, %v4835
        %v4837 = vpop.f32.mrf.mxu0
        %v4838 = vadd.f32 %v737, %v4837
        %4839 = vdwg.mxu0
        %4840 = vmatpush.bf16.msra.mxu0 %v2253
        %4841 = vmatpush.bf16.msra.mxu0 %v2241
        %4842 = vmatpush.bf16.msra.mxu0 %v2229
        %4843 = vmatpush.bf16.msra.mxu0 %v2217
        %4844 = vmatpush.bf16.msra.mxu0 %v2205
        %4845 = vmatpush.bf16.msra.mxu0 %v2193
        %4846 = vmatpush.bf16.msra.mxu0 %v2181
        %4847 = vmatpush.bf16.msra.mxu0 %v2169
        %4848 = vmatmul.bf16.gmra.mxu0 %v848
        %v4849 = vpop.f32.mrf.mxu0
        %v4850 = vadd.f32 %v4801, %v4849
        %v4851 = vpop.f32.mrf.mxu0
        %v4852 = vadd.f32 %v4803, %v4851
        %4853 = vmatmul.bf16.gmra.mxu0 %v852
        %v4854 = vpop.f32.mrf.mxu0
        %v4855 = vadd.f32 %v4806, %v4854
        %v4856 = vpop.f32.mrf.mxu0
        %v4857 = vadd.f32 %v4808, %v4856
        %4858 = vmatmul.bf16.gmra.mxu0 %v856
        %v4859 = vpop.f32.mrf.mxu0
        %v4860 = vadd.f32 %v4811, %v4859
        %v4861 = vpop.f32.mrf.mxu0
        %v4862 = vadd.f32 %v4813, %v4861
        %4863 = vmatmul.bf16.gmra.mxu0 %v860
        %v4864 = vpop.f32.mrf.mxu0
        %v4865 = vadd.f32 %v4816, %v4864
        %v4866 = vpop.f32.mrf.mxu0
        %v4867 = vadd.f32 %v4818, %v4866
        %4868 = vmatmul.bf16.gmra.mxu0 %v864
        %v4869 = vpop.f32.mrf.mxu0
        %v4870 = vadd.f32 %v4821, %v4869
        %v4871 = vpop.f32.mrf.mxu0
        %v4872 = vadd.f32 %v4823, %v4871
        %4873 = vmatmul.bf16.gmra.mxu0 %v868
        %v4874 = vpop.f32.mrf.mxu0
        %v4875 = vadd.f32 %v4826, %v4874
        %v4876 = vpop.f32.mrf.mxu0
        %v4877 = vadd.f32 %v4828, %v4876
        %4878 = vmatmul.bf16.gmra.mxu0 %v872
        %v4879 = vpop.f32.mrf.mxu0
        %v4880 = vadd.f32 %v4831, %v4879
        %v4881 = vpop.f32.mrf.mxu0
        %v4882 = vadd.f32 %v4833, %v4881
        %4883 = vmatmul.bf16.gmra.mxu0 %v876
        %v4884 = vpop.f32.mrf.mxu0
        %v4885 = vadd.f32 %v4836, %v4884
        %v4886 = vpop.f32.mrf.mxu0
        %v4887 = vadd.f32 %v4838, %v4886
        %4888 = vdwg.mxu0
        %4889 = vmatpush.bf16.msra.mxu0 %v2349
        %4890 = vmatpush.bf16.msra.mxu0 %v2337
        %4891 = vmatpush.bf16.msra.mxu0 %v2325
        %4892 = vmatpush.bf16.msra.mxu0 %v2313
        %4893 = vmatpush.bf16.msra.mxu0 %v2301
        %4894 = vmatpush.bf16.msra.mxu0 %v2289
        %4895 = vmatpush.bf16.msra.mxu0 %v2277
        %4896 = vmatpush.bf16.msra.mxu0 %v2265
        %4897 = vmatmul.bf16.gmra.mxu0 %v849
        %v4898 = vpop.f32.mrf.mxu0
        %v4899 = vadd.f32 %v4850, %v4898
        %v4900 = vpop.f32.mrf.mxu0
        %v4901 = vadd.f32 %v4852, %v4900
        %4902 = vmatmul.bf16.gmra.mxu0 %v853
        %v4903 = vpop.f32.mrf.mxu0
        %v4904 = vadd.f32 %v4855, %v4903
        %v4905 = vpop.f32.mrf.mxu0
        %v4906 = vadd.f32 %v4857, %v4905
        %4907 = vmatmul.bf16.gmra.mxu0 %v857
        %v4908 = vpop.f32.mrf.mxu0
        %v4909 = vadd.f32 %v4860, %v4908
        %v4910 = vpop.f32.mrf.mxu0
        %v4911 = vadd.f32 %v4862, %v4910
        %4912 = vmatmul.bf16.gmra.mxu0 %v861
        %v4913 = vpop.f32.mrf.mxu0
        %v4914 = vadd.f32 %v4865, %v4913
        %v4915 = vpop.f32.mrf.mxu0
        %v4916 = vadd.f32 %v4867, %v4915
        %4917 = vmatmul.bf16.gmra.mxu0 %v865
        %v4918 = vpop.f32.mrf.mxu0
        %v4919 = vadd.f32 %v4870, %v4918
        %v4920 = vpop.f32.mrf.mxu0
        %v4921 = vadd.f32 %v4872, %v4920
        %4922 = vmatmul.bf16.gmra.mxu0 %v869
        %v4923 = vpop.f32.mrf.mxu0
        %v4924 = vadd.f32 %v4875, %v4923
        %v4925 = vpop.f32.mrf.mxu0
        %v4926 = vadd.f32 %v4877, %v4925
        %4927 = vmatmul.bf16.gmra.mxu0 %v873
        %v4928 = vpop.f32.mrf.mxu0
        %v4929 = vadd.f32 %v4880, %v4928
        %v4930 = vpop.f32.mrf.mxu0
        %v4931 = vadd.f32 %v4882, %v4930
        %4932 = vmatmul.bf16.gmra.mxu0 %v877
        %v4933 = vpop.f32.mrf.mxu0
        %v4934 = vadd.f32 %v4885, %v4933
        %v4935 = vpop.f32.mrf.mxu0
        %v4936 = vadd.f32 %v4887, %v4935
        %4937 = vdwg.mxu0
        %4938 = vmatpush.bf16.msra.mxu0 %v2445
        %4939 = vmatpush.bf16.msra.mxu0 %v2433
        %4940 = vmatpush.bf16.msra.mxu0 %v2421
        %4941 = vmatpush.bf16.msra.mxu0 %v2409
        %4942 = vmatpush.bf16.msra.mxu0 %v2397
        %4943 = vmatpush.bf16.msra.mxu0 %v2385
        %4944 = vmatpush.bf16.msra.mxu0 %v2373
        %4945 = vmatpush.bf16.msra.mxu0 %v2361
        %4946 = vmatmul.bf16.gmra.mxu0 %v850
        %v4947 = vpop.f32.mrf.mxu0
        %v4948 = vadd.f32 %v4899, %v4947
        %v4949 = vpop.f32.mrf.mxu0
        %v4950 = vadd.f32 %v4901, %v4949
        %4951 = vmatmul.bf16.gmra.mxu0 %v854
        %v4952 = vpop.f32.mrf.mxu0
        %v4953 = vadd.f32 %v4904, %v4952
        %v4954 = vpop.f32.mrf.mxu0
        %v4955 = vadd.f32 %v4906, %v4954
        %4956 = vmatmul.bf16.gmra.mxu0 %v858
        %v4957 = vpop.f32.mrf.mxu0
        %v4958 = vadd.f32 %v4909, %v4957
        %v4959 = vpop.f32.mrf.mxu0
        %v4960 = vadd.f32 %v4911, %v4959
        %4961 = vmatmul.bf16.gmra.mxu0 %v862
        %v4962 = vpop.f32.mrf.mxu0
        %v4963 = vadd.f32 %v4914, %v4962
        %v4964 = vpop.f32.mrf.mxu0
        %v4965 = vadd.f32 %v4916, %v4964
        %4966 = vmatmul.bf16.gmra.mxu0 %v866
        %v4967 = vpop.f32.mrf.mxu0
        %v4968 = vadd.f32 %v4919, %v4967
        %v4969 = vpop.f32.mrf.mxu0
        %v4970 = vadd.f32 %v4921, %v4969
        %4971 = vmatmul.bf16.gmra.mxu0 %v870
        %v4972 = vpop.f32.mrf.mxu0
        %v4973 = vadd.f32 %v4924, %v4972
        %v4974 = vpop.f32.mrf.mxu0
        %v4975 = vadd.f32 %v4926, %v4974
        %4976 = vmatmul.bf16.gmra.mxu0 %v874
        %v4977 = vpop.f32.mrf.mxu0
        %v4978 = vadd.f32 %v4929, %v4977
        %v4979 = vpop.f32.mrf.mxu0
        %v4980 = vadd.f32 %v4931, %v4979
        %4981 = vmatmul.bf16.gmra.mxu0 %v878
        %v4982 = vpop.f32.mrf.mxu0
        %v4983 = vadd.f32 %v4934, %v4982
        %v4984 = vpop.f32.mrf.mxu0
        %v4985 = vadd.f32 %v4936, %v4984
        %4986 = vdwg.mxu0
        %4987 = vmatpush.bf16.msra.mxu0 %v2158
        %4988 = vmatpush.bf16.msra.mxu0 %v2146
        %4989 = vmatpush.bf16.msra.mxu0 %v2134
        %4990 = vmatpush.bf16.msra.mxu0 %v2122
        %4991 = vmatpush.bf16.msra.mxu0 %v2110
        %4992 = vmatpush.bf16.msra.mxu0 %v2098
        %4993 = vmatpush.bf16.msra.mxu0 %v2086
        %4994 = vmatpush.bf16.msra.mxu0 %v2074
        %4995 = vmatmul.bf16.gmra.mxu0 %v847
        %v4996 = vpop.f32.mrf.mxu0
        %v4997 = vadd.f32 %v738, %v4996
        %v4998 = vpop.f32.mrf.mxu0
        %v4999 = vadd.f32 %v738, %v4998
        %5000 = vmatmul.bf16.gmra.mxu0 %v851
        %v5001 = vpop.f32.mrf.mxu0
        %v5002 = vadd.f32 %v738, %v5001
        %v5003 = vpop.f32.mrf.mxu0
        %v5004 = vadd.f32 %v738, %v5003
        %5005 = vmatmul.bf16.gmra.mxu0 %v855
        %v5006 = vpop.f32.mrf.mxu0
        %v5007 = vadd.f32 %v738, %v5006
        %v5008 = vpop.f32.mrf.mxu0
        %v5009 = vadd.f32 %v738, %v5008
        %5010 = vmatmul.bf16.gmra.mxu0 %v859
        %v5011 = vpop.f32.mrf.mxu0
        %v5012 = vadd.f32 %v738, %v5011
        %v5013 = vpop.f32.mrf.mxu0
        %v5014 = vadd.f32 %v738, %v5013
        %5015 = vmatmul.bf16.gmra.mxu0 %v863
        %v5016 = vpop.f32.mrf.mxu0
        %v5017 = vadd.f32 %v738, %v5016
        %v5018 = vpop.f32.mrf.mxu0
        %v5019 = vadd.f32 %v738, %v5018
        %5020 = vmatmul.bf16.gmra.mxu0 %v867
        %v5021 = vpop.f32.mrf.mxu0
        %v5022 = vadd.f32 %v738, %v5021
        %v5023 = vpop.f32.mrf.mxu0
        %v5024 = vadd.f32 %v738, %v5023
        %5025 = vmatmul.bf16.gmra.mxu0 %v871
        %v5026 = vpop.f32.mrf.mxu0
        %v5027 = vadd.f32 %v738, %v5026
        %v5028 = vpop.f32.mrf.mxu0
        %v5029 = vadd.f32 %v738, %v5028
        %5030 = vmatmul.bf16.gmra.mxu0 %v875
        %v5031 = vpop.f32.mrf.mxu0
        %v5032 = vadd.f32 %v738, %v5031
        %v5033 = vpop.f32.mrf.mxu0
        %v5034 = vadd.f32 %v738, %v5033
        %5035 = vdwg.mxu0
        %5036 = vmatpush.bf16.msra.mxu0 %v2254
        %5037 = vmatpush.bf16.msra.mxu0 %v2242
        %5038 = vmatpush.bf16.msra.mxu0 %v2230
        %5039 = vmatpush.bf16.msra.mxu0 %v2218
        %5040 = vmatpush.bf16.msra.mxu0 %v2206
        %5041 = vmatpush.bf16.msra.mxu0 %v2194
        %5042 = vmatpush.bf16.msra.mxu0 %v2182
        %5043 = vmatpush.bf16.msra.mxu0 %v2170
        %5044 = vmatmul.bf16.gmra.mxu0 %v848
        %v5045 = vpop.f32.mrf.mxu0
        %v5046 = vadd.f32 %v4997, %v5045
        %v5047 = vpop.f32.mrf.mxu0
        %v5048 = vadd.f32 %v4999, %v5047
        %5049 = vmatmul.bf16.gmra.mxu0 %v852
        %v5050 = vpop.f32.mrf.mxu0
        %v5051 = vadd.f32 %v5002, %v5050
        %v5052 = vpop.f32.mrf.mxu0
        %v5053 = vadd.f32 %v5004, %v5052
        %5054 = vmatmul.bf16.gmra.mxu0 %v856
        %v5055 = vpop.f32.mrf.mxu0
        %v5056 = vadd.f32 %v5007, %v5055
        %v5057 = vpop.f32.mrf.mxu0
        %v5058 = vadd.f32 %v5009, %v5057
        %5059 = vmatmul.bf16.gmra.mxu0 %v860
        %v5060 = vpop.f32.mrf.mxu0
        %v5061 = vadd.f32 %v5012, %v5060
        %v5062 = vpop.f32.mrf.mxu0
        %v5063 = vadd.f32 %v5014, %v5062
        %5064 = vmatmul.bf16.gmra.mxu0 %v864
        %v5065 = vpop.f32.mrf.mxu0
        %v5066 = vadd.f32 %v5017, %v5065
        %v5067 = vpop.f32.mrf.mxu0
        %v5068 = vadd.f32 %v5019, %v5067
        %5069 = vmatmul.bf16.gmra.mxu0 %v868
        %v5070 = vpop.f32.mrf.mxu0
        %v5071 = vadd.f32 %v5022, %v5070
        %v5072 = vpop.f32.mrf.mxu0
        %v5073 = vadd.f32 %v5024, %v5072
        %5074 = vmatmul.bf16.gmra.mxu0 %v872
        %v5075 = vpop.f32.mrf.mxu0
        %v5076 = vadd.f32 %v5027, %v5075
        %v5077 = vpop.f32.mrf.mxu0
        %v5078 = vadd.f32 %v5029, %v5077
        %5079 = vmatmul.bf16.gmra.mxu0 %v876
        %v5080 = vpop.f32.mrf.mxu0
        %v5081 = vadd.f32 %v5032, %v5080
        %v5082 = vpop.f32.mrf.mxu0
        %v5083 = vadd.f32 %v5034, %v5082
        %5084 = vdwg.mxu0
        %5085 = vmatpush.bf16.msra.mxu0 %v2350
        %5086 = vmatpush.bf16.msra.mxu0 %v2338
        %5087 = vmatpush.bf16.msra.mxu0 %v2326
        %5088 = vmatpush.bf16.msra.mxu0 %v2314
        %5089 = vmatpush.bf16.msra.mxu0 %v2302
        %5090 = vmatpush.bf16.msra.mxu0 %v2290
        %5091 = vmatpush.bf16.msra.mxu0 %v2278
        %5092 = vmatpush.bf16.msra.mxu0 %v2266
        %5093 = vmatmul.bf16.gmra.mxu0 %v849
        %v5094 = vpop.f32.mrf.mxu0
        %v5095 = vadd.f32 %v5046, %v5094
        %v5096 = vpop.f32.mrf.mxu0
        %v5097 = vadd.f32 %v5048, %v5096
        %5098 = vmatmul.bf16.gmra.mxu0 %v853
        %v5099 = vpop.f32.mrf.mxu0
        %v5100 = vadd.f32 %v5051, %v5099
        %v5101 = vpop.f32.mrf.mxu0
        %v5102 = vadd.f32 %v5053, %v5101
        %5103 = vmatmul.bf16.gmra.mxu0 %v857
        %v5104 = vpop.f32.mrf.mxu0
        %v5105 = vadd.f32 %v5056, %v5104
        %v5106 = vpop.f32.mrf.mxu0
        %v5107 = vadd.f32 %v5058, %v5106
        %5108 = vmatmul.bf16.gmra.mxu0 %v861
        %v5109 = vpop.f32.mrf.mxu0
        %v5110 = vadd.f32 %v5061, %v5109
        %v5111 = vpop.f32.mrf.mxu0
        %v5112 = vadd.f32 %v5063, %v5111
        %5113 = vmatmul.bf16.gmra.mxu0 %v865
        %v5114 = vpop.f32.mrf.mxu0
        %v5115 = vadd.f32 %v5066, %v5114
        %v5116 = vpop.f32.mrf.mxu0
        %v5117 = vadd.f32 %v5068, %v5116
        %5118 = vmatmul.bf16.gmra.mxu0 %v869
        %v5119 = vpop.f32.mrf.mxu0
        %v5120 = vadd.f32 %v5071, %v5119
        %v5121 = vpop.f32.mrf.mxu0
        %v5122 = vadd.f32 %v5073, %v5121
        %5123 = vmatmul.bf16.gmra.mxu0 %v873
        %v5124 = vpop.f32.mrf.mxu0
        %v5125 = vadd.f32 %v5076, %v5124
        %v5126 = vpop.f32.mrf.mxu0
        %v5127 = vadd.f32 %v5078, %v5126
        %5128 = vmatmul.bf16.gmra.mxu0 %v877
        %v5129 = vpop.f32.mrf.mxu0
        %v5130 = vadd.f32 %v5081, %v5129
        %v5131 = vpop.f32.mrf.mxu0
        %v5132 = vadd.f32 %v5083, %v5131
        %5133 = vdwg.mxu0
        %5134 = vmatpush.bf16.msra.mxu0 %v2446
        %5135 = vmatpush.bf16.msra.mxu0 %v2434
        %5136 = vmatpush.bf16.msra.mxu0 %v2422
        %5137 = vmatpush.bf16.msra.mxu0 %v2410
        %5138 = vmatpush.bf16.msra.mxu0 %v2398
        %5139 = vmatpush.bf16.msra.mxu0 %v2386
        %5140 = vmatpush.bf16.msra.mxu0 %v2374
        %5141 = vmatpush.bf16.msra.mxu0 %v2362
        %5142 = vmatmul.bf16.gmra.mxu0 %v850
        %v5143 = vpop.f32.mrf.mxu0
        %v5144 = vadd.f32 %v5095, %v5143
        %v5145 = vpop.f32.mrf.mxu0
        %v5146 = vadd.f32 %v5097, %v5145
        %5147 = vmatmul.bf16.gmra.mxu0 %v854
        %v5148 = vpop.f32.mrf.mxu0
        %v5149 = vadd.f32 %v5100, %v5148
        %v5150 = vpop.f32.mrf.mxu0
        %v5151 = vadd.f32 %v5102, %v5150
        %5152 = vmatmul.bf16.gmra.mxu0 %v858
        %v5153 = vpop.f32.mrf.mxu0
        %v5154 = vadd.f32 %v5105, %v5153
        %v5155 = vpop.f32.mrf.mxu0
        %v5156 = vadd.f32 %v5107, %v5155
        %5157 = vmatmul.bf16.gmra.mxu0 %v862
        %v5158 = vpop.f32.mrf.mxu0
        %v5159 = vadd.f32 %v5110, %v5158
        %v5160 = vpop.f32.mrf.mxu0
        %v5161 = vadd.f32 %v5112, %v5160
        %5162 = vmatmul.bf16.gmra.mxu0 %v866
        %v5163 = vpop.f32.mrf.mxu0
        %v5164 = vadd.f32 %v5115, %v5163
        %v5165 = vpop.f32.mrf.mxu0
        %v5166 = vadd.f32 %v5117, %v5165
        %5167 = vmatmul.bf16.gmra.mxu0 %v870
        %v5168 = vpop.f32.mrf.mxu0
        %v5169 = vadd.f32 %v5120, %v5168
        %v5170 = vpop.f32.mrf.mxu0
        %v5171 = vadd.f32 %v5122, %v5170
        %5172 = vmatmul.bf16.gmra.mxu0 %v874
        %v5173 = vpop.f32.mrf.mxu0
        %v5174 = vadd.f32 %v5125, %v5173
        %v5175 = vpop.f32.mrf.mxu0
        %v5176 = vadd.f32 %v5127, %v5175
        %5177 = vmatmul.bf16.gmra.mxu0 %v878
        %v5178 = vpop.f32.mrf.mxu0
        %v5179 = vadd.f32 %v5130, %v5178
        %v5180 = vpop.f32.mrf.mxu0
        %v5181 = vadd.f32 %v5132, %v5180
        %5182 = vdwg.mxu0
        %v5183 = vmul.f32 %v2988, 0.088388346
        %v5184 = vmul.f32 %v3184, 0.088388346
        %v5185 = vmul.f32 %v3380, 0.088388346
        %v5186 = vmul.f32 %v3576, 0.088388346
        %v5187 = vmul.f32 %v2990, 0.088388346
        %v5188 = vmul.f32 %v3186, 0.088388346
        %v5189 = vmul.f32 %v3382, 0.088388346
        %v5190 = vmul.f32 %v3578, 0.088388346
        %v5191 = vmul.f32 %v2993, 0.088388346
        %v5192 = vmul.f32 %v3189, 0.088388346
        %v5193 = vmul.f32 %v3385, 0.088388346
        %v5194 = vmul.f32 %v3581, 0.088388346
        %v5195 = vmul.f32 %v2995, 0.088388346
        %v5196 = vmul.f32 %v3191, 0.088388346
        %v5197 = vmul.f32 %v3387, 0.088388346
        %v5198 = vmul.f32 %v3583, 0.088388346
        %v5199 = vmul.f32 %v2998, 0.088388346
        %v5200 = vmul.f32 %v3194, 0.088388346
        %v5201 = vmul.f32 %v3390, 0.088388346
        %v5202 = vmul.f32 %v3586, 0.088388346
        %v5203 = vmul.f32 %v3000, 0.088388346
        %v5204 = vmul.f32 %v3196, 0.088388346
        %v5205 = vmul.f32 %v3392, 0.088388346
        %v5206 = vmul.f32 %v3588, 0.088388346
        %v5207 = vmul.f32 %v3003, 0.088388346
        %v5208 = vmul.f32 %v3199, 0.088388346
        %v5209 = vmul.f32 %v3395, 0.088388346
        %v5210 = vmul.f32 %v3591, 0.088388346
        %v5211 = vmul.f32 %v3005, 0.088388346
        %v5212 = vmul.f32 %v3201, 0.088388346
        %v5213 = vmul.f32 %v3397, 0.088388346
        %v5214 = vmul.f32 %v3593, 0.088388346
        %v5215 = vmul.f32 %v3008, 0.088388346
        %v5216 = vmul.f32 %v3204, 0.088388346
        %v5217 = vmul.f32 %v3400, 0.088388346
        %v5218 = vmul.f32 %v3596, 0.088388346
        %v5219 = vmul.f32 %v3010, 0.088388346
        %v5220 = vmul.f32 %v3206, 0.088388346
        %v5221 = vmul.f32 %v3402, 0.088388346
        %v5222 = vmul.f32 %v3598, 0.088388346
        %v5223 = vmul.f32 %v3013, 0.088388346
        %v5224 = vmul.f32 %v3209, 0.088388346
        %v5225 = vmul.f32 %v3405, 0.088388346
        %v5226 = vmul.f32 %v3601, 0.088388346
        %v5227 = vmul.f32 %v3015, 0.088388346
        %v5228 = vmul.f32 %v3211, 0.088388346
        %v5229 = vmul.f32 %v3407, 0.088388346
        %v5230 = vmul.f32 %v3603, 0.088388346
        %v5231 = vmul.f32 %v3018, 0.088388346
        %v5232 = vmul.f32 %v3214, 0.088388346
        %v5233 = vmul.f32 %v3410, 0.088388346
        %v5234 = vmul.f32 %v3606, 0.088388346
        %v5235 = vmul.f32 %v3020, 0.088388346
        %v5236 = vmul.f32 %v3216, 0.088388346
        %v5237 = vmul.f32 %v3412, 0.088388346
        %v5238 = vmul.f32 %v3608, 0.088388346
        %v5239 = vmul.f32 %v3023, 0.088388346
        %v5240 = vmul.f32 %v3219, 0.088388346
        %v5241 = vmul.f32 %v3415, 0.088388346
        %v5242 = vmul.f32 %v3611, 0.088388346
        %v5243 = vmul.f32 %v3025, 0.088388346
        %v5244 = vmul.f32 %v3221, 0.088388346
        %v5245 = vmul.f32 %v3417, 0.088388346
        %v5246 = vmul.f32 %v3613, 0.088388346
        %v5247 = vpack.c.bf16 %v5184, %v5183
        %v5248 = vpack.c.bf16 %v5186, %v5185
        %v5249 = vpack.c.bf16 %v5188, %v5187
        %v5250 = vpack.c.bf16 %v5190, %v5189
        %v5251 = vpack.c.bf16 %v5192, %v5191
        %v5252 = vpack.c.bf16 %v5194, %v5193
        %v5253 = vpack.c.bf16 %v5196, %v5195
        %v5254 = vpack.c.bf16 %v5198, %v5197
        %v5255 = vpack.c.bf16 %v5200, %v5199
        %v5256 = vpack.c.bf16 %v5202, %v5201
        %v5257 = vpack.c.bf16 %v5204, %v5203
        %v5258 = vpack.c.bf16 %v5206, %v5205
        %v5259 = vpack.c.bf16 %v5208, %v5207
        %v5260 = vpack.c.bf16 %v5210, %v5209
        %v5261 = vpack.c.bf16 %v5212, %v5211
        %v5262 = vpack.c.bf16 %v5214, %v5213
        %v5263 = vpack.c.bf16 %v5216, %v5215
        %v5264 = vpack.c.bf16 %v5218, %v5217
        %v5265 = vpack.c.bf16 %v5220, %v5219
        %v5266 = vpack.c.bf16 %v5222, %v5221
        %v5267 = vpack.c.bf16 %v5224, %v5223
        %v5268 = vpack.c.bf16 %v5226, %v5225
        %v5269 = vpack.c.bf16 %v5228, %v5227
        %v5270 = vpack.c.bf16 %v5230, %v5229
        %v5271 = vpack.c.bf16 %v5232, %v5231
        %v5272 = vpack.c.bf16 %v5234, %v5233
        %v5273 = vpack.c.bf16 %v5236, %v5235
        %v5274 = vpack.c.bf16 %v5238, %v5237
        %v5275 = vpack.c.bf16 %v5240, %v5239
        %v5276 = vpack.c.bf16 %v5242, %v5241
        %v5277 = vpack.c.bf16 %v5244, %v5243
        %v5278 = vpack.c.bf16 %v5246, %v5245
        %v5279 = vpack.c.bf16 %v3968, %v3772
        %v5280 = vpack.c.bf16 %v4360, %v4164
        %v5281 = vpack.c.bf16 %v3970, %v3774
        %v5282 = vpack.c.bf16 %v4362, %v4166
        %v5283 = vpack.c.bf16 %v3973, %v3777
        %v5284 = vpack.c.bf16 %v4365, %v4169
        %v5285 = vpack.c.bf16 %v3975, %v3779
        %v5286 = vpack.c.bf16 %v4367, %v4171
        %v5287 = vpack.c.bf16 %v3978, %v3782
        %v5288 = vpack.c.bf16 %v4370, %v4174
        %v5289 = vpack.c.bf16 %v3980, %v3784
        %v5290 = vpack.c.bf16 %v4372, %v4176
        %v5291 = vpack.c.bf16 %v3983, %v3787
        %v5292 = vpack.c.bf16 %v4375, %v4179
        %v5293 = vpack.c.bf16 %v3985, %v3789
        %v5294 = vpack.c.bf16 %v4377, %v4181
        %v5295 = vpack.c.bf16 %v3988, %v3792
        %v5296 = vpack.c.bf16 %v4380, %v4184
        %v5297 = vpack.c.bf16 %v3990, %v3794
        %v5298 = vpack.c.bf16 %v4382, %v4186
        %v5299 = vpack.c.bf16 %v3993, %v3797
        %v5300 = vpack.c.bf16 %v4385, %v4189
        %v5301 = vpack.c.bf16 %v3995, %v3799
        %v5302 = vpack.c.bf16 %v4387, %v4191
        %v5303 = vpack.c.bf16 %v3998, %v3802
        %v5304 = vpack.c.bf16 %v4390, %v4194
        %v5305 = vpack.c.bf16 %v4000, %v3804
        %v5306 = vpack.c.bf16 %v4392, %v4196
        %v5307 = vpack.c.bf16 %v4003, %v3807
        %v5308 = vpack.c.bf16 %v4395, %v4199
        %v5309 = vpack.c.bf16 %v4005, %v3809
        %v5310 = vpack.c.bf16 %v4397, %v4201
        %v5311 = vpack.c.bf16 %v4752, %v4556
        %v5312 = vpack.c.bf16 %v5144, %v4948
        %v5313 = vpack.c.bf16 %v4754, %v4558
        %v5314 = vpack.c.bf16 %v5146, %v4950
        %v5315 = vpack.c.bf16 %v4757, %v4561
        %v5316 = vpack.c.bf16 %v5149, %v4953
        %v5317 = vpack.c.bf16 %v4759, %v4563
        %v5318 = vpack.c.bf16 %v5151, %v4955
        %v5319 = vpack.c.bf16 %v4762, %v4566
        %v5320 = vpack.c.bf16 %v5154, %v4958
        %v5321 = vpack.c.bf16 %v4764, %v4568
        %v5322 = vpack.c.bf16 %v5156, %v4960
        %v5323 = vpack.c.bf16 %v4767, %v4571
        %v5324 = vpack.c.bf16 %v5159, %v4963
        %v5325 = vpack.c.bf16 %v4769, %v4573
        %v5326 = vpack.c.bf16 %v5161, %v4965
        %v5327 = vpack.c.bf16 %v4772, %v4576
        %v5328 = vpack.c.bf16 %v5164, %v4968
        %v5329 = vpack.c.bf16 %v4774, %v4578
        %v5330 = vpack.c.bf16 %v5166, %v4970
        %v5331 = vpack.c.bf16 %v4777, %v4581
        %v5332 = vpack.c.bf16 %v5169, %v4973
        %v5333 = vpack.c.bf16 %v4779, %v4583
        %v5334 = vpack.c.bf16 %v5171, %v4975
        %v5335 = vpack.c.bf16 %v4782, %v4586
        %v5336 = vpack.c.bf16 %v5174, %v4978
        %v5337 = vpack.c.bf16 %v4784, %v4588
        %v5338 = vpack.c.bf16 %v5176, %v4980
        %v5339 = vpack.c.bf16 %v4787, %v4591
        %v5340 = vpack.c.bf16 %v5179, %v4983
        %v5341 = vpack.c.bf16 %v4789, %v4593
        %v5342 = vpack.c.bf16 %v5181, %v4985
        %v5359 = vunpack.c.l.b16 %v5247
        %v5360 = vunpack.c.l.b16 %v5249
        %v5361 = vunpack.c.l.b16 %v5251
        %v5362 = vunpack.c.l.b16 %v5253
        %v5363 = vunpack.c.l.b16 %v5255
        %v5364 = vunpack.c.l.b16 %v5257
        %v5365 = vunpack.c.l.b16 %v5259
        %v5366 = vunpack.c.l.b16 %v5261
        %v5367 = vunpack.c.l.b16 %v5263
        %v5368 = vunpack.c.l.b16 %v5265
        %v5369 = vunpack.c.l.b16 %v5267
        %v5370 = vunpack.c.l.b16 %v5269
        %v5371 = vunpack.c.l.b16 %v5271
        %v5372 = vunpack.c.l.b16 %v5273
        %v5373 = vunpack.c.l.b16 %v5275
        %v5374 = vunpack.c.l.b16 %v5277
        %v5375 = vpack.c.b16 %v5360, %v5359
        %v5376 = vpack.c.b16 %v5362, %v5361
        %v5377 = vpack.c.b16 %v5364, %v5363
        %v5378 = vpack.c.b16 %v5366, %v5365
        %v5379 = vpack.c.b16 %v5368, %v5367
        %v5380 = vpack.c.b16 %v5370, %v5369
        %v5381 = vpack.c.b16 %v5372, %v5371
        %v5382 = vpack.c.b16 %v5374, %v5373
        %v5407 = vunpack.c.l.b16 %v5279
        %v5408 = vunpack.c.l.b16 %v5281
        %v5409 = vunpack.c.l.b16 %v5283
        %v5410 = vunpack.c.l.b16 %v5285
        %v5411 = vunpack.c.l.b16 %v5287
        %v5412 = vunpack.c.l.b16 %v5289
        %v5413 = vunpack.c.l.b16 %v5291
        %v5414 = vunpack.c.l.b16 %v5293
        %v5415 = vunpack.c.l.b16 %v5295
        %v5416 = vunpack.c.l.b16 %v5297
        %v5417 = vunpack.c.l.b16 %v5299
        %v5418 = vunpack.c.l.b16 %v5301
        %v5419 = vunpack.c.l.b16 %v5303
        %v5420 = vunpack.c.l.b16 %v5305
        %v5421 = vunpack.c.l.b16 %v5307
        %v5422 = vunpack.c.l.b16 %v5309
        %v5423 = vpack.c.b16 %v5408, %v5407
        %v5424 = vpack.c.b16 %v5410, %v5409
        %v5425 = vpack.c.b16 %v5412, %v5411
        %v5426 = vpack.c.b16 %v5414, %v5413
        %v5427 = vpack.c.b16 %v5416, %v5415
        %v5428 = vpack.c.b16 %v5418, %v5417
        %v5429 = vpack.c.b16 %v5420, %v5419
        %v5430 = vpack.c.b16 %v5422, %v5421
        %5439 = vmatpush.bf16.xpose.msra.mxu0 %v5430
        %5440 = vmatpush.bf16.xpose.msra.mxu0 %v5429
        %5441 = vmatpush.bf16.xpose.msra.mxu0 %v5428
        %5442 = vmatpush.bf16.xpose.msra.mxu0 %v5427
        %5443 = vmatpush.bf16.xpose.msra.mxu0 %v5426
        %5444 = vmatpush.bf16.xpose.msra.mxu0 %v5425
        %5445 = vmatpush.bf16.xpose.msra.mxu0 %v5424
        %5446 = vmatpush.bf16.xpose.msra.mxu0 %v5423
        %5447 = vmatmul.bf16.gmra.mxu0 %v5375
        %v5448 = vpop.f32.mrf.mxu0
        %v5449 = vadd.f32 0.0, %v5448
        %v5450 = vpop.f32.mrf.mxu0
        %v5451 = vadd.f32 0.0, %v5450
        %5452 = vmatmul.bf16.gmra.mxu0 %v5376
        %v5453 = vpop.f32.mrf.mxu0
        %v5454 = vadd.f32 0.0, %v5453
        %v5455 = vpop.f32.mrf.mxu0
        %v5456 = vadd.f32 0.0, %v5455
        %5457 = vmatmul.bf16.gmra.mxu0 %v5377
        %v5458 = vpop.f32.mrf.mxu0
        %v5459 = vadd.f32 0.0, %v5458
        %v5460 = vpop.f32.mrf.mxu0
        %v5461 = vadd.f32 0.0, %v5460
        %5462 = vmatmul.bf16.gmra.mxu0 %v5378
        %v5463 = vpop.f32.mrf.mxu0
        %v5464 = vadd.f32 0.0, %v5463
        %v5465 = vpop.f32.mrf.mxu0
        %v5466 = vadd.f32 0.0, %v5465
        %5467 = vmatmul.bf16.gmra.mxu0 %v5379
        %v5468 = vpop.f32.mrf.mxu0
        %v5469 = vadd.f32 0.0, %v5468
        %v5470 = vpop.f32.mrf.mxu0
        %v5471 = vadd.f32 0.0, %v5470
        %5472 = vmatmul.bf16.gmra.mxu0 %v5380
        %v5473 = vpop.f32.mrf.mxu0
        %v5474 = vadd.f32 0.0, %v5473
        %v5475 = vpop.f32.mrf.mxu0
        %v5476 = vadd.f32 0.0, %v5475
        %5477 = vmatmul.bf16.gmra.mxu0 %v5381
        %v5478 = vpop.f32.mrf.mxu0
        %v5479 = vadd.f32 0.0, %v5478
        %v5480 = vpop.f32.mrf.mxu0
        %v5481 = vadd.f32 0.0, %v5480
        %5482 = vmatmul.bf16.gmra.mxu0 %v5382
        %v5483 = vpop.f32.mrf.mxu0
        %v5484 = vadd.f32 0.0, %v5483
        %v5485 = vpop.f32.mrf.mxu0
        %v5486 = vadd.f32 0.0, %v5485
        %5487 = vdwg.mxu0
        %5488 = vmax.xlane.f32.xlu0 %v5449
        %v5489 = vpop.xlane.xlu0 %5488
        %5490 = vmax.xlane.f32.xlu0 %v5451
        %v5491 = vpop.xlane.xlu0 %5490
        %5492 = vmax.xlane.f32.xlu0 %v5454
        %v5493 = vpop.xlane.xlu0 %5492
        %5494 = vmax.xlane.f32.xlu0 %v5456
        %v5495 = vpop.xlane.xlu0 %5494
        %5496 = vmax.xlane.f32.xlu0 %v5459
        %v5497 = vpop.xlane.xlu0 %5496
        %5498 = vmax.xlane.f32.xlu0 %v5461
        %v5499 = vpop.xlane.xlu0 %5498
        %5500 = vmax.xlane.f32.xlu0 %v5464
        %v5501 = vpop.xlane.xlu0 %5500
        %5502 = vmax.xlane.f32.xlu0 %v5466
        %v5503 = vpop.xlane.xlu0 %5502
        %5504 = vmax.xlane.f32.xlu0 %v5469
        %v5505 = vpop.xlane.xlu0 %5504
        %5506 = vmax.xlane.f32.xlu0 %v5471
        %v5507 = vpop.xlane.xlu0 %5506
        %5508 = vmax.xlane.f32.xlu0 %v5474
        %v5509 = vpop.xlane.xlu0 %5508
        %5510 = vmax.xlane.f32.xlu0 %v5476
        %v5511 = vpop.xlane.xlu0 %5510
        %5512 = vmax.xlane.f32.xlu0 %v5479
        %v5513 = vpop.xlane.xlu0 %5512
        %5514 = vmax.xlane.f32.xlu0 %v5481
        %v5515 = vpop.xlane.xlu0 %5514
        %5516 = vmax.xlane.f32.xlu0 %v5484
        %v5517 = vpop.xlane.xlu0 %5516
        %5518 = vmax.xlane.f32.xlu0 %v5486
        %v5519 = vpop.xlane.xlu0 %5518
        %v5520 = vsub.f32 %v5449, %v5489
        %v5521 = vsub.f32 %v5451, %v5491
        %v5522 = vsub.f32 %v5454, %v5493
        %v5523 = vsub.f32 %v5456, %v5495
        %v5524 = vsub.f32 %v5459, %v5497
        %v5525 = vsub.f32 %v5461, %v5499
        %v5526 = vsub.f32 %v5464, %v5501
        %v5527 = vsub.f32 %v5466, %v5503
        %v5528 = vsub.f32 %v5469, %v5505
        %v5529 = vsub.f32 %v5471, %v5507
        %v5530 = vsub.f32 %v5474, %v5509
        %v5531 = vsub.f32 %v5476, %v5511
        %v5532 = vsub.f32 %v5479, %v5513
        %v5533 = vsub.f32 %v5481, %v5515
        %v5534 = vsub.f32 %v5484, %v5517
        %v5535 = vsub.f32 %v5486, %v5519
        %v5536 = vmul.f32 %v5520, 1.442695
        %v5537 = vpow.pop %v5536
        %v5538 = vmul.f32 %v5521, 1.442695
        %v5539 = vpow.pop %v5538
        %v5540 = vmul.f32 %v5522, 1.442695
        %v5541 = vpow.pop %v5540
        %v5542 = vmul.f32 %v5523, 1.442695
        %v5543 = vpow.pop %v5542
        %v5544 = vmul.f32 %v5524, 1.442695
        %v5545 = vpow.pop %v5544
        %v5546 = vmul.f32 %v5525, 1.442695
        %v5547 = vpow.pop %v5546
        %v5548 = vmul.f32 %v5526, 1.442695
        %v5549 = vpow.pop %v5548
        %v5550 = vmul.f32 %v5527, 1.442695
        %v5551 = vpow.pop %v5550
        %v5552 = vmul.f32 %v5528, 1.442695
        %v5553 = vpow.pop %v5552
        %v5554 = vmul.f32 %v5529, 1.442695
        %v5555 = vpow.pop %v5554
        %v5556 = vmul.f32 %v5530, 1.442695
        %v5557 = vpow.pop %v5556
        %v5558 = vmul.f32 %v5531, 1.442695
        %v5559 = vpow.pop %v5558
        %v5560 = vmul.f32 %v5532, 1.442695
        %v5561 = vpow.pop %v5560
        %v5562 = vmul.f32 %v5533, 1.442695
        %v5563 = vpow.pop %v5562
        %v5564 = vmul.f32 %v5534, 1.442695
        %v5565 = vpow.pop %v5564
        %v5566 = vmul.f32 %v5535, 1.442695
        %v5567 = vpow.pop %v5566
        %5568 = vadd.xlane.f32.xlu0 %v5537
        %v5569 = vpop.xlane.xlu0 %5568
        %5570 = vadd.xlane.f32.xlu0 %v5539
        %v5571 = vpop.xlane.xlu0 %5570
        %5572 = vadd.xlane.f32.xlu0 %v5541
        %v5573 = vpop.xlane.xlu0 %5572
        %5574 = vadd.xlane.f32.xlu0 %v5543
        %v5575 = vpop.xlane.xlu0 %5574
        %5576 = vadd.xlane.f32.xlu0 %v5545
        %v5577 = vpop.xlane.xlu0 %5576
        %5578 = vadd.xlane.f32.xlu0 %v5547
        %v5579 = vpop.xlane.xlu0 %5578
        %5580 = vadd.xlane.f32.xlu0 %v5549
        %v5581 = vpop.xlane.xlu0 %5580
        %5582 = vadd.xlane.f32.xlu0 %v5551
        %v5583 = vpop.xlane.xlu0 %5582
        %5584 = vadd.xlane.f32.xlu0 %v5553
        %v5585 = vpop.xlane.xlu0 %5584
        %5586 = vadd.xlane.f32.xlu0 %v5555
        %v5587 = vpop.xlane.xlu0 %5586
        %5588 = vadd.xlane.f32.xlu0 %v5557
        %v5589 = vpop.xlane.xlu0 %5588
        %5590 = vadd.xlane.f32.xlu0 %v5559
        %v5591 = vpop.xlane.xlu0 %5590
        %5592 = vadd.xlane.f32.xlu0 %v5561
        %v5593 = vpop.xlane.xlu0 %5592
        %5594 = vadd.xlane.f32.xlu0 %v5563
        %v5595 = vpop.xlane.xlu0 %5594
        %5596 = vadd.xlane.f32.xlu0 %v5565
        %v5597 = vpop.xlane.xlu0 %5596
        %5598 = vadd.xlane.f32.xlu0 %v5567
        %v5599 = vpop.xlane.xlu0 %5598
        %v5600 = vrcp.pop %v5569
        %v5601 = vrcp.pop %v5571
        %v5602 = vrcp.pop %v5573
        %v5603 = vrcp.pop %v5575
        %v5604 = vrcp.pop %v5577
        %v5605 = vrcp.pop %v5579
        %v5606 = vrcp.pop %v5581
        %v5607 = vrcp.pop %v5583
        %v5608 = vrcp.pop %v5585
        %v5609 = vrcp.pop %v5587
        %v5610 = vrcp.pop %v5589
        %v5611 = vrcp.pop %v5591
        %v5612 = vrcp.pop %v5593
        %v5613 = vrcp.pop %v5595
        %v5614 = vrcp.pop %v5597
        %v5615 = vrcp.pop %v5599
        %v5616 = vmul.f32 %v5537, %v5600
        %v5617 = vmul.f32 %v5539, %v5601
        %v5618 = vmul.f32 %v5541, %v5602
        %v5619 = vmul.f32 %v5543, %v5603
        %v5620 = vmul.f32 %v5545, %v5604
        %v5621 = vmul.f32 %v5547, %v5605
        %v5622 = vmul.f32 %v5549, %v5606
        %v5623 = vmul.f32 %v5551, %v5607
        %v5624 = vmul.f32 %v5553, %v5608
        %v5625 = vmul.f32 %v5555, %v5609
        %v5626 = vmul.f32 %v5557, %v5610
        %v5627 = vmul.f32 %v5559, %v5611
        %v5628 = vmul.f32 %v5561, %v5612
        %v5629 = vmul.f32 %v5563, %v5613
        %v5630 = vmul.f32 %v5565, %v5614
        %v5631 = vmul.f32 %v5567, %v5615
        %v5632 = vpack.c.bf16 %v5617, %v5616
        %v5633 = vpack.c.bf16 %v5619, %v5618
        %v5634 = vpack.c.bf16 %v5621, %v5620
        %v5635 = vpack.c.bf16 %v5623, %v5622
        %v5636 = vpack.c.bf16 %v5625, %v5624
        %v5637 = vpack.c.bf16 %v5627, %v5626
        %v5638 = vpack.c.bf16 %v5629, %v5628
        %v5639 = vpack.c.bf16 %v5631, %v5630
        %v5656 = vunpack.c.l.b16 %v5311
        %v5657 = vunpack.c.l.b16 %v5313
        %v5658 = vunpack.c.l.b16 %v5315
        %v5659 = vunpack.c.l.b16 %v5317
        %v5660 = vunpack.c.l.b16 %v5319
        %v5661 = vunpack.c.l.b16 %v5321
        %v5662 = vunpack.c.l.b16 %v5323
        %v5663 = vunpack.c.l.b16 %v5325
        %v5664 = vunpack.c.l.b16 %v5327
        %v5665 = vunpack.c.l.b16 %v5329
        %v5666 = vunpack.c.l.b16 %v5331
        %v5667 = vunpack.c.l.b16 %v5333
        %v5668 = vunpack.c.l.b16 %v5335
        %v5669 = vunpack.c.l.b16 %v5337
        %v5670 = vunpack.c.l.b16 %v5339
        %v5671 = vunpack.c.l.b16 %v5341
        %v5672 = vpack.c.b16 %v5657, %v5656
        %v5673 = vpack.c.b16 %v5659, %v5658
        %v5674 = vpack.c.b16 %v5661, %v5660
        %v5675 = vpack.c.b16 %v5663, %v5662
        %v5676 = vpack.c.b16 %v5665, %v5664
        %v5677 = vpack.c.b16 %v5667, %v5666
        %v5678 = vpack.c.b16 %v5669, %v5668
        %v5679 = vpack.c.b16 %v5671, %v5670
        %5688 = vmatpush.bf16.msra.mxu0 %v5679
        %5689 = vmatpush.bf16.msra.mxu0 %v5678
        %5690 = vmatpush.bf16.msra.mxu0 %v5677
        %5691 = vmatpush.bf16.msra.mxu0 %v5676
        %5692 = vmatpush.bf16.msra.mxu0 %v5675
        %5693 = vmatpush.bf16.msra.mxu0 %v5674
        %5694 = vmatpush.bf16.msra.mxu0 %v5673
        %5695 = vmatpush.bf16.msra.mxu0 %v5672
        %5696 = vmatmul.bf16.gmra.mxu0 %v5632
        %v5697 = vpop.f32.mrf.mxu0
        %v5698 = vadd.f32 0.0, %v5697
        %v5699 = vpop.f32.mrf.mxu0
        %v5700 = vadd.f32 0.0, %v5699
        %5701 = vmatmul.bf16.gmra.mxu0 %v5633
        %v5702 = vpop.f32.mrf.mxu0
        %v5703 = vadd.f32 0.0, %v5702
        %v5704 = vpop.f32.mrf.mxu0
        %v5705 = vadd.f32 0.0, %v5704
        %5706 = vmatmul.bf16.gmra.mxu0 %v5634
        %v5707 = vpop.f32.mrf.mxu0
        %v5708 = vadd.f32 0.0, %v5707
        %v5709 = vpop.f32.mrf.mxu0
        %v5710 = vadd.f32 0.0, %v5709
        %5711 = vmatmul.bf16.gmra.mxu0 %v5635
        %v5712 = vpop.f32.mrf.mxu0
        %v5713 = vadd.f32 0.0, %v5712
        %v5714 = vpop.f32.mrf.mxu0
        %v5715 = vadd.f32 0.0, %v5714
        %5716 = vmatmul.bf16.gmra.mxu0 %v5636
        %v5717 = vpop.f32.mrf.mxu0
        %v5718 = vadd.f32 0.0, %v5717
        %v5719 = vpop.f32.mrf.mxu0
        %v5720 = vadd.f32 0.0, %v5719
        %5721 = vmatmul.bf16.gmra.mxu0 %v5637
        %v5722 = vpop.f32.mrf.mxu0
        %v5723 = vadd.f32 0.0, %v5722
        %v5724 = vpop.f32.mrf.mxu0
        %v5725 = vadd.f32 0.0, %v5724
        %5726 = vmatmul.bf16.gmra.mxu0 %v5638
        %v5727 = vpop.f32.mrf.mxu0
        %v5728 = vadd.f32 0.0, %v5727
        %v5729 = vpop.f32.mrf.mxu0
        %v5730 = vadd.f32 0.0, %v5729
        %5731 = vmatmul.bf16.gmra.mxu0 %v5639
        %v5732 = vpop.f32.mrf.mxu0
        %v5733 = vadd.f32 0.0, %v5732
        %v5734 = vpop.f32.mrf.mxu0
        %v5735 = vadd.f32 0.0, %v5734
        %5736 = vdwg.mxu0
        %v5737 = vpack.c.bf16 %v5698, %v5698
        %v5738 = vpack.c.bf16 %v5700, %v5700
        %v5739 = vpack.c.bf16 %v5703, %v5703
        %v5740 = vpack.c.bf16 %v5705, %v5705
        %v5741 = vpack.c.bf16 %v5708, %v5708
        %v5742 = vpack.c.bf16 %v5710, %v5710
        %v5743 = vpack.c.bf16 %v5713, %v5713
        %v5744 = vpack.c.bf16 %v5715, %v5715
        %v5745 = vpack.c.bf16 %v5718, %v5718
        %v5746 = vpack.c.bf16 %v5720, %v5720
        %v5747 = vpack.c.bf16 %v5723, %v5723
        %v5748 = vpack.c.bf16 %v5725, %v5725
        %v5749 = vpack.c.bf16 %v5728, %v5728
        %v5750 = vpack.c.bf16 %v5730, %v5730
        %v5751 = vpack.c.bf16 %v5733, %v5733
        %v5752 = vpack.c.bf16 %v5735, %v5735
        %5753 = vst [vmem:[#allocation2] sm:$0xf] %v5737
        %5754 = vst [vmem:[#allocation2 + $0x10] sm:$0xf] %v5738
        %5755 = vst [vmem:[#allocation2 + $0x20] sm:$0xf] %v5739
        %5756 = vst [vmem:[#allocation2 + $0x30] sm:$0xf] %v5740
        %5757 = vst [vmem:[#allocation2 + $0x40] sm:$0xf] %v5741
        %5758 = vst [vmem:[#allocation2 + $0x50] sm:$0xf] %v5742
        %5759 = vst [vmem:[#allocation2 + $0x60] sm:$0xf] %v5743
        %5760 = vst [vmem:[#allocation2 + $0x70] sm:$0xf] %v5744
        %5761 = vst [vmem:[#allocation2 + $0x80] sm:$0xf] %v5745
        %5762 = vst [vmem:[#allocation2 + $0x90] sm:$0xf] %v5746
        %5763 = vst [vmem:[#allocation2 + $0xa0] sm:$0xf] %v5747
        %5764 = vst [vmem:[#allocation2 + $0xb0] sm:$0xf] %v5748
        %5765 = vst [vmem:[#allocation2 + $0xc0] sm:$0xf] %v5749
        %5766 = vst [vmem:[#allocation2 + $0xd0] sm:$0xf] %v5750
        %5767 = vst [vmem:[#allocation2 + $0xe0] sm:$0xf] %v5751
        %5768 = vst [vmem:[#allocation2 + $0xf0] sm:$0xf] %v5752
        %v5769 = vunpack.c.h.b16 %v5247
        %v5770 = vunpack.c.h.b16 %v5249
        %v5771 = vunpack.c.h.b16 %v5251
        %v5772 = vunpack.c.h.b16 %v5253
        %v5773 = vunpack.c.h.b16 %v5255
        %v5774 = vunpack.c.h.b16 %v5257
        %v5775 = vunpack.c.h.b16 %v5259
        %v5776 = vunpack.c.h.b16 %v5261
        %v5777 = vunpack.c.h.b16 %v5263
        %v5778 = vunpack.c.h.b16 %v5265
        %v5779 = vunpack.c.h.b16 %v5267
        %v5780 = vunpack.c.h.b16 %v5269
        %v5781 = vunpack.c.h.b16 %v5271
        %v5782 = vunpack.c.h.b16 %v5273
        %v5783 = vunpack.c.h.b16 %v5275
        %v5784 = vunpack.c.h.b16 %v5277
        %v5785 = vpack.c.b16 %v5770, %v5769
        %v5786 = vpack.c.b16 %v5772, %v5771
        %v5787 = vpack.c.b16 %v5774, %v5773
        %v5788 = vpack.c.b16 %v5776, %v5775
        %v5789 = vpack.c.b16 %v5778, %v5777
        %v5790 = vpack.c.b16 %v5780, %v5779
        %v5791 = vpack.c.b16 %v5782, %v5781
        %v5792 = vpack.c.b16 %v5784, %v5783
        %v5801 = vunpack.c.h.b16 %v5279
        %v5802 = vunpack.c.h.b16 %v5281
        %v5803 = vunpack.c.h.b16 %v5283
        %v5804 = vunpack.c.h.b16 %v5285
        %v5805 = vunpack.c.h.b16 %v5287
        %v5806 = vunpack.c.h.b16 %v5289
        %v5807 = vunpack.c.h.b16 %v5291
        %v5808 = vunpack.c.h.b16 %v5293
        %v5809 = vunpack.c.h.b16 %v5295
        %v5810 = vunpack.c.h.b16 %v5297
        %v5811 = vunpack.c.h.b16 %v5299
        %v5812 = vunpack.c.h.b16 %v5301
        %v5813 = vunpack.c.h.b16 %v5303
        %v5814 = vunpack.c.h.b16 %v5305
        %v5815 = vunpack.c.h.b16 %v5307
        %v5816 = vunpack.c.h.b16 %v5309
        %v5817 = vpack.c.b16 %v5802, %v5801
        %v5818 = vpack.c.b16 %v5804, %v5803
        %v5819 = vpack.c.b16 %v5806, %v5805
        %v5820 = vpack.c.b16 %v5808, %v5807
        %v5821 = vpack.c.b16 %v5810, %v5809
        %v5822 = vpack.c.b16 %v5812, %v5811
        %v5823 = vpack.c.b16 %v5814, %v5813
        %v5824 = vpack.c.b16 %v5816, %v5815
        %5833 = vmatpush.bf16.xpose.msra.mxu0 %v5824
        %5834 = vmatpush.bf16.xpose.msra.mxu0 %v5823
        %5835 = vmatpush.bf16.xpose.msra.mxu0 %v5822
        %5836 = vmatpush.bf16.xpose.msra.mxu0 %v5821
        %5837 = vmatpush.bf16.xpose.msra.mxu0 %v5820
        %5838 = vmatpush.bf16.xpose.msra.mxu0 %v5819
        %5839 = vmatpush.bf16.xpose.msra.mxu0 %v5818
        %5840 = vmatpush.bf16.xpose.msra.mxu0 %v5817
        %5841 = vmatmul.bf16.gmra.mxu0 %v5785
        %v5842 = vpop.f32.mrf.mxu0
        %v5843 = vadd.f32 0.0, %v5842
        %v5844 = vpop.f32.mrf.mxu0
        %v5845 = vadd.f32 0.0, %v5844
        %5846 = vmatmul.bf16.gmra.mxu0 %v5786
        %v5847 = vpop.f32.mrf.mxu0
        %v5848 = vadd.f32 0.0, %v5847
        %v5849 = vpop.f32.mrf.mxu0
        %v5850 = vadd.f32 0.0, %v5849
        %5851 = vmatmul.bf16.gmra.mxu0 %v5787
        %v5852 = vpop.f32.mrf.mxu0
        %v5853 = vadd.f32 0.0, %v5852
        %v5854 = vpop.f32.mrf.mxu0
        %v5855 = vadd.f32 0.0, %v5854
        %5856 = vmatmul.bf16.gmra.mxu0 %v5788
        %v5857 = vpop.f32.mrf.mxu0
        %v5858 = vadd.f32 0.0, %v5857
        %v5859 = vpop.f32.mrf.mxu0
        %v5860 = vadd.f32 0.0, %v5859
        %5861 = vmatmul.bf16.gmra.mxu0 %v5789
        %v5862 = vpop.f32.mrf.mxu0
        %v5863 = vadd.f32 0.0, %v5862
        %v5864 = vpop.f32.mrf.mxu0
        %v5865 = vadd.f32 0.0, %v5864
        %5866 = vmatmul.bf16.gmra.mxu0 %v5790
        %v5867 = vpop.f32.mrf.mxu0
        %v5868 = vadd.f32 0.0, %v5867
        %v5869 = vpop.f32.mrf.mxu0
        %v5870 = vadd.f32 0.0, %v5869
        %5871 = vmatmul.bf16.gmra.mxu0 %v5791
        %v5872 = vpop.f32.mrf.mxu0
        %v5873 = vadd.f32 0.0, %v5872
        %v5874 = vpop.f32.mrf.mxu0
        %v5875 = vadd.f32 0.0, %v5874
        %5876 = vmatmul.bf16.gmra.mxu0 %v5792
        %v5877 = vpop.f32.mrf.mxu0
        %v5878 = vadd.f32 0.0, %v5877
        %v5879 = vpop.f32.mrf.mxu0
        %v5880 = vadd.f32 0.0, %v5879
        %5881 = vdwg.mxu0
        %5882 = vmax.xlane.f32.xlu0 %v5843
        %v5883 = vpop.xlane.xlu0 %5882
        %5884 = vmax.xlane.f32.xlu0 %v5845
        %v5885 = vpop.xlane.xlu0 %5884
        %5886 = vmax.xlane.f32.xlu0 %v5848
        %v5887 = vpop.xlane.xlu0 %5886
        %5888 = vmax.xlane.f32.xlu0 %v5850
        %v5889 = vpop.xlane.xlu0 %5888
        %5890 = vmax.xlane.f32.xlu0 %v5853
        %v5891 = vpop.xlane.xlu0 %5890
        %5892 = vmax.xlane.f32.xlu0 %v5855
        %v5893 = vpop.xlane.xlu0 %5892
        %5894 = vmax.xlane.f32.xlu0 %v5858
        %v5895 = vpop.xlane.xlu0 %5894
        %5896 = vmax.xlane.f32.xlu0 %v5860
        %v5897 = vpop.xlane.xlu0 %5896
        %5898 = vmax.xlane.f32.xlu0 %v5863
        %v5899 = vpop.xlane.xlu0 %5898
        %5900 = vmax.xlane.f32.xlu0 %v5865
        %v5901 = vpop.xlane.xlu0 %5900
        %5902 = vmax.xlane.f32.xlu0 %v5868
        %v5903 = vpop.xlane.xlu0 %5902
        %5904 = vmax.xlane.f32.xlu0 %v5870
        %v5905 = vpop.xlane.xlu0 %5904
        %5906 = vmax.xlane.f32.xlu0 %v5873
        %v5907 = vpop.xlane.xlu0 %5906
        %5908 = vmax.xlane.f32.xlu0 %v5875
        %v5909 = vpop.xlane.xlu0 %5908
        %5910 = vmax.xlane.f32.xlu0 %v5878
        %v5911 = vpop.xlane.xlu0 %5910
        %5912 = vmax.xlane.f32.xlu0 %v5880
        %v5913 = vpop.xlane.xlu0 %5912
        %v5914 = vsub.f32 %v5843, %v5883
        %v5915 = vsub.f32 %v5845, %v5885
        %v5916 = vsub.f32 %v5848, %v5887
        %v5917 = vsub.f32 %v5850, %v5889
        %v5918 = vsub.f32 %v5853, %v5891
        %v5919 = vsub.f32 %v5855, %v5893
        %v5920 = vsub.f32 %v5858, %v5895
        %v5921 = vsub.f32 %v5860, %v5897
        %v5922 = vsub.f32 %v5863, %v5899
        %v5923 = vsub.f32 %v5865, %v5901
        %v5924 = vsub.f32 %v5868, %v5903
        %v5925 = vsub.f32 %v5870, %v5905
        %v5926 = vsub.f32 %v5873, %v5907
        %v5927 = vsub.f32 %v5875, %v5909
        %v5928 = vsub.f32 %v5878, %v5911
        %v5929 = vsub.f32 %v5880, %v5913
        %v5930 = vmul.f32 %v5914, 1.442695
        %v5931 = vpow.pop %v5930
        %v5932 = vmul.f32 %v5915, 1.442695
        %v5933 = vpow.pop %v5932
        %v5934 = vmul.f32 %v5916, 1.442695
        %v5935 = vpow.pop %v5934
        %v5936 = vmul.f32 %v5917, 1.442695
        %v5937 = vpow.pop %v5936
        %v5938 = vmul.f32 %v5918, 1.442695
        %v5939 = vpow.pop %v5938
        %v5940 = vmul.f32 %v5919, 1.442695
        %v5941 = vpow.pop %v5940
        %v5942 = vmul.f32 %v5920, 1.442695
        %v5943 = vpow.pop %v5942
        %v5944 = vmul.f32 %v5921, 1.442695
        %v5945 = vpow.pop %v5944
        %v5946 = vmul.f32 %v5922, 1.442695
        %v5947 = vpow.pop %v5946
        %v5948 = vmul.f32 %v5923, 1.442695
        %v5949 = vpow.pop %v5948
        %v5950 = vmul.f32 %v5924, 1.442695
        %v5951 = vpow.pop %v5950
        %v5952 = vmul.f32 %v5925, 1.442695
        %v5953 = vpow.pop %v5952
        %v5954 = vmul.f32 %v5926, 1.442695
        %v5955 = vpow.pop %v5954
        %v5956 = vmul.f32 %v5927, 1.442695
        %v5957 = vpow.pop %v5956
        %v5958 = vmul.f32 %v5928, 1.442695
        %v5959 = vpow.pop %v5958
        %v5960 = vmul.f32 %v5929, 1.442695
        %v5961 = vpow.pop %v5960
        %5962 = vadd.xlane.f32.xlu0 %v5931
        %v5963 = vpop.xlane.xlu0 %5962
        %5964 = vadd.xlane.f32.xlu0 %v5933
        %v5965 = vpop.xlane.xlu0 %5964
        %5966 = vadd.xlane.f32.xlu0 %v5935
        %v5967 = vpop.xlane.xlu0 %5966
        %5968 = vadd.xlane.f32.xlu0 %v5937
        %v5969 = vpop.xlane.xlu0 %5968
        %5970 = vadd.xlane.f32.xlu0 %v5939
        %v5971 = vpop.xlane.xlu0 %5970
        %5972 = vadd.xlane.f32.xlu0 %v5941
        %v5973 = vpop.xlane.xlu0 %5972
        %5974 = vadd.xlane.f32.xlu0 %v5943
        %v5975 = vpop.xlane.xlu0 %5974
        %5976 = vadd.xlane.f32.xlu0 %v5945
        %v5977 = vpop.xlane.xlu0 %5976
        %5978 = vadd.xlane.f32.xlu0 %v5947
        %v5979 = vpop.xlane.xlu0 %5978
        %5980 = vadd.xlane.f32.xlu0 %v5949
        %v5981 = vpop.xlane.xlu0 %5980
        %5982 = vadd.xlane.f32.xlu0 %v5951
        %v5983 = vpop.xlane.xlu0 %5982
        %5984 = vadd.xlane.f32.xlu0 %v5953
        %v5985 = vpop.xlane.xlu0 %5984
        %5986 = vadd.xlane.f32.xlu0 %v5955
        %v5987 = vpop.xlane.xlu0 %5986
        %5988 = vadd.xlane.f32.xlu0 %v5957
        %v5989 = vpop.xlane.xlu0 %5988
        %5990 = vadd.xlane.f32.xlu0 %v5959
        %v5991 = vpop.xlane.xlu0 %5990
        %5992 = vadd.xlane.f32.xlu0 %v5961
        %v5993 = vpop.xlane.xlu0 %5992
        %v5994 = vrcp.pop %v5963
        %v5995 = vrcp.pop %v5965
        %v5996 = vrcp.pop %v5967
        %v5997 = vrcp.pop %v5969
        %v5998 = vrcp.pop %v5971
        %v5999 = vrcp.pop %v5973
        %v6000 = vrcp.pop %v5975
        %v6001 = vrcp.pop %v5977
        %v6002 = vrcp.pop %v5979
        %v6003 = vrcp.pop %v5981
        %v6004 = vrcp.pop %v5983
        %v6005 = vrcp.pop %v5985
        %v6006 = vrcp.pop %v5987
        %v6007 = vrcp.pop %v5989
        %v6008 = vrcp.pop %v5991
        %v6009 = vrcp.pop %v5993
        %v6010 = vmul.f32 %v5931, %v5994
        %v6011 = vmul.f32 %v5933, %v5995
        %v6012 = vmul.f32 %v5935, %v5996
        %v6013 = vmul.f32 %v5937, %v5997
        %v6014 = vmul.f32 %v5939, %v5998
        %v6015 = vmul.f32 %v5941, %v5999
        %v6016 = vmul.f32 %v5943, %v6000
        %v6017 = vmul.f32 %v5945, %v6001
        %v6018 = vmul.f32 %v5947, %v6002
        %v6019 = vmul.f32 %v5949, %v6003
        %v6020 = vmul.f32 %v5951, %v6004
        %v6021 = vmul.f32 %v5953, %v6005
        %v6022 = vmul.f32 %v5955, %v6006
        %v6023 = vmul.f32 %v5957, %v6007
        %v6024 = vmul.f32 %v5959, %v6008
        %v6025 = vmul.f32 %v5961, %v6009
        %v6026 = vpack.c.bf16 %v6011, %v6010
        %v6027 = vpack.c.bf16 %v6013, %v6012
        %v6028 = vpack.c.bf16 %v6015, %v6014
        %v6029 = vpack.c.bf16 %v6017, %v6016
        %v6030 = vpack.c.bf16 %v6019, %v6018
        %v6031 = vpack.c.bf16 %v6021, %v6020
        %v6032 = vpack.c.bf16 %v6023, %v6022
        %v6033 = vpack.c.bf16 %v6025, %v6024
        %v6034 = vunpack.c.h.b16 %v5311
        %v6035 = vunpack.c.h.b16 %v5313
        %v6036 = vunpack.c.h.b16 %v5315
        %v6037 = vunpack.c.h.b16 %v5317
        %v6038 = vunpack.c.h.b16 %v5319
        %v6039 = vunpack.c.h.b16 %v5321
        %v6040 = vunpack.c.h.b16 %v5323
        %v6041 = vunpack.c.h.b16 %v5325
        %v6042 = vunpack.c.h.b16 %v5327
        %v6043 = vunpack.c.h.b16 %v5329
        %v6044 = vunpack.c.h.b16 %v5331
        %v6045 = vunpack.c.h.b16 %v5333
        %v6046 = vunpack.c.h.b16 %v5335
        %v6047 = vunpack.c.h.b16 %v5337
        %v6048 = vunpack.c.h.b16 %v5339
        %v6049 = vunpack.c.h.b16 %v5341
        %v6050 = vpack.c.b16 %v6035, %v6034
        %v6051 = vpack.c.b16 %v6037, %v6036
        %v6052 = vpack.c.b16 %v6039, %v6038
        %v6053 = vpack.c.b16 %v6041, %v6040
        %v6054 = vpack.c.b16 %v6043, %v6042
        %v6055 = vpack.c.b16 %v6045, %v6044
        %v6056 = vpack.c.b16 %v6047, %v6046
        %v6057 = vpack.c.b16 %v6049, %v6048
        %6066 = vmatpush.bf16.msra.mxu0 %v6057
        %6067 = vmatpush.bf16.msra.mxu0 %v6056
        %6068 = vmatpush.bf16.msra.mxu0 %v6055
        %6069 = vmatpush.bf16.msra.mxu0 %v6054
        %6070 = vmatpush.bf16.msra.mxu0 %v6053
        %6071 = vmatpush.bf16.msra.mxu0 %v6052
        %6072 = vmatpush.bf16.msra.mxu0 %v6051
        %6073 = vmatpush.bf16.msra.mxu0 %v6050
        %6074 = vmatmul.bf16.gmra.mxu0 %v6026
        %v6075 = vpop.f32.mrf.mxu0
        %v6076 = vadd.f32 0.0, %v6075
        %v6077 = vpop.f32.mrf.mxu0
        %v6078 = vadd.f32 0.0, %v6077
        %6079 = vmatmul.bf16.gmra.mxu0 %v6027
        %v6080 = vpop.f32.mrf.mxu0
        %v6081 = vadd.f32 0.0, %v6080
        %v6082 = vpop.f32.mrf.mxu0
        %v6083 = vadd.f32 0.0, %v6082
        %6084 = vmatmul.bf16.gmra.mxu0 %v6028
        %v6085 = vpop.f32.mrf.mxu0
        %v6086 = vadd.f32 0.0, %v6085
        %v6087 = vpop.f32.mrf.mxu0
        %v6088 = vadd.f32 0.0, %v6087
        %6089 = vmatmul.bf16.gmra.mxu0 %v6029
        %v6090 = vpop.f32.mrf.mxu0
        %v6091 = vadd.f32 0.0, %v6090
        %v6092 = vpop.f32.mrf.mxu0
        %v6093 = vadd.f32 0.0, %v6092
        %6094 = vmatmul.bf16.gmra.mxu0 %v6030
        %v6095 = vpop.f32.mrf.mxu0
        %v6096 = vadd.f32 0.0, %v6095
        %v6097 = vpop.f32.mrf.mxu0
        %v6098 = vadd.f32 0.0, %v6097
        %6099 = vmatmul.bf16.gmra.mxu0 %v6031
        %v6100 = vpop.f32.mrf.mxu0
        %v6101 = vadd.f32 0.0, %v6100
        %v6102 = vpop.f32.mrf.mxu0
        %v6103 = vadd.f32 0.0, %v6102
        %6104 = vmatmul.bf16.gmra.mxu0 %v6032
        %v6105 = vpop.f32.mrf.mxu0
        %v6106 = vadd.f32 0.0, %v6105
        %v6107 = vpop.f32.mrf.mxu0
        %v6108 = vadd.f32 0.0, %v6107
        %6109 = vmatmul.bf16.gmra.mxu0 %v6033
        %v6110 = vpop.f32.mrf.mxu0
        %v6111 = vadd.f32 0.0, %v6110
        %v6112 = vpop.f32.mrf.mxu0
        %v6113 = vadd.f32 0.0, %v6112
        %6114 = vdwg.mxu0
        %v6115 = vpack.c.bf16 %v6076, %v6076
        %v6116 = vpack.c.bf16 %v6078, %v6078
        %v6117 = vpack.c.bf16 %v6081, %v6081
        %v6118 = vpack.c.bf16 %v6083, %v6083
        %v6119 = vpack.c.bf16 %v6086, %v6086
        %v6120 = vpack.c.bf16 %v6088, %v6088
        %v6121 = vpack.c.bf16 %v6091, %v6091
        %v6122 = vpack.c.bf16 %v6093, %v6093
        %v6123 = vpack.c.bf16 %v6096, %v6096
        %v6124 = vpack.c.bf16 %v6098, %v6098
        %v6125 = vpack.c.bf16 %v6101, %v6101
        %v6126 = vpack.c.bf16 %v6103, %v6103
        %v6127 = vpack.c.bf16 %v6106, %v6106
        %v6128 = vpack.c.bf16 %v6108, %v6108
        %v6129 = vpack.c.bf16 %v6111, %v6111
        %v6130 = vpack.c.bf16 %v6113, %v6113
        %6131 = vst [vmem:[#allocation2 + $0x4] sm:$0xf] %v6115
        %6132 = vst [vmem:[#allocation2 + $0x14] sm:$0xf] %v6116
        %6133 = vst [vmem:[#allocation2 + $0x24] sm:$0xf] %v6117
        %6134 = vst [vmem:[#allocation2 + $0x34] sm:$0xf] %v6118
        %6135 = vst [vmem:[#allocation2 + $0x44] sm:$0xf] %v6119
        %6136 = vst [vmem:[#allocation2 + $0x54] sm:$0xf] %v6120
        %6137 = vst [vmem:[#allocation2 + $0x64] sm:$0xf] %v6121
        %6138 = vst [vmem:[#allocation2 + $0x74] sm:$0xf] %v6122
        %6139 = vst [vmem:[#allocation2 + $0x84] sm:$0xf] %v6123
        %6140 = vst [vmem:[#allocation2 + $0x94] sm:$0xf] %v6124
        %6141 = vst [vmem:[#allocation2 + $0xa4] sm:$0xf] %v6125
        %6142 = vst [vmem:[#allocation2 + $0xb4] sm:$0xf] %v6126
        %6143 = vst [vmem:[#allocation2 + $0xc4] sm:$0xf] %v6127
        %6144 = vst [vmem:[#allocation2 + $0xd4] sm:$0xf] %v6128
        %6145 = vst [vmem:[#allocation2 + $0xe4] sm:$0xf] %v6129
        %6146 = vst [vmem:[#allocation2 + $0xf4] sm:$0xf] %v6130
        %v6163 = vunpack.c.l.b16 %v5248
        %v6164 = vunpack.c.l.b16 %v5250
        %v6165 = vunpack.c.l.b16 %v5252
        %v6166 = vunpack.c.l.b16 %v5254
        %v6167 = vunpack.c.l.b16 %v5256
        %v6168 = vunpack.c.l.b16 %v5258
        %v6169 = vunpack.c.l.b16 %v5260
        %v6170 = vunpack.c.l.b16 %v5262
        %v6171 = vunpack.c.l.b16 %v5264
        %v6172 = vunpack.c.l.b16 %v5266
        %v6173 = vunpack.c.l.b16 %v5268
        %v6174 = vunpack.c.l.b16 %v5270
        %v6175 = vunpack.c.l.b16 %v5272
        %v6176 = vunpack.c.l.b16 %v5274
        %v6177 = vunpack.c.l.b16 %v5276
        %v6178 = vunpack.c.l.b16 %v5278
        %v6179 = vpack.c.b16 %v6164, %v6163
        %v6180 = vpack.c.b16 %v6166, %v6165
        %v6181 = vpack.c.b16 %v6168, %v6167
        %v6182 = vpack.c.b16 %v6170, %v6169
        %v6183 = vpack.c.b16 %v6172, %v6171
        %v6184 = vpack.c.b16 %v6174, %v6173
        %v6185 = vpack.c.b16 %v6176, %v6175
        %v6186 = vpack.c.b16 %v6178, %v6177
        %v6211 = vunpack.c.l.b16 %v5280
        %v6212 = vunpack.c.l.b16 %v5282
        %v6213 = vunpack.c.l.b16 %v5284
        %v6214 = vunpack.c.l.b16 %v5286
        %v6215 = vunpack.c.l.b16 %v5288
        %v6216 = vunpack.c.l.b16 %v5290
        %v6217 = vunpack.c.l.b16 %v5292
        %v6218 = vunpack.c.l.b16 %v5294
        %v6219 = vunpack.c.l.b16 %v5296
        %v6220 = vunpack.c.l.b16 %v5298
        %v6221 = vunpack.c.l.b16 %v5300
        %v6222 = vunpack.c.l.b16 %v5302
        %v6223 = vunpack.c.l.b16 %v5304
        %v6224 = vunpack.c.l.b16 %v5306
        %v6225 = vunpack.c.l.b16 %v5308
        %v6226 = vunpack.c.l.b16 %v5310
        %v6227 = vpack.c.b16 %v6212, %v6211
        %v6228 = vpack.c.b16 %v6214, %v6213
        %v6229 = vpack.c.b16 %v6216, %v6215
        %v6230 = vpack.c.b16 %v6218, %v6217
        %v6231 = vpack.c.b16 %v6220, %v6219
        %v6232 = vpack.c.b16 %v6222, %v6221
        %v6233 = vpack.c.b16 %v6224, %v6223
        %v6234 = vpack.c.b16 %v6226, %v6225
        %6243 = vmatpush.bf16.xpose.msra.mxu0 %v6234
        %6244 = vmatpush.bf16.xpose.msra.mxu0 %v6233
        %6245 = vmatpush.bf16.xpose.msra.mxu0 %v6232
        %6246 = vmatpush.bf16.xpose.msra.mxu0 %v6231
        %6247 = vmatpush.bf16.xpose.msra.mxu0 %v6230
        %6248 = vmatpush.bf16.xpose.msra.mxu0 %v6229
        %6249 = vmatpush.bf16.xpose.msra.mxu0 %v6228
        %6250 = vmatpush.bf16.xpose.msra.mxu0 %v6227
        %6251 = vmatmul.bf16.gmra.mxu0 %v6179
        %v6252 = vpop.f32.mrf.mxu0
        %v6253 = vadd.f32 0.0, %v6252
        %v6254 = vpop.f32.mrf.mxu0
        %v6255 = vadd.f32 0.0, %v6254
        %6256 = vmatmul.bf16.gmra.mxu0 %v6180
        %v6257 = vpop.f32.mrf.mxu0
        %v6258 = vadd.f32 0.0, %v6257
        %v6259 = vpop.f32.mrf.mxu0
        %v6260 = vadd.f32 0.0, %v6259
        %6261 = vmatmul.bf16.gmra.mxu0 %v6181
        %v6262 = vpop.f32.mrf.mxu0
        %v6263 = vadd.f32 0.0, %v6262
        %v6264 = vpop.f32.mrf.mxu0
        %v6265 = vadd.f32 0.0, %v6264
        %6266 = vmatmul.bf16.gmra.mxu0 %v6182
        %v6267 = vpop.f32.mrf.mxu0
        %v6268 = vadd.f32 0.0, %v6267
        %v6269 = vpop.f32.mrf.mxu0
        %v6270 = vadd.f32 0.0, %v6269
        %6271 = vmatmul.bf16.gmra.mxu0 %v6183
        %v6272 = vpop.f32.mrf.mxu0
        %v6273 = vadd.f32 0.0, %v6272
        %v6274 = vpop.f32.mrf.mxu0
        %v6275 = vadd.f32 0.0, %v6274
        %6276 = vmatmul.bf16.gmra.mxu0 %v6184
        %v6277 = vpop.f32.mrf.mxu0
        %v6278 = vadd.f32 0.0, %v6277
        %v6279 = vpop.f32.mrf.mxu0
        %v6280 = vadd.f32 0.0, %v6279
        %6281 = vmatmul.bf16.gmra.mxu0 %v6185
        %v6282 = vpop.f32.mrf.mxu0
        %v6283 = vadd.f32 0.0, %v6282
        %v6284 = vpop.f32.mrf.mxu0
        %v6285 = vadd.f32 0.0, %v6284
        %6286 = vmatmul.bf16.gmra.mxu0 %v6186
        %v6287 = vpop.f32.mrf.mxu0
        %v6288 = vadd.f32 0.0, %v6287
        %v6289 = vpop.f32.mrf.mxu0
        %v6290 = vadd.f32 0.0, %v6289
        %6291 = vdwg.mxu0
        %6292 = vmax.xlane.f32.xlu0 %v6253
        %v6293 = vpop.xlane.xlu0 %6292
        %6294 = vmax.xlane.f32.xlu0 %v6255
        %v6295 = vpop.xlane.xlu0 %6294
        %6296 = vmax.xlane.f32.xlu0 %v6258
        %v6297 = vpop.xlane.xlu0 %6296
        %6298 = vmax.xlane.f32.xlu0 %v6260
        %v6299 = vpop.xlane.xlu0 %6298
        %6300 = vmax.xlane.f32.xlu0 %v6263
        %v6301 = vpop.xlane.xlu0 %6300
        %6302 = vmax.xlane.f32.xlu0 %v6265
        %v6303 = vpop.xlane.xlu0 %6302
        %6304 = vmax.xlane.f32.xlu0 %v6268
        %v6305 = vpop.xlane.xlu0 %6304
        %6306 = vmax.xlane.f32.xlu0 %v6270
        %v6307 = vpop.xlane.xlu0 %6306
        %6308 = vmax.xlane.f32.xlu0 %v6273
        %v6309 = vpop.xlane.xlu0 %6308
        %6310 = vmax.xlane.f32.xlu0 %v6275
        %v6311 = vpop.xlane.xlu0 %6310
        %6312 = vmax.xlane.f32.xlu0 %v6278
        %v6313 = vpop.xlane.xlu0 %6312
        %6314 = vmax.xlane.f32.xlu0 %v6280
        %v6315 = vpop.xlane.xlu0 %6314
        %6316 = vmax.xlane.f32.xlu0 %v6283
        %v6317 = vpop.xlane.xlu0 %6316
        %6318 = vmax.xlane.f32.xlu0 %v6285
        %v6319 = vpop.xlane.xlu0 %6318
        %6320 = vmax.xlane.f32.xlu0 %v6288
        %v6321 = vpop.xlane.xlu0 %6320
        %6322 = vmax.xlane.f32.xlu0 %v6290
        %v6323 = vpop.xlane.xlu0 %6322
        %v6324 = vsub.f32 %v6253, %v6293
        %v6325 = vsub.f32 %v6255, %v6295
        %v6326 = vsub.f32 %v6258, %v6297
        %v6327 = vsub.f32 %v6260, %v6299
        %v6328 = vsub.f32 %v6263, %v6301
        %v6329 = vsub.f32 %v6265, %v6303
        %v6330 = vsub.f32 %v6268, %v6305
        %v6331 = vsub.f32 %v6270, %v6307
        %v6332 = vsub.f32 %v6273, %v6309
        %v6333 = vsub.f32 %v6275, %v6311
        %v6334 = vsub.f32 %v6278, %v6313
        %v6335 = vsub.f32 %v6280, %v6315
        %v6336 = vsub.f32 %v6283, %v6317
        %v6337 = vsub.f32 %v6285, %v6319
        %v6338 = vsub.f32 %v6288, %v6321
        %v6339 = vsub.f32 %v6290, %v6323
        %v6340 = vmul.f32 %v6324, 1.442695
        %v6341 = vpow.pop %v6340
        %v6342 = vmul.f32 %v6325, 1.442695
        %v6343 = vpow.pop %v6342
        %v6344 = vmul.f32 %v6326, 1.442695
        %v6345 = vpow.pop %v6344
        %v6346 = vmul.f32 %v6327, 1.442695
        %v6347 = vpow.pop %v6346
        %v6348 = vmul.f32 %v6328, 1.442695
        %v6349 = vpow.pop %v6348
        %v6350 = vmul.f32 %v6329, 1.442695
        %v6351 = vpow.pop %v6350
        %v6352 = vmul.f32 %v6330, 1.442695
        %v6353 = vpow.pop %v6352
        %v6354 = vmul.f32 %v6331, 1.442695
        %v6355 = vpow.pop %v6354
        %v6356 = vmul.f32 %v6332, 1.442695
        %v6357 = vpow.pop %v6356
        %v6358 = vmul.f32 %v6333, 1.442695
        %v6359 = vpow.pop %v6358
        %v6360 = vmul.f32 %v6334, 1.442695
        %v6361 = vpow.pop %v6360
        %v6362 = vmul.f32 %v6335, 1.442695
        %v6363 = vpow.pop %v6362
        %v6364 = vmul.f32 %v6336, 1.442695
        %v6365 = vpow.pop %v6364
        %v6366 = vmul.f32 %v6337, 1.442695
        %v6367 = vpow.pop %v6366
        %v6368 = vmul.f32 %v6338, 1.442695
        %v6369 = vpow.pop %v6368
        %v6370 = vmul.f32 %v6339, 1.442695
        %v6371 = vpow.pop %v6370
        %6372 = vadd.xlane.f32.xlu0 %v6341
        %v6373 = vpop.xlane.xlu0 %6372
        %6374 = vadd.xlane.f32.xlu0 %v6343
        %v6375 = vpop.xlane.xlu0 %6374
        %6376 = vadd.xlane.f32.xlu0 %v6345
        %v6377 = vpop.xlane.xlu0 %6376
        %6378 = vadd.xlane.f32.xlu0 %v6347
        %v6379 = vpop.xlane.xlu0 %6378
        %6380 = vadd.xlane.f32.xlu0 %v6349
        %v6381 = vpop.xlane.xlu0 %6380
        %6382 = vadd.xlane.f32.xlu0 %v6351
        %v6383 = vpop.xlane.xlu0 %6382
        %6384 = vadd.xlane.f32.xlu0 %v6353
        %v6385 = vpop.xlane.xlu0 %6384
        %6386 = vadd.xlane.f32.xlu0 %v6355
        %v6387 = vpop.xlane.xlu0 %6386
        %6388 = vadd.xlane.f32.xlu0 %v6357
        %v6389 = vpop.xlane.xlu0 %6388
        %6390 = vadd.xlane.f32.xlu0 %v6359
        %v6391 = vpop.xlane.xlu0 %6390
        %6392 = vadd.xlane.f32.xlu0 %v6361
        %v6393 = vpop.xlane.xlu0 %6392
        %6394 = vadd.xlane.f32.xlu0 %v6363
        %v6395 = vpop.xlane.xlu0 %6394
        %6396 = vadd.xlane.f32.xlu0 %v6365
        %v6397 = vpop.xlane.xlu0 %6396
        %6398 = vadd.xlane.f32.xlu0 %v6367
        %v6399 = vpop.xlane.xlu0 %6398
        %6400 = vadd.xlane.f32.xlu0 %v6369
        %v6401 = vpop.xlane.xlu0 %6400
        %6402 = vadd.xlane.f32.xlu0 %v6371
        %v6403 = vpop.xlane.xlu0 %6402
        %v6404 = vrcp.pop %v6373
        %v6405 = vrcp.pop %v6375
        %v6406 = vrcp.pop %v6377
        %v6407 = vrcp.pop %v6379
        %v6408 = vrcp.pop %v6381
        %v6409 = vrcp.pop %v6383
        %v6410 = vrcp.pop %v6385
        %v6411 = vrcp.pop %v6387
        %v6412 = vrcp.pop %v6389
        %v6413 = vrcp.pop %v6391
        %v6414 = vrcp.pop %v6393
        %v6415 = vrcp.pop %v6395
        %v6416 = vrcp.pop %v6397
        %v6417 = vrcp.pop %v6399
        %v6418 = vrcp.pop %v6401
        %v6419 = vrcp.pop %v6403
        %v6420 = vmul.f32 %v6341, %v6404
        %v6421 = vmul.f32 %v6343, %v6405
        %v6422 = vmul.f32 %v6345, %v6406
        %v6423 = vmul.f32 %v6347, %v6407
        %v6424 = vmul.f32 %v6349, %v6408
        %v6425 = vmul.f32 %v6351, %v6409
        %v6426 = vmul.f32 %v6353, %v6410
        %v6427 = vmul.f32 %v6355, %v6411
        %v6428 = vmul.f32 %v6357, %v6412
        %v6429 = vmul.f32 %v6359, %v6413
        %v6430 = vmul.f32 %v6361, %v6414
        %v6431 = vmul.f32 %v6363, %v6415
        %v6432 = vmul.f32 %v6365, %v6416
        %v6433 = vmul.f32 %v6367, %v6417
        %v6434 = vmul.f32 %v6369, %v6418
        %v6435 = vmul.f32 %v6371, %v6419
        %v6436 = vpack.c.bf16 %v6421, %v6420
        %v6437 = vpack.c.bf16 %v6423, %v6422
        %v6438 = vpack.c.bf16 %v6425, %v6424
        %v6439 = vpack.c.bf16 %v6427, %v6426
        %v6440 = vpack.c.bf16 %v6429, %v6428
        %v6441 = vpack.c.bf16 %v6431, %v6430
        %v6442 = vpack.c.bf16 %v6433, %v6432
        %v6443 = vpack.c.bf16 %v6435, %v6434
        %v6460 = vunpack.c.l.b16 %v5312
        %v6461 = vunpack.c.l.b16 %v5314
        %v6462 = vunpack.c.l.b16 %v5316
        %v6463 = vunpack.c.l.b16 %v5318
        %v6464 = vunpack.c.l.b16 %v5320
        %v6465 = vunpack.c.l.b16 %v5322
        %v6466 = vunpack.c.l.b16 %v5324
        %v6467 = vunpack.c.l.b16 %v5326
        %v6468 = vunpack.c.l.b16 %v5328
        %v6469 = vunpack.c.l.b16 %v5330
        %v6470 = vunpack.c.l.b16 %v5332
        %v6471 = vunpack.c.l.b16 %v5334
        %v6472 = vunpack.c.l.b16 %v5336
        %v6473 = vunpack.c.l.b16 %v5338
        %v6474 = vunpack.c.l.b16 %v5340
        %v6475 = vunpack.c.l.b16 %v5342
        %v6476 = vpack.c.b16 %v6461, %v6460
        %v6477 = vpack.c.b16 %v6463, %v6462
        %v6478 = vpack.c.b16 %v6465, %v6464
        %v6479 = vpack.c.b16 %v6467, %v6466
        %v6480 = vpack.c.b16 %v6469, %v6468
        %v6481 = vpack.c.b16 %v6471, %v6470
        %v6482 = vpack.c.b16 %v6473, %v6472
        %v6483 = vpack.c.b16 %v6475, %v6474
        %6492 = vmatpush.bf16.msra.mxu0 %v6483
        %6493 = vmatpush.bf16.msra.mxu0 %v6482
        %6494 = vmatpush.bf16.msra.mxu0 %v6481
        %6495 = vmatpush.bf16.msra.mxu0 %v6480
        %6496 = vmatpush.bf16.msra.mxu0 %v6479
        %6497 = vmatpush.bf16.msra.mxu0 %v6478
        %6498 = vmatpush.bf16.msra.mxu0 %v6477
        %6499 = vmatpush.bf16.msra.mxu0 %v6476
        %6500 = vmatmul.bf16.gmra.mxu0 %v6436
        %v6501 = vpop.f32.mrf.mxu0
        %v6502 = vadd.f32 0.0, %v6501
        %v6503 = vpop.f32.mrf.mxu0
        %v6504 = vadd.f32 0.0, %v6503
        %6505 = vmatmul.bf16.gmra.mxu0 %v6437
        %v6506 = vpop.f32.mrf.mxu0
        %v6507 = vadd.f32 0.0, %v6506
        %v6508 = vpop.f32.mrf.mxu0
        %v6509 = vadd.f32 0.0, %v6508
        %6510 = vmatmul.bf16.gmra.mxu0 %v6438
        %v6511 = vpop.f32.mrf.mxu0
        %v6512 = vadd.f32 0.0, %v6511
        %v6513 = vpop.f32.mrf.mxu0
        %v6514 = vadd.f32 0.0, %v6513
        %6515 = vmatmul.bf16.gmra.mxu0 %v6439
        %v6516 = vpop.f32.mrf.mxu0
        %v6517 = vadd.f32 0.0, %v6516
        %v6518 = vpop.f32.mrf.mxu0
        %v6519 = vadd.f32 0.0, %v6518
        %6520 = vmatmul.bf16.gmra.mxu0 %v6440
        %v6521 = vpop.f32.mrf.mxu0
        %v6522 = vadd.f32 0.0, %v6521
        %v6523 = vpop.f32.mrf.mxu0
        %v6524 = vadd.f32 0.0, %v6523
        %6525 = vmatmul.bf16.gmra.mxu0 %v6441
        %v6526 = vpop.f32.mrf.mxu0
        %v6527 = vadd.f32 0.0, %v6526
        %v6528 = vpop.f32.mrf.mxu0
        %v6529 = vadd.f32 0.0, %v6528
        %6530 = vmatmul.bf16.gmra.mxu0 %v6442
        %v6531 = vpop.f32.mrf.mxu0
        %v6532 = vadd.f32 0.0, %v6531
        %v6533 = vpop.f32.mrf.mxu0
        %v6534 = vadd.f32 0.0, %v6533
        %6535 = vmatmul.bf16.gmra.mxu0 %v6443
        %v6536 = vpop.f32.mrf.mxu0
        %v6537 = vadd.f32 0.0, %v6536
        %v6538 = vpop.f32.mrf.mxu0
        %v6539 = vadd.f32 0.0, %v6538
        %6540 = vdwg.mxu0
        %v6541 = vpack.c.bf16 %v6502, %v6502
        %v6542 = vpack.c.bf16 %v6504, %v6504
        %v6543 = vpack.c.bf16 %v6507, %v6507
        %v6544 = vpack.c.bf16 %v6509, %v6509
        %v6545 = vpack.c.bf16 %v6512, %v6512
        %v6546 = vpack.c.bf16 %v6514, %v6514
        %v6547 = vpack.c.bf16 %v6517, %v6517
        %v6548 = vpack.c.bf16 %v6519, %v6519
        %v6549 = vpack.c.bf16 %v6522, %v6522
        %v6550 = vpack.c.bf16 %v6524, %v6524
        %v6551 = vpack.c.bf16 %v6527, %v6527
        %v6552 = vpack.c.bf16 %v6529, %v6529
        %v6553 = vpack.c.bf16 %v6532, %v6532
        %v6554 = vpack.c.bf16 %v6534, %v6534
        %v6555 = vpack.c.bf16 %v6537, %v6537
        %v6556 = vpack.c.bf16 %v6539, %v6539
        %6557 = vst [vmem:[#allocation2 + $0x8] sm:$0xf] %v6541
        %6558 = vst [vmem:[#allocation2 + $0x18] sm:$0xf] %v6542
        %6559 = vst [vmem:[#allocation2 + $0x28] sm:$0xf] %v6543
        %6560 = vst [vmem:[#allocation2 + $0x38] sm:$0xf] %v6544
        %6561 = vst [vmem:[#allocation2 + $0x48] sm:$0xf] %v6545
        %6562 = vst [vmem:[#allocation2 + $0x58] sm:$0xf] %v6546
        %6563 = vst [vmem:[#allocation2 + $0x68] sm:$0xf] %v6547
        %6564 = vst [vmem:[#allocation2 + $0x78] sm:$0xf] %v6548
        %6565 = vst [vmem:[#allocation2 + $0x88] sm:$0xf] %v6549
        %6566 = vst [vmem:[#allocation2 + $0x98] sm:$0xf] %v6550
        %6567 = vst [vmem:[#allocation2 + $0xa8] sm:$0xf] %v6551
        %6568 = vst [vmem:[#allocation2 + $0xb8] sm:$0xf] %v6552
        %6569 = vst [vmem:[#allocation2 + $0xc8] sm:$0xf] %v6553
        %6570 = vst [vmem:[#allocation2 + $0xd8] sm:$0xf] %v6554
        %6571 = vst [vmem:[#allocation2 + $0xe8] sm:$0xf] %v6555
        %6572 = vst [vmem:[#allocation2 + $0xf8] sm:$0xf] %v6556
        %v6573 = vunpack.c.h.b16 %v5248
        %v6574 = vunpack.c.h.b16 %v5250
        %v6575 = vunpack.c.h.b16 %v5252
        %v6576 = vunpack.c.h.b16 %v5254
        %v6577 = vunpack.c.h.b16 %v5256
        %v6578 = vunpack.c.h.b16 %v5258
        %v6579 = vunpack.c.h.b16 %v5260
        %v6580 = vunpack.c.h.b16 %v5262
        %v6581 = vunpack.c.h.b16 %v5264
        %v6582 = vunpack.c.h.b16 %v5266
        %v6583 = vunpack.c.h.b16 %v5268
        %v6584 = vunpack.c.h.b16 %v5270
        %v6585 = vunpack.c.h.b16 %v5272
        %v6586 = vunpack.c.h.b16 %v5274
        %v6587 = vunpack.c.h.b16 %v5276
        %v6588 = vunpack.c.h.b16 %v5278
        %v6589 = vpack.c.b16 %v6574, %v6573
        %v6590 = vpack.c.b16 %v6576, %v6575
        %v6591 = vpack.c.b16 %v6578, %v6577
        %v6592 = vpack.c.b16 %v6580, %v6579
        %v6593 = vpack.c.b16 %v6582, %v6581
        %v6594 = vpack.c.b16 %v6584, %v6583
        %v6595 = vpack.c.b16 %v6586, %v6585
        %v6596 = vpack.c.b16 %v6588, %v6587
        %v6605 = vunpack.c.h.b16 %v5280
        %v6606 = vunpack.c.h.b16 %v5282
        %v6607 = vunpack.c.h.b16 %v5284
        %v6608 = vunpack.c.h.b16 %v5286
        %v6609 = vunpack.c.h.b16 %v5288
        %v6610 = vunpack.c.h.b16 %v5290
        %v6611 = vunpack.c.h.b16 %v5292
        %v6612 = vunpack.c.h.b16 %v5294
        %v6613 = vunpack.c.h.b16 %v5296
        %v6614 = vunpack.c.h.b16 %v5298
        %v6615 = vunpack.c.h.b16 %v5300
        %v6616 = vunpack.c.h.b16 %v5302
        %v6617 = vunpack.c.h.b16 %v5304
        %v6618 = vunpack.c.h.b16 %v5306
        %v6619 = vunpack.c.h.b16 %v5308
        %v6620 = vunpack.c.h.b16 %v5310
        %v6621 = vpack.c.b16 %v6606, %v6605
        %v6622 = vpack.c.b16 %v6608, %v6607
        %v6623 = vpack.c.b16 %v6610, %v6609
        %v6624 = vpack.c.b16 %v6612, %v6611
        %v6625 = vpack.c.b16 %v6614, %v6613
        %v6626 = vpack.c.b16 %v6616, %v6615
        %v6627 = vpack.c.b16 %v6618, %v6617
        %v6628 = vpack.c.b16 %v6620, %v6619
        %6637 = vmatpush.bf16.xpose.msra.mxu0 %v6628
        %6638 = vmatpush.bf16.xpose.msra.mxu0 %v6627
        %6639 = vmatpush.bf16.xpose.msra.mxu0 %v6626
        %6640 = vmatpush.bf16.xpose.msra.mxu0 %v6625
        %6641 = vmatpush.bf16.xpose.msra.mxu0 %v6624
        %6642 = vmatpush.bf16.xpose.msra.mxu0 %v6623
        %6643 = vmatpush.bf16.xpose.msra.mxu0 %v6622
        %6644 = vmatpush.bf16.xpose.msra.mxu0 %v6621
        %6645 = vmatmul.bf16.gmra.mxu0 %v6589
        %v6646 = vpop.f32.mrf.mxu0
        %v6647 = vadd.f32 0.0, %v6646
        %v6648 = vpop.f32.mrf.mxu0
        %v6649 = vadd.f32 0.0, %v6648
        %6650 = vmatmul.bf16.gmra.mxu0 %v6590
        %v6651 = vpop.f32.mrf.mxu0
        %v6652 = vadd.f32 0.0, %v6651
        %v6653 = vpop.f32.mrf.mxu0
        %v6654 = vadd.f32 0.0, %v6653
        %6655 = vmatmul.bf16.gmra.mxu0 %v6591
        %v6656 = vpop.f32.mrf.mxu0
        %v6657 = vadd.f32 0.0, %v6656
        %v6658 = vpop.f32.mrf.mxu0
        %v6659 = vadd.f32 0.0, %v6658
        %6660 = vmatmul.bf16.gmra.mxu0 %v6592
        %v6661 = vpop.f32.mrf.mxu0
        %v6662 = vadd.f32 0.0, %v6661
        %v6663 = vpop.f32.mrf.mxu0
        %v6664 = vadd.f32 0.0, %v6663
        %6665 = vmatmul.bf16.gmra.mxu0 %v6593
        %v6666 = vpop.f32.mrf.mxu0
        %v6667 = vadd.f32 0.0, %v6666
        %v6668 = vpop.f32.mrf.mxu0
        %v6669 = vadd.f32 0.0, %v6668
        %6670 = vmatmul.bf16.gmra.mxu0 %v6594
        %v6671 = vpop.f32.mrf.mxu0
        %v6672 = vadd.f32 0.0, %v6671
        %v6673 = vpop.f32.mrf.mxu0
        %v6674 = vadd.f32 0.0, %v6673
        %6675 = vmatmul.bf16.gmra.mxu0 %v6595
        %v6676 = vpop.f32.mrf.mxu0
        %v6677 = vadd.f32 0.0, %v6676
        %v6678 = vpop.f32.mrf.mxu0
        %v6679 = vadd.f32 0.0, %v6678
        %6680 = vmatmul.bf16.gmra.mxu0 %v6596
        %v6681 = vpop.f32.mrf.mxu0
        %v6682 = vadd.f32 0.0, %v6681
        %v6683 = vpop.f32.mrf.mxu0
        %v6684 = vadd.f32 0.0, %v6683
        %6685 = vdwg.mxu0
        %6686 = vmax.xlane.f32.xlu0 %v6647
        %v6687 = vpop.xlane.xlu0 %6686
        %6688 = vmax.xlane.f32.xlu0 %v6649
        %v6689 = vpop.xlane.xlu0 %6688
        %6690 = vmax.xlane.f32.xlu0 %v6652
        %v6691 = vpop.xlane.xlu0 %6690
        %6692 = vmax.xlane.f32.xlu0 %v6654
        %v6693 = vpop.xlane.xlu0 %6692
        %6694 = vmax.xlane.f32.xlu0 %v6657
        %v6695 = vpop.xlane.xlu0 %6694
        %6696 = vmax.xlane.f32.xlu0 %v6659
        %v6697 = vpop.xlane.xlu0 %6696
        %6698 = vmax.xlane.f32.xlu0 %v6662
        %v6699 = vpop.xlane.xlu0 %6698
        %6700 = vmax.xlane.f32.xlu0 %v6664
        %v6701 = vpop.xlane.xlu0 %6700
        %6702 = vmax.xlane.f32.xlu0 %v6667
        %v6703 = vpop.xlane.xlu0 %6702
        %6704 = vmax.xlane.f32.xlu0 %v6669
        %v6705 = vpop.xlane.xlu0 %6704
        %6706 = vmax.xlane.f32.xlu0 %v6672
        %v6707 = vpop.xlane.xlu0 %6706
        %6708 = vmax.xlane.f32.xlu0 %v6674
        %v6709 = vpop.xlane.xlu0 %6708
        %6710 = vmax.xlane.f32.xlu0 %v6677
        %v6711 = vpop.xlane.xlu0 %6710
        %6712 = vmax.xlane.f32.xlu0 %v6679
        %v6713 = vpop.xlane.xlu0 %6712
        %6714 = vmax.xlane.f32.xlu0 %v6682
        %v6715 = vpop.xlane.xlu0 %6714
        %6716 = vmax.xlane.f32.xlu0 %v6684
        %v6717 = vpop.xlane.xlu0 %6716
        %v6718 = vsub.f32 %v6647, %v6687
        %v6719 = vsub.f32 %v6649, %v6689
        %v6720 = vsub.f32 %v6652, %v6691
        %v6721 = vsub.f32 %v6654, %v6693
        %v6722 = vsub.f32 %v6657, %v6695
        %v6723 = vsub.f32 %v6659, %v6697
        %v6724 = vsub.f32 %v6662, %v6699
        %v6725 = vsub.f32 %v6664, %v6701
        %v6726 = vsub.f32 %v6667, %v6703
        %v6727 = vsub.f32 %v6669, %v6705
        %v6728 = vsub.f32 %v6672, %v6707
        %v6729 = vsub.f32 %v6674, %v6709
        %v6730 = vsub.f32 %v6677, %v6711
        %v6731 = vsub.f32 %v6679, %v6713
        %v6732 = vsub.f32 %v6682, %v6715
        %v6733 = vsub.f32 %v6684, %v6717
        %v6734 = vmul.f32 %v6718, 1.442695
        %v6735 = vpow.pop %v6734
        %v6736 = vmul.f32 %v6719, 1.442695
        %v6737 = vpow.pop %v6736
        %v6738 = vmul.f32 %v6720, 1.442695
        %v6739 = vpow.pop %v6738
        %v6740 = vmul.f32 %v6721, 1.442695
        %v6741 = vpow.pop %v6740
        %v6742 = vmul.f32 %v6722, 1.442695
        %v6743 = vpow.pop %v6742
        %v6744 = vmul.f32 %v6723, 1.442695
        %v6745 = vpow.pop %v6744
        %v6746 = vmul.f32 %v6724, 1.442695
        %v6747 = vpow.pop %v6746
        %v6748 = vmul.f32 %v6725, 1.442695
        %v6749 = vpow.pop %v6748
        %v6750 = vmul.f32 %v6726, 1.442695
        %v6751 = vpow.pop %v6750
        %v6752 = vmul.f32 %v6727, 1.442695
        %v6753 = vpow.pop %v6752
        %v6754 = vmul.f32 %v6728, 1.442695
        %v6755 = vpow.pop %v6754
        %v6756 = vmul.f32 %v6729, 1.442695
        %v6757 = vpow.pop %v6756
        %v6758 = vmul.f32 %v6730, 1.442695
        %v6759 = vpow.pop %v6758
        %v6760 = vmul.f32 %v6731, 1.442695
        %v6761 = vpow.pop %v6760
        %v6762 = vmul.f32 %v6732, 1.442695
        %v6763 = vpow.pop %v6762
        %v6764 = vmul.f32 %v6733, 1.442695
        %v6765 = vpow.pop %v6764
        %6766 = vadd.xlane.f32.xlu0 %v6735
        %v6767 = vpop.xlane.xlu0 %6766
        %6768 = vadd.xlane.f32.xlu0 %v6737
        %v6769 = vpop.xlane.xlu0 %6768
        %6770 = vadd.xlane.f32.xlu0 %v6739
        %v6771 = vpop.xlane.xlu0 %6770
        %6772 = vadd.xlane.f32.xlu0 %v6741
        %v6773 = vpop.xlane.xlu0 %6772
        %6774 = vadd.xlane.f32.xlu0 %v6743
        %v6775 = vpop.xlane.xlu0 %6774
        %6776 = vadd.xlane.f32.xlu0 %v6745
        %v6777 = vpop.xlane.xlu0 %6776
        %6778 = vadd.xlane.f32.xlu0 %v6747
        %v6779 = vpop.xlane.xlu0 %6778
        %6780 = vadd.xlane.f32.xlu0 %v6749
        %v6781 = vpop.xlane.xlu0 %6780
        %6782 = vadd.xlane.f32.xlu0 %v6751
        %v6783 = vpop.xlane.xlu0 %6782
        %6784 = vadd.xlane.f32.xlu0 %v6753
        %v6785 = vpop.xlane.xlu0 %6784
        %6786 = vadd.xlane.f32.xlu0 %v6755
        %v6787 = vpop.xlane.xlu0 %6786
        %6788 = vadd.xlane.f32.xlu0 %v6757
        %v6789 = vpop.xlane.xlu0 %6788
        %6790 = vadd.xlane.f32.xlu0 %v6759
        %v6791 = vpop.xlane.xlu0 %6790
        %6792 = vadd.xlane.f32.xlu0 %v6761
        %v6793 = vpop.xlane.xlu0 %6792
        %6794 = vadd.xlane.f32.xlu0 %v6763
        %v6795 = vpop.xlane.xlu0 %6794
        %6796 = vadd.xlane.f32.xlu0 %v6765
        %v6797 = vpop.xlane.xlu0 %6796
        %v6798 = vrcp.pop %v6767
        %v6799 = vrcp.pop %v6769
        %v6800 = vrcp.pop %v6771
        %v6801 = vrcp.pop %v6773
        %v6802 = vrcp.pop %v6775
        %v6803 = vrcp.pop %v6777
        %v6804 = vrcp.pop %v6779
        %v6805 = vrcp.pop %v6781
        %v6806 = vrcp.pop %v6783
        %v6807 = vrcp.pop %v6785
        %v6808 = vrcp.pop %v6787
        %v6809 = vrcp.pop %v6789
        %v6810 = vrcp.pop %v6791
        %v6811 = vrcp.pop %v6793
        %v6812 = vrcp.pop %v6795
        %v6813 = vrcp.pop %v6797
        %v6814 = vmul.f32 %v6735, %v6798
        %v6815 = vmul.f32 %v6737, %v6799
        %v6816 = vmul.f32 %v6739, %v6800
        %v6817 = vmul.f32 %v6741, %v6801
        %v6818 = vmul.f32 %v6743, %v6802
        %v6819 = vmul.f32 %v6745, %v6803
        %v6820 = vmul.f32 %v6747, %v6804
        %v6821 = vmul.f32 %v6749, %v6805
        %v6822 = vmul.f32 %v6751, %v6806
        %v6823 = vmul.f32 %v6753, %v6807
        %v6824 = vmul.f32 %v6755, %v6808
        %v6825 = vmul.f32 %v6757, %v6809
        %v6826 = vmul.f32 %v6759, %v6810
        %v6827 = vmul.f32 %v6761, %v6811
        %v6828 = vmul.f32 %v6763, %v6812
        %v6829 = vmul.f32 %v6765, %v6813
        %v6830 = vpack.c.bf16 %v6815, %v6814
        %v6831 = vpack.c.bf16 %v6817, %v6816
        %v6832 = vpack.c.bf16 %v6819, %v6818
        %v6833 = vpack.c.bf16 %v6821, %v6820
        %v6834 = vpack.c.bf16 %v6823, %v6822
        %v6835 = vpack.c.bf16 %v6825, %v6824
        %v6836 = vpack.c.bf16 %v6827, %v6826
        %v6837 = vpack.c.bf16 %v6829, %v6828
        %v6838 = vunpack.c.h.b16 %v5312
        %v6839 = vunpack.c.h.b16 %v5314
        %v6840 = vunpack.c.h.b16 %v5316
        %v6841 = vunpack.c.h.b16 %v5318
        %v6842 = vunpack.c.h.b16 %v5320
        %v6843 = vunpack.c.h.b16 %v5322
        %v6844 = vunpack.c.h.b16 %v5324
        %v6845 = vunpack.c.h.b16 %v5326
        %v6846 = vunpack.c.h.b16 %v5328
        %v6847 = vunpack.c.h.b16 %v5330
        %v6848 = vunpack.c.h.b16 %v5332
        %v6849 = vunpack.c.h.b16 %v5334
        %v6850 = vunpack.c.h.b16 %v5336
        %v6851 = vunpack.c.h.b16 %v5338
        %v6852 = vunpack.c.h.b16 %v5340
        %v6853 = vunpack.c.h.b16 %v5342
        %v6854 = vpack.c.b16 %v6839, %v6838
        %v6855 = vpack.c.b16 %v6841, %v6840
        %v6856 = vpack.c.b16 %v6843, %v6842
        %v6857 = vpack.c.b16 %v6845, %v6844
        %v6858 = vpack.c.b16 %v6847, %v6846
        %v6859 = vpack.c.b16 %v6849, %v6848
        %v6860 = vpack.c.b16 %v6851, %v6850
        %v6861 = vpack.c.b16 %v6853, %v6852
        %6870 = vmatpush.bf16.msra.mxu0 %v6861
        %6871 = vmatpush.bf16.msra.mxu0 %v6860
        %6872 = vmatpush.bf16.msra.mxu0 %v6859
        %6873 = vmatpush.bf16.msra.mxu0 %v6858
        %6874 = vmatpush.bf16.msra.mxu0 %v6857
        %6875 = vmatpush.bf16.msra.mxu0 %v6856
        %6876 = vmatpush.bf16.msra.mxu0 %v6855
        %6877 = vmatpush.bf16.msra.mxu0 %v6854
        %6878 = vmatmul.bf16.gmra.mxu0 %v6830
        %v6879 = vpop.f32.mrf.mxu0
        %v6880 = vadd.f32 0.0, %v6879
        %v6881 = vpop.f32.mrf.mxu0
        %v6882 = vadd.f32 0.0, %v6881
        %6883 = vmatmul.bf16.gmra.mxu0 %v6831
        %v6884 = vpop.f32.mrf.mxu0
        %v6885 = vadd.f32 0.0, %v6884
        %v6886 = vpop.f32.mrf.mxu0
        %v6887 = vadd.f32 0.0, %v6886
        %6888 = vmatmul.bf16.gmra.mxu0 %v6832
        %v6889 = vpop.f32.mrf.mxu0
        %v6890 = vadd.f32 0.0, %v6889
        %v6891 = vpop.f32.mrf.mxu0
        %v6892 = vadd.f32 0.0, %v6891
        %6893 = vmatmul.bf16.gmra.mxu0 %v6833
        %v6894 = vpop.f32.mrf.mxu0
        %v6895 = vadd.f32 0.0, %v6894
        %v6896 = vpop.f32.mrf.mxu0
        %v6897 = vadd.f32 0.0, %v6896
        %6898 = vmatmul.bf16.gmra.mxu0 %v6834
        %v6899 = vpop.f32.mrf.mxu0
        %v6900 = vadd.f32 0.0, %v6899
        %v6901 = vpop.f32.mrf.mxu0
        %v6902 = vadd.f32 0.0, %v6901
        %6903 = vmatmul.bf16.gmra.mxu0 %v6835
        %v6904 = vpop.f32.mrf.mxu0
        %v6905 = vadd.f32 0.0, %v6904
        %v6906 = vpop.f32.mrf.mxu0
        %v6907 = vadd.f32 0.0, %v6906
        %6908 = vmatmul.bf16.gmra.mxu0 %v6836
        %v6909 = vpop.f32.mrf.mxu0
        %v6910 = vadd.f32 0.0, %v6909
        %v6911 = vpop.f32.mrf.mxu0
        %v6912 = vadd.f32 0.0, %v6911
        %6913 = vmatmul.bf16.gmra.mxu0 %v6837
        %v6914 = vpop.f32.mrf.mxu0
        %v6915 = vadd.f32 0.0, %v6914
        %v6916 = vpop.f32.mrf.mxu0
        %v6917 = vadd.f32 0.0, %v6916
        %6918 = vdwg.mxu0
        %v6919 = vpack.c.bf16 %v6880, %v6880
        %v6920 = vpack.c.bf16 %v6882, %v6882
        %v6921 = vpack.c.bf16 %v6885, %v6885
        %v6922 = vpack.c.bf16 %v6887, %v6887
        %v6923 = vpack.c.bf16 %v6890, %v6890
        %v6924 = vpack.c.bf16 %v6892, %v6892
        %v6925 = vpack.c.bf16 %v6895, %v6895
        %v6926 = vpack.c.bf16 %v6897, %v6897
        %v6927 = vpack.c.bf16 %v6900, %v6900
        %v6928 = vpack.c.bf16 %v6902, %v6902
        %v6929 = vpack.c.bf16 %v6905, %v6905
        %v6930 = vpack.c.bf16 %v6907, %v6907
        %v6931 = vpack.c.bf16 %v6910, %v6910
        %v6932 = vpack.c.bf16 %v6912, %v6912
        %v6933 = vpack.c.bf16 %v6915, %v6915
        %v6934 = vpack.c.bf16 %v6917, %v6917
        %6935 = vst [vmem:[#allocation2 + $0xc] sm:$0xf] %v6919
        %6936 = vst [vmem:[#allocation2 + $0x1c] sm:$0xf] %v6920
        %6937 = vst [vmem:[#allocation2 + $0x2c] sm:$0xf] %v6921
        %6938 = vst [vmem:[#allocation2 + $0x3c] sm:$0xf] %v6922
        %6939 = vst [vmem:[#allocation2 + $0x4c] sm:$0xf] %v6923
        %6940 = vst [vmem:[#allocation2 + $0x5c] sm:$0xf] %v6924
        %6941 = vst [vmem:[#allocation2 + $0x6c] sm:$0xf] %v6925
        %6942 = vst [vmem:[#allocation2 + $0x7c] sm:$0xf] %v6926
        %6943 = vst [vmem:[#allocation2 + $0x8c] sm:$0xf] %v6927
        %6944 = vst [vmem:[#allocation2 + $0x9c] sm:$0xf] %v6928
        %6945 = vst [vmem:[#allocation2 + $0xac] sm:$0xf] %v6929
        %6946 = vst [vmem:[#allocation2 + $0xbc] sm:$0xf] %v6930
        %6947 = vst [vmem:[#allocation2 + $0xcc] sm:$0xf] %v6931
        %6948 = vst [vmem:[#allocation2 + $0xdc] sm:$0xf] %v6932
        %6949 = vst [vmem:[#allocation2 + $0xec] sm:$0xf] %v6933
        %6950 = vst [vmem:[#allocation2 + $0xfc] sm:$0xf] %v6934
        %v6951 = vld [vmem:[#allocation2] sm:$0xff]
        %v6952 = vld [vmem:[#allocation2 + $0x8] sm:$0xff]
        %v6953 = vld [vmem:[#allocation2 + $0x10] sm:$0xff]
        %v6954 = vld [vmem:[#allocation2 + $0x18] sm:$0xff]
        %v6955 = vld [vmem:[#allocation2 + $0x20] sm:$0xff]
        %v6956 = vld [vmem:[#allocation2 + $0x28] sm:$0xff]
        %v6957 = vld [vmem:[#allocation2 + $0x30] sm:$0xff]
        %v6958 = vld [vmem:[#allocation2 + $0x38] sm:$0xff]
        %v6959 = vld [vmem:[#allocation2 + $0x40] sm:$0xff]
        %v6960 = vld [vmem:[#allocation2 + $0x48] sm:$0xff]
        %v6961 = vld [vmem:[#allocation2 + $0x50] sm:$0xff]
        %v6962 = vld [vmem:[#allocation2 + $0x58] sm:$0xff]
        %v6963 = vld [vmem:[#allocation2 + $0x60] sm:$0xff]
        %v6964 = vld [vmem:[#allocation2 + $0x68] sm:$0xff]
        %v6965 = vld [vmem:[#allocation2 + $0x70] sm:$0xff]
        %v6966 = vld [vmem:[#allocation2 + $0x78] sm:$0xff]
        %v6967 = vld [vmem:[#allocation2 + $0x80] sm:$0xff]
        %v6968 = vld [vmem:[#allocation2 + $0x88] sm:$0xff]
        %v6969 = vld [vmem:[#allocation2 + $0x90] sm:$0xff]
        %v6970 = vld [vmem:[#allocation2 + $0x98] sm:$0xff]
        %v6971 = vld [vmem:[#allocation2 + $0xa0] sm:$0xff]
        %v6972 = vld [vmem:[#allocation2 + $0xa8] sm:$0xff]
        %v6973 = vld [vmem:[#allocation2 + $0xb0] sm:$0xff]
        %v6974 = vld [vmem:[#allocation2 + $0xb8] sm:$0xff]
        %v6975 = vld [vmem:[#allocation2 + $0xc0] sm:$0xff]
        %v6976 = vld [vmem:[#allocation2 + $0xc8] sm:$0xff]
        %v6977 = vld [vmem:[#allocation2 + $0xd0] sm:$0xff]
        %v6978 = vld [vmem:[#allocation2 + $0xd8] sm:$0xff]
        %v6979 = vld [vmem:[#allocation2 + $0xe0] sm:$0xff]
        %v6980 = vld [vmem:[#allocation2 + $0xe8] sm:$0xff]
        %v6981 = vld [vmem:[#allocation2 + $0xf0] sm:$0xff]
        %v6982 = vld [vmem:[#allocation2 + $0xf8] sm:$0xff]
        %v6983 = vld [vmem:[#allocation9] sm:$0xff]
        %v6984 = vld [vmem:[#allocation9 + $0x8] sm:$0xff]
        %v6985 = vld [vmem:[#allocation9 + $0x10] sm:$0xff]
        %v6986 = vld [vmem:[#allocation9 + $0x18] sm:$0xff]
        %v6987 = vld [vmem:[#allocation9 + $0x20] sm:$0xff]
        %v6988 = vld [vmem:[#allocation9 + $0x28] sm:$0xff]
        %v6989 = vld [vmem:[#allocation9 + $0x30] sm:$0xff]
        %v6990 = vld [vmem:[#allocation9 + $0x38] sm:$0xff]
        %v6991 = vld [vmem:[#allocation9 + $0x40] sm:$0xff]
        %v6992 = vld [vmem:[#allocation9 + $0x48] sm:$0xff]
        %v6993 = vld [vmem:[#allocation9 + $0x50] sm:$0xff]
        %v6994 = vld [vmem:[#allocation9 + $0x58] sm:$0xff]
        %v6995 = vld [vmem:[#allocation9 + $0x60] sm:$0xff]
        %v6996 = vld [vmem:[#allocation9 + $0x68] sm:$0xff]
        %v6997 = vld [vmem:[#allocation9 + $0x70] sm:$0xff]
        %v6998 = vld [vmem:[#allocation9 + $0x78] sm:$0xff]
        %v6999 = vld [vmem:[#allocation9 + $0x80] sm:$0xff]
        %v7000 = vld [vmem:[#allocation9 + $0x88] sm:$0xff]
        %v7001 = vld [vmem:[#allocation9 + $0x90] sm:$0xff]
        %v7002 = vld [vmem:[#allocation9 + $0x98] sm:$0xff]
        %v7003 = vld [vmem:[#allocation9 + $0xa0] sm:$0xff]
        %v7004 = vld [vmem:[#allocation9 + $0xa8] sm:$0xff]
        %v7005 = vld [vmem:[#allocation9 + $0xb0] sm:$0xff]
        %v7006 = vld [vmem:[#allocation9 + $0xb8] sm:$0xff]
        %v7007 = vld [vmem:[#allocation9 + $0xc0] sm:$0xff]
        %v7008 = vld [vmem:[#allocation9 + $0xc8] sm:$0xff]
        %v7009 = vld [vmem:[#allocation9 + $0xd0] sm:$0xff]
        %v7010 = vld [vmem:[#allocation9 + $0xd8] sm:$0xff]
        %v7011 = vld [vmem:[#allocation9 + $0xe0] sm:$0xff]
        %v7012 = vld [vmem:[#allocation9 + $0xe8] sm:$0xff]
        %v7013 = vld [vmem:[#allocation9 + $0xf0] sm:$0xff]
        %v7014 = vld [vmem:[#allocation9 + $0xf8] sm:$0xff]
        %v7015 = vld [vmem:[#allocation9 + $0x100] sm:$0xff]
        %v7016 = vld [vmem:[#allocation9 + $0x108] sm:$0xff]
        %v7017 = vld [vmem:[#allocation9 + $0x110] sm:$0xff]
        %v7018 = vld [vmem:[#allocation9 + $0x118] sm:$0xff]
        %v7019 = vld [vmem:[#allocation9 + $0x120] sm:$0xff]
        %v7020 = vld [vmem:[#allocation9 + $0x128] sm:$0xff]
        %v7021 = vld [vmem:[#allocation9 + $0x130] sm:$0xff]
        %v7022 = vld [vmem:[#allocation9 + $0x138] sm:$0xff]
        %v7023 = vld [vmem:[#allocation9 + $0x140] sm:$0xff]
        %v7024 = vld [vmem:[#allocation9 + $0x148] sm:$0xff]
        %v7025 = vld [vmem:[#allocation9 + $0x150] sm:$0xff]
        %v7026 = vld [vmem:[#allocation9 + $0x158] sm:$0xff]
        %v7027 = vld [vmem:[#allocation9 + $0x160] sm:$0xff]
        %v7028 = vld [vmem:[#allocation9 + $0x168] sm:$0xff]
        %v7029 = vld [vmem:[#allocation9 + $0x170] sm:$0xff]
        %v7030 = vld [vmem:[#allocation9 + $0x178] sm:$0xff]
        %v7031 = vld [vmem:[#allocation9 + $0x180] sm:$0xff]
        %v7032 = vld [vmem:[#allocation9 + $0x188] sm:$0xff]
        %v7033 = vld [vmem:[#allocation9 + $0x190] sm:$0xff]
        %v7034 = vld [vmem:[#allocation9 + $0x198] sm:$0xff]
        %v7035 = vld [vmem:[#allocation9 + $0x1a0] sm:$0xff]
        %v7036 = vld [vmem:[#allocation9 + $0x1a8] sm:$0xff]
        %v7037 = vld [vmem:[#allocation9 + $0x1b0] sm:$0xff]
        %v7038 = vld [vmem:[#allocation9 + $0x1b8] sm:$0xff]
        %v7039 = vld [vmem:[#allocation9 + $0x1c0] sm:$0xff]
        %v7040 = vld [vmem:[#allocation9 + $0x1c8] sm:$0xff]
        %v7041 = vld [vmem:[#allocation9 + $0x1d0] sm:$0xff]
        %v7042 = vld [vmem:[#allocation9 + $0x1d8] sm:$0xff]
        %v7043 = vld [vmem:[#allocation9 + $0x1e0] sm:$0xff]
        %v7044 = vld [vmem:[#allocation9 + $0x1e8] sm:$0xff]
        %v7045 = vld [vmem:[#allocation9 + $0x1f0] sm:$0xff]
        %v7046 = vld [vmem:[#allocation9 + $0x1f8] sm:$0xff]
        %v7047 = vld [vmem:[#allocation9 + $0x200] sm:$0xff]
        %v7048 = vld [vmem:[#allocation9 + $0x208] sm:$0xff]
        %v7049 = vld [vmem:[#allocation9 + $0x210] sm:$0xff]
        %v7050 = vld [vmem:[#allocation9 + $0x218] sm:$0xff]
        %v7051 = vld [vmem:[#allocation9 + $0x220] sm:$0xff]
        %v7052 = vld [vmem:[#allocation9 + $0x228] sm:$0xff]
        %v7053 = vld [vmem:[#allocation9 + $0x230] sm:$0xff]
        %v7054 = vld [vmem:[#allocation9 + $0x238] sm:$0xff]
        %v7055 = vld [vmem:[#allocation9 + $0x240] sm:$0xff]
        %v7056 = vld [vmem:[#allocation9 + $0x248] sm:$0xff]
        %v7057 = vld [vmem:[#allocation9 + $0x250] sm:$0xff]
        %v7058 = vld [vmem:[#allocation9 + $0x258] sm:$0xff]
        %v7059 = vld [vmem:[#allocation9 + $0x260] sm:$0xff]
        %v7060 = vld [vmem:[#allocation9 + $0x268] sm:$0xff]
        %v7061 = vld [vmem:[#allocation9 + $0x270] sm:$0xff]
        %v7062 = vld [vmem:[#allocation9 + $0x278] sm:$0xff]
        %v7063 = vld [vmem:[#allocation9 + $0x280] sm:$0xff]
        %v7064 = vld [vmem:[#allocation9 + $0x288] sm:$0xff]
        %v7065 = vld [vmem:[#allocation9 + $0x290] sm:$0xff]
        %v7066 = vld [vmem:[#allocation9 + $0x298] sm:$0xff]
        %v7067 = vld [vmem:[#allocation9 + $0x2a0] sm:$0xff]
        %v7068 = vld [vmem:[#allocation9 + $0x2a8] sm:$0xff]
        %v7069 = vld [vmem:[#allocation9 + $0x2b0] sm:$0xff]
        %v7070 = vld [vmem:[#allocation9 + $0x2b8] sm:$0xff]
        %v7071 = vld [vmem:[#allocation9 + $0x2c0] sm:$0xff]
        %v7072 = vld [vmem:[#allocation9 + $0x2c8] sm:$0xff]
        %v7073 = vld [vmem:[#allocation9 + $0x2d0] sm:$0xff]
        %v7074 = vld [vmem:[#allocation9 + $0x2d8] sm:$0xff]
        %v7075 = vld [vmem:[#allocation9 + $0x2e0] sm:$0xff]
        %v7076 = vld [vmem:[#allocation9 + $0x2e8] sm:$0xff]
        %v7077 = vld [vmem:[#allocation9 + $0x2f0] sm:$0xff]
        %v7078 = vld [vmem:[#allocation9 + $0x2f8] sm:$0xff]
        %v7079 = vld [vmem:[#allocation9 + $0x300] sm:$0xff]
        %v7080 = vld [vmem:[#allocation9 + $0x308] sm:$0xff]
        %v7081 = vld [vmem:[#allocation9 + $0x310] sm:$0xff]
        %v7082 = vld [vmem:[#allocation9 + $0x318] sm:$0xff]
        %v7083 = vld [vmem:[#allocation9 + $0x320] sm:$0xff]
        %v7084 = vld [vmem:[#allocation9 + $0x328] sm:$0xff]
        %v7085 = vld [vmem:[#allocation9 + $0x330] sm:$0xff]
        %v7086 = vld [vmem:[#allocation9 + $0x338] sm:$0xff]
        %v7087 = vld [vmem:[#allocation9 + $0x340] sm:$0xff]
        %v7088 = vld [vmem:[#allocation9 + $0x348] sm:$0xff]
        %v7089 = vld [vmem:[#allocation9 + $0x350] sm:$0xff]
        %v7090 = vld [vmem:[#allocation9 + $0x358] sm:$0xff]
        %v7091 = vld [vmem:[#allocation9 + $0x360] sm:$0xff]
        %v7092 = vld [vmem:[#allocation9 + $0x368] sm:$0xff]
        %v7093 = vld [vmem:[#allocation9 + $0x370] sm:$0xff]
        %v7094 = vld [vmem:[#allocation9 + $0x378] sm:$0xff]
        %v7095 = vld [vmem:[#allocation9 + $0x380] sm:$0xff]
        %v7096 = vld [vmem:[#allocation9 + $0x388] sm:$0xff]
        %v7097 = vld [vmem:[#allocation9 + $0x390] sm:$0xff]
        %v7098 = vld [vmem:[#allocation9 + $0x398] sm:$0xff]
        %v7099 = vld [vmem:[#allocation9 + $0x3a0] sm:$0xff]
        %v7100 = vld [vmem:[#allocation9 + $0x3a8] sm:$0xff]
        %v7101 = vld [vmem:[#allocation9 + $0x3b0] sm:$0xff]
        %v7102 = vld [vmem:[#allocation9 + $0x3b8] sm:$0xff]
        %v7103 = vld [vmem:[#allocation9 + $0x3c0] sm:$0xff]
        %v7104 = vld [vmem:[#allocation9 + $0x3c8] sm:$0xff]
        %v7105 = vld [vmem:[#allocation9 + $0x3d0] sm:$0xff]
        %v7106 = vld [vmem:[#allocation9 + $0x3d8] sm:$0xff]
        %v7107 = vld [vmem:[#allocation9 + $0x3e0] sm:$0xff]
        %v7108 = vld [vmem:[#allocation9 + $0x3e8] sm:$0xff]
        %v7109 = vld [vmem:[#allocation9 + $0x3f0] sm:$0xff]
        %v7110 = vld [vmem:[#allocation9 + $0x3f8] sm:$0xff]
        %v7111 = vld [vmem:[#allocation11] sm:$0xf]
        %v7113 = vperm.slane %v7111, 0
        %v7114 = vperm.slane %v7111, 1
        %v7115 = vperm.slane %v7111, 2
        %v7116 = vperm.slane %v7111, 3
        %v7153 = vunpack.c.l.b16 %v6951
        %v7154 = vunpack.c.h.b16 %v6951
        %v7155 = vunpack.c.l.b16 %v6952
        %v7156 = vunpack.c.h.b16 %v6952
        %v7157 = vunpack.c.l.b16 %v6953
        %v7158 = vunpack.c.h.b16 %v6953
        %v7159 = vunpack.c.l.b16 %v6954
        %v7160 = vunpack.c.h.b16 %v6954
        %v7161 = vunpack.c.l.b16 %v6955
        %v7162 = vunpack.c.h.b16 %v6955
        %v7163 = vunpack.c.l.b16 %v6956
        %v7164 = vunpack.c.h.b16 %v6956
        %v7165 = vunpack.c.l.b16 %v6957
        %v7166 = vunpack.c.h.b16 %v6957
        %v7167 = vunpack.c.l.b16 %v6958
        %v7168 = vunpack.c.h.b16 %v6958
        %v7169 = vunpack.c.l.b16 %v6959
        %v7170 = vunpack.c.h.b16 %v6959
        %v7171 = vunpack.c.l.b16 %v6960
        %v7172 = vunpack.c.h.b16 %v6960
        %v7173 = vunpack.c.l.b16 %v6961
        %v7174 = vunpack.c.h.b16 %v6961
        %v7175 = vunpack.c.l.b16 %v6962
        %v7176 = vunpack.c.h.b16 %v6962
        %v7177 = vunpack.c.l.b16 %v6963
        %v7178 = vunpack.c.h.b16 %v6963
        %v7179 = vunpack.c.l.b16 %v6964
        %v7180 = vunpack.c.h.b16 %v6964
        %v7181 = vunpack.c.l.b16 %v6965
        %v7182 = vunpack.c.h.b16 %v6965
        %v7183 = vunpack.c.l.b16 %v6966
        %v7184 = vunpack.c.h.b16 %v6966
        %v7185 = vunpack.c.l.b16 %v6967
        %v7186 = vunpack.c.h.b16 %v6967
        %v7187 = vunpack.c.l.b16 %v6968
        %v7188 = vunpack.c.h.b16 %v6968
        %v7189 = vunpack.c.l.b16 %v6969
        %v7190 = vunpack.c.h.b16 %v6969
        %v7191 = vunpack.c.l.b16 %v6970
        %v7192 = vunpack.c.h.b16 %v6970
        %v7193 = vunpack.c.l.b16 %v6971
        %v7194 = vunpack.c.h.b16 %v6971
        %v7195 = vunpack.c.l.b16 %v6972
        %v7196 = vunpack.c.h.b16 %v6972
        %v7197 = vunpack.c.l.b16 %v6973
        %v7198 = vunpack.c.h.b16 %v6973
        %v7199 = vunpack.c.l.b16 %v6974
        %v7200 = vunpack.c.h.b16 %v6974
        %v7201 = vunpack.c.l.b16 %v6975
        %v7202 = vunpack.c.h.b16 %v6975
        %v7203 = vunpack.c.l.b16 %v6976
        %v7204 = vunpack.c.h.b16 %v6976
        %v7205 = vunpack.c.l.b16 %v6977
        %v7206 = vunpack.c.h.b16 %v6977
        %v7207 = vunpack.c.l.b16 %v6978
        %v7208 = vunpack.c.h.b16 %v6978
        %v7209 = vunpack.c.l.b16 %v6979
        %v7210 = vunpack.c.h.b16 %v6979
        %v7211 = vunpack.c.l.b16 %v6980
        %v7212 = vunpack.c.h.b16 %v6980
        %v7213 = vunpack.c.l.b16 %v6981
        %v7214 = vunpack.c.h.b16 %v6981
        %v7215 = vunpack.c.l.b16 %v6982
        %v7216 = vunpack.c.h.b16 %v6982
        %v7217 = vpack.c.b16 %v7157, %v7153
        %v7218 = vpack.c.b16 %v7158, %v7154
        %v7219 = vpack.c.b16 %v7159, %v7155
        %v7220 = vpack.c.b16 %v7160, %v7156
        %v7221 = vpack.c.b16 %v7165, %v7161
        %v7222 = vpack.c.b16 %v7166, %v7162
        %v7223 = vpack.c.b16 %v7167, %v7163
        %v7224 = vpack.c.b16 %v7168, %v7164
        %v7225 = vpack.c.b16 %v7173, %v7169
        %v7226 = vpack.c.b16 %v7174, %v7170
        %v7227 = vpack.c.b16 %v7175, %v7171
        %v7228 = vpack.c.b16 %v7176, %v7172
        %v7229 = vpack.c.b16 %v7181, %v7177
        %v7230 = vpack.c.b16 %v7182, %v7178
        %v7231 = vpack.c.b16 %v7183, %v7179
        %v7232 = vpack.c.b16 %v7184, %v7180
        %v7233 = vpack.c.b16 %v7189, %v7185
        %v7234 = vpack.c.b16 %v7190, %v7186
        %v7235 = vpack.c.b16 %v7191, %v7187
        %v7236 = vpack.c.b16 %v7192, %v7188
        %v7237 = vpack.c.b16 %v7197, %v7193
        %v7238 = vpack.c.b16 %v7198, %v7194
        %v7239 = vpack.c.b16 %v7199, %v7195
        %v7240 = vpack.c.b16 %v7200, %v7196
        %v7241 = vpack.c.b16 %v7205, %v7201
        %v7242 = vpack.c.b16 %v7206, %v7202
        %v7243 = vpack.c.b16 %v7207, %v7203
        %v7244 = vpack.c.b16 %v7208, %v7204
        %v7245 = vpack.c.b16 %v7213, %v7209
        %v7246 = vpack.c.b16 %v7214, %v7210
        %v7247 = vpack.c.b16 %v7215, %v7211
        %v7248 = vpack.c.b16 %v7216, %v7212
        %v7409 = vunpack.c.l.b16 %v6983
        %v7410 = vunpack.c.h.b16 %v6983
        %v7411 = vunpack.c.l.b16 %v6984
        %v7412 = vunpack.c.h.b16 %v6984
        %v7413 = vunpack.c.l.b16 %v6985
        %v7414 = vunpack.c.h.b16 %v6985
        %v7415 = vunpack.c.l.b16 %v6986
        %v7416 = vunpack.c.h.b16 %v6986
        %v7417 = vunpack.c.l.b16 %v6987
        %v7418 = vunpack.c.h.b16 %v6987
        %v7419 = vunpack.c.l.b16 %v6988
        %v7420 = vunpack.c.h.b16 %v6988
        %v7421 = vunpack.c.l.b16 %v6989
        %v7422 = vunpack.c.h.b16 %v6989
        %v7423 = vunpack.c.l.b16 %v6990
        %v7424 = vunpack.c.h.b16 %v6990
        %v7425 = vunpack.c.l.b16 %v6991
        %v7426 = vunpack.c.h.b16 %v6991
        %v7427 = vunpack.c.l.b16 %v6992
        %v7428 = vunpack.c.h.b16 %v6992
        %v7429 = vunpack.c.l.b16 %v6993
        %v7430 = vunpack.c.h.b16 %v6993
        %v7431 = vunpack.c.l.b16 %v6994
        %v7432 = vunpack.c.h.b16 %v6994
        %v7433 = vunpack.c.l.b16 %v6995
        %v7434 = vunpack.c.h.b16 %v6995
        %v7435 = vunpack.c.l.b16 %v6996
        %v7436 = vunpack.c.h.b16 %v6996
        %v7437 = vunpack.c.l.b16 %v6997
        %v7438 = vunpack.c.h.b16 %v6997
        %v7439 = vunpack.c.l.b16 %v6998
        %v7440 = vunpack.c.h.b16 %v6998
        %v7441 = vunpack.c.l.b16 %v6999
        %v7442 = vunpack.c.h.b16 %v6999
        %v7443 = vunpack.c.l.b16 %v7000
        %v7444 = vunpack.c.h.b16 %v7000
        %v7445 = vunpack.c.l.b16 %v7001
        %v7446 = vunpack.c.h.b16 %v7001
        %v7447 = vunpack.c.l.b16 %v7002
        %v7448 = vunpack.c.h.b16 %v7002
        %v7449 = vunpack.c.l.b16 %v7003
        %v7450 = vunpack.c.h.b16 %v7003
        %v7451 = vunpack.c.l.b16 %v7004
        %v7452 = vunpack.c.h.b16 %v7004
        %v7453 = vunpack.c.l.b16 %v7005
        %v7454 = vunpack.c.h.b16 %v7005
        %v7455 = vunpack.c.l.b16 %v7006
        %v7456 = vunpack.c.h.b16 %v7006
        %v7457 = vunpack.c.l.b16 %v7007
        %v7458 = vunpack.c.h.b16 %v7007
        %v7459 = vunpack.c.l.b16 %v7008
        %v7460 = vunpack.c.h.b16 %v7008
        %v7461 = vunpack.c.l.b16 %v7009
        %v7462 = vunpack.c.h.b16 %v7009
        %v7463 = vunpack.c.l.b16 %v7010
        %v7464 = vunpack.c.h.b16 %v7010
        %v7465 = vunpack.c.l.b16 %v7011
        %v7466 = vunpack.c.h.b16 %v7011
        %v7467 = vunpack.c.l.b16 %v7012
        %v7468 = vunpack.c.h.b16 %v7012
        %v7469 = vunpack.c.l.b16 %v7013
        %v7470 = vunpack.c.h.b16 %v7013
        %v7471 = vunpack.c.l.b16 %v7014
        %v7472 = vunpack.c.h.b16 %v7014
        %v7473 = vunpack.c.l.b16 %v7015
        %v7474 = vunpack.c.h.b16 %v7015
        %v7475 = vunpack.c.l.b16 %v7016
        %v7476 = vunpack.c.h.b16 %v7016
        %v7477 = vunpack.c.l.b16 %v7017
        %v7478 = vunpack.c.h.b16 %v7017
        %v7479 = vunpack.c.l.b16 %v7018
        %v7480 = vunpack.c.h.b16 %v7018
        %v7481 = vunpack.c.l.b16 %v7019
        %v7482 = vunpack.c.h.b16 %v7019
        %v7483 = vunpack.c.l.b16 %v7020
        %v7484 = vunpack.c.h.b16 %v7020
        %v7485 = vunpack.c.l.b16 %v7021
        %v7486 = vunpack.c.h.b16 %v7021
        %v7487 = vunpack.c.l.b16 %v7022
        %v7488 = vunpack.c.h.b16 %v7022
        %v7489 = vunpack.c.l.b16 %v7023
        %v7490 = vunpack.c.h.b16 %v7023
        %v7491 = vunpack.c.l.b16 %v7024
        %v7492 = vunpack.c.h.b16 %v7024
        %v7493 = vunpack.c.l.b16 %v7025
        %v7494 = vunpack.c.h.b16 %v7025
        %v7495 = vunpack.c.l.b16 %v7026
        %v7496 = vunpack.c.h.b16 %v7026
        %v7497 = vunpack.c.l.b16 %v7027
        %v7498 = vunpack.c.h.b16 %v7027
        %v7499 = vunpack.c.l.b16 %v7028
        %v7500 = vunpack.c.h.b16 %v7028
        %v7501 = vunpack.c.l.b16 %v7029
        %v7502 = vunpack.c.h.b16 %v7029
        %v7503 = vunpack.c.l.b16 %v7030
        %v7504 = vunpack.c.h.b16 %v7030
        %v7505 = vunpack.c.l.b16 %v7031
        %v7506 = vunpack.c.h.b16 %v7031
        %v7507 = vunpack.c.l.b16 %v7032
        %v7508 = vunpack.c.h.b16 %v7032
        %v7509 = vunpack.c.l.b16 %v7033
        %v7510 = vunpack.c.h.b16 %v7033
        %v7511 = vunpack.c.l.b16 %v7034
        %v7512 = vunpack.c.h.b16 %v7034
        %v7513 = vunpack.c.l.b16 %v7035
        %v7514 = vunpack.c.h.b16 %v7035
        %v7515 = vunpack.c.l.b16 %v7036
        %v7516 = vunpack.c.h.b16 %v7036
        %v7517 = vunpack.c.l.b16 %v7037
        %v7518 = vunpack.c.h.b16 %v7037
        %v7519 = vunpack.c.l.b16 %v7038
        %v7520 = vunpack.c.h.b16 %v7038
        %v7521 = vunpack.c.l.b16 %v7039
        %v7522 = vunpack.c.h.b16 %v7039
        %v7523 = vunpack.c.l.b16 %v7040
        %v7524 = vunpack.c.h.b16 %v7040
        %v7525 = vunpack.c.l.b16 %v7041
        %v7526 = vunpack.c.h.b16 %v7041
        %v7527 = vunpack.c.l.b16 %v7042
        %v7528 = vunpack.c.h.b16 %v7042
        %v7529 = vunpack.c.l.b16 %v7043
        %v7530 = vunpack.c.h.b16 %v7043
        %v7531 = vunpack.c.l.b16 %v7044
        %v7532 = vunpack.c.h.b16 %v7044
        %v7533 = vunpack.c.l.b16 %v7045
        %v7534 = vunpack.c.h.b16 %v7045
        %v7535 = vunpack.c.l.b16 %v7046
        %v7536 = vunpack.c.h.b16 %v7046
        %v7537 = vunpack.c.l.b16 %v7047
        %v7538 = vunpack.c.h.b16 %v7047
        %v7539 = vunpack.c.l.b16 %v7048
        %v7540 = vunpack.c.h.b16 %v7048
        %v7541 = vunpack.c.l.b16 %v7049
        %v7542 = vunpack.c.h.b16 %v7049
        %v7543 = vunpack.c.l.b16 %v7050
        %v7544 = vunpack.c.h.b16 %v7050
        %v7545 = vunpack.c.l.b16 %v7051
        %v7546 = vunpack.c.h.b16 %v7051
        %v7547 = vunpack.c.l.b16 %v7052
        %v7548 = vunpack.c.h.b16 %v7052
        %v7549 = vunpack.c.l.b16 %v7053
        %v7550 = vunpack.c.h.b16 %v7053
        %v7551 = vunpack.c.l.b16 %v7054
        %v7552 = vunpack.c.h.b16 %v7054
        %v7553 = vunpack.c.l.b16 %v7055
        %v7554 = vunpack.c.h.b16 %v7055
        %v7555 = vunpack.c.l.b16 %v7056
        %v7556 = vunpack.c.h.b16 %v7056
        %v7557 = vunpack.c.l.b16 %v7057
        %v7558 = vunpack.c.h.b16 %v7057
        %v7559 = vunpack.c.l.b16 %v7058
        %v7560 = vunpack.c.h.b16 %v7058
        %v7561 = vunpack.c.l.b16 %v7059
        %v7562 = vunpack.c.h.b16 %v7059
        %v7563 = vunpack.c.l.b16 %v7060
        %v7564 = vunpack.c.h.b16 %v7060
        %v7565 = vunpack.c.l.b16 %v7061
        %v7566 = vunpack.c.h.b16 %v7061
        %v7567 = vunpack.c.l.b16 %v7062
        %v7568 = vunpack.c.h.b16 %v7062
        %v7569 = vunpack.c.l.b16 %v7063
        %v7570 = vunpack.c.h.b16 %v7063
        %v7571 = vunpack.c.l.b16 %v7064
        %v7572 = vunpack.c.h.b16 %v7064
        %v7573 = vunpack.c.l.b16 %v7065
        %v7574 = vunpack.c.h.b16 %v7065
        %v7575 = vunpack.c.l.b16 %v7066
        %v7576 = vunpack.c.h.b16 %v7066
        %v7577 = vunpack.c.l.b16 %v7067
        %v7578 = vunpack.c.h.b16 %v7067
        %v7579 = vunpack.c.l.b16 %v7068
        %v7580 = vunpack.c.h.b16 %v7068
        %v7581 = vunpack.c.l.b16 %v7069
        %v7582 = vunpack.c.h.b16 %v7069
        %v7583 = vunpack.c.l.b16 %v7070
        %v7584 = vunpack.c.h.b16 %v7070
        %v7585 = vunpack.c.l.b16 %v7071
        %v7586 = vunpack.c.h.b16 %v7071
        %v7587 = vunpack.c.l.b16 %v7072
        %v7588 = vunpack.c.h.b16 %v7072
        %v7589 = vunpack.c.l.b16 %v7073
        %v7590 = vunpack.c.h.b16 %v7073
        %v7591 = vunpack.c.l.b16 %v7074
        %v7592 = vunpack.c.h.b16 %v7074
        %v7593 = vunpack.c.l.b16 %v7075
        %v7594 = vunpack.c.h.b16 %v7075
        %v7595 = vunpack.c.l.b16 %v7076
        %v7596 = vunpack.c.h.b16 %v7076
        %v7597 = vunpack.c.l.b16 %v7077
        %v7598 = vunpack.c.h.b16 %v7077
        %v7599 = vunpack.c.l.b16 %v7078
        %v7600 = vunpack.c.h.b16 %v7078
        %v7601 = vunpack.c.l.b16 %v7079
        %v7602 = vunpack.c.h.b16 %v7079
        %v7603 = vunpack.c.l.b16 %v7080
        %v7604 = vunpack.c.h.b16 %v7080
        %v7605 = vunpack.c.l.b16 %v7081
        %v7606 = vunpack.c.h.b16 %v7081
        %v7607 = vunpack.c.l.b16 %v7082
        %v7608 = vunpack.c.h.b16 %v7082
        %v7609 = vunpack.c.l.b16 %v7083
        %v7610 = vunpack.c.h.b16 %v7083
        %v7611 = vunpack.c.l.b16 %v7084
        %v7612 = vunpack.c.h.b16 %v7084
        %v7613 = vunpack.c.l.b16 %v7085
        %v7614 = vunpack.c.h.b16 %v7085
        %v7615 = vunpack.c.l.b16 %v7086
        %v7616 = vunpack.c.h.b16 %v7086
        %v7617 = vunpack.c.l.b16 %v7087
        %v7618 = vunpack.c.h.b16 %v7087
        %v7619 = vunpack.c.l.b16 %v7088
        %v7620 = vunpack.c.h.b16 %v7088
        %v7621 = vunpack.c.l.b16 %v7089
        %v7622 = vunpack.c.h.b16 %v7089
        %v7623 = vunpack.c.l.b16 %v7090
        %v7624 = vunpack.c.h.b16 %v7090
        %v7625 = vunpack.c.l.b16 %v7091
        %v7626 = vunpack.c.h.b16 %v7091
        %v7627 = vunpack.c.l.b16 %v7092
        %v7628 = vunpack.c.h.b16 %v7092
        %v7629 = vunpack.c.l.b16 %v7093
        %v7630 = vunpack.c.h.b16 %v7093
        %v7631 = vunpack.c.l.b16 %v7094
        %v7632 = vunpack.c.h.b16 %v7094
        %v7633 = vunpack.c.l.b16 %v7095
        %v7634 = vunpack.c.h.b16 %v7095
        %v7635 = vunpack.c.l.b16 %v7096
        %v7636 = vunpack.c.h.b16 %v7096
        %v7637 = vunpack.c.l.b16 %v7097
        %v7638 = vunpack.c.h.b16 %v7097
        %v7639 = vunpack.c.l.b16 %v7098
        %v7640 = vunpack.c.h.b16 %v7098
        %v7641 = vunpack.c.l.b16 %v7099
        %v7642 = vunpack.c.h.b16 %v7099
        %v7643 = vunpack.c.l.b16 %v7100
        %v7644 = vunpack.c.h.b16 %v7100
        %v7645 = vunpack.c.l.b16 %v7101
        %v7646 = vunpack.c.h.b16 %v7101
        %v7647 = vunpack.c.l.b16 %v7102
        %v7648 = vunpack.c.h.b16 %v7102
        %v7649 = vunpack.c.l.b16 %v7103
        %v7650 = vunpack.c.h.b16 %v7103
        %v7651 = vunpack.c.l.b16 %v7104
        %v7652 = vunpack.c.h.b16 %v7104
        %v7653 = vunpack.c.l.b16 %v7105
        %v7654 = vunpack.c.h.b16 %v7105
        %v7655 = vunpack.c.l.b16 %v7106
        %v7656 = vunpack.c.h.b16 %v7106
        %v7657 = vunpack.c.l.b16 %v7107
        %v7658 = vunpack.c.h.b16 %v7107
        %v7659 = vunpack.c.l.b16 %v7108
        %v7660 = vunpack.c.h.b16 %v7108
        %v7661 = vunpack.c.l.b16 %v7109
        %v7662 = vunpack.c.h.b16 %v7109
        %v7663 = vunpack.c.l.b16 %v7110
        %v7664 = vunpack.c.h.b16 %v7110
        %v7665 = vpack.c.b16 %v7413, %v7409
        %v7666 = vpack.c.b16 %v7414, %v7410
        %v7667 = vpack.c.b16 %v7415, %v7411
        %v7668 = vpack.c.b16 %v7416, %v7412
        %v7669 = vpack.c.b16 %v7421, %v7417
        %v7670 = vpack.c.b16 %v7422, %v7418
        %v7671 = vpack.c.b16 %v7423, %v7419
        %v7672 = vpack.c.b16 %v7424, %v7420
        %v7673 = vpack.c.b16 %v7429, %v7425
        %v7674 = vpack.c.b16 %v7430, %v7426
        %v7675 = vpack.c.b16 %v7431, %v7427
        %v7676 = vpack.c.b16 %v7432, %v7428
        %v7677 = vpack.c.b16 %v7437, %v7433
        %v7678 = vpack.c.b16 %v7438, %v7434
        %v7679 = vpack.c.b16 %v7439, %v7435
        %v7680 = vpack.c.b16 %v7440, %v7436
        %v7681 = vpack.c.b16 %v7445, %v7441
        %v7682 = vpack.c.b16 %v7446, %v7442
        %v7683 = vpack.c.b16 %v7447, %v7443
        %v7684 = vpack.c.b16 %v7448, %v7444
        %v7685 = vpack.c.b16 %v7453, %v7449
        %v7686 = vpack.c.b16 %v7454, %v7450
        %v7687 = vpack.c.b16 %v7455, %v7451
        %v7688 = vpack.c.b16 %v7456, %v7452
        %v7689 = vpack.c.b16 %v7461, %v7457
        %v7690 = vpack.c.b16 %v7462, %v7458
        %v7691 = vpack.c.b16 %v7463, %v7459
        %v7692 = vpack.c.b16 %v7464, %v7460
        %v7693 = vpack.c.b16 %v7469, %v7465
        %v7694 = vpack.c.b16 %v7470, %v7466
        %v7695 = vpack.c.b16 %v7471, %v7467
        %v7696 = vpack.c.b16 %v7472, %v7468
        %v7697 = vpack.c.b16 %v7477, %v7473
        %v7698 = vpack.c.b16 %v7478, %v7474
        %v7699 = vpack.c.b16 %v7479, %v7475
        %v7700 = vpack.c.b16 %v7480, %v7476
        %v7701 = vpack.c.b16 %v7485, %v7481
        %v7702 = vpack.c.b16 %v7486, %v7482
        %v7703 = vpack.c.b16 %v7487, %v7483
        %v7704 = vpack.c.b16 %v7488, %v7484
        %v7705 = vpack.c.b16 %v7493, %v7489
        %v7706 = vpack.c.b16 %v7494, %v7490
        %v7707 = vpack.c.b16 %v7495, %v7491
        %v7708 = vpack.c.b16 %v7496, %v7492
        %v7709 = vpack.c.b16 %v7501, %v7497
        %v7710 = vpack.c.b16 %v7502, %v7498
        %v7711 = vpack.c.b16 %v7503, %v7499
        %v7712 = vpack.c.b16 %v7504, %v7500
        %v7713 = vpack.c.b16 %v7509, %v7505
        %v7714 = vpack.c.b16 %v7510, %v7506
        %v7715 = vpack.c.b16 %v7511, %v7507
        %v7716 = vpack.c.b16 %v7512, %v7508
        %v7717 = vpack.c.b16 %v7517, %v7513
        %v7718 = vpack.c.b16 %v7518, %v7514
        %v7719 = vpack.c.b16 %v7519, %v7515
        %v7720 = vpack.c.b16 %v7520, %v7516
        %v7721 = vpack.c.b16 %v7525, %v7521
        %v7722 = vpack.c.b16 %v7526, %v7522
        %v7723 = vpack.c.b16 %v7527, %v7523
        %v7724 = vpack.c.b16 %v7528, %v7524
        %v7725 = vpack.c.b16 %v7533, %v7529
        %v7726 = vpack.c.b16 %v7534, %v7530
        %v7727 = vpack.c.b16 %v7535, %v7531
        %v7728 = vpack.c.b16 %v7536, %v7532
        %v7729 = vpack.c.b16 %v7541, %v7537
        %v7730 = vpack.c.b16 %v7542, %v7538
        %v7731 = vpack.c.b16 %v7543, %v7539
        %v7732 = vpack.c.b16 %v7544, %v7540
        %v7733 = vpack.c.b16 %v7549, %v7545
        %v7734 = vpack.c.b16 %v7550, %v7546
        %v7735 = vpack.c.b16 %v7551, %v7547
        %v7736 = vpack.c.b16 %v7552, %v7548
        %v7737 = vpack.c.b16 %v7557, %v7553
        %v7738 = vpack.c.b16 %v7558, %v7554
        %v7739 = vpack.c.b16 %v7559, %v7555
        %v7740 = vpack.c.b16 %v7560, %v7556
        %v7741 = vpack.c.b16 %v7565, %v7561
        %v7742 = vpack.c.b16 %v7566, %v7562
        %v7743 = vpack.c.b16 %v7567, %v7563
        %v7744 = vpack.c.b16 %v7568, %v7564
        %v7745 = vpack.c.b16 %v7573, %v7569
        %v7746 = vpack.c.b16 %v7574, %v7570
        %v7747 = vpack.c.b16 %v7575, %v7571
        %v7748 = vpack.c.b16 %v7576, %v7572
        %v7749 = vpack.c.b16 %v7581, %v7577
        %v7750 = vpack.c.b16 %v7582, %v7578
        %v7751 = vpack.c.b16 %v7583, %v7579
        %v7752 = vpack.c.b16 %v7584, %v7580
        %v7753 = vpack.c.b16 %v7589, %v7585
        %v7754 = vpack.c.b16 %v7590, %v7586
        %v7755 = vpack.c.b16 %v7591, %v7587
        %v7756 = vpack.c.b16 %v7592, %v7588
        %v7757 = vpack.c.b16 %v7597, %v7593
        %v7758 = vpack.c.b16 %v7598, %v7594
        %v7759 = vpack.c.b16 %v7599, %v7595
        %v7760 = vpack.c.b16 %v7600, %v7596
        %v7761 = vpack.c.b16 %v7605, %v7601
        %v7762 = vpack.c.b16 %v7606, %v7602
        %v7763 = vpack.c.b16 %v7607, %v7603
        %v7764 = vpack.c.b16 %v7608, %v7604
        %v7765 = vpack.c.b16 %v7613, %v7609
        %v7766 = vpack.c.b16 %v7614, %v7610
        %v7767 = vpack.c.b16 %v7615, %v7611
        %v7768 = vpack.c.b16 %v7616, %v7612
        %v7769 = vpack.c.b16 %v7621, %v7617
        %v7770 = vpack.c.b16 %v7622, %v7618
        %v7771 = vpack.c.b16 %v7623, %v7619
        %v7772 = vpack.c.b16 %v7624, %v7620
        %v7773 = vpack.c.b16 %v7629, %v7625
        %v7774 = vpack.c.b16 %v7630, %v7626
        %v7775 = vpack.c.b16 %v7631, %v7627
        %v7776 = vpack.c.b16 %v7632, %v7628
        %v7777 = vpack.c.b16 %v7637, %v7633
        %v7778 = vpack.c.b16 %v7638, %v7634
        %v7779 = vpack.c.b16 %v7639, %v7635
        %v7780 = vpack.c.b16 %v7640, %v7636
        %v7781 = vpack.c.b16 %v7645, %v7641
        %v7782 = vpack.c.b16 %v7646, %v7642
        %v7783 = vpack.c.b16 %v7647, %v7643
        %v7784 = vpack.c.b16 %v7648, %v7644
        %v7785 = vpack.c.b16 %v7653, %v7649
        %v7786 = vpack.c.b16 %v7654, %v7650
        %v7787 = vpack.c.b16 %v7655, %v7651
        %v7788 = vpack.c.b16 %v7656, %v7652
        %v7789 = vpack.c.b16 %v7661, %v7657
        %v7790 = vpack.c.b16 %v7662, %v7658
        %v7791 = vpack.c.b16 %v7663, %v7659
        %v7792 = vpack.c.b16 %v7664, %v7660
        %7921 = vmatpush.bf16.msra.mxu0 %v7693
        %7922 = vmatpush.bf16.msra.mxu0 %v7689
        %7923 = vmatpush.bf16.msra.mxu0 %v7685
        %7924 = vmatpush.bf16.msra.mxu0 %v7681
        %7925 = vmatpush.bf16.msra.mxu0 %v7677
        %7926 = vmatpush.bf16.msra.mxu0 %v7673
        %7927 = vmatpush.bf16.msra.mxu0 %v7669
        %7928 = vmatpush.bf16.msra.mxu0 %v7665
        %7929 = vmatmul.bf16.gmra.mxu0 %v7217
        %v7930 = vpop.f32.mrf.mxu0
        %v7931 = vadd.f32 %v7113, %v7930
        %v7932 = vpop.f32.mrf.mxu0
        %v7933 = vadd.f32 %v7113, %v7932
        %7934 = vmatmul.bf16.gmra.mxu0 %v7221
        %v7935 = vpop.f32.mrf.mxu0
        %v7936 = vadd.f32 %v7113, %v7935
        %v7937 = vpop.f32.mrf.mxu0
        %v7938 = vadd.f32 %v7113, %v7937
        %7939 = vmatmul.bf16.gmra.mxu0 %v7225
        %v7940 = vpop.f32.mrf.mxu0
        %v7941 = vadd.f32 %v7113, %v7940
        %v7942 = vpop.f32.mrf.mxu0
        %v7943 = vadd.f32 %v7113, %v7942
        %7944 = vmatmul.bf16.gmra.mxu0 %v7229
        %v7945 = vpop.f32.mrf.mxu0
        %v7946 = vadd.f32 %v7113, %v7945
        %v7947 = vpop.f32.mrf.mxu0
        %v7948 = vadd.f32 %v7113, %v7947
        %7949 = vmatmul.bf16.gmra.mxu0 %v7233
        %v7950 = vpop.f32.mrf.mxu0
        %v7951 = vadd.f32 %v7113, %v7950
        %v7952 = vpop.f32.mrf.mxu0
        %v7953 = vadd.f32 %v7113, %v7952
        %7954 = vmatmul.bf16.gmra.mxu0 %v7237
        %v7955 = vpop.f32.mrf.mxu0
        %v7956 = vadd.f32 %v7113, %v7955
        %v7957 = vpop.f32.mrf.mxu0
        %v7958 = vadd.f32 %v7113, %v7957
        %7959 = vmatmul.bf16.gmra.mxu0 %v7241
        %v7960 = vpop.f32.mrf.mxu0
        %v7961 = vadd.f32 %v7113, %v7960
        %v7962 = vpop.f32.mrf.mxu0
        %v7963 = vadd.f32 %v7113, %v7962
        %7964 = vmatmul.bf16.gmra.mxu0 %v7245
        %v7965 = vpop.f32.mrf.mxu0
        %v7966 = vadd.f32 %v7113, %v7965
        %v7967 = vpop.f32.mrf.mxu0
        %v7968 = vadd.f32 %v7113, %v7967
        %7969 = vdwg.mxu0
        %7970 = vmatpush.bf16.msra.mxu0 %v7725
        %7971 = vmatpush.bf16.msra.mxu0 %v7721
        %7972 = vmatpush.bf16.msra.mxu0 %v7717
        %7973 = vmatpush.bf16.msra.mxu0 %v7713
        %7974 = vmatpush.bf16.msra.mxu0 %v7709
        %7975 = vmatpush.bf16.msra.mxu0 %v7705
        %7976 = vmatpush.bf16.msra.mxu0 %v7701
        %7977 = vmatpush.bf16.msra.mxu0 %v7697
        %7978 = vmatmul.bf16.gmra.mxu0 %v7218
        %v7979 = vpop.f32.mrf.mxu0
        %v7980 = vadd.f32 %v7931, %v7979
        %v7981 = vpop.f32.mrf.mxu0
        %v7982 = vadd.f32 %v7933, %v7981
        %7983 = vmatmul.bf16.gmra.mxu0 %v7222
        %v7984 = vpop.f32.mrf.mxu0
        %v7985 = vadd.f32 %v7936, %v7984
        %v7986 = vpop.f32.mrf.mxu0
        %v7987 = vadd.f32 %v7938, %v7986
        %7988 = vmatmul.bf16.gmra.mxu0 %v7226
        %v7989 = vpop.f32.mrf.mxu0
        %v7990 = vadd.f32 %v7941, %v7989
        %v7991 = vpop.f32.mrf.mxu0
        %v7992 = vadd.f32 %v7943, %v7991
        %7993 = vmatmul.bf16.gmra.mxu0 %v7230
        %v7994 = vpop.f32.mrf.mxu0
        %v7995 = vadd.f32 %v7946, %v7994
        %v7996 = vpop.f32.mrf.mxu0
        %v7997 = vadd.f32 %v7948, %v7996
        %7998 = vmatmul.bf16.gmra.mxu0 %v7234
        %v7999 = vpop.f32.mrf.mxu0
        %v8000 = vadd.f32 %v7951, %v7999
        %v8001 = vpop.f32.mrf.mxu0
        %v8002 = vadd.f32 %v7953, %v8001
        %8003 = vmatmul.bf16.gmra.mxu0 %v7238
        %v8004 = vpop.f32.mrf.mxu0
        %v8005 = vadd.f32 %v7956, %v8004
        %v8006 = vpop.f32.mrf.mxu0
        %v8007 = vadd.f32 %v7958, %v8006
        %8008 = vmatmul.bf16.gmra.mxu0 %v7242
        %v8009 = vpop.f32.mrf.mxu0
        %v8010 = vadd.f32 %v7961, %v8009
        %v8011 = vpop.f32.mrf.mxu0
        %v8012 = vadd.f32 %v7963, %v8011
        %8013 = vmatmul.bf16.gmra.mxu0 %v7246
        %v8014 = vpop.f32.mrf.mxu0
        %v8015 = vadd.f32 %v7966, %v8014
        %v8016 = vpop.f32.mrf.mxu0
        %v8017 = vadd.f32 %v7968, %v8016
        %8018 = vdwg.mxu0
        %8019 = vmatpush.bf16.msra.mxu0 %v7757
        %8020 = vmatpush.bf16.msra.mxu0 %v7753
        %8021 = vmatpush.bf16.msra.mxu0 %v7749
        %8022 = vmatpush.bf16.msra.mxu0 %v7745
        %8023 = vmatpush.bf16.msra.mxu0 %v7741
        %8024 = vmatpush.bf16.msra.mxu0 %v7737
        %8025 = vmatpush.bf16.msra.mxu0 %v7733
        %8026 = vmatpush.bf16.msra.mxu0 %v7729
        %8027 = vmatmul.bf16.gmra.mxu0 %v7219
        %v8028 = vpop.f32.mrf.mxu0
        %v8029 = vadd.f32 %v7980, %v8028
        %v8030 = vpop.f32.mrf.mxu0
        %v8031 = vadd.f32 %v7982, %v8030
        %8032 = vmatmul.bf16.gmra.mxu0 %v7223
        %v8033 = vpop.f32.mrf.mxu0
        %v8034 = vadd.f32 %v7985, %v8033
        %v8035 = vpop.f32.mrf.mxu0
        %v8036 = vadd.f32 %v7987, %v8035
        %8037 = vmatmul.bf16.gmra.mxu0 %v7227
        %v8038 = vpop.f32.mrf.mxu0
        %v8039 = vadd.f32 %v7990, %v8038
        %v8040 = vpop.f32.mrf.mxu0
        %v8041 = vadd.f32 %v7992, %v8040
        %8042 = vmatmul.bf16.gmra.mxu0 %v7231
        %v8043 = vpop.f32.mrf.mxu0
        %v8044 = vadd.f32 %v7995, %v8043
        %v8045 = vpop.f32.mrf.mxu0
        %v8046 = vadd.f32 %v7997, %v8045
        %8047 = vmatmul.bf16.gmra.mxu0 %v7235
        %v8048 = vpop.f32.mrf.mxu0
        %v8049 = vadd.f32 %v8000, %v8048
        %v8050 = vpop.f32.mrf.mxu0
        %v8051 = vadd.f32 %v8002, %v8050
        %8052 = vmatmul.bf16.gmra.mxu0 %v7239
        %v8053 = vpop.f32.mrf.mxu0
        %v8054 = vadd.f32 %v8005, %v8053
        %v8055 = vpop.f32.mrf.mxu0
        %v8056 = vadd.f32 %v8007, %v8055
        %8057 = vmatmul.bf16.gmra.mxu0 %v7243
        %v8058 = vpop.f32.mrf.mxu0
        %v8059 = vadd.f32 %v8010, %v8058
        %v8060 = vpop.f32.mrf.mxu0
        %v8061 = vadd.f32 %v8012, %v8060
        %8062 = vmatmul.bf16.gmra.mxu0 %v7247
        %v8063 = vpop.f32.mrf.mxu0
        %v8064 = vadd.f32 %v8015, %v8063
        %v8065 = vpop.f32.mrf.mxu0
        %v8066 = vadd.f32 %v8017, %v8065
        %8067 = vdwg.mxu0
        %8068 = vmatpush.bf16.msra.mxu0 %v7789
        %8069 = vmatpush.bf16.msra.mxu0 %v7785
        %8070 = vmatpush.bf16.msra.mxu0 %v7781
        %8071 = vmatpush.bf16.msra.mxu0 %v7777
        %8072 = vmatpush.bf16.msra.mxu0 %v7773
        %8073 = vmatpush.bf16.msra.mxu0 %v7769
        %8074 = vmatpush.bf16.msra.mxu0 %v7765
        %8075 = vmatpush.bf16.msra.mxu0 %v7761
        %8076 = vmatmul.bf16.gmra.mxu0 %v7220
        %v8077 = vpop.f32.mrf.mxu0
        %v8078 = vadd.f32 %v8029, %v8077
        %v8079 = vpop.f32.mrf.mxu0
        %v8080 = vadd.f32 %v8031, %v8079
        %8081 = vmatmul.bf16.gmra.mxu0 %v7224
        %v8082 = vpop.f32.mrf.mxu0
        %v8083 = vadd.f32 %v8034, %v8082
        %v8084 = vpop.f32.mrf.mxu0
        %v8085 = vadd.f32 %v8036, %v8084
        %8086 = vmatmul.bf16.gmra.mxu0 %v7228
        %v8087 = vpop.f32.mrf.mxu0
        %v8088 = vadd.f32 %v8039, %v8087
        %v8089 = vpop.f32.mrf.mxu0
        %v8090 = vadd.f32 %v8041, %v8089
        %8091 = vmatmul.bf16.gmra.mxu0 %v7232
        %v8092 = vpop.f32.mrf.mxu0
        %v8093 = vadd.f32 %v8044, %v8092
        %v8094 = vpop.f32.mrf.mxu0
        %v8095 = vadd.f32 %v8046, %v8094
        %8096 = vmatmul.bf16.gmra.mxu0 %v7236
        %v8097 = vpop.f32.mrf.mxu0
        %v8098 = vadd.f32 %v8049, %v8097
        %v8099 = vpop.f32.mrf.mxu0
        %v8100 = vadd.f32 %v8051, %v8099
        %8101 = vmatmul.bf16.gmra.mxu0 %v7240
        %v8102 = vpop.f32.mrf.mxu0
        %v8103 = vadd.f32 %v8054, %v8102
        %v8104 = vpop.f32.mrf.mxu0
        %v8105 = vadd.f32 %v8056, %v8104
        %8106 = vmatmul.bf16.gmra.mxu0 %v7244
        %v8107 = vpop.f32.mrf.mxu0
        %v8108 = vadd.f32 %v8059, %v8107
        %v8109 = vpop.f32.mrf.mxu0
        %v8110 = vadd.f32 %v8061, %v8109
        %8111 = vmatmul.bf16.gmra.mxu0 %v7248
        %v8112 = vpop.f32.mrf.mxu0
        %v8113 = vadd.f32 %v8064, %v8112
        %v8114 = vpop.f32.mrf.mxu0
        %v8115 = vadd.f32 %v8066, %v8114
        %8116 = vdwg.mxu0
        %8117 = vmatpush.bf16.msra.mxu0 %v7694
        %8118 = vmatpush.bf16.msra.mxu0 %v7690
        %8119 = vmatpush.bf16.msra.mxu0 %v7686
        %8120 = vmatpush.bf16.msra.mxu0 %v7682
        %8121 = vmatpush.bf16.msra.mxu0 %v7678
        %8122 = vmatpush.bf16.msra.mxu0 %v7674
        %8123 = vmatpush.bf16.msra.mxu0 %v7670
        %8124 = vmatpush.bf16.msra.mxu0 %v7666
        %8125 = vmatmul.bf16.gmra.mxu0 %v7217
        %v8126 = vpop.f32.mrf.mxu0
        %v8127 = vadd.f32 %v7114, %v8126
        %v8128 = vpop.f32.mrf.mxu0
        %v8129 = vadd.f32 %v7114, %v8128
        %8130 = vmatmul.bf16.gmra.mxu0 %v7221
        %v8131 = vpop.f32.mrf.mxu0
        %v8132 = vadd.f32 %v7114, %v8131
        %v8133 = vpop.f32.mrf.mxu0
        %v8134 = vadd.f32 %v7114, %v8133
        %8135 = vmatmul.bf16.gmra.mxu0 %v7225
        %v8136 = vpop.f32.mrf.mxu0
        %v8137 = vadd.f32 %v7114, %v8136
        %v8138 = vpop.f32.mrf.mxu0
        %v8139 = vadd.f32 %v7114, %v8138
        %8140 = vmatmul.bf16.gmra.mxu0 %v7229
        %v8141 = vpop.f32.mrf.mxu0
        %v8142 = vadd.f32 %v7114, %v8141
        %v8143 = vpop.f32.mrf.mxu0
        %v8144 = vadd.f32 %v7114, %v8143
        %8145 = vmatmul.bf16.gmra.mxu0 %v7233
        %v8146 = vpop.f32.mrf.mxu0
        %v8147 = vadd.f32 %v7114, %v8146
        %v8148 = vpop.f32.mrf.mxu0
        %v8149 = vadd.f32 %v7114, %v8148
        %8150 = vmatmul.bf16.gmra.mxu0 %v7237
        %v8151 = vpop.f32.mrf.mxu0
        %v8152 = vadd.f32 %v7114, %v8151
        %v8153 = vpop.f32.mrf.mxu0
        %v8154 = vadd.f32 %v7114, %v8153
        %8155 = vmatmul.bf16.gmra.mxu0 %v7241
        %v8156 = vpop.f32.mrf.mxu0
        %v8157 = vadd.f32 %v7114, %v8156
        %v8158 = vpop.f32.mrf.mxu0
        %v8159 = vadd.f32 %v7114, %v8158
        %8160 = vmatmul.bf16.gmra.mxu0 %v7245
        %v8161 = vpop.f32.mrf.mxu0
        %v8162 = vadd.f32 %v7114, %v8161
        %v8163 = vpop.f32.mrf.mxu0
        %v8164 = vadd.f32 %v7114, %v8163
        %8165 = vdwg.mxu0
        %8166 = vmatpush.bf16.msra.mxu0 %v7726
        %8167 = vmatpush.bf16.msra.mxu0 %v7722
        %8168 = vmatpush.bf16.msra.mxu0 %v7718
        %8169 = vmatpush.bf16.msra.mxu0 %v7714
        %8170 = vmatpush.bf16.msra.mxu0 %v7710
        %8171 = vmatpush.bf16.msra.mxu0 %v7706
        %8172 = vmatpush.bf16.msra.mxu0 %v7702
        %8173 = vmatpush.bf16.msra.mxu0 %v7698
        %8174 = vmatmul.bf16.gmra.mxu0 %v7218
        %v8175 = vpop.f32.mrf.mxu0
        %v8176 = vadd.f32 %v8127, %v8175
        %v8177 = vpop.f32.mrf.mxu0
        %v8178 = vadd.f32 %v8129, %v8177
        %8179 = vmatmul.bf16.gmra.mxu0 %v7222
        %v8180 = vpop.f32.mrf.mxu0
        %v8181 = vadd.f32 %v8132, %v8180
        %v8182 = vpop.f32.mrf.mxu0
        %v8183 = vadd.f32 %v8134, %v8182
        %8184 = vmatmul.bf16.gmra.mxu0 %v7226
        %v8185 = vpop.f32.mrf.mxu0
        %v8186 = vadd.f32 %v8137, %v8185
        %v8187 = vpop.f32.mrf.mxu0
        %v8188 = vadd.f32 %v8139, %v8187
        %8189 = vmatmul.bf16.gmra.mxu0 %v7230
        %v8190 = vpop.f32.mrf.mxu0
        %v8191 = vadd.f32 %v8142, %v8190
        %v8192 = vpop.f32.mrf.mxu0
        %v8193 = vadd.f32 %v8144, %v8192
        %8194 = vmatmul.bf16.gmra.mxu0 %v7234
        %v8195 = vpop.f32.mrf.mxu0
        %v8196 = vadd.f32 %v8147, %v8195
        %v8197 = vpop.f32.mrf.mxu0
        %v8198 = vadd.f32 %v8149, %v8197
        %8199 = vmatmul.bf16.gmra.mxu0 %v7238
        %v8200 = vpop.f32.mrf.mxu0
        %v8201 = vadd.f32 %v8152, %v8200
        %v8202 = vpop.f32.mrf.mxu0
        %v8203 = vadd.f32 %v8154, %v8202
        %8204 = vmatmul.bf16.gmra.mxu0 %v7242
        %v8205 = vpop.f32.mrf.mxu0
        %v8206 = vadd.f32 %v8157, %v8205
        %v8207 = vpop.f32.mrf.mxu0
        %v8208 = vadd.f32 %v8159, %v8207
        %8209 = vmatmul.bf16.gmra.mxu0 %v7246
        %v8210 = vpop.f32.mrf.mxu0
        %v8211 = vadd.f32 %v8162, %v8210
        %v8212 = vpop.f32.mrf.mxu0
        %v8213 = vadd.f32 %v8164, %v8212
        %8214 = vdwg.mxu0
        %8215 = vmatpush.bf16.msra.mxu0 %v7758
        %8216 = vmatpush.bf16.msra.mxu0 %v7754
        %8217 = vmatpush.bf16.msra.mxu0 %v7750
        %8218 = vmatpush.bf16.msra.mxu0 %v7746
        %8219 = vmatpush.bf16.msra.mxu0 %v7742
        %8220 = vmatpush.bf16.msra.mxu0 %v7738
        %8221 = vmatpush.bf16.msra.mxu0 %v7734
        %8222 = vmatpush.bf16.msra.mxu0 %v7730
        %8223 = vmatmul.bf16.gmra.mxu0 %v7219
        %v8224 = vpop.f32.mrf.mxu0
        %v8225 = vadd.f32 %v8176, %v8224
        %v8226 = vpop.f32.mrf.mxu0
        %v8227 = vadd.f32 %v8178, %v8226
        %8228 = vmatmul.bf16.gmra.mxu0 %v7223
        %v8229 = vpop.f32.mrf.mxu0
        %v8230 = vadd.f32 %v8181, %v8229
        %v8231 = vpop.f32.mrf.mxu0
        %v8232 = vadd.f32 %v8183, %v8231
        %8233 = vmatmul.bf16.gmra.mxu0 %v7227
        %v8234 = vpop.f32.mrf.mxu0
        %v8235 = vadd.f32 %v8186, %v8234
        %v8236 = vpop.f32.mrf.mxu0
        %v8237 = vadd.f32 %v8188, %v8236
        %8238 = vmatmul.bf16.gmra.mxu0 %v7231
        %v8239 = vpop.f32.mrf.mxu0
        %v8240 = vadd.f32 %v8191, %v8239
        %v8241 = vpop.f32.mrf.mxu0
        %v8242 = vadd.f32 %v8193, %v8241
        %8243 = vmatmul.bf16.gmra.mxu0 %v7235
        %v8244 = vpop.f32.mrf.mxu0
        %v8245 = vadd.f32 %v8196, %v8244
        %v8246 = vpop.f32.mrf.mxu0
        %v8247 = vadd.f32 %v8198, %v8246
        %8248 = vmatmul.bf16.gmra.mxu0 %v7239
        %v8249 = vpop.f32.mrf.mxu0
        %v8250 = vadd.f32 %v8201, %v8249
        %v8251 = vpop.f32.mrf.mxu0
        %v8252 = vadd.f32 %v8203, %v8251
        %8253 = vmatmul.bf16.gmra.mxu0 %v7243
        %v8254 = vpop.f32.mrf.mxu0
        %v8255 = vadd.f32 %v8206, %v8254
        %v8256 = vpop.f32.mrf.mxu0
        %v8257 = vadd.f32 %v8208, %v8256
        %8258 = vmatmul.bf16.gmra.mxu0 %v7247
        %v8259 = vpop.f32.mrf.mxu0
        %v8260 = vadd.f32 %v8211, %v8259
        %v8261 = vpop.f32.mrf.mxu0
        %v8262 = vadd.f32 %v8213, %v8261
        %8263 = vdwg.mxu0
        %8264 = vmatpush.bf16.msra.mxu0 %v7790
        %8265 = vmatpush.bf16.msra.mxu0 %v7786
        %8266 = vmatpush.bf16.msra.mxu0 %v7782
        %8267 = vmatpush.bf16.msra.mxu0 %v7778
        %8268 = vmatpush.bf16.msra.mxu0 %v7774
        %8269 = vmatpush.bf16.msra.mxu0 %v7770
        %8270 = vmatpush.bf16.msra.mxu0 %v7766
        %8271 = vmatpush.bf16.msra.mxu0 %v7762
        %8272 = vmatmul.bf16.gmra.mxu0 %v7220
        %v8273 = vpop.f32.mrf.mxu0
        %v8274 = vadd.f32 %v8225, %v8273
        %v8275 = vpop.f32.mrf.mxu0
        %v8276 = vadd.f32 %v8227, %v8275
        %8277 = vmatmul.bf16.gmra.mxu0 %v7224
        %v8278 = vpop.f32.mrf.mxu0
        %v8279 = vadd.f32 %v8230, %v8278
        %v8280 = vpop.f32.mrf.mxu0
        %v8281 = vadd.f32 %v8232, %v8280
        %8282 = vmatmul.bf16.gmra.mxu0 %v7228
        %v8283 = vpop.f32.mrf.mxu0
        %v8284 = vadd.f32 %v8235, %v8283
        %v8285 = vpop.f32.mrf.mxu0
        %v8286 = vadd.f32 %v8237, %v8285
        %8287 = vmatmul.bf16.gmra.mxu0 %v7232
        %v8288 = vpop.f32.mrf.mxu0
        %v8289 = vadd.f32 %v8240, %v8288
        %v8290 = vpop.f32.mrf.mxu0
        %v8291 = vadd.f32 %v8242, %v8290
        %8292 = vmatmul.bf16.gmra.mxu0 %v7236
        %v8293 = vpop.f32.mrf.mxu0
        %v8294 = vadd.f32 %v8245, %v8293
        %v8295 = vpop.f32.mrf.mxu0
        %v8296 = vadd.f32 %v8247, %v8295
        %8297 = vmatmul.bf16.gmra.mxu0 %v7240
        %v8298 = vpop.f32.mrf.mxu0
        %v8299 = vadd.f32 %v8250, %v8298
        %v8300 = vpop.f32.mrf.mxu0
        %v8301 = vadd.f32 %v8252, %v8300
        %8302 = vmatmul.bf16.gmra.mxu0 %v7244
        %v8303 = vpop.f32.mrf.mxu0
        %v8304 = vadd.f32 %v8255, %v8303
        %v8305 = vpop.f32.mrf.mxu0
        %v8306 = vadd.f32 %v8257, %v8305
        %8307 = vmatmul.bf16.gmra.mxu0 %v7248
        %v8308 = vpop.f32.mrf.mxu0
        %v8309 = vadd.f32 %v8260, %v8308
        %v8310 = vpop.f32.mrf.mxu0
        %v8311 = vadd.f32 %v8262, %v8310
        %8312 = vdwg.mxu0
        %8313 = vmatpush.bf16.msra.mxu0 %v7695
        %8314 = vmatpush.bf16.msra.mxu0 %v7691
        %8315 = vmatpush.bf16.msra.mxu0 %v7687
        %8316 = vmatpush.bf16.msra.mxu0 %v7683
        %8317 = vmatpush.bf16.msra.mxu0 %v7679
        %8318 = vmatpush.bf16.msra.mxu0 %v7675
        %8319 = vmatpush.bf16.msra.mxu0 %v7671
        %8320 = vmatpush.bf16.msra.mxu0 %v7667
        %8321 = vmatmul.bf16.gmra.mxu0 %v7217
        %v8322 = vpop.f32.mrf.mxu0
        %v8323 = vadd.f32 %v7115, %v8322
        %v8324 = vpop.f32.mrf.mxu0
        %v8325 = vadd.f32 %v7115, %v8324
        %8326 = vmatmul.bf16.gmra.mxu0 %v7221
        %v8327 = vpop.f32.mrf.mxu0
        %v8328 = vadd.f32 %v7115, %v8327
        %v8329 = vpop.f32.mrf.mxu0
        %v8330 = vadd.f32 %v7115, %v8329
        %8331 = vmatmul.bf16.gmra.mxu0 %v7225
        %v8332 = vpop.f32.mrf.mxu0
        %v8333 = vadd.f32 %v7115, %v8332
        %v8334 = vpop.f32.mrf.mxu0
        %v8335 = vadd.f32 %v7115, %v8334
        %8336 = vmatmul.bf16.gmra.mxu0 %v7229
        %v8337 = vpop.f32.mrf.mxu0
        %v8338 = vadd.f32 %v7115, %v8337
        %v8339 = vpop.f32.mrf.mxu0
        %v8340 = vadd.f32 %v7115, %v8339
        %8341 = vmatmul.bf16.gmra.mxu0 %v7233
        %v8342 = vpop.f32.mrf.mxu0
        %v8343 = vadd.f32 %v7115, %v8342
        %v8344 = vpop.f32.mrf.mxu0
        %v8345 = vadd.f32 %v7115, %v8344
        %8346 = vmatmul.bf16.gmra.mxu0 %v7237
        %v8347 = vpop.f32.mrf.mxu0
        %v8348 = vadd.f32 %v7115, %v8347
        %v8349 = vpop.f32.mrf.mxu0
        %v8350 = vadd.f32 %v7115, %v8349
        %8351 = vmatmul.bf16.gmra.mxu0 %v7241
        %v8352 = vpop.f32.mrf.mxu0
        %v8353 = vadd.f32 %v7115, %v8352
        %v8354 = vpop.f32.mrf.mxu0
        %v8355 = vadd.f32 %v7115, %v8354
        %8356 = vmatmul.bf16.gmra.mxu0 %v7245
        %v8357 = vpop.f32.mrf.mxu0
        %v8358 = vadd.f32 %v7115, %v8357
        %v8359 = vpop.f32.mrf.mxu0
        %v8360 = vadd.f32 %v7115, %v8359
        %8361 = vdwg.mxu0
        %8362 = vmatpush.bf16.msra.mxu0 %v7727
        %8363 = vmatpush.bf16.msra.mxu0 %v7723
        %8364 = vmatpush.bf16.msra.mxu0 %v7719
        %8365 = vmatpush.bf16.msra.mxu0 %v7715
        %8366 = vmatpush.bf16.msra.mxu0 %v7711
        %8367 = vmatpush.bf16.msra.mxu0 %v7707
        %8368 = vmatpush.bf16.msra.mxu0 %v7703
        %8369 = vmatpush.bf16.msra.mxu0 %v7699
        %8370 = vmatmul.bf16.gmra.mxu0 %v7218
        %v8371 = vpop.f32.mrf.mxu0
        %v8372 = vadd.f32 %v8323, %v8371
        %v8373 = vpop.f32.mrf.mxu0
        %v8374 = vadd.f32 %v8325, %v8373
        %8375 = vmatmul.bf16.gmra.mxu0 %v7222
        %v8376 = vpop.f32.mrf.mxu0
        %v8377 = vadd.f32 %v8328, %v8376
        %v8378 = vpop.f32.mrf.mxu0
        %v8379 = vadd.f32 %v8330, %v8378
        %8380 = vmatmul.bf16.gmra.mxu0 %v7226
        %v8381 = vpop.f32.mrf.mxu0
        %v8382 = vadd.f32 %v8333, %v8381
        %v8383 = vpop.f32.mrf.mxu0
        %v8384 = vadd.f32 %v8335, %v8383
        %8385 = vmatmul.bf16.gmra.mxu0 %v7230
        %v8386 = vpop.f32.mrf.mxu0
        %v8387 = vadd.f32 %v8338, %v8386
        %v8388 = vpop.f32.mrf.mxu0
        %v8389 = vadd.f32 %v8340, %v8388
        %8390 = vmatmul.bf16.gmra.mxu0 %v7234
        %v8391 = vpop.f32.mrf.mxu0
        %v8392 = vadd.f32 %v8343, %v8391
        %v8393 = vpop.f32.mrf.mxu0
        %v8394 = vadd.f32 %v8345, %v8393
        %8395 = vmatmul.bf16.gmra.mxu0 %v7238
        %v8396 = vpop.f32.mrf.mxu0
        %v8397 = vadd.f32 %v8348, %v8396
        %v8398 = vpop.f32.mrf.mxu0
        %v8399 = vadd.f32 %v8350, %v8398
        %8400 = vmatmul.bf16.gmra.mxu0 %v7242
        %v8401 = vpop.f32.mrf.mxu0
        %v8402 = vadd.f32 %v8353, %v8401
        %v8403 = vpop.f32.mrf.mxu0
        %v8404 = vadd.f32 %v8355, %v8403
        %8405 = vmatmul.bf16.gmra.mxu0 %v7246
        %v8406 = vpop.f32.mrf.mxu0
        %v8407 = vadd.f32 %v8358, %v8406
        %v8408 = vpop.f32.mrf.mxu0
        %v8409 = vadd.f32 %v8360, %v8408
        %8410 = vdwg.mxu0
        %8411 = vmatpush.bf16.msra.mxu0 %v7759
        %8412 = vmatpush.bf16.msra.mxu0 %v7755
        %8413 = vmatpush.bf16.msra.mxu0 %v7751
        %8414 = vmatpush.bf16.msra.mxu0 %v7747
        %8415 = vmatpush.bf16.msra.mxu0 %v7743
        %8416 = vmatpush.bf16.msra.mxu0 %v7739
        %8417 = vmatpush.bf16.msra.mxu0 %v7735
        %8418 = vmatpush.bf16.msra.mxu0 %v7731
        %8419 = vmatmul.bf16.gmra.mxu0 %v7219
        %v8420 = vpop.f32.mrf.mxu0
        %v8421 = vadd.f32 %v8372, %v8420
        %v8422 = vpop.f32.mrf.mxu0
        %v8423 = vadd.f32 %v8374, %v8422
        %8424 = vmatmul.bf16.gmra.mxu0 %v7223
        %v8425 = vpop.f32.mrf.mxu0
        %v8426 = vadd.f32 %v8377, %v8425
        %v8427 = vpop.f32.mrf.mxu0
        %v8428 = vadd.f32 %v8379, %v8427
        %8429 = vmatmul.bf16.gmra.mxu0 %v7227
        %v8430 = vpop.f32.mrf.mxu0
        %v8431 = vadd.f32 %v8382, %v8430
        %v8432 = vpop.f32.mrf.mxu0
        %v8433 = vadd.f32 %v8384, %v8432
        %8434 = vmatmul.bf16.gmra.mxu0 %v7231
        %v8435 = vpop.f32.mrf.mxu0
        %v8436 = vadd.f32 %v8387, %v8435
        %v8437 = vpop.f32.mrf.mxu0
        %v8438 = vadd.f32 %v8389, %v8437
        %8439 = vmatmul.bf16.gmra.mxu0 %v7235
        %v8440 = vpop.f32.mrf.mxu0
        %v8441 = vadd.f32 %v8392, %v8440
        %v8442 = vpop.f32.mrf.mxu0
        %v8443 = vadd.f32 %v8394, %v8442
        %8444 = vmatmul.bf16.gmra.mxu0 %v7239
        %v8445 = vpop.f32.mrf.mxu0
        %v8446 = vadd.f32 %v8397, %v8445
        %v8447 = vpop.f32.mrf.mxu0
        %v8448 = vadd.f32 %v8399, %v8447
        %8449 = vmatmul.bf16.gmra.mxu0 %v7243
        %v8450 = vpop.f32.mrf.mxu0
        %v8451 = vadd.f32 %v8402, %v8450
        %v8452 = vpop.f32.mrf.mxu0
        %v8453 = vadd.f32 %v8404, %v8452
        %8454 = vmatmul.bf16.gmra.mxu0 %v7247
        %v8455 = vpop.f32.mrf.mxu0
        %v8456 = vadd.f32 %v8407, %v8455
        %v8457 = vpop.f32.mrf.mxu0
        %v8458 = vadd.f32 %v8409, %v8457
        %8459 = vdwg.mxu0
        %8460 = vmatpush.bf16.msra.mxu0 %v7791
        %8461 = vmatpush.bf16.msra.mxu0 %v7787
        %8462 = vmatpush.bf16.msra.mxu0 %v7783
        %8463 = vmatpush.bf16.msra.mxu0 %v7779
        %8464 = vmatpush.bf16.msra.mxu0 %v7775
        %8465 = vmatpush.bf16.msra.mxu0 %v7771
        %8466 = vmatpush.bf16.msra.mxu0 %v7767
        %8467 = vmatpush.bf16.msra.mxu0 %v7763
        %8468 = vmatmul.bf16.gmra.mxu0 %v7220
        %v8469 = vpop.f32.mrf.mxu0
        %v8470 = vadd.f32 %v8421, %v8469
        %v8471 = vpop.f32.mrf.mxu0
        %v8472 = vadd.f32 %v8423, %v8471
        %8473 = vmatmul.bf16.gmra.mxu0 %v7224
        %v8474 = vpop.f32.mrf.mxu0
        %v8475 = vadd.f32 %v8426, %v8474
        %v8476 = vpop.f32.mrf.mxu0
        %v8477 = vadd.f32 %v8428, %v8476
        %8478 = vmatmul.bf16.gmra.mxu0 %v7228
        %v8479 = vpop.f32.mrf.mxu0
        %v8480 = vadd.f32 %v8431, %v8479
        %v8481 = vpop.f32.mrf.mxu0
        %v8482 = vadd.f32 %v8433, %v8481
        %8483 = vmatmul.bf16.gmra.mxu0 %v7232
        %v8484 = vpop.f32.mrf.mxu0
        %v8485 = vadd.f32 %v8436, %v8484
        %v8486 = vpop.f32.mrf.mxu0
        %v8487 = vadd.f32 %v8438, %v8486
        %8488 = vmatmul.bf16.gmra.mxu0 %v7236
        %v8489 = vpop.f32.mrf.mxu0
        %v8490 = vadd.f32 %v8441, %v8489
        %v8491 = vpop.f32.mrf.mxu0
        %v8492 = vadd.f32 %v8443, %v8491
        %8493 = vmatmul.bf16.gmra.mxu0 %v7240
        %v8494 = vpop.f32.mrf.mxu0
        %v8495 = vadd.f32 %v8446, %v8494
        %v8496 = vpop.f32.mrf.mxu0
        %v8497 = vadd.f32 %v8448, %v8496
        %8498 = vmatmul.bf16.gmra.mxu0 %v7244
        %v8499 = vpop.f32.mrf.mxu0
        %v8500 = vadd.f32 %v8451, %v8499
        %v8501 = vpop.f32.mrf.mxu0
        %v8502 = vadd.f32 %v8453, %v8501
        %8503 = vmatmul.bf16.gmra.mxu0 %v7248
        %v8504 = vpop.f32.mrf.mxu0
        %v8505 = vadd.f32 %v8456, %v8504
        %v8506 = vpop.f32.mrf.mxu0
        %v8507 = vadd.f32 %v8458, %v8506
        %8508 = vdwg.mxu0
        %8509 = vmatpush.bf16.msra.mxu0 %v7696
        %8510 = vmatpush.bf16.msra.mxu0 %v7692
        %8511 = vmatpush.bf16.msra.mxu0 %v7688
        %8512 = vmatpush.bf16.msra.mxu0 %v7684
        %8513 = vmatpush.bf16.msra.mxu0 %v7680
        %8514 = vmatpush.bf16.msra.mxu0 %v7676
        %8515 = vmatpush.bf16.msra.mxu0 %v7672
        %8516 = vmatpush.bf16.msra.mxu0 %v7668
        %8517 = vmatmul.bf16.gmra.mxu0 %v7217
        %v8518 = vpop.f32.mrf.mxu0
        %v8519 = vadd.f32 %v7116, %v8518
        %v8520 = vpop.f32.mrf.mxu0
        %v8521 = vadd.f32 %v7116, %v8520
        %8522 = vmatmul.bf16.gmra.mxu0 %v7221
        %v8523 = vpop.f32.mrf.mxu0
        %v8524 = vadd.f32 %v7116, %v8523
        %v8525 = vpop.f32.mrf.mxu0
        %v8526 = vadd.f32 %v7116, %v8525
        %8527 = vmatmul.bf16.gmra.mxu0 %v7225
        %v8528 = vpop.f32.mrf.mxu0
        %v8529 = vadd.f32 %v7116, %v8528
        %v8530 = vpop.f32.mrf.mxu0
        %v8531 = vadd.f32 %v7116, %v8530
        %8532 = vmatmul.bf16.gmra.mxu0 %v7229
        %v8533 = vpop.f32.mrf.mxu0
        %v8534 = vadd.f32 %v7116, %v8533
        %v8535 = vpop.f32.mrf.mxu0
        %v8536 = vadd.f32 %v7116, %v8535
        %8537 = vmatmul.bf16.gmra.mxu0 %v7233
        %v8538 = vpop.f32.mrf.mxu0
        %v8539 = vadd.f32 %v7116, %v8538
        %v8540 = vpop.f32.mrf.mxu0
        %v8541 = vadd.f32 %v7116, %v8540
        %8542 = vmatmul.bf16.gmra.mxu0 %v7237
        %v8543 = vpop.f32.mrf.mxu0
        %v8544 = vadd.f32 %v7116, %v8543
        %v8545 = vpop.f32.mrf.mxu0
        %v8546 = vadd.f32 %v7116, %v8545
        %8547 = vmatmul.bf16.gmra.mxu0 %v7241
        %v8548 = vpop.f32.mrf.mxu0
        %v8549 = vadd.f32 %v7116, %v8548
        %v8550 = vpop.f32.mrf.mxu0
        %v8551 = vadd.f32 %v7116, %v8550
        %8552 = vmatmul.bf16.gmra.mxu0 %v7245
        %v8553 = vpop.f32.mrf.mxu0
        %v8554 = vadd.f32 %v7116, %v8553
        %v8555 = vpop.f32.mrf.mxu0
        %v8556 = vadd.f32 %v7116, %v8555
        %8557 = vdwg.mxu0
        %8558 = vmatpush.bf16.msra.mxu0 %v7728
        %8559 = vmatpush.bf16.msra.mxu0 %v7724
        %8560 = vmatpush.bf16.msra.mxu0 %v7720
        %8561 = vmatpush.bf16.msra.mxu0 %v7716
        %8562 = vmatpush.bf16.msra.mxu0 %v7712
        %8563 = vmatpush.bf16.msra.mxu0 %v7708
        %8564 = vmatpush.bf16.msra.mxu0 %v7704
        %8565 = vmatpush.bf16.msra.mxu0 %v7700
        %8566 = vmatmul.bf16.gmra.mxu0 %v7218
        %v8567 = vpop.f32.mrf.mxu0
        %v8568 = vadd.f32 %v8519, %v8567
        %v8569 = vpop.f32.mrf.mxu0
        %v8570 = vadd.f32 %v8521, %v8569
        %8571 = vmatmul.bf16.gmra.mxu0 %v7222
        %v8572 = vpop.f32.mrf.mxu0
        %v8573 = vadd.f32 %v8524, %v8572
        %v8574 = vpop.f32.mrf.mxu0
        %v8575 = vadd.f32 %v8526, %v8574
        %8576 = vmatmul.bf16.gmra.mxu0 %v7226
        %v8577 = vpop.f32.mrf.mxu0
        %v8578 = vadd.f32 %v8529, %v8577
        %v8579 = vpop.f32.mrf.mxu0
        %v8580 = vadd.f32 %v8531, %v8579
        %8581 = vmatmul.bf16.gmra.mxu0 %v7230
        %v8582 = vpop.f32.mrf.mxu0
        %v8583 = vadd.f32 %v8534, %v8582
        %v8584 = vpop.f32.mrf.mxu0
        %v8585 = vadd.f32 %v8536, %v8584
        %8586 = vmatmul.bf16.gmra.mxu0 %v7234
        %v8587 = vpop.f32.mrf.mxu0
        %v8588 = vadd.f32 %v8539, %v8587
        %v8589 = vpop.f32.mrf.mxu0
        %v8590 = vadd.f32 %v8541, %v8589
        %8591 = vmatmul.bf16.gmra.mxu0 %v7238
        %v8592 = vpop.f32.mrf.mxu0
        %v8593 = vadd.f32 %v8544, %v8592
        %v8594 = vpop.f32.mrf.mxu0
        %v8595 = vadd.f32 %v8546, %v8594
        %8596 = vmatmul.bf16.gmra.mxu0 %v7242
        %v8597 = vpop.f32.mrf.mxu0
        %v8598 = vadd.f32 %v8549, %v8597
        %v8599 = vpop.f32.mrf.mxu0
        %v8600 = vadd.f32 %v8551, %v8599
        %8601 = vmatmul.bf16.gmra.mxu0 %v7246
        %v8602 = vpop.f32.mrf.mxu0
        %v8603 = vadd.f32 %v8554, %v8602
        %v8604 = vpop.f32.mrf.mxu0
        %v8605 = vadd.f32 %v8556, %v8604
        %8606 = vdwg.mxu0
        %8607 = vmatpush.bf16.msra.mxu0 %v7760
        %8608 = vmatpush.bf16.msra.mxu0 %v7756
        %8609 = vmatpush.bf16.msra.mxu0 %v7752
        %8610 = vmatpush.bf16.msra.mxu0 %v7748
        %8611 = vmatpush.bf16.msra.mxu0 %v7744
        %8612 = vmatpush.bf16.msra.mxu0 %v7740
        %8613 = vmatpush.bf16.msra.mxu0 %v7736
        %8614 = vmatpush.bf16.msra.mxu0 %v7732
        %8615 = vmatmul.bf16.gmra.mxu0 %v7219
        %v8616 = vpop.f32.mrf.mxu0
        %v8617 = vadd.f32 %v8568, %v8616
        %v8618 = vpop.f32.mrf.mxu0
        %v8619 = vadd.f32 %v8570, %v8618
        %8620 = vmatmul.bf16.gmra.mxu0 %v7223
        %v8621 = vpop.f32.mrf.mxu0
        %v8622 = vadd.f32 %v8573, %v8621
        %v8623 = vpop.f32.mrf.mxu0
        %v8624 = vadd.f32 %v8575, %v8623
        %8625 = vmatmul.bf16.gmra.mxu0 %v7227
        %v8626 = vpop.f32.mrf.mxu0
        %v8627 = vadd.f32 %v8578, %v8626
        %v8628 = vpop.f32.mrf.mxu0
        %v8629 = vadd.f32 %v8580, %v8628
        %8630 = vmatmul.bf16.gmra.mxu0 %v7231
        %v8631 = vpop.f32.mrf.mxu0
        %v8632 = vadd.f32 %v8583, %v8631
        %v8633 = vpop.f32.mrf.mxu0
        %v8634 = vadd.f32 %v8585, %v8633
        %8635 = vmatmul.bf16.gmra.mxu0 %v7235
        %v8636 = vpop.f32.mrf.mxu0
        %v8637 = vadd.f32 %v8588, %v8636
        %v8638 = vpop.f32.mrf.mxu0
        %v8639 = vadd.f32 %v8590, %v8638
        %8640 = vmatmul.bf16.gmra.mxu0 %v7239
        %v8641 = vpop.f32.mrf.mxu0
        %v8642 = vadd.f32 %v8593, %v8641
        %v8643 = vpop.f32.mrf.mxu0
        %v8644 = vadd.f32 %v8595, %v8643
        %8645 = vmatmul.bf16.gmra.mxu0 %v7243
        %v8646 = vpop.f32.mrf.mxu0
        %v8647 = vadd.f32 %v8598, %v8646
        %v8648 = vpop.f32.mrf.mxu0
        %v8649 = vadd.f32 %v8600, %v8648
        %8650 = vmatmul.bf16.gmra.mxu0 %v7247
        %v8651 = vpop.f32.mrf.mxu0
        %v8652 = vadd.f32 %v8603, %v8651
        %v8653 = vpop.f32.mrf.mxu0
        %v8654 = vadd.f32 %v8605, %v8653
        %8655 = vdwg.mxu0
        %8656 = vmatpush.bf16.msra.mxu0 %v7792
        %8657 = vmatpush.bf16.msra.mxu0 %v7788
        %8658 = vmatpush.bf16.msra.mxu0 %v7784
        %8659 = vmatpush.bf16.msra.mxu0 %v7780
        %8660 = vmatpush.bf16.msra.mxu0 %v7776
        %8661 = vmatpush.bf16.msra.mxu0 %v7772
        %8662 = vmatpush.bf16.msra.mxu0 %v7768
        %8663 = vmatpush.bf16.msra.mxu0 %v7764
        %8664 = vmatmul.bf16.gmra.mxu0 %v7220
        %v8665 = vpop.f32.mrf.mxu0
        %v8666 = vadd.f32 %v8617, %v8665
        %v8667 = vpop.f32.mrf.mxu0
        %v8668 = vadd.f32 %v8619, %v8667
        %8669 = vmatmul.bf16.gmra.mxu0 %v7224
        %v8670 = vpop.f32.mrf.mxu0
        %v8671 = vadd.f32 %v8622, %v8670
        %v8672 = vpop.f32.mrf.mxu0
        %v8673 = vadd.f32 %v8624, %v8672
        %8674 = vmatmul.bf16.gmra.mxu0 %v7228
        %v8675 = vpop.f32.mrf.mxu0
        %v8676 = vadd.f32 %v8627, %v8675
        %v8677 = vpop.f32.mrf.mxu0
        %v8678 = vadd.f32 %v8629, %v8677
        %8679 = vmatmul.bf16.gmra.mxu0 %v7232
        %v8680 = vpop.f32.mrf.mxu0
        %v8681 = vadd.f32 %v8632, %v8680
        %v8682 = vpop.f32.mrf.mxu0
        %v8683 = vadd.f32 %v8634, %v8682
        %8684 = vmatmul.bf16.gmra.mxu0 %v7236
        %v8685 = vpop.f32.mrf.mxu0
        %v8686 = vadd.f32 %v8637, %v8685
        %v8687 = vpop.f32.mrf.mxu0
        %v8688 = vadd.f32 %v8639, %v8687
        %8689 = vmatmul.bf16.gmra.mxu0 %v7240
        %v8690 = vpop.f32.mrf.mxu0
        %v8691 = vadd.f32 %v8642, %v8690
        %v8692 = vpop.f32.mrf.mxu0
        %v8693 = vadd.f32 %v8644, %v8692
        %8694 = vmatmul.bf16.gmra.mxu0 %v7244
        %v8695 = vpop.f32.mrf.mxu0
        %v8696 = vadd.f32 %v8647, %v8695
        %v8697 = vpop.f32.mrf.mxu0
        %v8698 = vadd.f32 %v8649, %v8697
        %8699 = vmatmul.bf16.gmra.mxu0 %v7248
        %v8700 = vpop.f32.mrf.mxu0
        %v8701 = vadd.f32 %v8652, %v8700
        %v8702 = vpop.f32.mrf.mxu0
        %v8703 = vadd.f32 %v8654, %v8702
        %8704 = vdwg.mxu0
        %8705 = vst [vmem:[%s306] sm:$0xff] %v8078
        %8706 = vst [vmem:[%s306 + $0x8] sm:$0xff] %v8274
        %8707 = vst [vmem:[%s306 + $0x10] sm:$0xff] %v8470
        %8708 = vst [vmem:[%s306 + $0x18] sm:$0xff] %v8666
        %8709 = vst [vmem:[%s306 + $0x20] sm:$0xff] %v8080
        %8710 = vst [vmem:[%s306 + $0x28] sm:$0xff] %v8276
        %8711 = vst [vmem:[%s306 + $0x30] sm:$0xff] %v8472
        %8712 = vst [vmem:[%s306 + $0x38] sm:$0xff] %v8668
        %8713 = vst [vmem:[%s306 + $0x40] sm:$0xff] %v8083
        %8714 = vst [vmem:[%s306 + $0x48] sm:$0xff] %v8279
        %8715 = vst [vmem:[%s306 + $0x50] sm:$0xff] %v8475
        %8716 = vst [vmem:[%s306 + $0x58] sm:$0xff] %v8671
        %8717 = vst [vmem:[%s306 + $0x60] sm:$0xff] %v8085
        %8718 = vst [vmem:[%s306 + $0x68] sm:$0xff] %v8281
        %8719 = vst [vmem:[%s306 + $0x70] sm:$0xff] %v8477
        %8720 = vst [vmem:[%s306 + $0x78] sm:$0xff] %v8673
        %8721 = vst [vmem:[%s306 + $0x80] sm:$0xff] %v8088
        %8722 = vst [vmem:[%s306 + $0x88] sm:$0xff] %v8284
        %8723 = vst [vmem:[%s306 + $0x90] sm:$0xff] %v8480
        %8724 = vst [vmem:[%s306 + $0x98] sm:$0xff] %v8676
        %8725 = vst [vmem:[%s306 + $0xa0] sm:$0xff] %v8090
        %8726 = vst [vmem:[%s306 + $0xa8] sm:$0xff] %v8286
        %8727 = vst [vmem:[%s306 + $0xb0] sm:$0xff] %v8482
        %8728 = vst [vmem:[%s306 + $0xb8] sm:$0xff] %v8678
        %8729 = vst [vmem:[%s306 + $0xc0] sm:$0xff] %v8093
        %8730 = vst [vmem:[%s306 + $0xc8] sm:$0xff] %v8289
        %8731 = vst [vmem:[%s306 + $0xd0] sm:$0xff] %v8485
        %8732 = vst [vmem:[%s306 + $0xd8] sm:$0xff] %v8681
        %8733 = vst [vmem:[%s306 + $0xe0] sm:$0xff] %v8095
        %8734 = vst [vmem:[%s306 + $0xe8] sm:$0xff] %v8291
        %8735 = vst [vmem:[%s306 + $0xf0] sm:$0xff] %v8487
        %8736 = vst [vmem:[%s306 + $0xf8] sm:$0xff] %v8683
        %8737 = vst [vmem:[%s306 + $0x100] sm:$0xff] %v8098
        %8738 = vst [vmem:[%s306 + $0x108] sm:$0xff] %v8294
        %8739 = vst [vmem:[%s306 + $0x110] sm:$0xff] %v8490
        %8740 = vst [vmem:[%s306 + $0x118] sm:$0xff] %v8686
        %8741 = vst [vmem:[%s306 + $0x120] sm:$0xff] %v8100
        %8742 = vst [vmem:[%s306 + $0x128] sm:$0xff] %v8296
        %8743 = vst [vmem:[%s306 + $0x130] sm:$0xff] %v8492
        %8744 = vst [vmem:[%s306 + $0x138] sm:$0xff] %v8688
        %8745 = vst [vmem:[%s306 + $0x140] sm:$0xff] %v8103
        %8746 = vst [vmem:[%s306 + $0x148] sm:$0xff] %v8299
        %8747 = vst [vmem:[%s306 + $0x150] sm:$0xff] %v8495
        %8748 = vst [vmem:[%s306 + $0x158] sm:$0xff] %v8691
        %8749 = vst [vmem:[%s306 + $0x160] sm:$0xff] %v8105
        %8750 = vst [vmem:[%s306 + $0x168] sm:$0xff] %v8301
        %8751 = vst [vmem:[%s306 + $0x170] sm:$0xff] %v8497
        %8752 = vst [vmem:[%s306 + $0x178] sm:$0xff] %v8693
        %8753 = vst [vmem:[%s306 + $0x180] sm:$0xff] %v8108
        %8754 = vst [vmem:[%s306 + $0x188] sm:$0xff] %v8304
        %8755 = vst [vmem:[%s306 + $0x190] sm:$0xff] %v8500
        %8756 = vst [vmem:[%s306 + $0x198] sm:$0xff] %v8696
        %8757 = vst [vmem:[%s306 + $0x1a0] sm:$0xff] %v8110
        %8758 = vst [vmem:[%s306 + $0x1a8] sm:$0xff] %v8306
        %8759 = vst [vmem:[%s306 + $0x1b0] sm:$0xff] %v8502
        %8760 = vst [vmem:[%s306 + $0x1b8] sm:$0xff] %v8698
        %8761 = vst [vmem:[%s306 + $0x1c0] sm:$0xff] %v8113
        %8762 = vst [vmem:[%s306 + $0x1c8] sm:$0xff] %v8309
        %8763 = vst [vmem:[%s306 + $0x1d0] sm:$0xff] %v8505
        %8764 = vst [vmem:[%s306 + $0x1d8] sm:$0xff] %v8701
        %8765 = vst [vmem:[%s306 + $0x1e0] sm:$0xff] %v8115
        %8766 = vst [vmem:[%s306 + $0x1e8] sm:$0xff] %v8311
        %8767 = vst [vmem:[%s306 + $0x1f0] sm:$0xff] %v8507
        %8768 = vst [vmem:[%s306 + $0x1f8] sm:$0xff] %v8703
        %s8769 = sand.u32 %s142, 1
        %s8770 = scalar_lea.sflag [#allocation5], %s8769
        %s8771 = sand.u32 %s142, 1
        %s8772 = smul.addr %s8771, 512
        %s8773 = scalar_lea.vmem [#allocation12], %s8772
        // Predicated region
        $region61: #{tpu_custom_call.1} parent=39 // pred_check
          %p8774 = pneg %p152
        $region62: #{tpu_custom_call.1} parent=39 // pred_check_branch
          %8776 = sbr.rel (%p8774) target = $region64
        $region63: #{tpu_custom_call.1} parent=39 // pred_region
          %8778 = vsyncadd %s8770, 0
          %s8779 = smul.addr %s24, 64
          %s8780 = smul.addr %s8779, 8
          %s8781 = scalar_lea.hbm %s5, %s8780
          %s8782 = sshll.u32 %s8773, 4
          %s8783 = int_to_ptr.vmem [resolvable:$true] %s8782
          %s8784 = sshll.u32 %s8781, 4
          %s8785 = int_to_ptr.hbm [resolvable:$true] %s8784
          %8790 = dma.vmem_to_hbm [thread:$0]  %s8783, 8192, %s8785, %s8770, 512, 512, 32
        $region64: #{tpu_custom_call.1} parent=39 // pred_fallthru
          _
      $region40: #{tpu_custom_call.1} parent=5 // pred_fallthru
        _
      %p8791 = scmp.le.s32.totalorder 2, %s19
      // Predicated region
      $region65: #{tpu_custom_call.1} parent=5 // pred_check
        %p8792 = pneg %p8791
      $region66: #{tpu_custom_call.1} parent=5 // pred_check_branch
        %8794 = sbr.rel (%p8792) target = $region68
      $region67: #{tpu_custom_call.1} parent=5 // pred_region
        %s8795 = ssub.s32 %s19, 2
        // Predicated region
        $region69: #{tpu_custom_call.1} parent=67 // pred_check
          %p8796 = pneg %p158
        $region70: #{tpu_custom_call.1} parent=67 // pred_check_branch
          %8798 = sbr.rel (%p8796) target = $region72
        $region71: #{tpu_custom_call.1} parent=67 // pred_region
          %s8799 = sand.u32 %s143, 1
          %s8800 = scalar_lea.sflag [#allocation5], %s8799
          %s8801 = sand.u32 %s143, 1
          %s8802 = smul.addr %s8801, 512
          %s8803 = scalar_lea.vmem [#allocation12], %s8802
          %8805 = dma.done %s8800, 8192
        $region72: #{tpu_custom_call.1} parent=67 // pred_fallthru
          _
      $region68: #{tpu_custom_call.1} parent=5 // pred_fallthru
        _
    $region6: #{tpu_custom_call.1} parent=1 // loop_footer
      %s23 = sadd.s32 1, %s19
    $region7: #{tpu_custom_call.1} parent=1 // loop_footer_branch
      %18 = sbr.rel target = $region3
    $region8: #{tpu_custom_call.1} parent=1 // loop_exit
      _
    %8806 = vsyncpa [#allocation4], 1
    %s8807 = scalar_lea.sflag [#allocation4], 1
    %8808 = vsyncpa %s8807, 1
    %8809 = vsyncpa [#allocation7], 1
    %8810 = vsyncpa [#allocation10], 1
    %8811 = vsyncpa [#allocation5], 1
    %s8812 = scalar_lea.sflag [#allocation5], 1
    %8813 = vsyncpa %s8812, 1

</llo_original>
